<compile_context>
chip_gen: v7x
topology: tpu7x:2x2x1
jax: 0.10.0
libtpu: 0.0.40
codegen_flags: <defaults>
</compile_context>

<pallas_src>
import jax
import jax.numpy as jnp
from jax.experimental import pallas as pl
from jax.experimental.pallas import tpu as pltpu

LRELU_SLOPE = 0.2
BN_EPS = 1e-5


def _tpu_setup():
    """Generation-aware scoped-VMEM budget and preferred output-channel tile."""
    vmem_limit = 48 * 1024 * 1024          # safe fallback (headroom on v7x's 64 MiB)
    prefer_tn = 128
    try:
        kind = jax.devices()[0].device_kind.lower()
        # v6e MXU is 2x256x256 -> prefer 256-wide N tiles there.  Keep 128 on
        # v5e (4x128x128) and v7x (keeps a 2-step parallel N grid for 2 TCs).
        if "v6" in kind:
            prefer_tn = 256
    except Exception:
        pass
    try:
        phys = pltpu.get_tpu_info().vmem_capacity_bytes
        vmem_limit = int(min(100 * 1024 * 1024,
                             max(phys - 16 * 1024 * 1024, 32 * 1024 * 1024)))
    except Exception:
        pass
    return vmem_limit, prefer_tn


_VMEM_LIMIT_BYTES, _PREFER_TN = _tpu_setup()


def _pick_tn(n):
    if n % _PREFER_TN == 0:
        return _PREFER_TN
    if n % 128 == 0:
        return 128
    return n


def _compiler_params():
    return pltpu.CompilerParams(
        dimension_semantics=("parallel",),
        vmem_limit_bytes=_VMEM_LIMIT_BYTES,
    )


# ----------------------------------------------------------------------------
# In-kernel epilogue helpers (f32 math).
# ----------------------------------------------------------------------------
def _batchnorm(y, gamma, beta):
    # Training-mode batch statistics over the row axis (= N*H*W), exact because
    # the grid tiles only output channels so every tile sees all rows.
    m_rows = jnp.float32(y.shape[0])
    mean = jnp.sum(y, axis=0, keepdims=True) / m_rows
    d = y - mean
    var = jnp.sum(d * d, axis=0, keepdims=True) / m_rows   # two-pass, biased (BN training)
    return d * jax.lax.rsqrt(var + BN_EPS) * gamma + beta


def _lrelu(y):
    return jnp.where(y >= 0, y, LRELU_SLOPE * y)


# ----------------------------------------------------------------------------
# Kernel A: stride-2 conv (im2col patches) + BN + LeakyReLU
# ----------------------------------------------------------------------------
def _patches_bn_lrelu_kernel(p_ref, w_ref, g_ref, b_ref, o_ref):
    y = jnp.dot(p_ref[...], w_ref[...], preferred_element_type=jnp.float32)
    y = _lrelu(_batchnorm(y, g_ref[...], b_ref[...]))
    o_ref[...] = y.astype(o_ref.dtype)


def conv_s2_bn_lrelu(patches, w_mat, gamma, beta):
    m, k = patches.shape
    n = w_mat.shape[1]
    tn = _pick_tn(n)
    return pl.pallas_call(
        _patches_bn_lrelu_kernel,
        out_shape=jax.ShapeDtypeStruct((m, n), jnp.bfloat16),
        grid=(n // tn,),
        in_specs=[
            # Activation patches are grid-invariant -> single-buffered.
            pl.BlockSpec((m, k), lambda j: (0, 0), pipeline_mode=pl.Buffered(1)),
            pl.BlockSpec((k, tn), lambda j: (0, j)),
            pl.BlockSpec((1, tn), lambda j: (0, j)),
            pl.BlockSpec((1, tn), lambda j: (0, j)),
        ],
        out_specs=pl.BlockSpec((m, tn), lambda j: (0, j)),
        compiler_params=_compiler_params(),
    )(patches.astype(jnp.bfloat16), w_mat, gamma, beta)


# ----------------------------------------------------------------------------
# Kernel B: stride-1 3x3 conv with IN-KERNEL patch taps + BN + residual + LReLU
# ----------------------------------------------------------------------------
def _make_conv_s1_res_kernel(b, ho, wo, c):
    m = b * ho * wo

    def kernel(x_ref, w_ref, g_ref, be_ref, rp_ref, wr_ref, o_ref):
        tn = o_ref.shape[1]
        acc = jnp.zeros((m, tn), jnp.float32)
        # 3x3/stride-1 conv as 9 accumulating MXU taps over the padded NHWC
        # activation block (no im2col tensor in HBM).
        for kh in range(3):
            for kw in range(3):
                tap = x_ref[:, kh:kh + ho, kw:kw + wo, :].reshape(m, c)
                acc = acc + jnp.dot(tap, w_ref[kh * 3 + kw],
                                    preferred_element_type=jnp.float32)
        y = _batchnorm(acc, g_ref[...], be_ref[...])
        # Residual 1x1 conv on the AvgPool'd block input, fused on the MXU.
        y = y + jnp.dot(rp_ref[...], wr_ref[...], preferred_element_type=jnp.float32)
        o_ref[...] = _lrelu(y).astype(o_ref.dtype)

    return kernel


def conv_s1_bn_res_lrelu(x_nhwc, w_taps, gamma, beta, rpat, wres):
    b, ho, wo, c = x_nhwc.shape
    n = w_taps.shape[-1]
    cres = rpat.shape[-1]
    tn = _pick_tn(n)
    m = b * ho * wo
    xp = jnp.pad(x_nhwc, ((0, 0), (1, 1), (1, 1), (0, 0)))
    return pl.pallas_call(
        _make_conv_s1_res_kernel(b, ho, wo, c),
        out_shape=jax.ShapeDtypeStruct((m, n), jnp.bfloat16),
        grid=(n // tn,),
        in_specs=[
            pl.BlockSpec((b, ho + 2, wo + 2, c), lambda j: (0, 0, 0, 0),
                         pipeline_mode=pl.Buffered(1)),
            pl.BlockSpec((9, c, tn), lambda j: (0, 0, j)),
            pl.BlockSpec((1, tn), lambda j: (0, j)),
            pl.BlockSpec((1, tn), lambda j: (0, j)),
            pl.BlockSpec((m, cres), lambda j: (0, 0), pipeline_mode=pl.Buffered(1)),
            pl.BlockSpec((cres, tn), lambda j: (0, j)),
        ],
        out_specs=pl.BlockSpec((m, tn), lambda j: (0, j)),
        compiler_params=_compiler_params(),
    )(xp.astype(jnp.bfloat16), w_taps, gamma, beta,
      rpat.astype(jnp.bfloat16), wres)


# ----------------------------------------------------------------------------
# Plain-JAX glue
# ----------------------------------------------------------------------------
def im2col(x_nhwc, k, stride, pad):
    """(B,H,W,C) -> patches (B*Ho*Wo, k*k*C) in (kh, kw, ci) column order."""
    b, h, w, c = x_nhwc.shape
    xp = jnp.pad(x_nhwc, ((0, 0), (pad, pad), (pad, pad), (0, 0)))
    ho = (h + 2 * pad - k) // stride + 1
    wo = (w + 2 * pad - k) // stride + 1
    cols = []
    for kh in range(k):
        for kw in range(k):
            cols.append(xp[:, kh:kh + stride * (ho - 1) + 1:stride,
                            kw:kw + stride * (wo - 1) + 1:stride, :])
    patches = jnp.concatenate(cols, axis=-1)
    return patches.reshape(b * ho * wo, k * k * c), ho, wo


def avg_pool_2x2(x_nhwc):
    b, h, w, c = x_nhwc.shape
    return x_nhwc.astype(jnp.float32).reshape(b, h // 2, 2, w // 2, 2, c).mean(axis=(2, 4))


def conv_weight_to_mat(w_oihw):
    """PyTorch (Cout,Cin,kh,kw) -> (kh*kw*Cin, Cout), matching im2col order."""
    cout, cin, kh, kw = w_oihw.shape
    return jnp.transpose(w_oihw, (2, 3, 1, 0)).reshape(kh * kw * cin, cout)


def conv_weight_to_taps(w_oihw):
    """PyTorch (Cout,Cin,3,3) -> (9, Cin, Cout), tap index = kh*3+kw."""
    cout, cin, kh, kw = w_oihw.shape
    return jnp.transpose(w_oihw, (2, 3, 1, 0)).reshape(kh * kw, cin, cout)


# ----------------------------------------------------------------------------
# Parameters (deterministic synthetic init; matmul weights stored bf16 once)
# ----------------------------------------------------------------------------
def init_params(key):
    keys = jax.random.split(key, 16)

    def rand_w(k, cout, cin, ksz):
        return jax.random.normal(k, (cout, cin, ksz, ksz), jnp.float32) * 0.05

    def bn(n):  # PyTorch BatchNorm2d default init: weight=1, bias=0
        return jnp.ones((1, n), jnp.float32), jnp.zeros((1, n), jnp.float32)

    p = {}
    # stem: Conv2d(3, 64, 3, s2, p1, bias=False) + BN + LReLU.
    # Output channels zero-padded 64 -> 128 for lane-dense stores.
    stem = conv_weight_to_mat(rand_w(keys[0], 64, 3, 3))            # (27, 64)
    p["stem_w"] = jnp.pad(stem, ((0, 0), (0, 64))).astype(jnp.bfloat16)
    g, b = bn(64)
    p["stem_g"] = jnp.pad(g, ((0, 0), (0, 64)), constant_values=1.0)
    p["stem_b"] = jnp.pad(b, ((0, 0), (0, 64)))

    def block(kidx, in_c, out_c):
        bp = {}
        bp["w1"] = conv_weight_to_mat(rand_w(keys[kidx], out_c, in_c, 3)).astype(jnp.bfloat16)
        bp["g1"], bp["be1"] = bn(out_c)
        bp["w2"] = conv_weight_to_taps(rand_w(keys[kidx + 1], out_c, out_c, 3)).astype(jnp.bfloat16)
        bp["g2"], bp["be2"] = bn(out_c)
        bp["wres"] = conv_weight_to_mat(rand_w(keys[kidx + 2], out_c, in_c, 1)).astype(jnp.bfloat16)
        return bp

    p["b1"] = block(1, 64, 128)
    p["b2"] = block(4, 128, 256)
    # final Conv2d(256, 1, 3, s2, p1, bias=True)  (plain-jnp conv+pool GEMV, f32)
    p["final_w"] = conv_weight_to_mat(rand_w(keys[7], 1, 256, 3))   # (2304, 1)
    p["final_b"] = jax.random.normal(keys[8], (1, 1), jnp.float32) * 0.05
    return p


# ----------------------------------------------------------------------------
# Forward pass
# ----------------------------------------------------------------------------
def res_down_block(x_nhwc, bp):
    b, h, w, cin = x_nhwc.shape
    cout = bp["w1"].shape[1]
    # main conv1: Conv(3x3, s2, no bias) + BN + LReLU    (one fused kernel)
    pat, ho, wo = im2col(x_nhwc, 3, 2, 1)
    h1 = conv_s2_bn_lrelu(pat, bp["w1"], bp["g1"], bp["be1"]).reshape(b, ho, wo, cout)
    # residual operands: AvgPool2d(2); its 1x1 conv is fused into the next kernel
    rpat = avg_pool_2x2(x_nhwc).reshape(b * ho * wo, cin)
    # main conv2: Conv(3x3, s1, no bias) + BN, + residual, + LReLU (one fused kernel,
    # patches built in-kernel)
    out = conv_s1_bn_res_lrelu(h1, bp["w2"], bp["g2"], bp["be2"], rpat, bp["wres"])
    return out.reshape(b, ho, wo, cout)


@jax.jit
def discriminator_v2(x_nchw, params):
    b = x_nchw.shape[0]
    x = jnp.transpose(x_nchw, (0, 2, 3, 1)).astype(jnp.float32)     # -> NHWC
    # stem (channels padded to 128 inside the kernel; slice back to 64)
    pat, ho, wo = im2col(x, 3, 2, 1)
    y = conv_s2_bn_lrelu(pat, params["stem_w"], params["stem_g"], params["stem_b"])
    x = y.reshape(b, ho, wo, 128)[..., :64]
    # two residual downsample blocks
    x = res_down_block(x, params["b1"])
    x = res_down_block(x, params["b2"])
    # final Conv2d(256->1, s2, p1, bias) + AdaptiveAvgPool2d(1): pool the patch
    # rows first (linearity), then a tiny plain-jnp GEMV + bias.
    pat, ho, wo = im2col(x, 3, 2, 1)
    pooled = pat.reshape(b, ho * wo, -1).astype(jnp.float32).mean(axis=1)
    out = pooled @ params["final_w"] + params["final_b"]
    return out  # == model(x).squeeze(2, 3) -> (B, 1)
    # NOTE: BatchNorm running statistics are intentionally not tracked
    # (training-mode forward output only), matching what forward() returns.


if __name__ == "__main__":
    key = jax.random.PRNGKey(0)
    kx, kp = jax.random.split(key)
    # NCHW input consistent with the module: 3 channels, 16x16 spatial
    x = jax.random.normal(kx, (2, 3, 16, 16), jnp.float32)
    params = init_params(kp)
    out = discriminator_v2(x, params)
    jax.block_until_ready(out)
    assert out.shape == (2, 1), out.shape
    assert bool(jnp.all(jnp.isfinite(out)))
    print("KERNEL_OK")
</pallas_src>

<mosaic_0001>
module attributes {stable_mosaic.version = 11 : i64} {
  func.func @_patches_bn_lrelu_kernel(%arg0: i32, %arg1: memref<128x27xbf16, #tpu.memory_space<vmem>>, %arg2: memref<27x128xbf16, #tpu.memory_space<vmem>>, %arg3: memref<1x128xf32, #tpu.memory_space<vmem>>, %arg4: memref<1x128xf32, #tpu.memory_space<vmem>>, %arg5: memref<128x128xbf16, #tpu.memory_space<vmem>>) attributes {dimension_semantics = [#tpu.dimension_semantics<parallel>], iteration_bounds = array<i64: 1>, scalar_prefetch = 0 : i64, scratch_operands = 0 : i64, tpu.core_type = #tpu.core_type<tc>, window_params = [{pipeline_mode = #tpu.pipeline_mode<synchronous>, transform_indices = @transform_0, window_bounds = array<i64: 128, 27>}, {transform_indices = @transform_1, window_bounds = array<i64: 27, 128>}, {transform_indices = @transform_2, window_bounds = array<i64: 1, 128>}, {transform_indices = @transform_3, window_bounds = array<i64: 1, 128>}, {transform_indices = @transform_4, window_bounds = array<i64: 128, 128>}]} {
    %c0 = arith.constant 0 : index
    %c0_0 = arith.constant 0 : index
    %0 = vector.load %arg1[%c0, %c0_0] : memref<128x27xbf16, #tpu.memory_space<vmem>>, vector<128x27xbf16>
    %c0_1 = arith.constant 0 : index
    %c0_2 = arith.constant 0 : index
    %1 = vector.load %arg2[%c0_1, %c0_2] : memref<27x128xbf16, #tpu.memory_space<vmem>>, vector<27x128xbf16>
    %cst = arith.constant dense<0.000000e+00> : vector<128x128xf32>
    %2 = tpu.matmul %0, %1, %cst {dimension_numbers = #tpu.dot_dimension_numbers<[1], [0], [0], [1], [0, 0, 1, 1], [], []>} : vector<128x27xbf16>, vector<27x128xbf16>, vector<128x128xf32> -> vector<128x128xf32>
    %c0_3 = arith.constant 0 : index
    %c0_4 = arith.constant 0 : index
    %3 = vector.load %arg3[%c0_3, %c0_4] : memref<1x128xf32, #tpu.memory_space<vmem>>, vector<1x128xf32>
    %c0_5 = arith.constant 0 : index
    %c0_6 = arith.constant 0 : index
    %4 = vector.load %arg4[%c0_5, %c0_6] : memref<1x128xf32, #tpu.memory_space<vmem>>, vector<1x128xf32>
    %cst_7 = arith.constant dense<0.000000e+00> : vector<128xf32>
    %5 = vector.multi_reduction <add>, %2, %cst_7 [0] : vector<128x128xf32> to vector<128xf32>
    %6 = vector.shape_cast %5 : vector<128xf32> to vector<1x128xf32>
    %cst_8 = arith.constant 1.280000e+02 : f32
    %7 = vector.broadcast %cst_8 : f32 to vector<1x128xf32>
    %8 = arith.divf %6, %7 : vector<1x128xf32>
    %9 = vector.broadcast %8 : vector<1x128xf32> to vector<128x128xf32>
    %10 = arith.subf %2, %9 : vector<128x128xf32>
    %11 = arith.mulf %10, %10 : vector<128x128xf32>
    %cst_9 = arith.constant dense<0.000000e+00> : vector<128xf32>
    %12 = vector.multi_reduction <add>, %11, %cst_9 [0] : vector<128x128xf32> to vector<128xf32>
    %13 = vector.shape_cast %12 : vector<128xf32> to vector<1x128xf32>
    %cst_10 = arith.constant 1.280000e+02 : f32
    %14 = vector.broadcast %cst_10 : f32 to vector<1x128xf32>
    %15 = arith.divf %13, %14 : vector<1x128xf32>
    %cst_11 = arith.constant 9.99999974E-6 : f32
    %16 = vector.broadcast %cst_11 : f32 to vector<1x128xf32>
    %17 = arith.addf %15, %16 : vector<1x128xf32>
    %18 = math.rsqrt %17 : vector<1x128xf32>
    %19 = vector.broadcast %18 : vector<1x128xf32> to vector<128x128xf32>
    %20 = arith.mulf %10, %19 : vector<128x128xf32>
    %21 = vector.broadcast %3 : vector<1x128xf32> to vector<128x128xf32>
    %22 = arith.mulf %20, %21 : vector<128x128xf32>
    %23 = vector.broadcast %4 : vector<1x128xf32> to vector<128x128xf32>
    %24 = arith.addf %22, %23 : vector<128x128xf32>
    %cst_12 = arith.constant 0.000000e+00 : f32
    %25 = vector.broadcast %cst_12 : f32 to vector<128x128xf32>
    %26 = arith.cmpf oge, %24, %25 : vector<128x128xf32>
    %cst_13 = arith.constant 2.000000e-01 : f32
    %27 = vector.broadcast %cst_13 : f32 to vector<128x128xf32>
    %28 = arith.mulf %27, %24 : vector<128x128xf32>
    %29 = arith.select %26, %24, %28 : vector<128x128xi1>, vector<128x128xf32>
    %30 = arith.truncf %29 : vector<128x128xf32> to vector<128x128xbf16>
    %c0_14 = arith.constant 0 : index
    %c0_15 = arith.constant 0 : index
    %31 = vector.load %arg5[%c0_14, %c0_15] : memref<128x128xbf16, #tpu.memory_space<vmem>>, vector<128x128xbf16>
    tpu.vector_store %arg5[%c0_14, %c0_15], %30 {strides = array<i32>} : memref<128x128xbf16, #tpu.memory_space<vmem>>, vector<128x128xbf16>,
    return
  }
  func.func @transform_0(%arg0: i32) -> (i32, i32) {
    %c0_i32 = arith.constant 0 : i32
    %c0_i32_0 = arith.constant 0 : i32
    %c0_i32_1 = arith.constant 0 : i32
    return %c0_i32, %c0_i32_0 : i32, i32
  }
  func.func @transform_1(%arg0: i32) -> (i32, i32) {
    %c0_i32 = arith.constant 0 : i32
    %c0_i32_0 = arith.constant 0 : i32
    return %c0_i32, %arg0 : i32, i32
  }
  func.func @transform_2(%arg0: i32) -> (i32, i32) {
    %c0_i32 = arith.constant 0 : i32
    %c0_i32_0 = arith.constant 0 : i32
    return %c0_i32, %arg0 : i32, i32
  }
  func.func @transform_3(%arg0: i32) -> (i32, i32) {
    %c0_i32 = arith.constant 0 : i32
    %c0_i32_0 = arith.constant 0 : i32
    return %c0_i32, %arg0 : i32, i32
  }
  func.func @transform_4(%arg0: i32) -> (i32, i32) {
    %c0_i32 = arith.constant 0 : i32
    %c0_i32_0 = arith.constant 0 : i32
    return %c0_i32, %arg0 : i32, i32
  }
}

module attributes {stable_mosaic.version = 11 : i64} {
  func.func @_patches_bn_lrelu_kernel(%arg0: i32, %arg1: memref<32x576xbf16, #tpu.memory_space<vmem>>, %arg2: memref<576x128xbf16, #tpu.memory_space<vmem>>, %arg3: memref<1x128xf32, #tpu.memory_space<vmem>>, %arg4: memref<1x128xf32, #tpu.memory_space<vmem>>, %arg5: memref<32x128xbf16, #tpu.memory_space<vmem>>) attributes {dimension_semantics = [#tpu.dimension_semantics<parallel>], iteration_bounds = array<i64: 1>, scalar_prefetch = 0 : i64, scratch_operands = 0 : i64, tpu.core_type = #tpu.core_type<tc>, window_params = [{pipeline_mode = #tpu.pipeline_mode<synchronous>, transform_indices = @transform_0, window_bounds = array<i64: 32, 576>}, {transform_indices = @transform_1, window_bounds = array<i64: 576, 128>}, {transform_indices = @transform_2, window_bounds = array<i64: 1, 128>}, {transform_indices = @transform_3, window_bounds = array<i64: 1, 128>}, {transform_indices = @transform_4, window_bounds = array<i64: 32, 128>}]} {
    %c0 = arith.constant 0 : index
    %c0_0 = arith.constant 0 : index
    %0 = vector.load %arg1[%c0, %c0_0] : memref<32x576xbf16, #tpu.memory_space<vmem>>, vector<32x576xbf16>
    %c0_1 = arith.constant 0 : index
    %c0_2 = arith.constant 0 : index
    %1 = vector.load %arg2[%c0_1, %c0_2] : memref<576x128xbf16, #tpu.memory_space<vmem>>, vector<576x128xbf16>
    %cst = arith.constant dense<0.000000e+00> : vector<32x128xf32>
    %2 = tpu.matmul %0, %1, %cst {dimension_numbers = #tpu.dot_dimension_numbers<[1], [0], [0], [1], [0, 0, 1, 1], [], []>} : vector<32x576xbf16>, vector<576x128xbf16>, vector<32x128xf32> -> vector<32x128xf32>
    %c0_3 = arith.constant 0 : index
    %c0_4 = arith.constant 0 : index
    %3 = vector.load %arg3[%c0_3, %c0_4] : memref<1x128xf32, #tpu.memory_space<vmem>>, vector<1x128xf32>
    %c0_5 = arith.constant 0 : index
    %c0_6 = arith.constant 0 : index
    %4 = vector.load %arg4[%c0_5, %c0_6] : memref<1x128xf32, #tpu.memory_space<vmem>>, vector<1x128xf32>
    %cst_7 = arith.constant dense<0.000000e+00> : vector<128xf32>
    %5 = vector.multi_reduction <add>, %2, %cst_7 [0] : vector<32x128xf32> to vector<128xf32>
    %6 = vector.shape_cast %5 : vector<128xf32> to vector<1x128xf32>
    %cst_8 = arith.constant 3.200000e+01 : f32
    %7 = vector.broadcast %cst_8 : f32 to vector<1x128xf32>
    %8 = arith.divf %6, %7 : vector<1x128xf32>
    %9 = vector.broadcast %8 : vector<1x128xf32> to vector<32x128xf32>
    %10 = arith.subf %2, %9 : vector<32x128xf32>
    %11 = arith.mulf %10, %10 : vector<32x128xf32>
    %cst_9 = arith.constant dense<0.000000e+00> : vector<128xf32>
    %12 = vector.multi_reduction <add>, %11, %cst_9 [0] : vector<32x128xf32> to vector<128xf32>
    %13 = vector.shape_cast %12 : vector<128xf32> to vector<1x128xf32>
    %cst_10 = arith.constant 3.200000e+01 : f32
    %14 = vector.broadcast %cst_10 : f32 to vector<1x128xf32>
    %15 = arith.divf %13, %14 : vector<1x128xf32>
    %cst_11 = arith.constant 9.99999974E-6 : f32
    %16 = vector.broadcast %cst_11 : f32 to vector<1x128xf32>
    %17 = arith.addf %15, %16 : vector<1x128xf32>
    %18 = math.rsqrt %17 : vector<1x128xf32>
    %19 = vector.broadcast %18 : vector<1x128xf32> to vector<32x128xf32>
    %20 = arith.mulf %10, %19 : vector<32x128xf32>
    %21 = vector.broadcast %3 : vector<1x128xf32> to vector<32x128xf32>
    %22 = arith.mulf %20, %21 : vector<32x128xf32>
    %23 = vector.broadcast %4 : vector<1x128xf32> to vector<32x128xf32>
    %24 = arith.addf %22, %23 : vector<32x128xf32>
    %cst_12 = arith.constant 0.000000e+00 : f32
    %25 = vector.broadcast %cst_12 : f32 to vector<32x128xf32>
    %26 = arith.cmpf oge, %24, %25 : vector<32x128xf32>
    %cst_13 = arith.constant 2.000000e-01 : f32
    %27 = vector.broadcast %cst_13 : f32 to vector<32x128xf32>
    %28 = arith.mulf %27, %24 : vector<32x128xf32>
    %29 = arith.select %26, %24, %28 : vector<32x128xi1>, vector<32x128xf32>
    %30 = arith.truncf %29 : vector<32x128xf32> to vector<32x128xbf16>
    %c0_14 = arith.constant 0 : index
    %c0_15 = arith.constant 0 : index
    %31 = vector.load %arg5[%c0_14, %c0_15] : memref<32x128xbf16, #tpu.memory_space<vmem>>, vector<32x128xbf16>
    tpu.vector_store %arg5[%c0_14, %c0_15], %30 {strides = array<i32>} : memref<32x128xbf16, #tpu.memory_space<vmem>>, vector<32x128xbf16>,
    return
  }
  func.func @transform_0(%arg0: i32) -> (i32, i32) {
    %c0_i32 = arith.constant 0 : i32
    %c0_i32_0 = arith.constant 0 : i32
    %c0_i32_1 = arith.constant 0 : i32
    return %c0_i32, %c0_i32_0 : i32, i32
  }
  func.func @transform_1(%arg0: i32) -> (i32, i32) {
    %c0_i32 = arith.constant 0 : i32
    %c0_i32_0 = arith.constant 0 : i32
    return %c0_i32, %arg0 : i32, i32
  }
  func.func @transform_2(%arg0: i32) -> (i32, i32) {
    %c0_i32 = arith.constant 0 : i32
    %c0_i32_0 = arith.constant 0 : i32
    return %c0_i32, %arg0 : i32, i32
  }
  func.func @transform_3(%arg0: i32) -> (i32, i32) {
    %c0_i32 = arith.constant 0 : i32
    %c0_i32_0 = arith.constant 0 : i32
    return %c0_i32, %arg0 : i32, i32
  }
  func.func @transform_4(%arg0: i32) -> (i32, i32) {
    %c0_i32 = arith.constant 0 : i32
    %c0_i32_0 = arith.constant 0 : i32
    return %c0_i32, %arg0 : i32, i32
  }
}

module attributes {stable_mosaic.version = 11 : i64} {
  func.func @kernel(%arg0: i32, %arg1: memref<2x6x6x128xbf16, #tpu.memory_space<vmem>>, %arg2: memref<9x128x128xbf16, #tpu.memory_space<vmem>>, %arg3: memref<1x128xf32, #tpu.memory_space<vmem>>, %arg4: memref<1x128xf32, #tpu.memory_space<vmem>>, %arg5: memref<32x64xbf16, #tpu.memory_space<vmem>>, %arg6: memref<64x128xbf16, #tpu.memory_space<vmem>>, %arg7: memref<32x128xbf16, #tpu.memory_space<vmem>>) attributes {dimension_semantics = [#tpu.dimension_semantics<parallel>], iteration_bounds = array<i64: 1>, scalar_prefetch = 0 : i64, scratch_operands = 0 : i64, tpu.core_type = #tpu.core_type<tc>, window_params = [{pipeline_mode = #tpu.pipeline_mode<synchronous>, transform_indices = @transform_0, window_bounds = array<i64: 2, 6, 6, 128>}, {transform_indices = @transform_1, window_bounds = array<i64: 9, 128, 128>}, {transform_indices = @transform_2, window_bounds = array<i64: 1, 128>}, {transform_indices = @transform_3, window_bounds = array<i64: 1, 128>}, {pipeline_mode = #tpu.pipeline_mode<synchronous>, transform_indices = @transform_4, window_bounds = array<i64: 32, 64>}, {transform_indices = @transform_5, window_bounds = array<i64: 64, 128>}, {transform_indices = @transform_6, window_bounds = array<i64: 32, 128>}]} {
    %cst = arith.constant 0.000000e+00 : f32
    %0 = vector.broadcast %cst : f32 to vector<32x128xf32>
    %c0 = arith.constant 0 : index
    %c0_0 = arith.constant 0 : index
    %c0_1 = arith.constant 0 : index
    %c0_2 = arith.constant 0 : index
    %1 = vector.load %arg1[%c0, %c0_0, %c0_1, %c0_2] : memref<2x6x6x128xbf16, #tpu.memory_space<vmem>>, vector<2x4x4x128xbf16>
    %2 = vector.shape_cast %1 : vector<2x4x4x128xbf16> to vector<32x128xbf16>
    %c0_3 = arith.constant 0 : index
    %c0_4 = arith.constant 0 : index
    %c0_5 = arith.constant 0 : index
    %3 = vector.load %arg2[%c0_3, %c0_4, %c0_5] : memref<9x128x128xbf16, #tpu.memory_space<vmem>>, vector<1x128x128xbf16>
    %4 = vector.shape_cast %3 : vector<1x128x128xbf16> to vector<128x128xbf16>
    %cst_6 = arith.constant dense<0.000000e+00> : vector<32x128xf32>
    %5 = tpu.matmul %2, %4, %cst_6 {dimension_numbers = #tpu.dot_dimension_numbers<[1], [0], [0], [1], [0, 0, 1, 1], [], []>} : vector<32x128xbf16>, vector<128x128xbf16>, vector<32x128xf32> -> vector<32x128xf32>
    %6 = arith.addf %0, %5 : vector<32x128xf32>
    %c0_7 = arith.constant 0 : index
    %c0_8 = arith.constant 0 : index
    %c1 = arith.constant 1 : index
    %c0_9 = arith.constant 0 : index
    %7 = vector.load %arg1[%c0_7, %c0_8, %c1, %c0_9] : memref<2x6x6x128xbf16, #tpu.memory_space<vmem>>, vector<2x4x4x128xbf16>
    %8 = vector.shape_cast %7 : vector<2x4x4x128xbf16> to vector<32x128xbf16>
    %c1_10 = arith.constant 1 : index
    %c0_11 = arith.constant 0 : index
    %c0_12 = arith.constant 0 : index
    %9 = vector.load %arg2[%c1_10, %c0_11, %c0_12] : memref<9x128x128xbf16, #tpu.memory_space<vmem>>, vector<1x128x128xbf16>
    %10 = vector.shape_cast %9 : vector<1x128x128xbf16> to vector<128x128xbf16>
    %cst_13 = arith.constant dense<0.000000e+00> : vector<32x128xf32>
    %11 = tpu.matmul %8, %10, %cst_13 {dimension_numbers = #tpu.dot_dimension_numbers<[1], [0], [0], [1], [0, 0, 1, 1], [], []>} : vector<32x128xbf16>, vector<128x128xbf16>, vector<32x128xf32> -> vector<32x128xf32>
    %12 = arith.addf %6, %11 : vector<32x128xf32>
    %c0_14 = arith.constant 0 : index
    %c0_15 = arith.constant 0 : index
    %c2 = arith.constant 2 : index
    %c0_16 = arith.constant 0 : index
    %13 = vector.load %arg1[%c0_14, %c0_15, %c2, %c0_16] : memref<2x6x6x128xbf16, #tpu.memory_space<vmem>>, vector<2x4x4x128xbf16>
    %14 = vector.shape_cast %13 : vector<2x4x4x128xbf16> to vector<32x128xbf16>
    %c2_17 = arith.constant 2 : index
    %c0_18 = arith.constant 0 : index
    %c0_19 = arith.constant 0 : index
    %15 = vector.load %arg2[%c2_17, %c0_18, %c0_19] : memref<9x128x128xbf16, #tpu.memory_space<vmem>>, vector<1x128x128xbf16>
    %16 = vector.shape_cast %15 : vector<1x128x128xbf16> to vector<128x128xbf16>
    %cst_20 = arith.constant dense<0.000000e+00> : vector<32x128xf32>
    %17 = tpu.matmul %14, %16, %cst_20 {dimension_numbers = #tpu.dot_dimension_numbers<[1], [0], [0], [1], [0, 0, 1, 1], [], []>} : vector<32x128xbf16>, vector<128x128xbf16>, vector<32x128xf32> -> vector<32x128xf32>
    %18 = arith.addf %12, %17 : vector<32x128xf32>
    %c0_21 = arith.constant 0 : index
    %c1_22 = arith.constant 1 : index
    %c0_23 = arith.constant 0 : index
    %c0_24 = arith.constant 0 : index
    %19 = vector.load %arg1[%c0_21, %c1_22, %c0_23, %c0_24] : memref<2x6x6x128xbf16, #tpu.memory_space<vmem>>, vector<2x4x4x128xbf16>
    %20 = vector.shape_cast %19 : vector<2x4x4x128xbf16> to vector<32x128xbf16>
    %c3 = arith.constant 3 : index
    %c0_25 = arith.constant 0 : index
    %c0_26 = arith.constant 0 : index
    %21 = vector.load %arg2[%c3, %c0_25, %c0_26] : memref<9x128x128xbf16, #tpu.memory_space<vmem>>, vector<1x128x128xbf16>
    %22 = vector.shape_cast %21 : vector<1x128x128xbf16> to vector<128x128xbf16>
    %cst_27 = arith.constant dense<0.000000e+00> : vector<32x128xf32>
    %23 = tpu.matmul %20, %22, %cst_27 {dimension_numbers = #tpu.dot_dimension_numbers<[1], [0], [0], [1], [0, 0, 1, 1], [], []>} : vector<32x128xbf16>, vector<128x128xbf16>, vector<32x128xf32> -> vector<32x128xf32>
    %24 = arith.addf %18, %23 : vector<32x128xf32>
    %c0_28 = arith.constant 0 : index
    %c1_29 = arith.constant 1 : index
    %c1_30 = arith.constant 1 : index
    %c0_31 = arith.constant 0 : index
    %25 = vector.load %arg1[%c0_28, %c1_29, %c1_30, %c0_31] : memref<2x6x6x128xbf16, #tpu.memory_space<vmem>>, vector<2x4x4x128xbf16>
    %26 = vector.shape_cast %25 : vector<2x4x4x128xbf16> to vector<32x128xbf16>
    %c4 = arith.constant 4 : index
    %c0_32 = arith.constant 0 : index
    %c0_33 = arith.constant 0 : index
    %27 = vector.load %arg2[%c4, %c0_32, %c0_33] : memref<9x128x128xbf16, #tpu.memory_space<vmem>>, vector<1x128x128xbf16>
    %28 = vector.shape_cast %27 : vector<1x128x128xbf16> to vector<128x128xbf16>
    %cst_34 = arith.constant dense<0.000000e+00> : vector<32x128xf32>
    %29 = tpu.matmul %26, %28, %cst_34 {dimension_numbers = #tpu.dot_dimension_numbers<[1], [0], [0], [1], [0, 0, 1, 1], [], []>} : vector<32x128xbf16>, vector<128x128xbf16>, vector<32x128xf32> -> vector<32x128xf32>
    %30 = arith.addf %24, %29 : vector<32x128xf32>
    %c0_35 = arith.constant 0 : index
    %c1_36 = arith.constant 1 : index
    %c2_37 = arith.constant 2 : index
    %c0_38 = arith.constant 0 : index
    %31 = vector.load %arg1[%c0_35, %c1_36, %c2_37, %c0_38] : memref<2x6x6x128xbf16, #tpu.memory_space<vmem>>, vector<2x4x4x128xbf16>
    %32 = vector.shape_cast %31 : vector<2x4x4x128xbf16> to vector<32x128xbf16>
    %c5 = arith.constant 5 : index
    %c0_39 = arith.constant 0 : index
    %c0_40 = arith.constant 0 : index
    %33 = vector.load %arg2[%c5, %c0_39, %c0_40] : memref<9x128x128xbf16, #tpu.memory_space<vmem>>, vector<1x128x128xbf16>
    %34 = vector.shape_cast %33 : vector<1x128x128xbf16> to vector<128x128xbf16>
    %cst_41 = arith.constant dense<0.000000e+00> : vector<32x128xf32>
    %35 = tpu.matmul %32, %34, %cst_41 {dimension_numbers = #tpu.dot_dimension_numbers<[1], [0], [0], [1], [0, 0, 1, 1], [], []>} : vector<32x128xbf16>, vector<128x128xbf16>, vector<32x128xf32> -> vector<32x128xf32>
    %36 = arith.addf %30, %35 : vector<32x128xf32>
    %c0_42 = arith.constant 0 : index
    %c2_43 = arith.constant 2 : index
    %c0_44 = arith.constant 0 : index
    %c0_45 = arith.constant 0 : index
    %37 = vector.load %arg1[%c0_42, %c2_43, %c0_44, %c0_45] : memref<2x6x6x128xbf16, #tpu.memory_space<vmem>>, vector<2x4x4x128xbf16>
    %38 = vector.shape_cast %37 : vector<2x4x4x128xbf16> to vector<32x128xbf16>
    %c6 = arith.constant 6 : index
    %c0_46 = arith.constant 0 : index
    %c0_47 = arith.constant 0 : index
    %39 = vector.load %arg2[%c6, %c0_46, %c0_47] : memref<9x128x128xbf16, #tpu.memory_space<vmem>>, vector<1x128x128xbf16>
    %40 = vector.shape_cast %39 : vector<1x128x128xbf16> to vector<128x128xbf16>
    %cst_48 = arith.constant dense<0.000000e+00> : vector<32x128xf32>
    %41 = tpu.matmul %38, %40, %cst_48 {dimension_numbers = #tpu.dot_dimension_numbers<[1], [0], [0], [1], [0, 0, 1, 1], [], []>} : vector<32x128xbf16>, vector<128x128xbf16>, vector<32x128xf32> -> vector<32x128xf32>
    %42 = arith.addf %36, %41 : vector<32x128xf32>
    %c0_49 = arith.constant 0 : index
    %c2_50 = arith.constant 2 : index
    %c1_51 = arith.constant 1 : index
    %c0_52 = arith.constant 0 : index
    %43 = vector.load %arg1[%c0_49, %c2_50, %c1_51, %c0_52] : memref<2x6x6x128xbf16, #tpu.memory_space<vmem>>, vector<2x4x4x128xbf16>
    %44 = vector.shape_cast %43 : vector<2x4x4x128xbf16> to vector<32x128xbf16>
    %c7 = arith.constant 7 : index
    %c0_53 = arith.constant 0 : index
    %c0_54 = arith.constant 0 : index
    %45 = vector.load %arg2[%c7, %c0_53, %c0_54] : memref<9x128x128xbf16, #tpu.memory_space<vmem>>, vector<1x128x128xbf16>
    %46 = vector.shape_cast %45 : vector<1x128x128xbf16> to vector<128x128xbf16>
    %cst_55 = arith.constant dense<0.000000e+00> : vector<32x128xf32>
    %47 = tpu.matmul %44, %46, %cst_55 {dimension_numbers = #tpu.dot_dimension_numbers<[1], [0], [0], [1], [0, 0, 1, 1], [], []>} : vector<32x128xbf16>, vector<128x128xbf16>, vector<32x128xf32> -> vector<32x128xf32>
    %48 = arith.addf %42, %47 : vector<32x128xf32>
    %c0_56 = arith.constant 0 : index
    %c2_57 = arith.constant 2 : index
    %c2_58 = arith.constant 2 : index
    %c0_59 = arith.constant 0 : index
    %49 = vector.load %arg1[%c0_56, %c2_57, %c2_58, %c0_59] : memref<2x6x6x128xbf16, #tpu.memory_space<vmem>>, vector<2x4x4x128xbf16>
    %50 = vector.shape_cast %49 : vector<2x4x4x128xbf16> to vector<32x128xbf16>
    %c8 = arith.constant 8 : index
    %c0_60 = arith.constant 0 : index
    %c0_61 = arith.constant 0 : index
    %51 = vector.load %arg2[%c8, %c0_60, %c0_61] : memref<9x128x128xbf16, #tpu.memory_space<vmem>>, vector<1x128x128xbf16>
    %52 = vector.shape_cast %51 : vector<1x128x128xbf16> to vector<128x128xbf16>
    %cst_62 = arith.constant dense<0.000000e+00> : vector<32x128xf32>
    %53 = tpu.matmul %50, %52, %cst_62 {dimension_numbers = #tpu.dot_dimension_numbers<[1], [0], [0], [1], [0, 0, 1, 1], [], []>} : vector<32x128xbf16>, vector<128x128xbf16>, vector<32x128xf32> -> vector<32x128xf32>
    %54 = arith.addf %48, %53 : vector<32x128xf32>
    %c0_63 = arith.constant 0 : index
    %c0_64 = arith.constant 0 : index
    %55 = vector.load %arg3[%c0_63, %c0_64] : memref<1x128xf32, #tpu.memory_space<vmem>>, vector<1x128xf32>
    %c0_65 = arith.constant 0 : index
    %c0_66 = arith.constant 0 : index
    %56 = vector.load %arg4[%c0_65, %c0_66] : memref<1x128xf32, #tpu.memory_space<vmem>>, vector<1x128xf32>
    %cst_67 = arith.constant dense<0.000000e+00> : vector<128xf32>
    %57 = vector.multi_reduction <add>, %54, %cst_67 [0] : vector<32x128xf32> to vector<128xf32>
    %58 = vector.shape_cast %57 : vector<128xf32> to vector<1x128xf32>
    %cst_68 = arith.constant 3.200000e+01 : f32
    %59 = vector.broadcast %cst_68 : f32 to vector<1x128xf32>
    %60 = arith.divf %58, %59 : vector<1x128xf32>
    %61 = vector.broadcast %60 : vector<1x128xf32> to vector<32x128xf32>
    %62 = arith.subf %54, %61 : vector<32x128xf32>
    %63 = arith.mulf %62, %62 : vector<32x128xf32>
    %cst_69 = arith.constant dense<0.000000e+00> : vector<128xf32>
    %64 = vector.multi_reduction <add>, %63, %cst_69 [0] : vector<32x128xf32> to vector<128xf32>
    %65 = vector.shape_cast %64 : vector<128xf32> to vector<1x128xf32>
    %cst_70 = arith.constant 3.200000e+01 : f32
    %66 = vector.broadcast %cst_70 : f32 to vector<1x128xf32>
    %67 = arith.divf %65, %66 : vector<1x128xf32>
    %cst_71 = arith.constant 9.99999974E-6 : f32
    %68 = vector.broadcast %cst_71 : f32 to vector<1x128xf32>
    %69 = arith.addf %67, %68 : vector<1x128xf32>
    %70 = math.rsqrt %69 : vector<1x128xf32>
    %71 = vector.broadcast %70 : vector<1x128xf32> to vector<32x128xf32>
    %72 = arith.mulf %62, %71 : vector<32x128xf32>
    %73 = vector.broadcast %55 : vector<1x128xf32> to vector<32x128xf32>
    %74 = arith.mulf %72, %73 : vector<32x128xf32>
    %75 = vector.broadcast %56 : vector<1x128xf32> to vector<32x128xf32>
    %76 = arith.addf %74, %75 : vector<32x128xf32>
    %c0_72 = arith.constant 0 : index
    %c0_73 = arith.constant 0 : index
    %77 = vector.load %arg5[%c0_72, %c0_73] : memref<32x64xbf16, #tpu.memory_space<vmem>>, vector<32x64xbf16>
    %c0_74 = arith.constant 0 : index
    %c0_75 = arith.constant 0 : index
    %78 = vector.load %arg6[%c0_74, %c0_75] : memref<64x128xbf16, #tpu.memory_space<vmem>>, vector<64x128xbf16>
    %cst_76 = arith.constant dense<0.000000e+00> : vector<32x128xf32>
    %79 = tpu.matmul %77, %78, %cst_76 {dimension_numbers = #tpu.dot_dimension_numbers<[1], [0], [0], [1], [0, 0, 1, 1], [], []>} : vector<32x64xbf16>, vector<64x128xbf16>, vector<32x128xf32> -> vector<32x128xf32>
    %80 = arith.addf %76, %79 : vector<32x128xf32>
    %cst_77 = arith.constant 0.000000e+00 : f32
    %81 = vector.broadcast %cst_77 : f32 to vector<32x128xf32>
    %82 = arith.cmpf oge, %80, %81 : vector<32x128xf32>
    %cst_78 = arith.constant 2.000000e-01 : f32
    %83 = vector.broadcast %cst_78 : f32 to vector<32x128xf32>
    %84 = arith.mulf %83, %80 : vector<32x128xf32>
    %85 = arith.select %82, %80, %84 : vector<32x128xi1>, vector<32x128xf32>
    %86 = arith.truncf %85 : vector<32x128xf32> to vector<32x128xbf16>
    %c0_79 = arith.constant 0 : index
    %c0_80 = arith.constant 0 : index
    %87 = vector.load %arg7[%c0_79, %c0_80] : memref<32x128xbf16, #tpu.memory_space<vmem>>, vector<32x128xbf16>
    tpu.vector_store %arg7[%c0_79, %c0_80], %86 {strides = array<i32>} : memref<32x128xbf16, #tpu.memory_space<vmem>>, vector<32x128xbf16>,
    return
  }
  func.func @transform_0(%arg0: i32) -> (i32, i32, i32, i32) {
    %c0_i32 = arith.constant 0 : i32
    %c0_i32_0 = arith.constant 0 : i32
    %c0_i32_1 = arith.constant 0 : i32
    %c0_i32_2 = arith.constant 0 : i32
    %c0_i32_3 = arith.constant 0 : i32
    return %c0_i32, %c0_i32_0, %c0_i32_1, %c0_i32_2 : i32, i32, i32, i32
  }
  func.func @transform_1(%arg0: i32) -> (i32, i32, i32) {
    %c0_i32 = arith.constant 0 : i32
    %c0_i32_0 = arith.constant 0 : i32
    %c0_i32_1 = arith.constant 0 : i32
    return %c0_i32, %c0_i32_0, %arg0 : i32, i32, i32
  }
  func.func @transform_2(%arg0: i32) -> (i32, i32) {
    %c0_i32 = arith.constant 0 : i32
    %c0_i32_0 = arith.constant 0 : i32
    return %c0_i32, %arg0 : i32, i32
  }
  func.func @transform_3(%arg0: i32) -> (i32, i32) {
    %c0_i32 = arith.constant 0 : i32
    %c0_i32_0 = arith.constant 0 : i32
    return %c0_i32, %arg0 : i32, i32
  }
  func.func @transform_4(%arg0: i32) -> (i32, i32) {
    %c0_i32 = arith.constant 0 : i32
    %c0_i32_0 = arith.constant 0 : i32
    %c0_i32_1 = arith.constant 0 : i32
    return %c0_i32, %c0_i32_0 : i32, i32
  }
  func.func @transform_5(%arg0: i32) -> (i32, i32) {
    %c0_i32 = arith.constant 0 : i32
    %c0_i32_0 = arith.constant 0 : i32
    return %c0_i32, %arg0 : i32, i32
  }
  func.func @transform_6(%arg0: i32) -> (i32, i32) {
    %c0_i32 = arith.constant 0 : i32
    %c0_i32_0 = arith.constant 0 : i32
    return %c0_i32, %arg0 : i32, i32
  }
}

module attributes {stable_mosaic.version = 11 : i64} {
  func.func @_patches_bn_lrelu_kernel(%arg0: i32, %arg1: memref<8x1152xbf16, #tpu.memory_space<vmem>>, %arg2: memref<1152x128xbf16, #tpu.memory_space<vmem>>, %arg3: memref<1x128xf32, #tpu.memory_space<vmem>>, %arg4: memref<1x128xf32, #tpu.memory_space<vmem>>, %arg5: memref<8x128xbf16, #tpu.memory_space<vmem>>) attributes {dimension_semantics = [#tpu.dimension_semantics<parallel>], iteration_bounds = array<i64: 2>, scalar_prefetch = 0 : i64, scratch_operands = 0 : i64, tpu.core_type = #tpu.core_type<tc>, window_params = [{pipeline_mode = #tpu.pipeline_mode<synchronous>, transform_indices = @transform_0, window_bounds = array<i64: 8, 1152>}, {transform_indices = @transform_1, window_bounds = array<i64: 1152, 128>}, {transform_indices = @transform_2, window_bounds = array<i64: 1, 128>}, {transform_indices = @transform_3, window_bounds = array<i64: 1, 128>}, {transform_indices = @transform_4, window_bounds = array<i64: 8, 128>}]} {
    %c0 = arith.constant 0 : index
    %c0_0 = arith.constant 0 : index
    %0 = vector.load %arg1[%c0, %c0_0] : memref<8x1152xbf16, #tpu.memory_space<vmem>>, vector<8x1152xbf16>
    %c0_1 = arith.constant 0 : index
    %c0_2 = arith.constant 0 : index
    %1 = vector.load %arg2[%c0_1, %c0_2] : memref<1152x128xbf16, #tpu.memory_space<vmem>>, vector<1152x128xbf16>
    %cst = arith.constant dense<0.000000e+00> : vector<8x128xf32>
    %2 = tpu.matmul %0, %1, %cst {dimension_numbers = #tpu.dot_dimension_numbers<[1], [0], [0], [1], [0, 0, 1, 1], [], []>} : vector<8x1152xbf16>, vector<1152x128xbf16>, vector<8x128xf32> -> vector<8x128xf32>
    %c0_3 = arith.constant 0 : index
    %c0_4 = arith.constant 0 : index
    %3 = vector.load %arg3[%c0_3, %c0_4] : memref<1x128xf32, #tpu.memory_space<vmem>>, vector<1x128xf32>
    %c0_5 = arith.constant 0 : index
    %c0_6 = arith.constant 0 : index
    %4 = vector.load %arg4[%c0_5, %c0_6] : memref<1x128xf32, #tpu.memory_space<vmem>>, vector<1x128xf32>
    %cst_7 = arith.constant dense<0.000000e+00> : vector<128xf32>
    %5 = vector.multi_reduction <add>, %2, %cst_7 [0] : vector<8x128xf32> to vector<128xf32>
    %6 = vector.shape_cast %5 : vector<128xf32> to vector<1x128xf32>
    %cst_8 = arith.constant 8.000000e+00 : f32
    %7 = vector.broadcast %cst_8 : f32 to vector<1x128xf32>
    %8 = arith.divf %6, %7 : vector<1x128xf32>
    %9 = vector.broadcast %8 : vector<1x128xf32> to vector<8x128xf32>
    %10 = arith.subf %2, %9 : vector<8x128xf32>
    %11 = arith.mulf %10, %10 : vector<8x128xf32>
    %cst_9 = arith.constant dense<0.000000e+00> : vector<128xf32>
    %12 = vector.multi_reduction <add>, %11, %cst_9 [0] : vector<8x128xf32> to vector<128xf32>
    %13 = vector.shape_cast %12 : vector<128xf32> to vector<1x128xf32>
    %cst_10 = arith.constant 8.000000e+00 : f32
    %14 = vector.broadcast %cst_10 : f32 to vector<1x128xf32>
    %15 = arith.divf %13, %14 : vector<1x128xf32>
    %cst_11 = arith.constant 9.99999974E-6 : f32
    %16 = vector.broadcast %cst_11 : f32 to vector<1x128xf32>
    %17 = arith.addf %15, %16 : vector<1x128xf32>
    %18 = math.rsqrt %17 : vector<1x128xf32>
    %19 = vector.broadcast %18 : vector<1x128xf32> to vector<8x128xf32>
    %20 = arith.mulf %10, %19 : vector<8x128xf32>
    %21 = vector.broadcast %3 : vector<1x128xf32> to vector<8x128xf32>
    %22 = arith.mulf %20, %21 : vector<8x128xf32>
    %23 = vector.broadcast %4 : vector<1x128xf32> to vector<8x128xf32>
    %24 = arith.addf %22, %23 : vector<8x128xf32>
    %cst_12 = arith.constant 0.000000e+00 : f32
    %25 = vector.broadcast %cst_12 : f32 to vector<8x128xf32>
    %26 = arith.cmpf oge, %24, %25 : vector<8x128xf32>
    %cst_13 = arith.constant 2.000000e-01 : f32
    %27 = vector.broadcast %cst_13 : f32 to vector<8x128xf32>
    %28 = arith.mulf %27, %24 : vector<8x128xf32>
    %29 = arith.select %26, %24, %28 : vector<8x128xi1>, vector<8x128xf32>
    %30 = arith.truncf %29 : vector<8x128xf32> to vector<8x128xbf16>
    %c0_14 = arith.constant 0 : index
    %c0_15 = arith.constant 0 : index
    %31 = vector.load %arg5[%c0_14, %c0_15] : memref<8x128xbf16, #tpu.memory_space<vmem>>, vector<8x128xbf16>
    tpu.vector_store %arg5[%c0_14, %c0_15], %30 {strides = array<i32>} : memref<8x128xbf16, #tpu.memory_space<vmem>>, vector<8x128xbf16>,
    return
  }
  func.func @transform_0(%arg0: i32) -> (i32, i32) {
    %c0_i32 = arith.constant 0 : i32
    %c0_i32_0 = arith.constant 0 : i32
    %c0_i32_1 = arith.constant 0 : i32
    return %c0_i32, %c0_i32_0 : i32, i32
  }
  func.func @transform_1(%arg0: i32) -> (i32, i32) {
    %c0_i32 = arith.constant 0 : i32
    %c0_i32_0 = arith.constant 0 : i32
    return %c0_i32, %arg0 : i32, i32
  }
  func.func @transform_2(%arg0: i32) -> (i32, i32) {
    %c0_i32 = arith.constant 0 : i32
    %c0_i32_0 = arith.constant 0 : i32
    return %c0_i32, %arg0 : i32, i32
  }
  func.func @transform_3(%arg0: i32) -> (i32, i32) {
    %c0_i32 = arith.constant 0 : i32
    %c0_i32_0 = arith.constant 0 : i32
    return %c0_i32, %arg0 : i32, i32
  }
  func.func @transform_4(%arg0: i32) -> (i32, i32) {
    %c0_i32 = arith.constant 0 : i32
    %c0_i32_0 = arith.constant 0 : i32
    return %c0_i32, %arg0 : i32, i32
  }
}

module attributes {stable_mosaic.version = 11 : i64} {
  func.func @kernel(%arg0: i32, %arg1: memref<2x4x4x256xbf16, #tpu.memory_space<vmem>>, %arg2: memref<9x256x128xbf16, #tpu.memory_space<vmem>>, %arg3: memref<1x128xf32, #tpu.memory_space<vmem>>, %arg4: memref<1x128xf32, #tpu.memory_space<vmem>>, %arg5: memref<8x128xbf16, #tpu.memory_space<vmem>>, %arg6: memref<128x128xbf16, #tpu.memory_space<vmem>>, %arg7: memref<8x128xbf16, #tpu.memory_space<vmem>>) attributes {dimension_semantics = [#tpu.dimension_semantics<parallel>], iteration_bounds = array<i64: 2>, scalar_prefetch = 0 : i64, scratch_operands = 0 : i64, tpu.core_type = #tpu.core_type<tc>, window_params = [{pipeline_mode = #tpu.pipeline_mode<synchronous>, transform_indices = @transform_0, window_bounds = array<i64: 2, 4, 4, 256>}, {transform_indices = @transform_1, window_bounds = array<i64: 9, 256, 128>}, {transform_indices = @transform_2, window_bounds = array<i64: 1, 128>}, {transform_indices = @transform_3, window_bounds = array<i64: 1, 128>}, {pipeline_mode = #tpu.pipeline_mode<synchronous>, transform_indices = @transform_4, window_bounds = array<i64: 8, 128>}, {transform_indices = @transform_5, window_bounds = array<i64: 128, 128>}, {transform_indices = @transform_6, window_bounds = array<i64: 8, 128>}]} {
    %cst = arith.constant 0.000000e+00 : f32
    %0 = vector.broadcast %cst : f32 to vector<8x128xf32>
    %c0 = arith.constant 0 : index
    %c0_0 = arith.constant 0 : index
    %c0_1 = arith.constant 0 : index
    %c0_2 = arith.constant 0 : index
    %1 = vector.load %arg1[%c0, %c0_0, %c0_1, %c0_2] : memref<2x4x4x256xbf16, #tpu.memory_space<vmem>>, vector<2x2x2x256xbf16>
    %2 = vector.shape_cast %1 : vector<2x2x2x256xbf16> to vector<8x256xbf16>
    %c0_3 = arith.constant 0 : index
    %c0_4 = arith.constant 0 : index
    %c0_5 = arith.constant 0 : index
    %3 = vector.load %arg2[%c0_3, %c0_4, %c0_5] : memref<9x256x128xbf16, #tpu.memory_space<vmem>>, vector<1x256x128xbf16>
    %4 = vector.shape_cast %3 : vector<1x256x128xbf16> to vector<256x128xbf16>
    %cst_6 = arith.constant dense<0.000000e+00> : vector<8x128xf32>
    %5 = tpu.matmul %2, %4, %cst_6 {dimension_numbers = #tpu.dot_dimension_numbers<[1], [0], [0], [1], [0, 0, 1, 1], [], []>} : vector<8x256xbf16>, vector<256x128xbf16>, vector<8x128xf32> -> vector<8x128xf32>
    %6 = arith.addf %0, %5 : vector<8x128xf32>
    %c0_7 = arith.constant 0 : index
    %c0_8 = arith.constant 0 : index
    %c1 = arith.constant 1 : index
    %c0_9 = arith.constant 0 : index
    %7 = vector.load %arg1[%c0_7, %c0_8, %c1, %c0_9] : memref<2x4x4x256xbf16, #tpu.memory_space<vmem>>, vector<2x2x2x256xbf16>
    %8 = vector.shape_cast %7 : vector<2x2x2x256xbf16> to vector<8x256xbf16>
    %c1_10 = arith.constant 1 : index
    %c0_11 = arith.constant 0 : index
    %c0_12 = arith.constant 0 : index
    %9 = vector.load %arg2[%c1_10, %c0_11, %c0_12] : memref<9x256x128xbf16, #tpu.memory_space<vmem>>, vector<1x256x128xbf16>
    %10 = vector.shape_cast %9 : vector<1x256x128xbf16> to vector<256x128xbf16>
    %cst_13 = arith.constant dense<0.000000e+00> : vector<8x128xf32>
    %11 = tpu.matmul %8, %10, %cst_13 {dimension_numbers = #tpu.dot_dimension_numbers<[1], [0], [0], [1], [0, 0, 1, 1], [], []>} : vector<8x256xbf16>, vector<256x128xbf16>, vector<8x128xf32> -> vector<8x128xf32>
    %12 = arith.addf %6, %11 : vector<8x128xf32>
    %c0_14 = arith.constant 0 : index
    %c0_15 = arith.constant 0 : index
    %c2 = arith.constant 2 : index
    %c0_16 = arith.constant 0 : index
    %13 = vector.load %arg1[%c0_14, %c0_15, %c2, %c0_16] : memref<2x4x4x256xbf16, #tpu.memory_space<vmem>>, vector<2x2x2x256xbf16>
    %14 = vector.shape_cast %13 : vector<2x2x2x256xbf16> to vector<8x256xbf16>
    %c2_17 = arith.constant 2 : index
    %c0_18 = arith.constant 0 : index
    %c0_19 = arith.constant 0 : index
    %15 = vector.load %arg2[%c2_17, %c0_18, %c0_19] : memref<9x256x128xbf16, #tpu.memory_space<vmem>>, vector<1x256x128xbf16>
    %16 = vector.shape_cast %15 : vector<1x256x128xbf16> to vector<256x128xbf16>
    %cst_20 = arith.constant dense<0.000000e+00> : vector<8x128xf32>
    %17 = tpu.matmul %14, %16, %cst_20 {dimension_numbers = #tpu.dot_dimension_numbers<[1], [0], [0], [1], [0, 0, 1, 1], [], []>} : vector<8x256xbf16>, vector<256x128xbf16>, vector<8x128xf32> -> vector<8x128xf32>
    %18 = arith.addf %12, %17 : vector<8x128xf32>
    %c0_21 = arith.constant 0 : index
    %c1_22 = arith.constant 1 : index
    %c0_23 = arith.constant 0 : index
    %c0_24 = arith.constant 0 : index
    %19 = vector.load %arg1[%c0_21, %c1_22, %c0_23, %c0_24] : memref<2x4x4x256xbf16, #tpu.memory_space<vmem>>, vector<2x2x2x256xbf16>
    %20 = vector.shape_cast %19 : vector<2x2x2x256xbf16> to vector<8x256xbf16>
    %c3 = arith.constant 3 : index
    %c0_25 = arith.constant 0 : index
    %c0_26 = arith.constant 0 : index
    %21 = vector.load %arg2[%c3, %c0_25, %c0_26] : memref<9x256x128xbf16, #tpu.memory_space<vmem>>, vector<1x256x128xbf16>
    %22 = vector.shape_cast %21 : vector<1x256x128xbf16> to vector<256x128xbf16>
    %cst_27 = arith.constant dense<0.000000e+00> : vector<8x128xf32>
    %23 = tpu.matmul %20, %22, %cst_27 {dimension_numbers = #tpu.dot_dimension_numbers<[1], [0], [0], [1], [0, 0, 1, 1], [], []>} : vector<8x256xbf16>, vector<256x128xbf16>, vector<8x128xf32> -> vector<8x128xf32>
    %24 = arith.addf %18, %23 : vector<8x128xf32>
    %c0_28 = arith.constant 0 : index
    %c1_29 = arith.constant 1 : index
    %c1_30 = arith.constant 1 : index
    %c0_31 = arith.constant 0 : index
    %25 = vector.load %arg1[%c0_28, %c1_29, %c1_30, %c0_31] : memref<2x4x4x256xbf16, #tpu.memory_space<vmem>>, vector<2x2x2x256xbf16>
    %26 = vector.shape_cast %25 : vector<2x2x2x256xbf16> to vector<8x256xbf16>
    %c4 = arith.constant 4 : index
    %c0_32 = arith.constant 0 : index
    %c0_33 = arith.constant 0 : index
    %27 = vector.load %arg2[%c4, %c0_32, %c0_33] : memref<9x256x128xbf16, #tpu.memory_space<vmem>>, vector<1x256x128xbf16>
    %28 = vector.shape_cast %27 : vector<1x256x128xbf16> to vector<256x128xbf16>
    %cst_34 = arith.constant dense<0.000000e+00> : vector<8x128xf32>
    %29 = tpu.matmul %26, %28, %cst_34 {dimension_numbers = #tpu.dot_dimension_numbers<[1], [0], [0], [1], [0, 0, 1, 1], [], []>} : vector<8x256xbf16>, vector<256x128xbf16>, vector<8x128xf32> -> vector<8x128xf32>
    %30 = arith.addf %24, %29 : vector<8x128xf32>
    %c0_35 = arith.constant 0 : index
    %c1_36 = arith.constant 1 : index
    %c2_37 = arith.constant 2 : index
    %c0_38 = arith.constant 0 : index
    %31 = vector.load %arg1[%c0_35, %c1_36, %c2_37, %c0_38] : memref<2x4x4x256xbf16, #tpu.memory_space<vmem>>, vector<2x2x2x256xbf16>
    %32 = vector.shape_cast %31 : vector<2x2x2x256xbf16> to vector<8x256xbf16>
    %c5 = arith.constant 5 : index
    %c0_39 = arith.constant 0 : index
    %c0_40 = arith.constant 0 : index
    %33 = vector.load %arg2[%c5, %c0_39, %c0_40] : memref<9x256x128xbf16, #tpu.memory_space<vmem>>, vector<1x256x128xbf16>
    %34 = vector.shape_cast %33 : vector<1x256x128xbf16> to vector<256x128xbf16>
    %cst_41 = arith.constant dense<0.000000e+00> : vector<8x128xf32>
    %35 = tpu.matmul %32, %34, %cst_41 {dimension_numbers = #tpu.dot_dimension_numbers<[1], [0], [0], [1], [0, 0, 1, 1], [], []>} : vector<8x256xbf16>, vector<256x128xbf16>, vector<8x128xf32> -> vector<8x128xf32>
    %36 = arith.addf %30, %35 : vector<8x128xf32>
    %c0_42 = arith.constant 0 : index
    %c2_43 = arith.constant 2 : index
    %c0_44 = arith.constant 0 : index
    %c0_45 = arith.constant 0 : index
    %37 = vector.load %arg1[%c0_42, %c2_43, %c0_44, %c0_45] : memref<2x4x4x256xbf16, #tpu.memory_space<vmem>>, vector<2x2x2x256xbf16>
    %38 = vector.shape_cast %37 : vector<2x2x2x256xbf16> to vector<8x256xbf16>
    %c6 = arith.constant 6 : index
    %c0_46 = arith.constant 0 : index
    %c0_47 = arith.constant 0 : index
    %39 = vector.load %arg2[%c6, %c0_46, %c0_47] : memref<9x256x128xbf16, #tpu.memory_space<vmem>>, vector<1x256x128xbf16>
    %40 = vector.shape_cast %39 : vector<1x256x128xbf16> to vector<256x128xbf16>
    %cst_48 = arith.constant dense<0.000000e+00> : vector<8x128xf32>
    %41 = tpu.matmul %38, %40, %cst_48 {dimension_numbers = #tpu.dot_dimension_numbers<[1], [0], [0], [1], [0, 0, 1, 1], [], []>} : vector<8x256xbf16>, vector<256x128xbf16>, vector<8x128xf32> -> vector<8x128xf32>
    %42 = arith.addf %36, %41 : vector<8x128xf32>
    %c0_49 = arith.constant 0 : index
    %c2_50 = arith.constant 2 : index
    %c1_51 = arith.constant 1 : index
    %c0_52 = arith.constant 0 : index
    %43 = vector.load %arg1[%c0_49, %c2_50, %c1_51, %c0_52] : memref<2x4x4x256xbf16, #tpu.memory_space<vmem>>, vector<2x2x2x256xbf16>
    %44 = vector.shape_cast %43 : vector<2x2x2x256xbf16> to vector<8x256xbf16>
    %c7 = arith.constant 7 : index
    %c0_53 = arith.constant 0 : index
    %c0_54 = arith.constant 0 : index
    %45 = vector.load %arg2[%c7, %c0_53, %c0_54] : memref<9x256x128xbf16, #tpu.memory_space<vmem>>, vector<1x256x128xbf16>
    %46 = vector.shape_cast %45 : vector<1x256x128xbf16> to vector<256x128xbf16>
    %cst_55 = arith.constant dense<0.000000e+00> : vector<8x128xf32>
    %47 = tpu.matmul %44, %46, %cst_55 {dimension_numbers = #tpu.dot_dimension_numbers<[1], [0], [0], [1], [0, 0, 1, 1], [], []>} : vector<8x256xbf16>, vector<256x128xbf16>, vector<8x128xf32> -> vector<8x128xf32>
    %48 = arith.addf %42, %47 : vector<8x128xf32>
    %c0_56 = arith.constant 0 : index
    %c2_57 = arith.constant 2 : index
    %c2_58 = arith.constant 2 : index
    %c0_59 = arith.constant 0 : index
    %49 = vector.load %arg1[%c0_56, %c2_57, %c2_58, %c0_59] : memref<2x4x4x256xbf16, #tpu.memory_space<vmem>>, vector<2x2x2x256xbf16>
    %50 = vector.shape_cast %49 : vector<2x2x2x256xbf16> to vector<8x256xbf16>
    %c8 = arith.constant 8 : index
    %c0_60 = arith.constant 0 : index
    %c0_61 = arith.constant 0 : index
    %51 = vector.load %arg2[%c8, %c0_60, %c0_61] : memref<9x256x128xbf16, #tpu.memory_space<vmem>>, vector<1x256x128xbf16>
    %52 = vector.shape_cast %51 : vector<1x256x128xbf16> to vector<256x128xbf16>
    %cst_62 = arith.constant dense<0.000000e+00> : vector<8x128xf32>
    %53 = tpu.matmul %50, %52, %cst_62 {dimension_numbers = #tpu.dot_dimension_numbers<[1], [0], [0], [1], [0, 0, 1, 1], [], []>} : vector<8x256xbf16>, vector<256x128xbf16>, vector<8x128xf32> -> vector<8x128xf32>
    %54 = arith.addf %48, %53 : vector<8x128xf32>
    %c0_63 = arith.constant 0 : index
    %c0_64 = arith.constant 0 : index
    %55 = vector.load %arg3[%c0_63, %c0_64] : memref<1x128xf32, #tpu.memory_space<vmem>>, vector<1x128xf32>
    %c0_65 = arith.constant 0 : index
    %c0_66 = arith.constant 0 : index
    %56 = vector.load %arg4[%c0_65, %c0_66] : memref<1x128xf32, #tpu.memory_space<vmem>>, vector<1x128xf32>
    %cst_67 = arith.constant dense<0.000000e+00> : vector<128xf32>
    %57 = vector.multi_reduction <add>, %54, %cst_67 [0] : vector<8x128xf32> to vector<128xf32>
    %58 = vector.shape_cast %57 : vector<128xf32> to vector<1x128xf32>
    %cst_68 = arith.constant 8.000000e+00 : f32
    %59 = vector.broadcast %cst_68 : f32 to vector<1x128xf32>
    %60 = arith.divf %58, %59 : vector<1x128xf32>
    %61 = vector.broadcast %60 : vector<1x128xf32> to vector<8x128xf32>
    %62 = arith.subf %54, %61 : vector<8x128xf32>
    %63 = arith.mulf %62, %62 : vector<8x128xf32>
    %cst_69 = arith.constant dense<0.000000e+00> : vector<128xf32>
    %64 = vector.multi_reduction <add>, %63, %cst_69 [0] : vector<8x128xf32> to vector<128xf32>
    %65 = vector.shape_cast %64 : vector<128xf32> to vector<1x128xf32>
    %cst_70 = arith.constant 8.000000e+00 : f32
    %66 = vector.broadcast %cst_70 : f32 to vector<1x128xf32>
    %67 = arith.divf %65, %66 : vector<1x128xf32>
    %cst_71 = arith.constant 9.99999974E-6 : f32
    %68 = vector.broadcast %cst_71 : f32 to vector<1x128xf32>
    %69 = arith.addf %67, %68 : vector<1x128xf32>
    %70 = math.rsqrt %69 : vector<1x128xf32>
    %71 = vector.broadcast %70 : vector<1x128xf32> to vector<8x128xf32>
    %72 = arith.mulf %62, %71 : vector<8x128xf32>
    %73 = vector.broadcast %55 : vector<1x128xf32> to vector<8x128xf32>
    %74 = arith.mulf %72, %73 : vector<8x128xf32>
    %75 = vector.broadcast %56 : vector<1x128xf32> to vector<8x128xf32>
    %76 = arith.addf %74, %75 : vector<8x128xf32>
    %c0_72 = arith.constant 0 : index
    %c0_73 = arith.constant 0 : index
    %77 = vector.load %arg5[%c0_72, %c0_73] : memref<8x128xbf16, #tpu.memory_space<vmem>>, vector<8x128xbf16>
    %c0_74 = arith.constant 0 : index
    %c0_75 = arith.constant 0 : index
    %78 = vector.load %arg6[%c0_74, %c0_75] : memref<128x128xbf16, #tpu.memory_space<vmem>>, vector<128x128xbf16>
    %cst_76 = arith.constant dense<0.000000e+00> : vector<8x128xf32>
    %79 = tpu.matmul %77, %78, %cst_76 {dimension_numbers = #tpu.dot_dimension_numbers<[1], [0], [0], [1], [0, 0, 1, 1], [], []>} : vector<8x128xbf16>, vector<128x128xbf16>, vector<8x128xf32> -> vector<8x128xf32>
    %80 = arith.addf %76, %79 : vector<8x128xf32>
    %cst_77 = arith.constant 0.000000e+00 : f32
    %81 = vector.broadcast %cst_77 : f32 to vector<8x128xf32>
    %82 = arith.cmpf oge, %80, %81 : vector<8x128xf32>
    %cst_78 = arith.constant 2.000000e-01 : f32
    %83 = vector.broadcast %cst_78 : f32 to vector<8x128xf32>
    %84 = arith.mulf %83, %80 : vector<8x128xf32>
    %85 = arith.select %82, %80, %84 : vector<8x128xi1>, vector<8x128xf32>
    %86 = arith.truncf %85 : vector<8x128xf32> to vector<8x128xbf16>
    %c0_79 = arith.constant 0 : index
    %c0_80 = arith.constant 0 : index
    %87 = vector.load %arg7[%c0_79, %c0_80] : memref<8x128xbf16, #tpu.memory_space<vmem>>, vector<8x128xbf16>
    tpu.vector_store %arg7[%c0_79, %c0_80], %86 {strides = array<i32>} : memref<8x128xbf16, #tpu.memory_space<vmem>>, vector<8x128xbf16>,
    return
  }
  func.func @transform_0(%arg0: i32) -> (i32, i32, i32, i32) {
    %c0_i32 = arith.constant 0 : i32
    %c0_i32_0 = arith.constant 0 : i32
    %c0_i32_1 = arith.constant 0 : i32
    %c0_i32_2 = arith.constant 0 : i32
    %c0_i32_3 = arith.constant 0 : i32
    return %c0_i32, %c0_i32_0, %c0_i32_1, %c0_i32_2 : i32, i32, i32, i32
  }
  func.func @transform_1(%arg0: i32) -> (i32, i32, i32) {
    %c0_i32 = arith.constant 0 : i32
    %c0_i32_0 = arith.constant 0 : i32
    %c0_i32_1 = arith.constant 0 : i32
    return %c0_i32, %c0_i32_0, %arg0 : i32, i32, i32
  }
  func.func @transform_2(%arg0: i32) -> (i32, i32) {
    %c0_i32 = arith.constant 0 : i32
    %c0_i32_0 = arith.constant 0 : i32
    return %c0_i32, %arg0 : i32, i32
  }
  func.func @transform_3(%arg0: i32) -> (i32, i32) {
    %c0_i32 = arith.constant 0 : i32
    %c0_i32_0 = arith.constant 0 : i32
    return %c0_i32, %arg0 : i32, i32
  }
  func.func @transform_4(%arg0: i32) -> (i32, i32) {
    %c0_i32 = arith.constant 0 : i32
    %c0_i32_0 = arith.constant 0 : i32
    %c0_i32_1 = arith.constant 0 : i32
    return %c0_i32, %c0_i32_0 : i32, i32
  }
  func.func @transform_5(%arg0: i32) -> (i32, i32) {
    %c0_i32 = arith.constant 0 : i32
    %c0_i32_0 = arith.constant 0 : i32
    return %c0_i32, %arg0 : i32, i32
  }
  func.func @transform_6(%arg0: i32) -> (i32, i32) {
    %c0_i32 = arith.constant 0 : i32
    %c0_i32_0 = arith.constant 0 : i32
    return %c0_i32, %arg0 : i32, i32
  }
}

</mosaic_0001>

<llo_original>
// kernel: discriminator_v2.5
$region0: #{discriminator_v2.5}
  #allocation0 [shape = 'u32[]', space=smem, size = 0x4, offset = 0x4, fixed_abs, tag = 'smem constant byte address 0x4 - core index']
  #allocation1 [shape = 'u32[144,128]{1,0:T(1,128)}', space=vmem, size = 0x12000, scoped, tag = 'internal scratch']
  %s0 = inlined_call_operand.vmem [shape: bf16[128,27], index: 0, kind: input, shape index: {}]
  %s1 = inlined_call_operand.vmem [shape: bf16[27,128], index: 1, kind: input, shape index: {}]
  %s2 = inlined_call_operand.vmem [shape: f32[1,128], index: 2, kind: input, shape index: {}]
  %s3 = inlined_call_operand.vmem [shape: f32[1,128], index: 3, kind: input, shape index: {}]
  %s4 = inlined_call_operand.vmem [shape: bf16[128,128], index: 4, kind: output, shape index: {}]
  %s5 = sld [smem:[#allocation0]]
  $region26: #{discriminator_v2.5} parent=0
    _
  %s7 = ssub.s32 1, %s5
  %s8 = scalar_select 0, %s7, %s5
  // Predicated region
  $region2: #{discriminator_v2.5} parent=0 // pred_check
    _
  $region3: #{discriminator_v2.5} parent=0 // pred_check_branch
    %10 = sbr.rel (0) target = $region5
  $region4: #{discriminator_v2.5} parent=0 // pred_region
    _
  $region5: #{discriminator_v2.5} parent=0 // pred_fallthru
    _
  // Predicated region
  $region6: #{discriminator_v2.5} parent=0 // pred_check
    _
  $region7: #{discriminator_v2.5} parent=0 // pred_check_branch
    %12 = sbr.rel (0) target = $region9
  $region8: #{discriminator_v2.5} parent=0 // pred_region
    _
  $region9: #{discriminator_v2.5} parent=0 // pred_fallthru
    _
  // Predicated region
  $region10: #{discriminator_v2.5} parent=0 // pred_check
    _
  $region11: #{discriminator_v2.5} parent=0 // pred_check_branch
    %14 = sbr.rel (0) target = $region13
  $region12: #{discriminator_v2.5} parent=0 // pred_region
    _
  $region13: #{discriminator_v2.5} parent=0 // pred_fallthru
    _
  // Predicated region
  $region14: #{discriminator_v2.5} parent=0 // pred_check
    _
  $region15: #{discriminator_v2.5} parent=0 // pred_check_branch
    %16 = sbr.rel (0) target = $region17
  $region16: #{discriminator_v2.5} parent=0 // pred_region
    _
  $region17: #{discriminator_v2.5} parent=0 // pred_fallthru
    _
  %v18 = vld [vmem:[%s0] sm:$0xf]
  %v19 = vld [vmem:[%s0 + $0x4] sm:$0xf]
  %v20 = vld [vmem:[%s0 + $0x8] sm:$0xf]
  %v21 = vld [vmem:[%s0 + $0xc] sm:$0xf]
  %v22 = vld [vmem:[%s0 + $0x10] sm:$0xf]
  %v23 = vld [vmem:[%s0 + $0x14] sm:$0xf]
  %v24 = vld [vmem:[%s0 + $0x18] sm:$0xf]
  %v25 = vld [vmem:[%s0 + $0x1c] sm:$0xf]
  %v26 = vld [vmem:[%s0 + $0x20] sm:$0xf]
  %v27 = vld [vmem:[%s0 + $0x24] sm:$0xf]
  %v28 = vld [vmem:[%s0 + $0x28] sm:$0xf]
  %v29 = vld [vmem:[%s0 + $0x2c] sm:$0xf]
  %v30 = vld [vmem:[%s0 + $0x30] sm:$0xf]
  %v31 = vld [vmem:[%s0 + $0x34] sm:$0xf]
  %v32 = vld [vmem:[%s0 + $0x38] sm:$0xf]
  %v33 = vld [vmem:[%s0 + $0x3c] sm:$0xf]
  %v34 = vld [vmem:[%s1] sm:$0xf]
  %v35 = vld [vmem:[%s1 + $0x4] sm:$0xf]
  %v36 = vld [vmem:[%s1 + $0x8] sm:$0xf]
  %v37 = vld [vmem:[%s1 + $0xc] sm:$0x3]
  %v54 = vunpack.c.l.b16 %v18
  %v55 = vunpack.c.l.b16 %v19
  %v56 = vunpack.c.l.b16 %v20
  %v57 = vunpack.c.l.b16 %v21
  %v58 = vunpack.c.l.b16 %v22
  %v59 = vunpack.c.l.b16 %v23
  %v60 = vunpack.c.l.b16 %v24
  %v61 = vunpack.c.l.b16 %v25
  %v62 = vunpack.c.l.b16 %v26
  %v63 = vunpack.c.l.b16 %v27
  %v64 = vunpack.c.l.b16 %v28
  %v65 = vunpack.c.l.b16 %v29
  %v66 = vunpack.c.l.b16 %v30
  %v67 = vunpack.c.l.b16 %v31
  %v68 = vunpack.c.l.b16 %v32
  %v69 = vunpack.c.l.b16 %v33
  %v70 = vpack.c.b16 %v55, %v54
  %v71 = vpack.c.b16 %v57, %v56
  %v72 = vpack.c.b16 %v59, %v58
  %v73 = vpack.c.b16 %v61, %v60
  %v74 = vpack.c.b16 %v63, %v62
  %v75 = vpack.c.b16 %v65, %v64
  %v76 = vpack.c.b16 %v67, %v66
  %v77 = vpack.c.b16 %v69, %v68
  %v82 = vunpack.c.l.b16 %v34
  %v83 = vunpack.c.l.b16 %v35
  %v84 = vunpack.c.l.b16 %v36
  %v85 = vunpack.c.l.b16 %v37
  %v86 = vpack.c.b16 %v83, %v82
  %v87 = vpack.c.b16 %v85, %v84
  %vm89 = vcmask 220160
  %v91 = vsel %vm89, %v70, 0
  %v94 = vsel %vm89, %v71, 0
  %v97 = vsel %vm89, %v72, 0
  %v100 = vsel %vm89, %v73, 0
  %v103 = vsel %vm89, %v74, 0
  %v106 = vsel %vm89, %v75, 0
  %v109 = vsel %vm89, %v76, 0
  %v112 = vsel %vm89, %v77, 0
  %vm114 = vcmask 1044480
  %vm115 = vcmask 1045504
  %v116 = vsel %vm114, 4294967295, 65535
  %v117 = vsel %vm115, %v116, 0
  %v119 = vand.u32 %v87, %v117
  %121 = vmatprep.subr.bf16.mxu0 0
  %122 = vmatpush1.bf16.msra.mxu0 %v86
  %123 = vmatprep.subr.bf16.mxu0 0
  %124 = vmatpush1.bf16.msra.mxu0 %v119
  %125 = vmatprep.subr.bf16.mxu0 0
  %126 = vmatpush1.bf16.msra.mxu0 0
  %127 = vmatprep.subr.bf16.mxu0 0
  %128 = vmatpush1.bf16.msra.mxu0 0
  %129 = vmatprep.subr.bf16.mxu0 0
  %130 = vmatpush1.bf16.msra.mxu0 0
  %131 = vmatprep.subr.bf16.mxu0 0
  %132 = vmatpush1.bf16.msra.mxu0 0
  %133 = vmatprep.subr.bf16.mxu0 0
  %134 = vmatpush1.bf16.msra.mxu0 0
  %135 = vmatprep.subr.bf16.mxu0 0
  %136 = vmatpush1.bf16.msra.mxu0 0
  %137 = vmatprep.subr.bf16.mxu0 0
  %138 = vmatpush1.bf16.msra.mxu0 0
  %139 = vmatprep.subr.bf16.mxu0 0
  %140 = vmatpush1.bf16.msra.mxu0 0
  %141 = vmatprep.subr.bf16.mxu0 0
  %142 = vmatpush1.bf16.msra.mxu0 0
  %143 = vmatprep.subr.bf16.mxu0 0
  %144 = vmatpush1.bf16.msra.mxu0 0
  %145 = vmatprep.subr.bf16.mxu0 0
  %146 = vmatpush1.bf16.msra.mxu0 0
  %147 = vmatprep.subr.bf16.mxu0 0
  %148 = vmatpush1.bf16.msra.mxu0 0
  %149 = vmatprep.subr.bf16.mxu0 0
  %150 = vmatpush1.bf16.msra.mxu0 0
  %151 = vmatprep.subr.bf16.mxu0 0
  %152 = vmatpush1.bf16.msra.mxu0 0
  %153 = vmatprep.mubr.bf16.mxu0 0
  %154 = vmatmul.mubr.bf16.gmra.mrb[0].mxu0 %v91
  %v155 = vpop.f32.mrb[0].mxu0
  %v156 = vadd.f32 0.0, %v155
  %v157 = vpop.f32.mrb[0].mxu0
  %v158 = vpop.f32.mrb[0].mxu0
  %v159 = vadd.f32 0.0, %v158
  %v160 = vpop.f32.mrb[0].mxu0
  %161 = vmatprep.mubr.bf16.mxu0 0
  %162 = vmatmul.mubr.bf16.gmra.mrb[0].mxu0 %v94
  %v163 = vpop.f32.mrb[0].mxu0
  %v164 = vadd.f32 0.0, %v163
  %v165 = vpop.f32.mrb[0].mxu0
  %v166 = vpop.f32.mrb[0].mxu0
  %v167 = vadd.f32 0.0, %v166
  %v168 = vpop.f32.mrb[0].mxu0
  %169 = vmatprep.mubr.bf16.mxu0 0
  %170 = vmatmul.mubr.bf16.gmra.mrb[0].mxu0 %v97
  %v171 = vpop.f32.mrb[0].mxu0
  %v172 = vadd.f32 0.0, %v171
  %v173 = vpop.f32.mrb[0].mxu0
  %v174 = vpop.f32.mrb[0].mxu0
  %v175 = vadd.f32 0.0, %v174
  %v176 = vpop.f32.mrb[0].mxu0
  %177 = vmatprep.mubr.bf16.mxu0 0
  %178 = vmatmul.mubr.bf16.gmra.mrb[0].mxu0 %v100
  %v179 = vpop.f32.mrb[0].mxu0
  %v180 = vadd.f32 0.0, %v179
  %v181 = vpop.f32.mrb[0].mxu0
  %v182 = vpop.f32.mrb[0].mxu0
  %v183 = vadd.f32 0.0, %v182
  %v184 = vpop.f32.mrb[0].mxu0
  %185 = vmatprep.mubr.bf16.mxu0 0
  %186 = vmatmul.mubr.bf16.gmra.mrb[0].mxu0 %v103
  %v187 = vpop.f32.mrb[0].mxu0
  %v188 = vadd.f32 0.0, %v187
  %v189 = vpop.f32.mrb[0].mxu0
  %v190 = vpop.f32.mrb[0].mxu0
  %v191 = vadd.f32 0.0, %v190
  %v192 = vpop.f32.mrb[0].mxu0
  %193 = vmatprep.mubr.bf16.mxu0 0
  %194 = vmatmul.mubr.bf16.gmra.mrb[0].mxu0 %v106
  %v195 = vpop.f32.mrb[0].mxu0
  %v196 = vadd.f32 0.0, %v195
  %v197 = vpop.f32.mrb[0].mxu0
  %v198 = vpop.f32.mrb[0].mxu0
  %v199 = vadd.f32 0.0, %v198
  %v200 = vpop.f32.mrb[0].mxu0
  %201 = vmatprep.mubr.bf16.mxu0 0
  %202 = vmatmul.mubr.bf16.gmra.mrb[0].mxu0 %v109
  %v203 = vpop.f32.mrb[0].mxu0
  %v204 = vadd.f32 0.0, %v203
  %v205 = vpop.f32.mrb[0].mxu0
  %v206 = vpop.f32.mrb[0].mxu0
  %v207 = vadd.f32 0.0, %v206
  %v208 = vpop.f32.mrb[0].mxu0
  %209 = vmatprep.mubr.bf16.mxu0 0
  %210 = vmatmul.mubr.bf16.gmra.mrb[0].mxu0 %v112
  %v211 = vpop.f32.mrb[0].mxu0
  %v212 = vadd.f32 0.0, %v211
  %v213 = vpop.f32.mrb[0].mxu0
  %v214 = vpop.f32.mrb[0].mxu0
  %v215 = vadd.f32 0.0, %v214
  %v216 = vpop.f32.mrb[0].mxu0
  %217 = vdwg.mxu0
  %v218 = vld [vmem:[%s2] sm:$0x1]
  %v219 = vld [vmem:[%s3] sm:$0x1]
  %v220 = vadd.f32 %v156, %v159
  %v221 = vadd.f32 %v220, %v164
  %v222 = vadd.f32 %v221, %v167
  %v223 = vadd.f32 %v222, %v172
  %v224 = vadd.f32 %v223, %v175
  %v225 = vadd.f32 %v224, %v180
  %v226 = vadd.f32 %v225, %v183
  %v227 = vadd.f32 %v226, %v188
  %v228 = vadd.f32 %v227, %v191
  %v229 = vadd.f32 %v228, %v196
  %v230 = vadd.f32 %v229, %v199
  %v231 = vadd.f32 %v230, %v204
  %v232 = vadd.f32 %v231, %v207
  %v233 = vadd.f32 %v232, %v212
  %v234 = vadd.f32 %v233, %v215
  %v235 = vrot.slane %v234, 4
  %v236 = vadd.f32 %v234, %v235
  %v237 = vrot.slane %v236, 2
  %v238 = vadd.f32 %v236, %v237
  %v239 = vrot.slane %v238, 1
  %v240 = vadd.f32 %v238, %v239
  %v241 = vrcp.pop 128.0
  %v242 = vmul.f32 %v240, %v241
  %v243 = vsub.f32 %v156, %v242
  %v244 = vsub.f32 %v159, %v242
  %v245 = vsub.f32 %v164, %v242
  %v246 = vsub.f32 %v167, %v242
  %v247 = vsub.f32 %v172, %v242
  %v248 = vsub.f32 %v175, %v242
  %v249 = vsub.f32 %v180, %v242
  %v250 = vsub.f32 %v183, %v242
  %v251 = vsub.f32 %v188, %v242
  %v252 = vsub.f32 %v191, %v242
  %v253 = vsub.f32 %v196, %v242
  %v254 = vsub.f32 %v199, %v242
  %v255 = vsub.f32 %v204, %v242
  %v256 = vsub.f32 %v207, %v242
  %v257 = vsub.f32 %v212, %v242
  %v258 = vsub.f32 %v215, %v242
  %v259 = vmul.f32 %v243, %v243
  %v260 = vmul.f32 %v244, %v244
  %v261 = vmul.f32 %v245, %v245
  %v262 = vmul.f32 %v246, %v246
  %v263 = vmul.f32 %v247, %v247
  %v264 = vmul.f32 %v248, %v248
  %v265 = vmul.f32 %v249, %v249
  %v266 = vmul.f32 %v250, %v250
  %v267 = vmul.f32 %v251, %v251
  %v268 = vmul.f32 %v252, %v252
  %v269 = vmul.f32 %v253, %v253
  %v270 = vmul.f32 %v254, %v254
  %v271 = vmul.f32 %v255, %v255
  %v272 = vmul.f32 %v256, %v256
  %v273 = vmul.f32 %v257, %v257
  %v274 = vmul.f32 %v258, %v258
  %v275 = vadd.f32 %v259, %v260
  %v276 = vadd.f32 %v275, %v261
  %v277 = vadd.f32 %v276, %v262
  %v278 = vadd.f32 %v277, %v263
  %v279 = vadd.f32 %v278, %v264
  %v280 = vadd.f32 %v279, %v265
  %v281 = vadd.f32 %v280, %v266
  %v282 = vadd.f32 %v281, %v267
  %v283 = vadd.f32 %v282, %v268
  %v284 = vadd.f32 %v283, %v269
  %v285 = vadd.f32 %v284, %v270
  %v286 = vadd.f32 %v285, %v271
  %v287 = vadd.f32 %v286, %v272
  %v288 = vadd.f32 %v287, %v273
  %v289 = vadd.f32 %v288, %v274
  %v290 = vrot.slane %v289, 4
  %v291 = vadd.f32 %v289, %v290
  %v292 = vrot.slane %v291, 2
  %v293 = vadd.f32 %v291, %v292
  %v294 = vrot.slane %v293, 1
  %v295 = vadd.f32 %v293, %v294
  %v296 = vmul.f32 %v295, %v241
  %v297 = vadd.f32 %v296, 1e-05
  %v298 = vrsqrt.pop %v297
  %v299 = vmul.f32 %v243, %v298
  %v300 = vmul.f32 %v244, %v298
  %v301 = vmul.f32 %v245, %v298
  %v302 = vmul.f32 %v246, %v298
  %v303 = vmul.f32 %v247, %v298
  %v304 = vmul.f32 %v248, %v298
  %v305 = vmul.f32 %v249, %v298
  %v306 = vmul.f32 %v250, %v298
  %v307 = vmul.f32 %v251, %v298
  %v308 = vmul.f32 %v252, %v298
  %v309 = vmul.f32 %v253, %v298
  %v310 = vmul.f32 %v254, %v298
  %v311 = vmul.f32 %v255, %v298
  %v312 = vmul.f32 %v256, %v298
  %v313 = vmul.f32 %v257, %v298
  %v314 = vmul.f32 %v258, %v298
  %v316 = vlaneseq
  %v317 = vshrl.u32 %v316, 7
  %v318 = vsub.s32 0, %v317
  %v319 = vrot.slane %v218, %v318
  %v321 = vmul.f32 %v299, %v319
  %v322 = vmul.f32 %v300, %v319
  %v323 = vmul.f32 %v301, %v319
  %v324 = vmul.f32 %v302, %v319
  %v325 = vmul.f32 %v303, %v319
  %v326 = vmul.f32 %v304, %v319
  %v327 = vmul.f32 %v305, %v319
  %v328 = vmul.f32 %v306, %v319
  %v329 = vmul.f32 %v307, %v319
  %v330 = vmul.f32 %v308, %v319
  %v331 = vmul.f32 %v309, %v319
  %v332 = vmul.f32 %v310, %v319
  %v333 = vmul.f32 %v311, %v319
  %v334 = vmul.f32 %v312, %v319
  %v335 = vmul.f32 %v313, %v319
  %v336 = vmul.f32 %v314, %v319
  %v338 = vlaneseq
  %v339 = vshrl.u32 %v338, 7
  %v340 = vsub.s32 0, %v339
  %v341 = vrot.slane %v219, %v340
  %v343 = vadd.f32 %v321, %v341
  %v344 = vadd.f32 %v322, %v341
  %v345 = vadd.f32 %v323, %v341
  %v346 = vadd.f32 %v324, %v341
  %v347 = vadd.f32 %v325, %v341
  %v348 = vadd.f32 %v326, %v341
  %v349 = vadd.f32 %v327, %v341
  %v350 = vadd.f32 %v328, %v341
  %v351 = vadd.f32 %v329, %v341
  %v352 = vadd.f32 %v330, %v341
  %v353 = vadd.f32 %v331, %v341
  %v354 = vadd.f32 %v332, %v341
  %v355 = vadd.f32 %v333, %v341
  %v356 = vadd.f32 %v334, %v341
  %v357 = vadd.f32 %v335, %v341
  %v358 = vadd.f32 %v336, %v341
  %vm359 = vcmp.ge.f32.partialorder %v343, 0.0
  %vm360 = vcmp.ge.f32.partialorder %v344, 0.0
  %vm361 = vcmp.ge.f32.partialorder %v345, 0.0
  %vm362 = vcmp.ge.f32.partialorder %v346, 0.0
  %vm363 = vcmp.ge.f32.partialorder %v347, 0.0
  %vm364 = vcmp.ge.f32.partialorder %v348, 0.0
  %vm365 = vcmp.ge.f32.partialorder %v349, 0.0
  %vm366 = vcmp.ge.f32.partialorder %v350, 0.0
  %vm367 = vcmp.ge.f32.partialorder %v351, 0.0
  %vm368 = vcmp.ge.f32.partialorder %v352, 0.0
  %vm369 = vcmp.ge.f32.partialorder %v353, 0.0
  %vm370 = vcmp.ge.f32.partialorder %v354, 0.0
  %vm371 = vcmp.ge.f32.partialorder %v355, 0.0
  %vm372 = vcmp.ge.f32.partialorder %v356, 0.0
  %vm373 = vcmp.ge.f32.partialorder %v357, 0.0
  %vm374 = vcmp.ge.f32.partialorder %v358, 0.0
  %v375 = vmul.f32 %v343, 0.2
  %v376 = vmul.f32 %v344, 0.2
  %v377 = vmul.f32 %v345, 0.2
  %v378 = vmul.f32 %v346, 0.2
  %v379 = vmul.f32 %v347, 0.2
  %v380 = vmul.f32 %v348, 0.2
  %v381 = vmul.f32 %v349, 0.2
  %v382 = vmul.f32 %v350, 0.2
  %v383 = vmul.f32 %v351, 0.2
  %v384 = vmul.f32 %v352, 0.2
  %v385 = vmul.f32 %v353, 0.2
  %v386 = vmul.f32 %v354, 0.2
  %v387 = vmul.f32 %v355, 0.2
  %v388 = vmul.f32 %v356, 0.2
  %v389 = vmul.f32 %v357, 0.2
  %v390 = vmul.f32 %v358, 0.2
  %v391 = vsel %vm359, %v343, %v375
  %v392 = vsel %vm360, %v344, %v376
  %v393 = vsel %vm361, %v345, %v377
  %v394 = vsel %vm362, %v346, %v378
  %v395 = vsel %vm363, %v347, %v379
  %v396 = vsel %vm364, %v348, %v380
  %v397 = vsel %vm365, %v349, %v381
  %v398 = vsel %vm366, %v350, %v382
  %v399 = vsel %vm367, %v351, %v383
  %v400 = vsel %vm368, %v352, %v384
  %v401 = vsel %vm369, %v353, %v385
  %v402 = vsel %vm370, %v354, %v386
  %v403 = vsel %vm371, %v355, %v387
  %v404 = vsel %vm372, %v356, %v388
  %v405 = vsel %vm373, %v357, %v389
  %v406 = vsel %vm374, %v358, %v390
  %v407 = vpack.c.bf16 %v392, %v391
  %v408 = vpack.c.bf16 %v394, %v393
  %v409 = vpack.c.bf16 %v396, %v395
  %v410 = vpack.c.bf16 %v398, %v397
  %v411 = vpack.c.bf16 %v400, %v399
  %v412 = vpack.c.bf16 %v402, %v401
  %v413 = vpack.c.bf16 %v404, %v403
  %v414 = vpack.c.bf16 %v406, %v405
  %v423 = vunpack.c.l.b16 %v407
  %v424 = vunpack.c.h.b16 %v407
  %v425 = vunpack.c.l.b16 %v408
  %v426 = vunpack.c.h.b16 %v408
  %v427 = vunpack.c.l.b16 %v409
  %v428 = vunpack.c.h.b16 %v409
  %v429 = vunpack.c.l.b16 %v410
  %v430 = vunpack.c.h.b16 %v410
  %v431 = vunpack.c.l.b16 %v411
  %v432 = vunpack.c.h.b16 %v411
  %v433 = vunpack.c.l.b16 %v412
  %v434 = vunpack.c.h.b16 %v412
  %v435 = vunpack.c.l.b16 %v413
  %v436 = vunpack.c.h.b16 %v413
  %v437 = vunpack.c.l.b16 %v414
  %v438 = vunpack.c.h.b16 %v414
  %v439 = vpack.c.b16 %v423, %v423
  %v440 = vpack.c.b16 %v424, %v424
  %v441 = vpack.c.b16 %v425, %v425
  %v442 = vpack.c.b16 %v426, %v426
  %v443 = vpack.c.b16 %v427, %v427
  %v444 = vpack.c.b16 %v428, %v428
  %v445 = vpack.c.b16 %v429, %v429
  %v446 = vpack.c.b16 %v430, %v430
  %v447 = vpack.c.b16 %v431, %v431
  %v448 = vpack.c.b16 %v432, %v432
  %v449 = vpack.c.b16 %v433, %v433
  %v450 = vpack.c.b16 %v434, %v434
  %v451 = vpack.c.b16 %v435, %v435
  %v452 = vpack.c.b16 %v436, %v436
  %v453 = vpack.c.b16 %v437, %v437
  %v454 = vpack.c.b16 %v438, %v438
  %471 = vst [vmem:[%s4] sm:$0xf] %v439
  %472 = vst [vmem:[%s4 + $0x4] sm:$0xf] %v440
  %473 = vst [vmem:[%s4 + $0x8] sm:$0xf] %v441
  %474 = vst [vmem:[%s4 + $0xc] sm:$0xf] %v442
  %475 = vst [vmem:[%s4 + $0x10] sm:$0xf] %v443
  %476 = vst [vmem:[%s4 + $0x14] sm:$0xf] %v444
  %477 = vst [vmem:[%s4 + $0x18] sm:$0xf] %v445
  %478 = vst [vmem:[%s4 + $0x1c] sm:$0xf] %v446
  %479 = vst [vmem:[%s4 + $0x20] sm:$0xf] %v447
  %480 = vst [vmem:[%s4 + $0x24] sm:$0xf] %v448
  %481 = vst [vmem:[%s4 + $0x28] sm:$0xf] %v449
  %482 = vst [vmem:[%s4 + $0x2c] sm:$0xf] %v450
  %483 = vst [vmem:[%s4 + $0x30] sm:$0xf] %v451
  %484 = vst [vmem:[%s4 + $0x34] sm:$0xf] %v452
  %485 = vst [vmem:[%s4 + $0x38] sm:$0xf] %v453
  %486 = vst [vmem:[%s4 + $0x3c] sm:$0xf] %v454
  // Predicated region
  $region18: #{discriminator_v2.5} parent=0 // pred_check
    _
  $region19: #{discriminator_v2.5} parent=0 // pred_check_branch
    %488 = sbr.rel (0) target = $region21
  $region20: #{discriminator_v2.5} parent=0 // pred_region
    _
  $region21: #{discriminator_v2.5} parent=0 // pred_fallthru
    _
  // Predicated region
  $region22: #{discriminator_v2.5} parent=0 // pred_check
    _
  $region23: #{discriminator_v2.5} parent=0 // pred_check_branch
    %490 = sbr.rel (0) target = $region25
  $region24: #{discriminator_v2.5} parent=0 // pred_region
    _
  $region25: #{discriminator_v2.5} parent=0 // pred_fallthru
    _

// kernel: discriminator_v2.6
$region0: #{discriminator_v2.6}
  #allocation0 [shape = 'u32[]', space=smem, size = 0x4, offset = 0x4, fixed_abs, tag = 'smem constant byte address 0x4 - core index']
  #allocation1 [shape = 'u32[144,128]{1,0:T(1,128)}', space=vmem, size = 0x12000, scoped, tag = 'internal scratch']
  %s0 = inlined_call_operand.vmem [shape: bf16[32,576], index: 0, kind: input, shape index: {}]
  %s1 = inlined_call_operand.vmem [shape: bf16[576,128], index: 1, kind: input, shape index: {}]
  %s2 = inlined_call_operand.vmem [shape: f32[1,128], index: 2, kind: input, shape index: {}]
  %s3 = inlined_call_operand.vmem [shape: f32[1,128], index: 3, kind: input, shape index: {}]
  %s4 = inlined_call_operand.vmem [shape: bf16[32,128], index: 4, kind: output, shape index: {}]
  %s5 = sld [smem:[#allocation0]]
  $region26: #{discriminator_v2.6} parent=0
    _
  %s7 = ssub.s32 1, %s5
  %s8 = scalar_select 0, %s7, %s5
  // Predicated region
  $region2: #{discriminator_v2.6} parent=0 // pred_check
    _
  $region3: #{discriminator_v2.6} parent=0 // pred_check_branch
    %10 = sbr.rel (0) target = $region5
  $region4: #{discriminator_v2.6} parent=0 // pred_region
    _
  $region5: #{discriminator_v2.6} parent=0 // pred_fallthru
    _
  // Predicated region
  $region6: #{discriminator_v2.6} parent=0 // pred_check
    _
  $region7: #{discriminator_v2.6} parent=0 // pred_check_branch
    %12 = sbr.rel (0) target = $region9
  $region8: #{discriminator_v2.6} parent=0 // pred_region
    _
  $region9: #{discriminator_v2.6} parent=0 // pred_fallthru
    _
  // Predicated region
  $region10: #{discriminator_v2.6} parent=0 // pred_check
    _
  $region11: #{discriminator_v2.6} parent=0 // pred_check_branch
    %14 = sbr.rel (0) target = $region13
  $region12: #{discriminator_v2.6} parent=0 // pred_region
    _
  $region13: #{discriminator_v2.6} parent=0 // pred_fallthru
    _
  // Predicated region
  $region14: #{discriminator_v2.6} parent=0 // pred_check
    _
  $region15: #{discriminator_v2.6} parent=0 // pred_check_branch
    %16 = sbr.rel (0) target = $region17
  $region16: #{discriminator_v2.6} parent=0 // pred_region
    _
  $region17: #{discriminator_v2.6} parent=0 // pred_fallthru
    _
  %v18 = vld [vmem:[%s0] sm:$0xff]
  %v19 = vld [vmem:[%s0 + $0x8] sm:$0xff]
  %v20 = vld [vmem:[%s0 + $0x10] sm:$0xf]
  %v21 = vld [vmem:[%s0 + $0x14] sm:$0xff]
  %v22 = vld [vmem:[%s0 + $0x1c] sm:$0xff]
  %v23 = vld [vmem:[%s0 + $0x24] sm:$0xf]
  %v24 = vld [vmem:[%s0 + $0x28] sm:$0xff]
  %v25 = vld [vmem:[%s0 + $0x30] sm:$0xff]
  %v26 = vld [vmem:[%s0 + $0x38] sm:$0xf]
  %v27 = vld [vmem:[%s0 + $0x3c] sm:$0xff]
  %v28 = vld [vmem:[%s0 + $0x44] sm:$0xff]
  %v29 = vld [vmem:[%s0 + $0x4c] sm:$0xf]
  %v30 = vld [vmem:[%s1] sm:$0xf]
  %v31 = vld [vmem:[%s1 + $0x4] sm:$0xf]
  %v32 = vld [vmem:[%s1 + $0x8] sm:$0xf]
  %v33 = vld [vmem:[%s1 + $0xc] sm:$0xf]
  %v34 = vld [vmem:[%s1 + $0x10] sm:$0xf]
  %v35 = vld [vmem:[%s1 + $0x14] sm:$0xf]
  %v36 = vld [vmem:[%s1 + $0x18] sm:$0xf]
  %v37 = vld [vmem:[%s1 + $0x1c] sm:$0xf]
  %v38 = vld [vmem:[%s1 + $0x20] sm:$0xf]
  %v39 = vld [vmem:[%s1 + $0x24] sm:$0xf]
  %v40 = vld [vmem:[%s1 + $0x28] sm:$0xf]
  %v41 = vld [vmem:[%s1 + $0x2c] sm:$0xf]
  %v42 = vld [vmem:[%s1 + $0x30] sm:$0xf]
  %v43 = vld [vmem:[%s1 + $0x34] sm:$0xf]
  %v44 = vld [vmem:[%s1 + $0x38] sm:$0xf]
  %v45 = vld [vmem:[%s1 + $0x3c] sm:$0xf]
  %v46 = vld [vmem:[%s1 + $0x40] sm:$0xf]
  %v47 = vld [vmem:[%s1 + $0x44] sm:$0xf]
  %v48 = vld [vmem:[%s1 + $0x48] sm:$0xf]
  %v49 = vld [vmem:[%s1 + $0x4c] sm:$0xf]
  %v50 = vld [vmem:[%s1 + $0x50] sm:$0xf]
  %v51 = vld [vmem:[%s1 + $0x54] sm:$0xf]
  %v52 = vld [vmem:[%s1 + $0x58] sm:$0xf]
  %v53 = vld [vmem:[%s1 + $0x5c] sm:$0xf]
  %v54 = vld [vmem:[%s1 + $0x60] sm:$0xf]
  %v55 = vld [vmem:[%s1 + $0x64] sm:$0xf]
  %v56 = vld [vmem:[%s1 + $0x68] sm:$0xf]
  %v57 = vld [vmem:[%s1 + $0x6c] sm:$0xf]
  %v58 = vld [vmem:[%s1 + $0x70] sm:$0xf]
  %v59 = vld [vmem:[%s1 + $0x74] sm:$0xf]
  %v60 = vld [vmem:[%s1 + $0x78] sm:$0xf]
  %v61 = vld [vmem:[%s1 + $0x7c] sm:$0xf]
  %v62 = vld [vmem:[%s1 + $0x80] sm:$0xf]
  %v63 = vld [vmem:[%s1 + $0x84] sm:$0xf]
  %v64 = vld [vmem:[%s1 + $0x88] sm:$0xf]
  %v65 = vld [vmem:[%s1 + $0x8c] sm:$0xf]
  %v66 = vld [vmem:[%s1 + $0x90] sm:$0xf]
  %v67 = vld [vmem:[%s1 + $0x94] sm:$0xf]
  %v68 = vld [vmem:[%s1 + $0x98] sm:$0xf]
  %v69 = vld [vmem:[%s1 + $0x9c] sm:$0xf]
  %v70 = vld [vmem:[%s1 + $0xa0] sm:$0xf]
  %v71 = vld [vmem:[%s1 + $0xa4] sm:$0xf]
  %v72 = vld [vmem:[%s1 + $0xa8] sm:$0xf]
  %v73 = vld [vmem:[%s1 + $0xac] sm:$0xf]
  %v74 = vld [vmem:[%s1 + $0xb0] sm:$0xf]
  %v75 = vld [vmem:[%s1 + $0xb4] sm:$0xf]
  %v76 = vld [vmem:[%s1 + $0xb8] sm:$0xf]
  %v77 = vld [vmem:[%s1 + $0xbc] sm:$0xf]
  %v78 = vld [vmem:[%s1 + $0xc0] sm:$0xf]
  %v79 = vld [vmem:[%s1 + $0xc4] sm:$0xf]
  %v80 = vld [vmem:[%s1 + $0xc8] sm:$0xf]
  %v81 = vld [vmem:[%s1 + $0xcc] sm:$0xf]
  %v82 = vld [vmem:[%s1 + $0xd0] sm:$0xf]
  %v83 = vld [vmem:[%s1 + $0xd4] sm:$0xf]
  %v84 = vld [vmem:[%s1 + $0xd8] sm:$0xf]
  %v85 = vld [vmem:[%s1 + $0xdc] sm:$0xf]
  %v86 = vld [vmem:[%s1 + $0xe0] sm:$0xf]
  %v87 = vld [vmem:[%s1 + $0xe4] sm:$0xf]
  %v88 = vld [vmem:[%s1 + $0xe8] sm:$0xf]
  %v89 = vld [vmem:[%s1 + $0xec] sm:$0xf]
  %v90 = vld [vmem:[%s1 + $0xf0] sm:$0xf]
  %v91 = vld [vmem:[%s1 + $0xf4] sm:$0xf]
  %v92 = vld [vmem:[%s1 + $0xf8] sm:$0xf]
  %v93 = vld [vmem:[%s1 + $0xfc] sm:$0xf]
  %v94 = vld [vmem:[%s1 + $0x100] sm:$0xf]
  %v95 = vld [vmem:[%s1 + $0x104] sm:$0xf]
  %v96 = vld [vmem:[%s1 + $0x108] sm:$0xf]
  %v97 = vld [vmem:[%s1 + $0x10c] sm:$0xf]
  %v98 = vld [vmem:[%s1 + $0x110] sm:$0xf]
  %v99 = vld [vmem:[%s1 + $0x114] sm:$0xf]
  %v100 = vld [vmem:[%s1 + $0x118] sm:$0xf]
  %v101 = vld [vmem:[%s1 + $0x11c] sm:$0xf]
  %v114 = vunpack.c.l.b16 %v18
  %v115 = vunpack.c.h.b16 %v18
  %v116 = vunpack.c.l.b16 %v19
  %v117 = vunpack.c.h.b16 %v19
  %v118 = vunpack.c.l.b16 %v20
  %v119 = vunpack.c.l.b16 %v21
  %v120 = vunpack.c.h.b16 %v21
  %v121 = vunpack.c.l.b16 %v22
  %v122 = vunpack.c.h.b16 %v22
  %v123 = vunpack.c.l.b16 %v23
  %v124 = vunpack.c.l.b16 %v24
  %v125 = vunpack.c.h.b16 %v24
  %v126 = vunpack.c.l.b16 %v25
  %v127 = vunpack.c.h.b16 %v25
  %v128 = vunpack.c.l.b16 %v26
  %v129 = vunpack.c.l.b16 %v27
  %v130 = vunpack.c.h.b16 %v27
  %v131 = vunpack.c.l.b16 %v28
  %v132 = vunpack.c.h.b16 %v28
  %v133 = vunpack.c.l.b16 %v29
  %v134 = vpack.c.b16 %v119, %v114
  %v135 = vpack.c.b16 %v120, %v115
  %v136 = vpack.c.b16 %v121, %v116
  %v137 = vpack.c.b16 %v122, %v117
  %v138 = vpack.c.b16 %v123, %v118
  %v139 = vpack.c.b16 %v129, %v124
  %v140 = vpack.c.b16 %v130, %v125
  %v141 = vpack.c.b16 %v131, %v126
  %v142 = vpack.c.b16 %v132, %v127
  %v143 = vpack.c.b16 %v133, %v128
  %v224 = vunpack.c.l.b16 %v30
  %v225 = vunpack.c.l.b16 %v31
  %v226 = vunpack.c.l.b16 %v32
  %v227 = vunpack.c.l.b16 %v33
  %v228 = vunpack.c.l.b16 %v34
  %v229 = vunpack.c.l.b16 %v35
  %v230 = vunpack.c.l.b16 %v36
  %v231 = vunpack.c.l.b16 %v37
  %v232 = vunpack.c.l.b16 %v38
  %v233 = vunpack.c.l.b16 %v39
  %v234 = vunpack.c.l.b16 %v40
  %v235 = vunpack.c.l.b16 %v41
  %v236 = vunpack.c.l.b16 %v42
  %v237 = vunpack.c.l.b16 %v43
  %v238 = vunpack.c.l.b16 %v44
  %v239 = vunpack.c.l.b16 %v45
  %v240 = vunpack.c.l.b16 %v46
  %v241 = vunpack.c.l.b16 %v47
  %v242 = vunpack.c.l.b16 %v48
  %v243 = vunpack.c.l.b16 %v49
  %v244 = vunpack.c.l.b16 %v50
  %v245 = vunpack.c.l.b16 %v51
  %v246 = vunpack.c.l.b16 %v52
  %v247 = vunpack.c.l.b16 %v53
  %v248 = vunpack.c.l.b16 %v54
  %v249 = vunpack.c.l.b16 %v55
  %v250 = vunpack.c.l.b16 %v56
  %v251 = vunpack.c.l.b16 %v57
  %v252 = vunpack.c.l.b16 %v58
  %v253 = vunpack.c.l.b16 %v59
  %v254 = vunpack.c.l.b16 %v60
  %v255 = vunpack.c.l.b16 %v61
  %v256 = vunpack.c.l.b16 %v62
  %v257 = vunpack.c.l.b16 %v63
  %v258 = vunpack.c.l.b16 %v64
  %v259 = vunpack.c.l.b16 %v65
  %v260 = vunpack.c.l.b16 %v66
  %v261 = vunpack.c.l.b16 %v67
  %v262 = vunpack.c.l.b16 %v68
  %v263 = vunpack.c.l.b16 %v69
  %v264 = vunpack.c.l.b16 %v70
  %v265 = vunpack.c.l.b16 %v71
  %v266 = vunpack.c.l.b16 %v72
  %v267 = vunpack.c.l.b16 %v73
  %v268 = vunpack.c.l.b16 %v74
  %v269 = vunpack.c.l.b16 %v75
  %v270 = vunpack.c.l.b16 %v76
  %v271 = vunpack.c.l.b16 %v77
  %v272 = vunpack.c.l.b16 %v78
  %v273 = vunpack.c.l.b16 %v79
  %v274 = vunpack.c.l.b16 %v80
  %v275 = vunpack.c.l.b16 %v81
  %v276 = vunpack.c.l.b16 %v82
  %v277 = vunpack.c.l.b16 %v83
  %v278 = vunpack.c.l.b16 %v84
  %v279 = vunpack.c.l.b16 %v85
  %v280 = vunpack.c.l.b16 %v86
  %v281 = vunpack.c.l.b16 %v87
  %v282 = vunpack.c.l.b16 %v88
  %v283 = vunpack.c.l.b16 %v89
  %v284 = vunpack.c.l.b16 %v90
  %v285 = vunpack.c.l.b16 %v91
  %v286 = vunpack.c.l.b16 %v92
  %v287 = vunpack.c.l.b16 %v93
  %v288 = vunpack.c.l.b16 %v94
  %v289 = vunpack.c.l.b16 %v95
  %v290 = vunpack.c.l.b16 %v96
  %v291 = vunpack.c.l.b16 %v97
  %v292 = vunpack.c.l.b16 %v98
  %v293 = vunpack.c.l.b16 %v99
  %v294 = vunpack.c.l.b16 %v100
  %v295 = vunpack.c.l.b16 %v101
  %v296 = vpack.c.b16 %v225, %v224
  %v297 = vpack.c.b16 %v227, %v226
  %v298 = vpack.c.b16 %v229, %v228
  %v299 = vpack.c.b16 %v231, %v230
  %v300 = vpack.c.b16 %v233, %v232
  %v301 = vpack.c.b16 %v235, %v234
  %v302 = vpack.c.b16 %v237, %v236
  %v303 = vpack.c.b16 %v239, %v238
  %v304 = vpack.c.b16 %v241, %v240
  %v305 = vpack.c.b16 %v243, %v242
  %v306 = vpack.c.b16 %v245, %v244
  %v307 = vpack.c.b16 %v247, %v246
  %v308 = vpack.c.b16 %v249, %v248
  %v309 = vpack.c.b16 %v251, %v250
  %v310 = vpack.c.b16 %v253, %v252
  %v311 = vpack.c.b16 %v255, %v254
  %v312 = vpack.c.b16 %v257, %v256
  %v313 = vpack.c.b16 %v259, %v258
  %v314 = vpack.c.b16 %v261, %v260
  %v315 = vpack.c.b16 %v263, %v262
  %v316 = vpack.c.b16 %v265, %v264
  %v317 = vpack.c.b16 %v267, %v266
  %v318 = vpack.c.b16 %v269, %v268
  %v319 = vpack.c.b16 %v271, %v270
  %v320 = vpack.c.b16 %v273, %v272
  %v321 = vpack.c.b16 %v275, %v274
  %v322 = vpack.c.b16 %v277, %v276
  %v323 = vpack.c.b16 %v279, %v278
  %v324 = vpack.c.b16 %v281, %v280
  %v325 = vpack.c.b16 %v283, %v282
  %v326 = vpack.c.b16 %v285, %v284
  %v327 = vpack.c.b16 %v287, %v286
  %v328 = vpack.c.b16 %v289, %v288
  %v329 = vpack.c.b16 %v291, %v290
  %v330 = vpack.c.b16 %v293, %v292
  %v331 = vpack.c.b16 %v295, %v294
  %vm368 = vcmask 523264
  %v370 = vsel %vm368, %v138, 0
  %v373 = vsel %vm368, %v143, 0
  %375 = vmatprep.subr.bf16.mxu0 0
  %376 = vmatpush1.bf16.msra.mxu0 %v296
  %377 = vmatprep.subr.bf16.mxu0 0
  %378 = vmatpush1.bf16.msra.mxu0 %v297
  %379 = vmatprep.subr.bf16.mxu0 0
  %380 = vmatpush1.bf16.msra.mxu0 %v298
  %381 = vmatprep.subr.bf16.mxu0 0
  %382 = vmatpush1.bf16.msra.mxu0 %v299
  %383 = vmatprep.subr.bf16.mxu0 0
  %384 = vmatpush1.bf16.msra.mxu0 %v300
  %385 = vmatprep.subr.bf16.mxu0 0
  %386 = vmatpush1.bf16.msra.mxu0 %v301
  %387 = vmatprep.subr.bf16.mxu0 0
  %388 = vmatpush1.bf16.msra.mxu0 %v302
  %389 = vmatprep.subr.bf16.mxu0 0
  %390 = vmatpush1.bf16.msra.mxu0 %v303
  %391 = vmatprep.subr.bf16.mxu0 0
  %392 = vmatpush1.bf16.msra.mxu0 %v304
  %393 = vmatprep.subr.bf16.mxu0 0
  %394 = vmatpush1.bf16.msra.mxu0 %v305
  %395 = vmatprep.subr.bf16.mxu0 0
  %396 = vmatpush1.bf16.msra.mxu0 %v306
  %397 = vmatprep.subr.bf16.mxu0 0
  %398 = vmatpush1.bf16.msra.mxu0 %v307
  %399 = vmatprep.subr.bf16.mxu0 0
  %400 = vmatpush1.bf16.msra.mxu0 %v308
  %401 = vmatprep.subr.bf16.mxu0 0
  %402 = vmatpush1.bf16.msra.mxu0 %v309
  %403 = vmatprep.subr.bf16.mxu0 0
  %404 = vmatpush1.bf16.msra.mxu0 %v310
  %405 = vmatprep.subr.bf16.mxu0 0
  %406 = vmatpush1.bf16.msra.mxu0 %v311
  %407 = vmatprep.mubr.bf16.mxu0 %v135
  %408 = vmatmul.mubr.bf16.gmra.mrb[0].mxu0 %v134
  %v409 = vpop.f32.mrb[0].mxu0
  %v410 = vadd.f32 0.0, %v409
  %v411 = vpop.f32.mrb[0].mxu0
  %v412 = vpop.f32.mrb[0].mxu0
  %v413 = vadd.f32 0.0, %v412
  %v414 = vpop.f32.mrb[0].mxu0
  %415 = vmatprep.mubr.bf16.mxu0 %v140
  %416 = vmatmul.mubr.bf16.gmra.mrb[0].mxu0 %v139
  %v417 = vpop.f32.mrb[0].mxu0
  %v418 = vadd.f32 0.0, %v417
  %v419 = vpop.f32.mrb[0].mxu0
  %v420 = vpop.f32.mrb[0].mxu0
  %v421 = vadd.f32 0.0, %v420
  %v422 = vpop.f32.mrb[0].mxu0
  %423 = vdwg.mxu0
  %424 = vmatprep.subr.bf16.mxu0 0
  %425 = vmatpush1.bf16.msra.mxu0 %v312
  %426 = vmatprep.subr.bf16.mxu0 0
  %427 = vmatpush1.bf16.msra.mxu0 %v313
  %428 = vmatprep.subr.bf16.mxu0 0
  %429 = vmatpush1.bf16.msra.mxu0 %v314
  %430 = vmatprep.subr.bf16.mxu0 0
  %431 = vmatpush1.bf16.msra.mxu0 %v315
  %432 = vmatprep.subr.bf16.mxu0 0
  %433 = vmatpush1.bf16.msra.mxu0 %v316
  %434 = vmatprep.subr.bf16.mxu0 0
  %435 = vmatpush1.bf16.msra.mxu0 %v317
  %436 = vmatprep.subr.bf16.mxu0 0
  %437 = vmatpush1.bf16.msra.mxu0 %v318
  %438 = vmatprep.subr.bf16.mxu0 0
  %439 = vmatpush1.bf16.msra.mxu0 %v319
  %440 = vmatprep.subr.bf16.mxu0 0
  %441 = vmatpush1.bf16.msra.mxu0 %v320
  %442 = vmatprep.subr.bf16.mxu0 0
  %443 = vmatpush1.bf16.msra.mxu0 %v321
  %444 = vmatprep.subr.bf16.mxu0 0
  %445 = vmatpush1.bf16.msra.mxu0 %v322
  %446 = vmatprep.subr.bf16.mxu0 0
  %447 = vmatpush1.bf16.msra.mxu0 %v323
  %448 = vmatprep.subr.bf16.mxu0 0
  %449 = vmatpush1.bf16.msra.mxu0 %v324
  %450 = vmatprep.subr.bf16.mxu0 0
  %451 = vmatpush1.bf16.msra.mxu0 %v325
  %452 = vmatprep.subr.bf16.mxu0 0
  %453 = vmatpush1.bf16.msra.mxu0 %v326
  %454 = vmatprep.subr.bf16.mxu0 0
  %455 = vmatpush1.bf16.msra.mxu0 %v327
  %456 = vmatprep.mubr.bf16.mxu0 %v137
  %457 = vmatmul.mubr.bf16.gmra.mrb[0].mxu0 %v136
  %v458 = vpop.f32.mrb[0].mxu0
  %v459 = vadd.f32 %v410, %v458
  %v460 = vpop.f32.mrb[0].mxu0
  %v461 = vpop.f32.mrb[0].mxu0
  %v462 = vadd.f32 %v413, %v461
  %v463 = vpop.f32.mrb[0].mxu0
  %464 = vmatprep.mubr.bf16.mxu0 %v142
  %465 = vmatmul.mubr.bf16.gmra.mrb[0].mxu0 %v141
  %v466 = vpop.f32.mrb[0].mxu0
  %v467 = vadd.f32 %v418, %v466
  %v468 = vpop.f32.mrb[0].mxu0
  %v469 = vpop.f32.mrb[0].mxu0
  %v470 = vadd.f32 %v421, %v469
  %v471 = vpop.f32.mrb[0].mxu0
  %472 = vdwg.mxu0
  %473 = vmatprep.subr.bf16.mxu0 0
  %474 = vmatpush1.bf16.msra.mxu0 %v328
  %475 = vmatprep.subr.bf16.mxu0 0
  %476 = vmatpush1.bf16.msra.mxu0 %v329
  %477 = vmatprep.subr.bf16.mxu0 0
  %478 = vmatpush1.bf16.msra.mxu0 %v330
  %479 = vmatprep.subr.bf16.mxu0 0
  %480 = vmatpush1.bf16.msra.mxu0 %v331
  %481 = vmatprep.subr.bf16.mxu0 0
  %482 = vmatpush1.bf16.msra.mxu0 0
  %483 = vmatprep.subr.bf16.mxu0 0
  %484 = vmatpush1.bf16.msra.mxu0 0
  %485 = vmatprep.subr.bf16.mxu0 0
  %486 = vmatpush1.bf16.msra.mxu0 0
  %487 = vmatprep.subr.bf16.mxu0 0
  %488 = vmatpush1.bf16.msra.mxu0 0
  %489 = vmatprep.subr.bf16.mxu0 0
  %490 = vmatpush1.bf16.msra.mxu0 0
  %491 = vmatprep.subr.bf16.mxu0 0
  %492 = vmatpush1.bf16.msra.mxu0 0
  %493 = vmatprep.subr.bf16.mxu0 0
  %494 = vmatpush1.bf16.msra.mxu0 0
  %495 = vmatprep.subr.bf16.mxu0 0
  %496 = vmatpush1.bf16.msra.mxu0 0
  %497 = vmatprep.subr.bf16.mxu0 0
  %498 = vmatpush1.bf16.msra.mxu0 0
  %499 = vmatprep.subr.bf16.mxu0 0
  %500 = vmatpush1.bf16.msra.mxu0 0
  %501 = vmatprep.subr.bf16.mxu0 0
  %502 = vmatpush1.bf16.msra.mxu0 0
  %503 = vmatprep.subr.bf16.mxu0 0
  %504 = vmatpush1.bf16.msra.mxu0 0
  %505 = vmatprep.mubr.bf16.mxu0 0
  %506 = vmatmul.mubr.bf16.gmra.mrb[0].mxu0 %v370
  %v507 = vpop.f32.mrb[0].mxu0
  %v508 = vadd.f32 %v459, %v507
  %v509 = vpop.f32.mrb[0].mxu0
  %v510 = vpop.f32.mrb[0].mxu0
  %v511 = vadd.f32 %v462, %v510
  %v512 = vpop.f32.mrb[0].mxu0
  %513 = vmatprep.mubr.bf16.mxu0 0
  %514 = vmatmul.mubr.bf16.gmra.mrb[0].mxu0 %v373
  %v515 = vpop.f32.mrb[0].mxu0
  %v516 = vadd.f32 %v467, %v515
  %v517 = vpop.f32.mrb[0].mxu0
  %v518 = vpop.f32.mrb[0].mxu0
  %v519 = vadd.f32 %v470, %v518
  %v520 = vpop.f32.mrb[0].mxu0
  %521 = vdwg.mxu0
  %v522 = vld [vmem:[%s2] sm:$0x1]
  %v523 = vld [vmem:[%s3] sm:$0x1]
  %v524 = vadd.f32 %v508, %v511
  %v525 = vadd.f32 %v524, %v516
  %v526 = vadd.f32 %v525, %v519
  %v527 = vrot.slane %v526, 4
  %v528 = vadd.f32 %v526, %v527
  %v529 = vrot.slane %v528, 2
  %v530 = vadd.f32 %v528, %v529
  %v531 = vrot.slane %v530, 1
  %v532 = vadd.f32 %v530, %v531
  %v533 = vrcp.pop 32.0
  %v534 = vmul.f32 %v532, %v533
  %v535 = vsub.f32 %v508, %v534
  %v536 = vsub.f32 %v511, %v534
  %v537 = vsub.f32 %v516, %v534
  %v538 = vsub.f32 %v519, %v534
  %v539 = vmul.f32 %v535, %v535
  %v540 = vmul.f32 %v536, %v536
  %v541 = vmul.f32 %v537, %v537
  %v542 = vmul.f32 %v538, %v538
  %v543 = vadd.f32 %v539, %v540
  %v544 = vadd.f32 %v543, %v541
  %v545 = vadd.f32 %v544, %v542
  %v546 = vrot.slane %v545, 4
  %v547 = vadd.f32 %v545, %v546
  %v548 = vrot.slane %v547, 2
  %v549 = vadd.f32 %v547, %v548
  %v550 = vrot.slane %v549, 1
  %v551 = vadd.f32 %v549, %v550
  %v552 = vmul.f32 %v551, %v533
  %v553 = vadd.f32 %v552, 1e-05
  %v554 = vrsqrt.pop %v553
  %v555 = vmul.f32 %v535, %v554
  %v556 = vmul.f32 %v536, %v554
  %v557 = vmul.f32 %v537, %v554
  %v558 = vmul.f32 %v538, %v554
  %v560 = vlaneseq
  %v561 = vshrl.u32 %v560, 7
  %v562 = vsub.s32 0, %v561
  %v563 = vrot.slane %v522, %v562
  %v565 = vmul.f32 %v555, %v563
  %v566 = vmul.f32 %v556, %v563
  %v567 = vmul.f32 %v557, %v563
  %v568 = vmul.f32 %v558, %v563
  %v570 = vlaneseq
  %v571 = vshrl.u32 %v570, 7
  %v572 = vsub.s32 0, %v571
  %v573 = vrot.slane %v523, %v572
  %v575 = vadd.f32 %v565, %v573
  %v576 = vadd.f32 %v566, %v573
  %v577 = vadd.f32 %v567, %v573
  %v578 = vadd.f32 %v568, %v573
  %vm579 = vcmp.ge.f32.partialorder %v575, 0.0
  %vm580 = vcmp.ge.f32.partialorder %v576, 0.0
  %vm581 = vcmp.ge.f32.partialorder %v577, 0.0
  %vm582 = vcmp.ge.f32.partialorder %v578, 0.0
  %v583 = vmul.f32 %v575, 0.2
  %v584 = vmul.f32 %v576, 0.2
  %v585 = vmul.f32 %v577, 0.2
  %v586 = vmul.f32 %v578, 0.2
  %v587 = vsel %vm579, %v575, %v583
  %v588 = vsel %vm580, %v576, %v584
  %v589 = vsel %vm581, %v577, %v585
  %v590 = vsel %vm582, %v578, %v586
  %v591 = vpack.c.bf16 %v588, %v587
  %v592 = vpack.c.bf16 %v590, %v589
  %v595 = vunpack.c.l.b16 %v591
  %v596 = vunpack.c.h.b16 %v591
  %v597 = vunpack.c.l.b16 %v592
  %v598 = vunpack.c.h.b16 %v592
  %v599 = vpack.c.b16 %v595, %v595
  %v600 = vpack.c.b16 %v596, %v596
  %v601 = vpack.c.b16 %v597, %v597
  %v602 = vpack.c.b16 %v598, %v598
  %607 = vst [vmem:[%s4] sm:$0xf] %v599
  %608 = vst [vmem:[%s4 + $0x4] sm:$0xf] %v600
  %609 = vst [vmem:[%s4 + $0x8] sm:$0xf] %v601
  %610 = vst [vmem:[%s4 + $0xc] sm:$0xf] %v602
  // Predicated region
  $region18: #{discriminator_v2.6} parent=0 // pred_check
    _
  $region19: #{discriminator_v2.6} parent=0 // pred_check_branch
    %612 = sbr.rel (0) target = $region21
  $region20: #{discriminator_v2.6} parent=0 // pred_region
    _
  $region21: #{discriminator_v2.6} parent=0 // pred_fallthru
    _
  // Predicated region
  $region22: #{discriminator_v2.6} parent=0 // pred_check
    _
  $region23: #{discriminator_v2.6} parent=0 // pred_check_branch
    %614 = sbr.rel (0) target = $region25
  $region24: #{discriminator_v2.6} parent=0 // pred_region
    _
  $region25: #{discriminator_v2.6} parent=0 // pred_fallthru
    _

// kernel: discriminator_v2.8
$region0: #{discriminator_v2.8}
  #allocation0 [shape = 'u32[]', space=smem, size = 0x4, offset = 0x4, fixed_abs, tag = 'smem constant byte address 0x4 - core index']
  #allocation1 [shape = 'u32[144,128]{1,0:T(1,128)}', space=vmem, size = 0x12000, scoped, tag = 'internal scratch']
  %s0 = inlined_call_operand.vmem [shape: bf16[8,1152], index: 0, kind: input, shape index: {}]
  %s1 = inlined_call_operand.vmem [shape: bf16[1152,256], index: 1, kind: input, shape index: {}]
  %s2 = inlined_call_operand.vmem [shape: f32[1,256], index: 2, kind: input, shape index: {}]
  %s3 = inlined_call_operand.vmem [shape: f32[1,256], index: 3, kind: input, shape index: {}]
  %s4 = inlined_call_operand.vmem [shape: bf16[8,256], index: 4, kind: output, shape index: {}]
  %s5 = sld [smem:[#allocation0]]
  $region90: #{discriminator_v2.8} parent=0
    _
  %s7 = ssub.s32 1, %s5
  %s8 = scalar_select 0, %s7, %s5
  $region1: #{discriminator_v2.8} parent=0
    #allocation2 [shape = 'u8[589824]{0}', space=vmem, size = 0x90000, scoped, tag = 'input window, operand 1']
    loop: start=0, step=1, limit=4
    $region2: #{discriminator_v2.8} parent=1 // loop_pre_header
      _
    $region3: #{discriminator_v2.8} parent=1 // loop_header
      %s10 = sphi 0, %s14
      %p11 = scmp.ge.s32.totalorder %s10, 4
      %s18 = sphi 0, %s18
      %s20 = sphi 0, %s18
      %s21 = sphi 0, %s20
      %s35 = sphi 0, %s21
      %s41 = sphi 0, %s43
      %s44 = sphi 0, %s41
      %s45 = sphi 0, %s44
      %s61 = sphi 0, %s45
      %s67 = sphi 0, %s69
      %s70 = sphi 0, %s67
      %s71 = sphi 0, %s70
      %s87 = sphi 0, %s71
      %s93 = sphi 0, %s95
      %s96 = sphi 0, %s93
      %s97 = sphi 0, %s96
      %s113 = sphi 0, %s97
      %s119 = sphi 0, %s121
      %s122 = sphi 0, %s119
      %s123 = sphi 0, %s122
      %s139 = sphi 0, %s123
    $region4: #{discriminator_v2.8} parent=1 // loop_header_branch
      %13 = sbr.rel (%p11) target = $region8
    $region5: #{discriminator_v2.8} parent=1 // loop_body
      %s15 = ssub.s32 %s10, 1
      %s16 = ssub.s32 %s10, 2
      %s17 = sadd.s32 %s10, 1
      %s19 = sadd.s32 %s18, 1
      %p22 = scmp.eq.s32.totalorder %s10, 1
      %p23 = scmp.ne.s32.totalorder %s18, %s20
      %p24 = scmp.eq.s32.totalorder %s10, 0
      %p25 = por %p23, %p24
      %p26 = scmp.ne.s32.totalorder %s18, %s20
      %p27 = scmp.eq.s32.totalorder %s15, 1
      %p28 = por %p26, %p27
      %p29 = scmp.ne.s32.totalorder %s20, %s21
      %p30 = scmp.eq.s32.totalorder %s15, 0
      %p31 = por %p29, %p30
      %p32 = scmp.ne.s32.totalorder %s20, %s21
      %p33 = scmp.eq.s32.totalorder %s16, 1
      %p34 = por %p32, %p33
      %p36 = scmp.ne.s32.totalorder %s21, %s35
      %p37 = scmp.eq.s32.totalorder %s16, 0
      %p38 = por %p36, %p37
      %s39 = ssub.s32 %s10, %s17
      %p40 = scmp.eq.s32.totalorder %s39, 0
      %s42 = sadd.s32 %s41, 1
      %s43 = scalar_select %p40, %s41, %s42
      %p46 = pneg %p40
      %p47 = scmp.eq.s32.totalorder %s10, 1
      %p48 = por %p46, %p47
      %p49 = scmp.ne.s32.totalorder %s41, %s44
      %p50 = scmp.eq.s32.totalorder %s10, 0
      %p51 = por %p49, %p50
      %p52 = scmp.ne.s32.totalorder %s41, %s44
      %p53 = scmp.eq.s32.totalorder %s15, 1
      %p54 = por %p52, %p53
      %p55 = scmp.ne.s32.totalorder %s44, %s45
      %p56 = scmp.eq.s32.totalorder %s15, 0
      %p57 = por %p55, %p56
      %p58 = scmp.ne.s32.totalorder %s44, %s45
      %p59 = scmp.eq.s32.totalorder %s16, 1
      %p60 = por %p58, %p59
      %p62 = scmp.ne.s32.totalorder %s45, %s61
      %p63 = scmp.eq.s32.totalorder %s16, 0
      %p64 = por %p62, %p63
      %s65 = ssub.s32 %s10, %s17
      %p66 = scmp.eq.s32.totalorder %s65, 0
      %s68 = sadd.s32 %s67, 1
      %s69 = scalar_select %p66, %s67, %s68
      %p72 = pneg %p66
      %p73 = scmp.eq.s32.totalorder %s10, 1
      %p74 = por %p72, %p73
      %p75 = scmp.ne.s32.totalorder %s67, %s70
      %p76 = scmp.eq.s32.totalorder %s10, 0
      %p77 = por %p75, %p76
      %p78 = scmp.ne.s32.totalorder %s67, %s70
      %p79 = scmp.eq.s32.totalorder %s15, 1
      %p80 = por %p78, %p79
      %p81 = scmp.ne.s32.totalorder %s70, %s71
      %p82 = scmp.eq.s32.totalorder %s15, 0
      %p83 = por %p81, %p82
      %p84 = scmp.ne.s32.totalorder %s70, %s71
      %p85 = scmp.eq.s32.totalorder %s16, 1
      %p86 = por %p84, %p85
      %p88 = scmp.ne.s32.totalorder %s71, %s87
      %p89 = scmp.eq.s32.totalorder %s16, 0
      %p90 = por %p88, %p89
      %s91 = ssub.s32 %s10, %s17
      %p92 = scmp.eq.s32.totalorder %s91, 0
      %s94 = sadd.s32 %s93, 1
      %s95 = scalar_select %p92, %s93, %s94
      %p98 = pneg %p92
      %p99 = scmp.eq.s32.totalorder %s10, 1
      %p100 = por %p98, %p99
      %p101 = scmp.ne.s32.totalorder %s93, %s96
      %p102 = scmp.eq.s32.totalorder %s10, 0
      %p103 = por %p101, %p102
      %p104 = scmp.ne.s32.totalorder %s93, %s96
      %p105 = scmp.eq.s32.totalorder %s15, 1
      %p106 = por %p104, %p105
      %p107 = scmp.ne.s32.totalorder %s96, %s97
      %p108 = scmp.eq.s32.totalorder %s15, 0
      %p109 = por %p107, %p108
      %p110 = scmp.ne.s32.totalorder %s96, %s97
      %p111 = scmp.eq.s32.totalorder %s16, 1
      %p112 = por %p110, %p111
      %p114 = scmp.ne.s32.totalorder %s97, %s113
      %p115 = scmp.eq.s32.totalorder %s16, 0
      %p116 = por %p114, %p115
      %s117 = ssub.s32 %s10, %s17
      %p118 = scmp.eq.s32.totalorder %s117, 0
      %s120 = sadd.s32 %s119, 1
      %s121 = scalar_select %p118, %s119, %s120
      %p124 = pneg %p118
      %p125 = scmp.eq.s32.totalorder %s10, 1
      %p126 = por %p124, %p125
      %p127 = scmp.ne.s32.totalorder %s119, %s122
      %p128 = scmp.eq.s32.totalorder %s10, 0
      %p129 = por %p127, %p128
      %p130 = scmp.ne.s32.totalorder %s119, %s122
      %p131 = scmp.eq.s32.totalorder %s15, 1
      %p132 = por %p130, %p131
      %p133 = scmp.ne.s32.totalorder %s122, %s123
      %p134 = scmp.eq.s32.totalorder %s15, 0
      %p135 = por %p133, %p134
      %p136 = scmp.ne.s32.totalorder %s122, %s123
      %p137 = scmp.eq.s32.totalorder %s16, 1
      %p138 = por %p136, %p137
      %p140 = scmp.ne.s32.totalorder %s123, %s139
      %p141 = scmp.eq.s32.totalorder %s16, 0
      %p142 = por %p140, %p141
      %p143 = scmp.le.s32.totalorder 1, %s10
      %p144 = scmp.lt.s32.totalorder %s10, 3
      %p145 = pnand %p143, %p144
      %p146 = pneg %p145
      // Predicated region
      $region9: #{discriminator_v2.8} parent=5 // pred_check
        _
      $region10: #{discriminator_v2.8} parent=5 // pred_check_branch
        %148 = sbr.rel (%p145) target = $region12
      $region11: #{discriminator_v2.8} parent=5 // pred_region
        %s149 = ssub.s32 %s10, 1
        // Predicated region
        $region13: #{discriminator_v2.8} parent=11 // pred_check
          %p150 = pneg %p31
        $region14: #{discriminator_v2.8} parent=11 // pred_check_branch
          %152 = sbr.rel (%p150) target = $region16
        $region15: #{discriminator_v2.8} parent=11 // pred_region
          _
        $region16: #{discriminator_v2.8} parent=11 // pred_fallthru
          _
      $region12: #{discriminator_v2.8} parent=5 // pred_fallthru
        _
      %p153 = scmp.lt.s32.totalorder %s10, 2
      // Predicated region
      $region17: #{discriminator_v2.8} parent=5 // pred_check
        %p154 = pneg %p153
      $region18: #{discriminator_v2.8} parent=5 // pred_check_branch
        %156 = sbr.rel (%p154) target = $region20
      $region19: #{discriminator_v2.8} parent=5 // pred_region
        // Predicated region
        $region21: #{discriminator_v2.8} parent=19 // pred_check
          %p157 = pneg %p51
        $region22: #{discriminator_v2.8} parent=19 // pred_check_branch
          %159 = sbr.rel (%p157) target = $region24
        $region23: #{discriminator_v2.8} parent=19 // pred_region
          %s160 = sand.u32 %s41, 1
          %s161 = sand.u32 %s41, 1
          %s162 = smul.addr %s161, 576
          %s163 = scalar_lea.vmem [#allocation2], %s162
          %s164 = smul.addr %s10, 4
          %s165 = scalar_lea.vmem %s1, %s164
          // Predicated region
          $region25: #{discriminator_v2.8} parent=23 // pred_check
            _
          $region26: #{discriminator_v2.8} parent=23 // pred_check_branch
            %167 = sbr.rel (0) target = $region28
          $region27: #{discriminator_v2.8} parent=23 // pred_region
            // Predicated region
            $region29: #{discriminator_v2.8} parent=27 // pred_check
              _
            $region30: #{discriminator_v2.8} parent=27 // pred_check_branch
              %169 = sbr.rel target = $region32
            $region31: #{discriminator_v2.8} parent=27 // pred_region
              // Predicated region
              $region44: #{discriminator_v2.8} parent=31 // pred_check
                _
              $region45: #{discriminator_v2.8} parent=31 // pred_check_branch
                %470 = sbr.rel (0) target = $region47
              $region46: #{discriminator_v2.8} parent=31 // pred_region
                loop: start=0, step=1, limit=1
                $region48: #{discriminator_v2.8} parent=46 // loop_pre_header
                  _
                $region49: #{discriminator_v2.8} parent=46 // loop_header
                  %s472 = sphi 0, %s476
                  %p473 = scmp.ge.s32.totalorder %s472, 1
                  %s477 = sphi %s165, %s165
                  %s478 = sphi %s163, %s163
                $region50: #{discriminator_v2.8} parent=46 // loop_header_branch
                  %475 = sbr.rel (%p473) target = $region54
                $region51: #{discriminator_v2.8} parent=46 // loop_body
                  _
                $region52: #{discriminator_v2.8} parent=46 // loop_footer
                  %s476 = sadd.s32 1, %s472
                $region53: #{discriminator_v2.8} parent=46 // loop_footer_branch
                  %471 = sbr.rel target = $region49
                $region54: #{discriminator_v2.8} parent=46 // loop_exit
                  _
                loop: start=0, step=1, limit=1
                $region55: #{discriminator_v2.8} parent=46 // loop_pre_header
                  _
                $region56: #{discriminator_v2.8} parent=46 // loop_header
                  %s481 = sphi 0, %s485
                  %p482 = scmp.ge.s32.totalorder %s481, 1
                  %s486 = sphi %s165, %s165
                  %s487 = sphi %s163, %s163
                $region57: #{discriminator_v2.8} parent=46 // loop_header_branch
                  %484 = sbr.rel (%p482) target = $region61
                $region58: #{discriminator_v2.8} parent=46 // loop_body
                  %v488 = vld [vmem:[%s486] sm:$0xf]
                  %489 = vst [vmem:[%s487] sm:$0xf] %v488
                  %v490 = vld [vmem:[%s486 + $0x8] sm:$0xf]
                  %491 = vst [vmem:[%s487 + $0x4] sm:$0xf] %v490
                  %v492 = vld [vmem:[%s486 + $0x10] sm:$0xf]
                  %493 = vst [vmem:[%s487 + $0x8] sm:$0xf] %v492
                  %v494 = vld [vmem:[%s486 + $0x18] sm:$0xf]
                  %495 = vst [vmem:[%s487 + $0xc] sm:$0xf] %v494
                  %v496 = vld [vmem:[%s486 + $0x20] sm:$0xf]
                  %497 = vst [vmem:[%s487 + $0x10] sm:$0xf] %v496
                  %v498 = vld [vmem:[%s486 + $0x28] sm:$0xf]
                  %499 = vst [vmem:[%s487 + $0x14] sm:$0xf] %v498
                  %v500 = vld [vmem:[%s486 + $0x30] sm:$0xf]
                  %501 = vst [vmem:[%s487 + $0x18] sm:$0xf] %v500
                  %v502 = vld [vmem:[%s486 + $0x38] sm:$0xf]
                  %503 = vst [vmem:[%s487 + $0x1c] sm:$0xf] %v502
                  %v504 = vld [vmem:[%s486 + $0x40] sm:$0xf]
                  %505 = vst [vmem:[%s487 + $0x20] sm:$0xf] %v504
                  %v506 = vld [vmem:[%s486 + $0x48] sm:$0xf]
                  %507 = vst [vmem:[%s487 + $0x24] sm:$0xf] %v506
                  %v508 = vld [vmem:[%s486 + $0x50] sm:$0xf]
                  %509 = vst [vmem:[%s487 + $0x28] sm:$0xf] %v508
                  %v510 = vld [vmem:[%s486 + $0x58] sm:$0xf]
                  %511 = vst [vmem:[%s487 + $0x2c] sm:$0xf] %v510
                  %v512 = vld [vmem:[%s486 + $0x60] sm:$0xf]
                  %513 = vst [vmem:[%s487 + $0x30] sm:$0xf] %v512
                  %v514 = vld [vmem:[%s486 + $0x68] sm:$0xf]
                  %515 = vst [vmem:[%s487 + $0x34] sm:$0xf] %v514
                  %v516 = vld [vmem:[%s486 + $0x70] sm:$0xf]
                  %517 = vst [vmem:[%s487 + $0x38] sm:$0xf] %v516
                  %v518 = vld [vmem:[%s486 + $0x78] sm:$0xf]
                  %519 = vst [vmem:[%s487 + $0x3c] sm:$0xf] %v518
                  %v520 = vld [vmem:[%s486 + $0x80] sm:$0xf]
                  %521 = vst [vmem:[%s487 + $0x40] sm:$0xf] %v520
                  %v522 = vld [vmem:[%s486 + $0x88] sm:$0xf]
                  %523 = vst [vmem:[%s487 + $0x44] sm:$0xf] %v522
                  %v524 = vld [vmem:[%s486 + $0x90] sm:$0xf]
                  %525 = vst [vmem:[%s487 + $0x48] sm:$0xf] %v524
                  %v526 = vld [vmem:[%s486 + $0x98] sm:$0xf]
                  %527 = vst [vmem:[%s487 + $0x4c] sm:$0xf] %v526
                  %v528 = vld [vmem:[%s486 + $0xa0] sm:$0xf]
                  %529 = vst [vmem:[%s487 + $0x50] sm:$0xf] %v528
                  %v530 = vld [vmem:[%s486 + $0xa8] sm:$0xf]
                  %531 = vst [vmem:[%s487 + $0x54] sm:$0xf] %v530
                  %v532 = vld [vmem:[%s486 + $0xb0] sm:$0xf]
                  %533 = vst [vmem:[%s487 + $0x58] sm:$0xf] %v532
                  %v534 = vld [vmem:[%s486 + $0xb8] sm:$0xf]
                  %535 = vst [vmem:[%s487 + $0x5c] sm:$0xf] %v534
                  %v536 = vld [vmem:[%s486 + $0xc0] sm:$0xf]
                  %537 = vst [vmem:[%s487 + $0x60] sm:$0xf] %v536
                  %v538 = vld [vmem:[%s486 + $0xc8] sm:$0xf]
                  %539 = vst [vmem:[%s487 + $0x64] sm:$0xf] %v538
                  %v540 = vld [vmem:[%s486 + $0xd0] sm:$0xf]
                  %541 = vst [vmem:[%s487 + $0x68] sm:$0xf] %v540
                  %v542 = vld [vmem:[%s486 + $0xd8] sm:$0xf]
                  %543 = vst [vmem:[%s487 + $0x6c] sm:$0xf] %v542
                  %v544 = vld [vmem:[%s486 + $0xe0] sm:$0xf]
                  %545 = vst [vmem:[%s487 + $0x70] sm:$0xf] %v544
                  %v546 = vld [vmem:[%s486 + $0xe8] sm:$0xf]
                  %547 = vst [vmem:[%s487 + $0x74] sm:$0xf] %v546
                  %v548 = vld [vmem:[%s486 + $0xf0] sm:$0xf]
                  %549 = vst [vmem:[%s487 + $0x78] sm:$0xf] %v548
                  %v550 = vld [vmem:[%s486 + $0xf8] sm:$0xf]
                  %551 = vst [vmem:[%s487 + $0x7c] sm:$0xf] %v550
                  %v552 = vld [vmem:[%s486 + $0x100] sm:$0xf]
                  %553 = vst [vmem:[%s487 + $0x80] sm:$0xf] %v552
                  %v554 = vld [vmem:[%s486 + $0x108] sm:$0xf]
                  %555 = vst [vmem:[%s487 + $0x84] sm:$0xf] %v554
                  %v556 = vld [vmem:[%s486 + $0x110] sm:$0xf]
                  %557 = vst [vmem:[%s487 + $0x88] sm:$0xf] %v556
                  %v558 = vld [vmem:[%s486 + $0x118] sm:$0xf]
                  %559 = vst [vmem:[%s487 + $0x8c] sm:$0xf] %v558
                  %v560 = vld [vmem:[%s486 + $0x120] sm:$0xf]
                  %561 = vst [vmem:[%s487 + $0x90] sm:$0xf] %v560
                  %v562 = vld [vmem:[%s486 + $0x128] sm:$0xf]
                  %563 = vst [vmem:[%s487 + $0x94] sm:$0xf] %v562
                  %v564 = vld [vmem:[%s486 + $0x130] sm:$0xf]
                  %565 = vst [vmem:[%s487 + $0x98] sm:$0xf] %v564
                  %v566 = vld [vmem:[%s486 + $0x138] sm:$0xf]
                  %567 = vst [vmem:[%s487 + $0x9c] sm:$0xf] %v566
                  %v568 = vld [vmem:[%s486 + $0x140] sm:$0xf]
                  %569 = vst [vmem:[%s487 + $0xa0] sm:$0xf] %v568
                  %v570 = vld [vmem:[%s486 + $0x148] sm:$0xf]
                  %571 = vst [vmem:[%s487 + $0xa4] sm:$0xf] %v570
                  %v572 = vld [vmem:[%s486 + $0x150] sm:$0xf]
                  %573 = vst [vmem:[%s487 + $0xa8] sm:$0xf] %v572
                  %v574 = vld [vmem:[%s486 + $0x158] sm:$0xf]
                  %575 = vst [vmem:[%s487 + $0xac] sm:$0xf] %v574
                  %v576 = vld [vmem:[%s486 + $0x160] sm:$0xf]
                  %577 = vst [vmem:[%s487 + $0xb0] sm:$0xf] %v576
                  %v578 = vld [vmem:[%s486 + $0x168] sm:$0xf]
                  %579 = vst [vmem:[%s487 + $0xb4] sm:$0xf] %v578
                  %v580 = vld [vmem:[%s486 + $0x170] sm:$0xf]
                  %581 = vst [vmem:[%s487 + $0xb8] sm:$0xf] %v580
                  %v582 = vld [vmem:[%s486 + $0x178] sm:$0xf]
                  %583 = vst [vmem:[%s487 + $0xbc] sm:$0xf] %v582
                  %v584 = vld [vmem:[%s486 + $0x180] sm:$0xf]
                  %585 = vst [vmem:[%s487 + $0xc0] sm:$0xf] %v584
                  %v586 = vld [vmem:[%s486 + $0x188] sm:$0xf]
                  %587 = vst [vmem:[%s487 + $0xc4] sm:$0xf] %v586
                  %v588 = vld [vmem:[%s486 + $0x190] sm:$0xf]
                  %589 = vst [vmem:[%s487 + $0xc8] sm:$0xf] %v588
                  %v590 = vld [vmem:[%s486 + $0x198] sm:$0xf]
                  %591 = vst [vmem:[%s487 + $0xcc] sm:$0xf] %v590
                  %v592 = vld [vmem:[%s486 + $0x1a0] sm:$0xf]
                  %593 = vst [vmem:[%s487 + $0xd0] sm:$0xf] %v592
                  %v594 = vld [vmem:[%s486 + $0x1a8] sm:$0xf]
                  %595 = vst [vmem:[%s487 + $0xd4] sm:$0xf] %v594
                  %v596 = vld [vmem:[%s486 + $0x1b0] sm:$0xf]
                  %597 = vst [vmem:[%s487 + $0xd8] sm:$0xf] %v596
                  %v598 = vld [vmem:[%s486 + $0x1b8] sm:$0xf]
                  %599 = vst [vmem:[%s487 + $0xdc] sm:$0xf] %v598
                  %v600 = vld [vmem:[%s486 + $0x1c0] sm:$0xf]
                  %601 = vst [vmem:[%s487 + $0xe0] sm:$0xf] %v600
                  %v602 = vld [vmem:[%s486 + $0x1c8] sm:$0xf]
                  %603 = vst [vmem:[%s487 + $0xe4] sm:$0xf] %v602
                  %v604 = vld [vmem:[%s486 + $0x1d0] sm:$0xf]
                  %605 = vst [vmem:[%s487 + $0xe8] sm:$0xf] %v604
                  %v606 = vld [vmem:[%s486 + $0x1d8] sm:$0xf]
                  %607 = vst [vmem:[%s487 + $0xec] sm:$0xf] %v606
                  %v608 = vld [vmem:[%s486 + $0x1e0] sm:$0xf]
                  %609 = vst [vmem:[%s487 + $0xf0] sm:$0xf] %v608
                  %v610 = vld [vmem:[%s486 + $0x1e8] sm:$0xf]
                  %611 = vst [vmem:[%s487 + $0xf4] sm:$0xf] %v610
                  %v612 = vld [vmem:[%s486 + $0x1f0] sm:$0xf]
                  %613 = vst [vmem:[%s487 + $0xf8] sm:$0xf] %v612
                  %v614 = vld [vmem:[%s486 + $0x1f8] sm:$0xf]
                  %615 = vst [vmem:[%s487 + $0xfc] sm:$0xf] %v614
                  %v616 = vld [vmem:[%s486 + $0x200] sm:$0xf]
                  %617 = vst [vmem:[%s487 + $0x100] sm:$0xf] %v616
                  %v618 = vld [vmem:[%s486 + $0x208] sm:$0xf]
                  %619 = vst [vmem:[%s487 + $0x104] sm:$0xf] %v618
                  %v620 = vld [vmem:[%s486 + $0x210] sm:$0xf]
                  %621 = vst [vmem:[%s487 + $0x108] sm:$0xf] %v620
                  %v622 = vld [vmem:[%s486 + $0x218] sm:$0xf]
                  %623 = vst [vmem:[%s487 + $0x10c] sm:$0xf] %v622
                  %v624 = vld [vmem:[%s486 + $0x220] sm:$0xf]
                  %625 = vst [vmem:[%s487 + $0x110] sm:$0xf] %v624
                  %v626 = vld [vmem:[%s486 + $0x228] sm:$0xf]
                  %627 = vst [vmem:[%s487 + $0x114] sm:$0xf] %v626
                  %v628 = vld [vmem:[%s486 + $0x230] sm:$0xf]
                  %629 = vst [vmem:[%s487 + $0x118] sm:$0xf] %v628
                  %v630 = vld [vmem:[%s486 + $0x238] sm:$0xf]
                  %631 = vst [vmem:[%s487 + $0x11c] sm:$0xf] %v630
                  %v632 = vld [vmem:[%s486 + $0x240] sm:$0xf]
                  %633 = vst [vmem:[%s487 + $0x120] sm:$0xf] %v632
                  %v634 = vld [vmem:[%s486 + $0x248] sm:$0xf]
                  %635 = vst [vmem:[%s487 + $0x124] sm:$0xf] %v634
                  %v636 = vld [vmem:[%s486 + $0x250] sm:$0xf]
                  %637 = vst [vmem:[%s487 + $0x128] sm:$0xf] %v636
                  %v638 = vld [vmem:[%s486 + $0x258] sm:$0xf]
                  %639 = vst [vmem:[%s487 + $0x12c] sm:$0xf] %v638
                  %v640 = vld [vmem:[%s486 + $0x260] sm:$0xf]
                  %641 = vst [vmem:[%s487 + $0x130] sm:$0xf] %v640
                  %v642 = vld [vmem:[%s486 + $0x268] sm:$0xf]
                  %643 = vst [vmem:[%s487 + $0x134] sm:$0xf] %v642
                  %v644 = vld [vmem:[%s486 + $0x270] sm:$0xf]
                  %645 = vst [vmem:[%s487 + $0x138] sm:$0xf] %v644
                  %v646 = vld [vmem:[%s486 + $0x278] sm:$0xf]
                  %647 = vst [vmem:[%s487 + $0x13c] sm:$0xf] %v646
                  %v648 = vld [vmem:[%s486 + $0x280] sm:$0xf]
                  %649 = vst [vmem:[%s487 + $0x140] sm:$0xf] %v648
                  %v650 = vld [vmem:[%s486 + $0x288] sm:$0xf]
                  %651 = vst [vmem:[%s487 + $0x144] sm:$0xf] %v650
                  %v652 = vld [vmem:[%s486 + $0x290] sm:$0xf]
                  %653 = vst [vmem:[%s487 + $0x148] sm:$0xf] %v652
                  %v654 = vld [vmem:[%s486 + $0x298] sm:$0xf]
                  %655 = vst [vmem:[%s487 + $0x14c] sm:$0xf] %v654
                  %v656 = vld [vmem:[%s486 + $0x2a0] sm:$0xf]
                  %657 = vst [vmem:[%s487 + $0x150] sm:$0xf] %v656
                  %v658 = vld [vmem:[%s486 + $0x2a8] sm:$0xf]
                  %659 = vst [vmem:[%s487 + $0x154] sm:$0xf] %v658
                  %v660 = vld [vmem:[%s486 + $0x2b0] sm:$0xf]
                  %661 = vst [vmem:[%s487 + $0x158] sm:$0xf] %v660
                  %v662 = vld [vmem:[%s486 + $0x2b8] sm:$0xf]
                  %663 = vst [vmem:[%s487 + $0x15c] sm:$0xf] %v662
                  %v664 = vld [vmem:[%s486 + $0x2c0] sm:$0xf]
                  %665 = vst [vmem:[%s487 + $0x160] sm:$0xf] %v664
                  %v666 = vld [vmem:[%s486 + $0x2c8] sm:$0xf]
                  %667 = vst [vmem:[%s487 + $0x164] sm:$0xf] %v666
                  %v668 = vld [vmem:[%s486 + $0x2d0] sm:$0xf]
                  %669 = vst [vmem:[%s487 + $0x168] sm:$0xf] %v668
                  %v670 = vld [vmem:[%s486 + $0x2d8] sm:$0xf]
                  %671 = vst [vmem:[%s487 + $0x16c] sm:$0xf] %v670
                  %v672 = vld [vmem:[%s486 + $0x2e0] sm:$0xf]
                  %673 = vst [vmem:[%s487 + $0x170] sm:$0xf] %v672
                  %v674 = vld [vmem:[%s486 + $0x2e8] sm:$0xf]
                  %675 = vst [vmem:[%s487 + $0x174] sm:$0xf] %v674
                  %v676 = vld [vmem:[%s486 + $0x2f0] sm:$0xf]
                  %677 = vst [vmem:[%s487 + $0x178] sm:$0xf] %v676
                  %v678 = vld [vmem:[%s486 + $0x2f8] sm:$0xf]
                  %679 = vst [vmem:[%s487 + $0x17c] sm:$0xf] %v678
                  %v680 = vld [vmem:[%s486 + $0x300] sm:$0xf]
                  %681 = vst [vmem:[%s487 + $0x180] sm:$0xf] %v680
                  %v682 = vld [vmem:[%s486 + $0x308] sm:$0xf]
                  %683 = vst [vmem:[%s487 + $0x184] sm:$0xf] %v682
                  %v684 = vld [vmem:[%s486 + $0x310] sm:$0xf]
                  %685 = vst [vmem:[%s487 + $0x188] sm:$0xf] %v684
                  %v686 = vld [vmem:[%s486 + $0x318] sm:$0xf]
                  %687 = vst [vmem:[%s487 + $0x18c] sm:$0xf] %v686
                  %v688 = vld [vmem:[%s486 + $0x320] sm:$0xf]
                  %689 = vst [vmem:[%s487 + $0x190] sm:$0xf] %v688
                  %v690 = vld [vmem:[%s486 + $0x328] sm:$0xf]
                  %691 = vst [vmem:[%s487 + $0x194] sm:$0xf] %v690
                  %v692 = vld [vmem:[%s486 + $0x330] sm:$0xf]
                  %693 = vst [vmem:[%s487 + $0x198] sm:$0xf] %v692
                  %v694 = vld [vmem:[%s486 + $0x338] sm:$0xf]
                  %695 = vst [vmem:[%s487 + $0x19c] sm:$0xf] %v694
                  %v696 = vld [vmem:[%s486 + $0x340] sm:$0xf]
                  %697 = vst [vmem:[%s487 + $0x1a0] sm:$0xf] %v696
                  %v698 = vld [vmem:[%s486 + $0x348] sm:$0xf]
                  %699 = vst [vmem:[%s487 + $0x1a4] sm:$0xf] %v698
                  %v700 = vld [vmem:[%s486 + $0x350] sm:$0xf]
                  %701 = vst [vmem:[%s487 + $0x1a8] sm:$0xf] %v700
                  %v702 = vld [vmem:[%s486 + $0x358] sm:$0xf]
                  %703 = vst [vmem:[%s487 + $0x1ac] sm:$0xf] %v702
                  %v704 = vld [vmem:[%s486 + $0x360] sm:$0xf]
                  %705 = vst [vmem:[%s487 + $0x1b0] sm:$0xf] %v704
                  %v706 = vld [vmem:[%s486 + $0x368] sm:$0xf]
                  %707 = vst [vmem:[%s487 + $0x1b4] sm:$0xf] %v706
                  %v708 = vld [vmem:[%s486 + $0x370] sm:$0xf]
                  %709 = vst [vmem:[%s487 + $0x1b8] sm:$0xf] %v708
                  %v710 = vld [vmem:[%s486 + $0x378] sm:$0xf]
                  %711 = vst [vmem:[%s487 + $0x1bc] sm:$0xf] %v710
                  %v712 = vld [vmem:[%s486 + $0x380] sm:$0xf]
                  %713 = vst [vmem:[%s487 + $0x1c0] sm:$0xf] %v712
                  %v714 = vld [vmem:[%s486 + $0x388] sm:$0xf]
                  %715 = vst [vmem:[%s487 + $0x1c4] sm:$0xf] %v714
                  %v716 = vld [vmem:[%s486 + $0x390] sm:$0xf]
                  %717 = vst [vmem:[%s487 + $0x1c8] sm:$0xf] %v716
                  %v718 = vld [vmem:[%s486 + $0x398] sm:$0xf]
                  %719 = vst [vmem:[%s487 + $0x1cc] sm:$0xf] %v718
                  %v720 = vld [vmem:[%s486 + $0x3a0] sm:$0xf]
                  %721 = vst [vmem:[%s487 + $0x1d0] sm:$0xf] %v720
                  %v722 = vld [vmem:[%s486 + $0x3a8] sm:$0xf]
                  %723 = vst [vmem:[%s487 + $0x1d4] sm:$0xf] %v722
                  %v724 = vld [vmem:[%s486 + $0x3b0] sm:$0xf]
                  %725 = vst [vmem:[%s487 + $0x1d8] sm:$0xf] %v724
                  %v726 = vld [vmem:[%s486 + $0x3b8] sm:$0xf]
                  %727 = vst [vmem:[%s487 + $0x1dc] sm:$0xf] %v726
                  %v728 = vld [vmem:[%s486 + $0x3c0] sm:$0xf]
                  %729 = vst [vmem:[%s487 + $0x1e0] sm:$0xf] %v728
                  %v730 = vld [vmem:[%s486 + $0x3c8] sm:$0xf]
                  %731 = vst [vmem:[%s487 + $0x1e4] sm:$0xf] %v730
                  %v732 = vld [vmem:[%s486 + $0x3d0] sm:$0xf]
                  %733 = vst [vmem:[%s487 + $0x1e8] sm:$0xf] %v732
                  %v734 = vld [vmem:[%s486 + $0x3d8] sm:$0xf]
                  %735 = vst [vmem:[%s487 + $0x1ec] sm:$0xf] %v734
                  %v736 = vld [vmem:[%s486 + $0x3e0] sm:$0xf]
                  %737 = vst [vmem:[%s487 + $0x1f0] sm:$0xf] %v736
                  %v738 = vld [vmem:[%s486 + $0x3e8] sm:$0xf]
                  %739 = vst [vmem:[%s487 + $0x1f4] sm:$0xf] %v738
                  %v740 = vld [vmem:[%s486 + $0x3f0] sm:$0xf]
                  %741 = vst [vmem:[%s487 + $0x1f8] sm:$0xf] %v740
                  %v742 = vld [vmem:[%s486 + $0x3f8] sm:$0xf]
                  %743 = vst [vmem:[%s487 + $0x1fc] sm:$0xf] %v742
                  %v744 = vld [vmem:[%s486 + $0x400] sm:$0xf]
                  %745 = vst [vmem:[%s487 + $0x200] sm:$0xf] %v744
                  %v746 = vld [vmem:[%s486 + $0x408] sm:$0xf]
                  %747 = vst [vmem:[%s487 + $0x204] sm:$0xf] %v746
                  %v748 = vld [vmem:[%s486 + $0x410] sm:$0xf]
                  %749 = vst [vmem:[%s487 + $0x208] sm:$0xf] %v748
                  %v750 = vld [vmem:[%s486 + $0x418] sm:$0xf]
                  %751 = vst [vmem:[%s487 + $0x20c] sm:$0xf] %v750
                  %v752 = vld [vmem:[%s486 + $0x420] sm:$0xf]
                  %753 = vst [vmem:[%s487 + $0x210] sm:$0xf] %v752
                  %v754 = vld [vmem:[%s486 + $0x428] sm:$0xf]
                  %755 = vst [vmem:[%s487 + $0x214] sm:$0xf] %v754
                  %v756 = vld [vmem:[%s486 + $0x430] sm:$0xf]
                  %757 = vst [vmem:[%s487 + $0x218] sm:$0xf] %v756
                  %v758 = vld [vmem:[%s486 + $0x438] sm:$0xf]
                  %759 = vst [vmem:[%s487 + $0x21c] sm:$0xf] %v758
                  %v760 = vld [vmem:[%s486 + $0x440] sm:$0xf]
                  %761 = vst [vmem:[%s487 + $0x220] sm:$0xf] %v760
                  %v762 = vld [vmem:[%s486 + $0x448] sm:$0xf]
                  %763 = vst [vmem:[%s487 + $0x224] sm:$0xf] %v762
                  %v764 = vld [vmem:[%s486 + $0x450] sm:$0xf]
                  %765 = vst [vmem:[%s487 + $0x228] sm:$0xf] %v764
                  %v766 = vld [vmem:[%s486 + $0x458] sm:$0xf]
                  %767 = vst [vmem:[%s487 + $0x22c] sm:$0xf] %v766
                  %v768 = vld [vmem:[%s486 + $0x460] sm:$0xf]
                  %769 = vst [vmem:[%s487 + $0x230] sm:$0xf] %v768
                  %v770 = vld [vmem:[%s486 + $0x468] sm:$0xf]
                  %771 = vst [vmem:[%s487 + $0x234] sm:$0xf] %v770
                  %v772 = vld [vmem:[%s486 + $0x470] sm:$0xf]
                  %773 = vst [vmem:[%s487 + $0x238] sm:$0xf] %v772
                  %v774 = vld [vmem:[%s486 + $0x478] sm:$0xf]
                  %775 = vst [vmem:[%s487 + $0x23c] sm:$0xf] %v774
                $region59: #{discriminator_v2.8} parent=46 // loop_footer
                  %s485 = sadd.s32 1, %s481
                $region60: #{discriminator_v2.8} parent=46 // loop_footer_branch
                  %480 = sbr.rel target = $region56
                $region61: #{discriminator_v2.8} parent=46 // loop_exit
                  _
              $region47: #{discriminator_v2.8} parent=31 // pred_fallthru
                _
            $region32: #{discriminator_v2.8} parent=27 // pred_fallthru
              _
            // Predicated region
            $region33: #{discriminator_v2.8} parent=27 // pred_check
              _
            $region34: #{discriminator_v2.8} parent=27 // pred_check_branch
              %171 = sbr.rel (0) target = $region36
            $region35: #{discriminator_v2.8} parent=27 // pred_region
              loop: start=0, step=1, limit=1
              $region37: #{discriminator_v2.8} parent=35 // loop_pre_header
                _
              $region38: #{discriminator_v2.8} parent=35 // loop_header
                %s174 = sphi 0, %s178
                %p175 = scmp.ge.s32.totalorder %s174, 1
                %s179 = sphi %s165, %s165
                %s180 = sphi %s163, %s163
              $region39: #{discriminator_v2.8} parent=35 // loop_header_branch
                %177 = sbr.rel (%p175) target = $region43
              $region40: #{discriminator_v2.8} parent=35 // loop_body
                %v181 = vld [vmem:[%s179] sm:$0xf]
                %182 = vst [vmem:[%s180] sm:$0xf] %v181
                %v183 = vld [vmem:[%s179 + $0x8] sm:$0xf]
                %184 = vst [vmem:[%s180 + $0x4] sm:$0xf] %v183
                %v185 = vld [vmem:[%s179 + $0x10] sm:$0xf]
                %186 = vst [vmem:[%s180 + $0x8] sm:$0xf] %v185
                %v187 = vld [vmem:[%s179 + $0x18] sm:$0xf]
                %188 = vst [vmem:[%s180 + $0xc] sm:$0xf] %v187
                %v189 = vld [vmem:[%s179 + $0x20] sm:$0xf]
                %190 = vst [vmem:[%s180 + $0x10] sm:$0xf] %v189
                %v191 = vld [vmem:[%s179 + $0x28] sm:$0xf]
                %192 = vst [vmem:[%s180 + $0x14] sm:$0xf] %v191
                %v193 = vld [vmem:[%s179 + $0x30] sm:$0xf]
                %194 = vst [vmem:[%s180 + $0x18] sm:$0xf] %v193
                %v195 = vld [vmem:[%s179 + $0x38] sm:$0xf]
                %196 = vst [vmem:[%s180 + $0x1c] sm:$0xf] %v195
                %v197 = vld [vmem:[%s179 + $0x40] sm:$0xf]
                %198 = vst [vmem:[%s180 + $0x20] sm:$0xf] %v197
                %v199 = vld [vmem:[%s179 + $0x48] sm:$0xf]
                %200 = vst [vmem:[%s180 + $0x24] sm:$0xf] %v199
                %v201 = vld [vmem:[%s179 + $0x50] sm:$0xf]
                %202 = vst [vmem:[%s180 + $0x28] sm:$0xf] %v201
                %v203 = vld [vmem:[%s179 + $0x58] sm:$0xf]
                %204 = vst [vmem:[%s180 + $0x2c] sm:$0xf] %v203
                %v205 = vld [vmem:[%s179 + $0x60] sm:$0xf]
                %206 = vst [vmem:[%s180 + $0x30] sm:$0xf] %v205
                %v207 = vld [vmem:[%s179 + $0x68] sm:$0xf]
                %208 = vst [vmem:[%s180 + $0x34] sm:$0xf] %v207
                %v209 = vld [vmem:[%s179 + $0x70] sm:$0xf]
                %210 = vst [vmem:[%s180 + $0x38] sm:$0xf] %v209
                %v211 = vld [vmem:[%s179 + $0x78] sm:$0xf]
                %212 = vst [vmem:[%s180 + $0x3c] sm:$0xf] %v211
                %v213 = vld [vmem:[%s179 + $0x80] sm:$0xf]
                %214 = vst [vmem:[%s180 + $0x40] sm:$0xf] %v213
                %v215 = vld [vmem:[%s179 + $0x88] sm:$0xf]
                %216 = vst [vmem:[%s180 + $0x44] sm:$0xf] %v215
                %v217 = vld [vmem:[%s179 + $0x90] sm:$0xf]
                %218 = vst [vmem:[%s180 + $0x48] sm:$0xf] %v217
                %v219 = vld [vmem:[%s179 + $0x98] sm:$0xf]
                %220 = vst [vmem:[%s180 + $0x4c] sm:$0xf] %v219
                %v221 = vld [vmem:[%s179 + $0xa0] sm:$0xf]
                %222 = vst [vmem:[%s180 + $0x50] sm:$0xf] %v221
                %v223 = vld [vmem:[%s179 + $0xa8] sm:$0xf]
                %224 = vst [vmem:[%s180 + $0x54] sm:$0xf] %v223
                %v225 = vld [vmem:[%s179 + $0xb0] sm:$0xf]
                %226 = vst [vmem:[%s180 + $0x58] sm:$0xf] %v225
                %v227 = vld [vmem:[%s179 + $0xb8] sm:$0xf]
                %228 = vst [vmem:[%s180 + $0x5c] sm:$0xf] %v227
                %v229 = vld [vmem:[%s179 + $0xc0] sm:$0xf]
                %230 = vst [vmem:[%s180 + $0x60] sm:$0xf] %v229
                %v231 = vld [vmem:[%s179 + $0xc8] sm:$0xf]
                %232 = vst [vmem:[%s180 + $0x64] sm:$0xf] %v231
                %v233 = vld [vmem:[%s179 + $0xd0] sm:$0xf]
                %234 = vst [vmem:[%s180 + $0x68] sm:$0xf] %v233
                %v235 = vld [vmem:[%s179 + $0xd8] sm:$0xf]
                %236 = vst [vmem:[%s180 + $0x6c] sm:$0xf] %v235
                %v237 = vld [vmem:[%s179 + $0xe0] sm:$0xf]
                %238 = vst [vmem:[%s180 + $0x70] sm:$0xf] %v237
                %v239 = vld [vmem:[%s179 + $0xe8] sm:$0xf]
                %240 = vst [vmem:[%s180 + $0x74] sm:$0xf] %v239
                %v241 = vld [vmem:[%s179 + $0xf0] sm:$0xf]
                %242 = vst [vmem:[%s180 + $0x78] sm:$0xf] %v241
                %v243 = vld [vmem:[%s179 + $0xf8] sm:$0xf]
                %244 = vst [vmem:[%s180 + $0x7c] sm:$0xf] %v243
                %v245 = vld [vmem:[%s179 + $0x100] sm:$0xf]
                %246 = vst [vmem:[%s180 + $0x80] sm:$0xf] %v245
                %v247 = vld [vmem:[%s179 + $0x108] sm:$0xf]
                %248 = vst [vmem:[%s180 + $0x84] sm:$0xf] %v247
                %v249 = vld [vmem:[%s179 + $0x110] sm:$0xf]
                %250 = vst [vmem:[%s180 + $0x88] sm:$0xf] %v249
                %v251 = vld [vmem:[%s179 + $0x118] sm:$0xf]
                %252 = vst [vmem:[%s180 + $0x8c] sm:$0xf] %v251
                %v253 = vld [vmem:[%s179 + $0x120] sm:$0xf]
                %254 = vst [vmem:[%s180 + $0x90] sm:$0xf] %v253
                %v255 = vld [vmem:[%s179 + $0x128] sm:$0xf]
                %256 = vst [vmem:[%s180 + $0x94] sm:$0xf] %v255
                %v257 = vld [vmem:[%s179 + $0x130] sm:$0xf]
                %258 = vst [vmem:[%s180 + $0x98] sm:$0xf] %v257
                %v259 = vld [vmem:[%s179 + $0x138] sm:$0xf]
                %260 = vst [vmem:[%s180 + $0x9c] sm:$0xf] %v259
                %v261 = vld [vmem:[%s179 + $0x140] sm:$0xf]
                %262 = vst [vmem:[%s180 + $0xa0] sm:$0xf] %v261
                %v263 = vld [vmem:[%s179 + $0x148] sm:$0xf]
                %264 = vst [vmem:[%s180 + $0xa4] sm:$0xf] %v263
                %v265 = vld [vmem:[%s179 + $0x150] sm:$0xf]
                %266 = vst [vmem:[%s180 + $0xa8] sm:$0xf] %v265
                %v267 = vld [vmem:[%s179 + $0x158] sm:$0xf]
                %268 = vst [vmem:[%s180 + $0xac] sm:$0xf] %v267
                %v269 = vld [vmem:[%s179 + $0x160] sm:$0xf]
                %270 = vst [vmem:[%s180 + $0xb0] sm:$0xf] %v269
                %v271 = vld [vmem:[%s179 + $0x168] sm:$0xf]
                %272 = vst [vmem:[%s180 + $0xb4] sm:$0xf] %v271
                %v273 = vld [vmem:[%s179 + $0x170] sm:$0xf]
                %274 = vst [vmem:[%s180 + $0xb8] sm:$0xf] %v273
                %v275 = vld [vmem:[%s179 + $0x178] sm:$0xf]
                %276 = vst [vmem:[%s180 + $0xbc] sm:$0xf] %v275
                %v277 = vld [vmem:[%s179 + $0x180] sm:$0xf]
                %278 = vst [vmem:[%s180 + $0xc0] sm:$0xf] %v277
                %v279 = vld [vmem:[%s179 + $0x188] sm:$0xf]
                %280 = vst [vmem:[%s180 + $0xc4] sm:$0xf] %v279
                %v281 = vld [vmem:[%s179 + $0x190] sm:$0xf]
                %282 = vst [vmem:[%s180 + $0xc8] sm:$0xf] %v281
                %v283 = vld [vmem:[%s179 + $0x198] sm:$0xf]
                %284 = vst [vmem:[%s180 + $0xcc] sm:$0xf] %v283
                %v285 = vld [vmem:[%s179 + $0x1a0] sm:$0xf]
                %286 = vst [vmem:[%s180 + $0xd0] sm:$0xf] %v285
                %v287 = vld [vmem:[%s179 + $0x1a8] sm:$0xf]
                %288 = vst [vmem:[%s180 + $0xd4] sm:$0xf] %v287
                %v289 = vld [vmem:[%s179 + $0x1b0] sm:$0xf]
                %290 = vst [vmem:[%s180 + $0xd8] sm:$0xf] %v289
                %v291 = vld [vmem:[%s179 + $0x1b8] sm:$0xf]
                %292 = vst [vmem:[%s180 + $0xdc] sm:$0xf] %v291
                %v293 = vld [vmem:[%s179 + $0x1c0] sm:$0xf]
                %294 = vst [vmem:[%s180 + $0xe0] sm:$0xf] %v293
                %v295 = vld [vmem:[%s179 + $0x1c8] sm:$0xf]
                %296 = vst [vmem:[%s180 + $0xe4] sm:$0xf] %v295
                %v297 = vld [vmem:[%s179 + $0x1d0] sm:$0xf]
                %298 = vst [vmem:[%s180 + $0xe8] sm:$0xf] %v297
                %v299 = vld [vmem:[%s179 + $0x1d8] sm:$0xf]
                %300 = vst [vmem:[%s180 + $0xec] sm:$0xf] %v299
                %v301 = vld [vmem:[%s179 + $0x1e0] sm:$0xf]
                %302 = vst [vmem:[%s180 + $0xf0] sm:$0xf] %v301
                %v303 = vld [vmem:[%s179 + $0x1e8] sm:$0xf]
                %304 = vst [vmem:[%s180 + $0xf4] sm:$0xf] %v303
                %v305 = vld [vmem:[%s179 + $0x1f0] sm:$0xf]
                %306 = vst [vmem:[%s180 + $0xf8] sm:$0xf] %v305
                %v307 = vld [vmem:[%s179 + $0x1f8] sm:$0xf]
                %308 = vst [vmem:[%s180 + $0xfc] sm:$0xf] %v307
                %v309 = vld [vmem:[%s179 + $0x200] sm:$0xf]
                %310 = vst [vmem:[%s180 + $0x100] sm:$0xf] %v309
                %v311 = vld [vmem:[%s179 + $0x208] sm:$0xf]
                %312 = vst [vmem:[%s180 + $0x104] sm:$0xf] %v311
                %v313 = vld [vmem:[%s179 + $0x210] sm:$0xf]
                %314 = vst [vmem:[%s180 + $0x108] sm:$0xf] %v313
                %v315 = vld [vmem:[%s179 + $0x218] sm:$0xf]
                %316 = vst [vmem:[%s180 + $0x10c] sm:$0xf] %v315
                %v317 = vld [vmem:[%s179 + $0x220] sm:$0xf]
                %318 = vst [vmem:[%s180 + $0x110] sm:$0xf] %v317
                %v319 = vld [vmem:[%s179 + $0x228] sm:$0xf]
                %320 = vst [vmem:[%s180 + $0x114] sm:$0xf] %v319
                %v321 = vld [vmem:[%s179 + $0x230] sm:$0xf]
                %322 = vst [vmem:[%s180 + $0x118] sm:$0xf] %v321
                %v323 = vld [vmem:[%s179 + $0x238] sm:$0xf]
                %324 = vst [vmem:[%s180 + $0x11c] sm:$0xf] %v323
                %v325 = vld [vmem:[%s179 + $0x240] sm:$0xf]
                %326 = vst [vmem:[%s180 + $0x120] sm:$0xf] %v325
                %v327 = vld [vmem:[%s179 + $0x248] sm:$0xf]
                %328 = vst [vmem:[%s180 + $0x124] sm:$0xf] %v327
                %v329 = vld [vmem:[%s179 + $0x250] sm:$0xf]
                %330 = vst [vmem:[%s180 + $0x128] sm:$0xf] %v329
                %v331 = vld [vmem:[%s179 + $0x258] sm:$0xf]
                %332 = vst [vmem:[%s180 + $0x12c] sm:$0xf] %v331
                %v333 = vld [vmem:[%s179 + $0x260] sm:$0xf]
                %334 = vst [vmem:[%s180 + $0x130] sm:$0xf] %v333
                %v335 = vld [vmem:[%s179 + $0x268] sm:$0xf]
                %336 = vst [vmem:[%s180 + $0x134] sm:$0xf] %v335
                %v337 = vld [vmem:[%s179 + $0x270] sm:$0xf]
                %338 = vst [vmem:[%s180 + $0x138] sm:$0xf] %v337
                %v339 = vld [vmem:[%s179 + $0x278] sm:$0xf]
                %340 = vst [vmem:[%s180 + $0x13c] sm:$0xf] %v339
                %v341 = vld [vmem:[%s179 + $0x280] sm:$0xf]
                %342 = vst [vmem:[%s180 + $0x140] sm:$0xf] %v341
                %v343 = vld [vmem:[%s179 + $0x288] sm:$0xf]
                %344 = vst [vmem:[%s180 + $0x144] sm:$0xf] %v343
                %v345 = vld [vmem:[%s179 + $0x290] sm:$0xf]
                %346 = vst [vmem:[%s180 + $0x148] sm:$0xf] %v345
                %v347 = vld [vmem:[%s179 + $0x298] sm:$0xf]
                %348 = vst [vmem:[%s180 + $0x14c] sm:$0xf] %v347
                %v349 = vld [vmem:[%s179 + $0x2a0] sm:$0xf]
                %350 = vst [vmem:[%s180 + $0x150] sm:$0xf] %v349
                %v351 = vld [vmem:[%s179 + $0x2a8] sm:$0xf]
                %352 = vst [vmem:[%s180 + $0x154] sm:$0xf] %v351
                %v353 = vld [vmem:[%s179 + $0x2b0] sm:$0xf]
                %354 = vst [vmem:[%s180 + $0x158] sm:$0xf] %v353
                %v355 = vld [vmem:[%s179 + $0x2b8] sm:$0xf]
                %356 = vst [vmem:[%s180 + $0x15c] sm:$0xf] %v355
                %v357 = vld [vmem:[%s179 + $0x2c0] sm:$0xf]
                %358 = vst [vmem:[%s180 + $0x160] sm:$0xf] %v357
                %v359 = vld [vmem:[%s179 + $0x2c8] sm:$0xf]
                %360 = vst [vmem:[%s180 + $0x164] sm:$0xf] %v359
                %v361 = vld [vmem:[%s179 + $0x2d0] sm:$0xf]
                %362 = vst [vmem:[%s180 + $0x168] sm:$0xf] %v361
                %v363 = vld [vmem:[%s179 + $0x2d8] sm:$0xf]
                %364 = vst [vmem:[%s180 + $0x16c] sm:$0xf] %v363
                %v365 = vld [vmem:[%s179 + $0x2e0] sm:$0xf]
                %366 = vst [vmem:[%s180 + $0x170] sm:$0xf] %v365
                %v367 = vld [vmem:[%s179 + $0x2e8] sm:$0xf]
                %368 = vst [vmem:[%s180 + $0x174] sm:$0xf] %v367
                %v369 = vld [vmem:[%s179 + $0x2f0] sm:$0xf]
                %370 = vst [vmem:[%s180 + $0x178] sm:$0xf] %v369
                %v371 = vld [vmem:[%s179 + $0x2f8] sm:$0xf]
                %372 = vst [vmem:[%s180 + $0x17c] sm:$0xf] %v371
                %v373 = vld [vmem:[%s179 + $0x300] sm:$0xf]
                %374 = vst [vmem:[%s180 + $0x180] sm:$0xf] %v373
                %v375 = vld [vmem:[%s179 + $0x308] sm:$0xf]
                %376 = vst [vmem:[%s180 + $0x184] sm:$0xf] %v375
                %v377 = vld [vmem:[%s179 + $0x310] sm:$0xf]
                %378 = vst [vmem:[%s180 + $0x188] sm:$0xf] %v377
                %v379 = vld [vmem:[%s179 + $0x318] sm:$0xf]
                %380 = vst [vmem:[%s180 + $0x18c] sm:$0xf] %v379
                %v381 = vld [vmem:[%s179 + $0x320] sm:$0xf]
                %382 = vst [vmem:[%s180 + $0x190] sm:$0xf] %v381
                %v383 = vld [vmem:[%s179 + $0x328] sm:$0xf]
                %384 = vst [vmem:[%s180 + $0x194] sm:$0xf] %v383
                %v385 = vld [vmem:[%s179 + $0x330] sm:$0xf]
                %386 = vst [vmem:[%s180 + $0x198] sm:$0xf] %v385
                %v387 = vld [vmem:[%s179 + $0x338] sm:$0xf]
                %388 = vst [vmem:[%s180 + $0x19c] sm:$0xf] %v387
                %v389 = vld [vmem:[%s179 + $0x340] sm:$0xf]
                %390 = vst [vmem:[%s180 + $0x1a0] sm:$0xf] %v389
                %v391 = vld [vmem:[%s179 + $0x348] sm:$0xf]
                %392 = vst [vmem:[%s180 + $0x1a4] sm:$0xf] %v391
                %v393 = vld [vmem:[%s179 + $0x350] sm:$0xf]
                %394 = vst [vmem:[%s180 + $0x1a8] sm:$0xf] %v393
                %v395 = vld [vmem:[%s179 + $0x358] sm:$0xf]
                %396 = vst [vmem:[%s180 + $0x1ac] sm:$0xf] %v395
                %v397 = vld [vmem:[%s179 + $0x360] sm:$0xf]
                %398 = vst [vmem:[%s180 + $0x1b0] sm:$0xf] %v397
                %v399 = vld [vmem:[%s179 + $0x368] sm:$0xf]
                %400 = vst [vmem:[%s180 + $0x1b4] sm:$0xf] %v399
                %v401 = vld [vmem:[%s179 + $0x370] sm:$0xf]
                %402 = vst [vmem:[%s180 + $0x1b8] sm:$0xf] %v401
                %v403 = vld [vmem:[%s179 + $0x378] sm:$0xf]
                %404 = vst [vmem:[%s180 + $0x1bc] sm:$0xf] %v403
                %v405 = vld [vmem:[%s179 + $0x380] sm:$0xf]
                %406 = vst [vmem:[%s180 + $0x1c0] sm:$0xf] %v405
                %v407 = vld [vmem:[%s179 + $0x388] sm:$0xf]
                %408 = vst [vmem:[%s180 + $0x1c4] sm:$0xf] %v407
                %v409 = vld [vmem:[%s179 + $0x390] sm:$0xf]
                %410 = vst [vmem:[%s180 + $0x1c8] sm:$0xf] %v409
                %v411 = vld [vmem:[%s179 + $0x398] sm:$0xf]
                %412 = vst [vmem:[%s180 + $0x1cc] sm:$0xf] %v411
                %v413 = vld [vmem:[%s179 + $0x3a0] sm:$0xf]
                %414 = vst [vmem:[%s180 + $0x1d0] sm:$0xf] %v413
                %v415 = vld [vmem:[%s179 + $0x3a8] sm:$0xf]
                %416 = vst [vmem:[%s180 + $0x1d4] sm:$0xf] %v415
                %v417 = vld [vmem:[%s179 + $0x3b0] sm:$0xf]
                %418 = vst [vmem:[%s180 + $0x1d8] sm:$0xf] %v417
                %v419 = vld [vmem:[%s179 + $0x3b8] sm:$0xf]
                %420 = vst [vmem:[%s180 + $0x1dc] sm:$0xf] %v419
                %v421 = vld [vmem:[%s179 + $0x3c0] sm:$0xf]
                %422 = vst [vmem:[%s180 + $0x1e0] sm:$0xf] %v421
                %v423 = vld [vmem:[%s179 + $0x3c8] sm:$0xf]
                %424 = vst [vmem:[%s180 + $0x1e4] sm:$0xf] %v423
                %v425 = vld [vmem:[%s179 + $0x3d0] sm:$0xf]
                %426 = vst [vmem:[%s180 + $0x1e8] sm:$0xf] %v425
                %v427 = vld [vmem:[%s179 + $0x3d8] sm:$0xf]
                %428 = vst [vmem:[%s180 + $0x1ec] sm:$0xf] %v427
                %v429 = vld [vmem:[%s179 + $0x3e0] sm:$0xf]
                %430 = vst [vmem:[%s180 + $0x1f0] sm:$0xf] %v429
                %v431 = vld [vmem:[%s179 + $0x3e8] sm:$0xf]
                %432 = vst [vmem:[%s180 + $0x1f4] sm:$0xf] %v431
                %v433 = vld [vmem:[%s179 + $0x3f0] sm:$0xf]
                %434 = vst [vmem:[%s180 + $0x1f8] sm:$0xf] %v433
                %v435 = vld [vmem:[%s179 + $0x3f8] sm:$0xf]
                %436 = vst [vmem:[%s180 + $0x1fc] sm:$0xf] %v435
                %v437 = vld [vmem:[%s179 + $0x400] sm:$0xf]
                %438 = vst [vmem:[%s180 + $0x200] sm:$0xf] %v437
                %v439 = vld [vmem:[%s179 + $0x408] sm:$0xf]
                %440 = vst [vmem:[%s180 + $0x204] sm:$0xf] %v439
                %v441 = vld [vmem:[%s179 + $0x410] sm:$0xf]
                %442 = vst [vmem:[%s180 + $0x208] sm:$0xf] %v441
                %v443 = vld [vmem:[%s179 + $0x418] sm:$0xf]
                %444 = vst [vmem:[%s180 + $0x20c] sm:$0xf] %v443
                %v445 = vld [vmem:[%s179 + $0x420] sm:$0xf]
                %446 = vst [vmem:[%s180 + $0x210] sm:$0xf] %v445
                %v447 = vld [vmem:[%s179 + $0x428] sm:$0xf]
                %448 = vst [vmem:[%s180 + $0x214] sm:$0xf] %v447
                %v449 = vld [vmem:[%s179 + $0x430] sm:$0xf]
                %450 = vst [vmem:[%s180 + $0x218] sm:$0xf] %v449
                %v451 = vld [vmem:[%s179 + $0x438] sm:$0xf]
                %452 = vst [vmem:[%s180 + $0x21c] sm:$0xf] %v451
                %v453 = vld [vmem:[%s179 + $0x440] sm:$0xf]
                %454 = vst [vmem:[%s180 + $0x220] sm:$0xf] %v453
                %v455 = vld [vmem:[%s179 + $0x448] sm:$0xf]
                %456 = vst [vmem:[%s180 + $0x224] sm:$0xf] %v455
                %v457 = vld [vmem:[%s179 + $0x450] sm:$0xf]
                %458 = vst [vmem:[%s180 + $0x228] sm:$0xf] %v457
                %v459 = vld [vmem:[%s179 + $0x458] sm:$0xf]
                %460 = vst [vmem:[%s180 + $0x22c] sm:$0xf] %v459
                %v461 = vld [vmem:[%s179 + $0x460] sm:$0xf]
                %462 = vst [vmem:[%s180 + $0x230] sm:$0xf] %v461
                %v463 = vld [vmem:[%s179 + $0x468] sm:$0xf]
                %464 = vst [vmem:[%s180 + $0x234] sm:$0xf] %v463
                %v465 = vld [vmem:[%s179 + $0x470] sm:$0xf]
                %466 = vst [vmem:[%s180 + $0x238] sm:$0xf] %v465
                %v467 = vld [vmem:[%s179 + $0x478] sm:$0xf]
                %468 = vst [vmem:[%s180 + $0x23c] sm:$0xf] %v467
              $region41: #{discriminator_v2.8} parent=35 // loop_footer
                %s178 = sadd.s32 1, %s174
              $region42: #{discriminator_v2.8} parent=35 // loop_footer_branch
                %173 = sbr.rel target = $region38
              $region43: #{discriminator_v2.8} parent=35 // loop_exit
                _
            $region36: #{discriminator_v2.8} parent=27 // pred_fallthru
              _
          $region28: #{discriminator_v2.8} parent=23 // pred_fallthru
            _
          %776 = vnop
        $region24: #{discriminator_v2.8} parent=19 // pred_fallthru
          _
        // Predicated region
        $region62: #{discriminator_v2.8} parent=19 // pred_check
          %p777 = pneg %p77
        $region63: #{discriminator_v2.8} parent=19 // pred_check_branch
          %779 = sbr.rel (%p777) target = $region65
        $region64: #{discriminator_v2.8} parent=19 // pred_region
          %p780 = scmp.lt.s32.totalorder %s10, 1
          %s781 = scalar_select %p780, %s10, 1
          %s782 = scalar_lea.vmem %s2, %s781
        $region65: #{discriminator_v2.8} parent=19 // pred_fallthru
          _
        // Predicated region
        $region66: #{discriminator_v2.8} parent=19 // pred_check
          %p783 = pneg %p103
        $region67: #{discriminator_v2.8} parent=19 // pred_check_branch
          %785 = sbr.rel (%p783) target = $region69
        $region68: #{discriminator_v2.8} parent=19 // pred_region
          %p786 = scmp.lt.s32.totalorder %s10, 1
          %s787 = scalar_select %p786, %s10, 1
          %s788 = scalar_lea.vmem %s3, %s787
        $region69: #{discriminator_v2.8} parent=19 // pred_fallthru
          _
      $region20: #{discriminator_v2.8} parent=5 // pred_fallthru
        _
      %p789 = scmp.le.s32.totalorder 1, %s10
      %p790 = scmp.lt.s32.totalorder %s10, 3
      %p791 = pnand %p789, %p790
      %p792 = pneg %p791
      // Predicated region
      $region70: #{discriminator_v2.8} parent=5 // pred_check
        _
      $region71: #{discriminator_v2.8} parent=5 // pred_check_branch
        %794 = sbr.rel (%p791) target = $region73
      $region72: #{discriminator_v2.8} parent=5 // pred_region
        %s795 = ssub.s32 %s10, 1
        %s796 = sand.u32 %s44, 1
        %s797 = sand.u32 %s44, 1
        %s798 = smul.addr %s797, 576
        %s799 = scalar_lea.vmem [#allocation2], %s798
        // Predicated region
        $region74: #{discriminator_v2.8} parent=72 // pred_check
          %p800 = pneg %p57
        $region75: #{discriminator_v2.8} parent=72 // pred_check_branch
          %802 = sbr.rel (%p800) target = $region77
        $region76: #{discriminator_v2.8} parent=72 // pred_region
          _
        $region77: #{discriminator_v2.8} parent=72 // pred_fallthru
          _
        %p803 = pneg %p31
        %p804 = pneg %p28
        %s805 = sand.u32 %s44, 1
        %s806 = sand.u32 %s44, 1
        %s807 = smul.addr %s806, 576
        %s808 = scalar_lea.vmem [#allocation2], %s807
        %p809 = pneg %p57
        %p810 = pneg %p54
        %p811 = scmp.lt.s32.totalorder %s15, 1
        %s812 = scalar_select %p811, %s15, 1
        %s813 = scalar_lea.vmem %s2, %s812
        %p814 = pneg %p83
        %p815 = pneg %p80
        %p816 = scmp.lt.s32.totalorder %s15, 1
        %s817 = scalar_select %p816, %s15, 1
        %s818 = scalar_lea.vmem %s3, %s817
        %p819 = pneg %p109
        %p820 = pneg %p106
        %p821 = pneg %p135
        %p822 = pneg %p132
        %p823 = scmp.lt.s32.totalorder %s15, 1
        %s824 = scalar_select %p823, %s15, 1
        %s825 = smul.addr %s824, 4
        %s826 = scalar_lea.vmem %s4, %s825
        %p827 = scmp.lt.s32.totalorder %s15, 1
        %s828 = scalar_select %p827, %s15, 1
        %s829 = scalar_lea.vmem %s2, %s828
        %p830 = scmp.lt.s32.totalorder %s15, 1
        %s831 = scalar_select %p830, %s15, 1
        %s832 = scalar_lea.vmem %s3, %s831
        %p833 = scmp.lt.s32.totalorder %s15, 1
        %s834 = scalar_select %p833, %s15, 1
        %s835 = smul.addr %s834, 4
        %s836 = scalar_lea.vmem %s4, %s835
        %v838 = vld [vmem:[%s0] sm:$0xff]
        %v839 = vld [vmem:[%s0 + $0x8] sm:$0xff]
        %v840 = vld [vmem:[%s0 + $0x10] sm:$0xff]
        %v841 = vld [vmem:[%s0 + $0x18] sm:$0xff]
        %v842 = vld [vmem:[%s0 + $0x20] sm:$0xf]
        %v843 = vld [vmem:[%s799] sm:$0xf]
        %v844 = vld [vmem:[%s799 + $0x4] sm:$0xf]
        %v845 = vld [vmem:[%s799 + $0x8] sm:$0xf]
        %v846 = vld [vmem:[%s799 + $0xc] sm:$0xf]
        %v847 = vld [vmem:[%s799 + $0x10] sm:$0xf]
        %v848 = vld [vmem:[%s799 + $0x14] sm:$0xf]
        %v849 = vld [vmem:[%s799 + $0x18] sm:$0xf]
        %v850 = vld [vmem:[%s799 + $0x1c] sm:$0xf]
        %v851 = vld [vmem:[%s799 + $0x20] sm:$0xf]
        %v852 = vld [vmem:[%s799 + $0x24] sm:$0xf]
        %v853 = vld [vmem:[%s799 + $0x28] sm:$0xf]
        %v854 = vld [vmem:[%s799 + $0x2c] sm:$0xf]
        %v855 = vld [vmem:[%s799 + $0x30] sm:$0xf]
        %v856 = vld [vmem:[%s799 + $0x34] sm:$0xf]
        %v857 = vld [vmem:[%s799 + $0x38] sm:$0xf]
        %v858 = vld [vmem:[%s799 + $0x3c] sm:$0xf]
        %v859 = vld [vmem:[%s799 + $0x40] sm:$0xf]
        %v860 = vld [vmem:[%s799 + $0x44] sm:$0xf]
        %v861 = vld [vmem:[%s799 + $0x48] sm:$0xf]
        %v862 = vld [vmem:[%s799 + $0x4c] sm:$0xf]
        %v863 = vld [vmem:[%s799 + $0x50] sm:$0xf]
        %v864 = vld [vmem:[%s799 + $0x54] sm:$0xf]
        %v865 = vld [vmem:[%s799 + $0x58] sm:$0xf]
        %v866 = vld [vmem:[%s799 + $0x5c] sm:$0xf]
        %v867 = vld [vmem:[%s799 + $0x60] sm:$0xf]
        %v868 = vld [vmem:[%s799 + $0x64] sm:$0xf]
        %v869 = vld [vmem:[%s799 + $0x68] sm:$0xf]
        %v870 = vld [vmem:[%s799 + $0x6c] sm:$0xf]
        %v871 = vld [vmem:[%s799 + $0x70] sm:$0xf]
        %v872 = vld [vmem:[%s799 + $0x74] sm:$0xf]
        %v873 = vld [vmem:[%s799 + $0x78] sm:$0xf]
        %v874 = vld [vmem:[%s799 + $0x7c] sm:$0xf]
        %v875 = vld [vmem:[%s799 + $0x80] sm:$0xf]
        %v876 = vld [vmem:[%s799 + $0x84] sm:$0xf]
        %v877 = vld [vmem:[%s799 + $0x88] sm:$0xf]
        %v878 = vld [vmem:[%s799 + $0x8c] sm:$0xf]
        %v879 = vld [vmem:[%s799 + $0x90] sm:$0xf]
        %v880 = vld [vmem:[%s799 + $0x94] sm:$0xf]
        %v881 = vld [vmem:[%s799 + $0x98] sm:$0xf]
        %v882 = vld [vmem:[%s799 + $0x9c] sm:$0xf]
        %v883 = vld [vmem:[%s799 + $0xa0] sm:$0xf]
        %v884 = vld [vmem:[%s799 + $0xa4] sm:$0xf]
        %v885 = vld [vmem:[%s799 + $0xa8] sm:$0xf]
        %v886 = vld [vmem:[%s799 + $0xac] sm:$0xf]
        %v887 = vld [vmem:[%s799 + $0xb0] sm:$0xf]
        %v888 = vld [vmem:[%s799 + $0xb4] sm:$0xf]
        %v889 = vld [vmem:[%s799 + $0xb8] sm:$0xf]
        %v890 = vld [vmem:[%s799 + $0xbc] sm:$0xf]
        %v891 = vld [vmem:[%s799 + $0xc0] sm:$0xf]
        %v892 = vld [vmem:[%s799 + $0xc4] sm:$0xf]
        %v893 = vld [vmem:[%s799 + $0xc8] sm:$0xf]
        %v894 = vld [vmem:[%s799 + $0xcc] sm:$0xf]
        %v895 = vld [vmem:[%s799 + $0xd0] sm:$0xf]
        %v896 = vld [vmem:[%s799 + $0xd4] sm:$0xf]
        %v897 = vld [vmem:[%s799 + $0xd8] sm:$0xf]
        %v898 = vld [vmem:[%s799 + $0xdc] sm:$0xf]
        %v899 = vld [vmem:[%s799 + $0xe0] sm:$0xf]
        %v900 = vld [vmem:[%s799 + $0xe4] sm:$0xf]
        %v901 = vld [vmem:[%s799 + $0xe8] sm:$0xf]
        %v902 = vld [vmem:[%s799 + $0xec] sm:$0xf]
        %v903 = vld [vmem:[%s799 + $0xf0] sm:$0xf]
        %v904 = vld [vmem:[%s799 + $0xf4] sm:$0xf]
        %v905 = vld [vmem:[%s799 + $0xf8] sm:$0xf]
        %v906 = vld [vmem:[%s799 + $0xfc] sm:$0xf]
        %v907 = vld [vmem:[%s799 + $0x100] sm:$0xf]
        %v908 = vld [vmem:[%s799 + $0x104] sm:$0xf]
        %v909 = vld [vmem:[%s799 + $0x108] sm:$0xf]
        %v910 = vld [vmem:[%s799 + $0x10c] sm:$0xf]
        %v911 = vld [vmem:[%s799 + $0x110] sm:$0xf]
        %v912 = vld [vmem:[%s799 + $0x114] sm:$0xf]
        %v913 = vld [vmem:[%s799 + $0x118] sm:$0xf]
        %v914 = vld [vmem:[%s799 + $0x11c] sm:$0xf]
        %v915 = vld [vmem:[%s799 + $0x120] sm:$0xf]
        %v916 = vld [vmem:[%s799 + $0x124] sm:$0xf]
        %v917 = vld [vmem:[%s799 + $0x128] sm:$0xf]
        %v918 = vld [vmem:[%s799 + $0x12c] sm:$0xf]
        %v919 = vld [vmem:[%s799 + $0x130] sm:$0xf]
        %v920 = vld [vmem:[%s799 + $0x134] sm:$0xf]
        %v921 = vld [vmem:[%s799 + $0x138] sm:$0xf]
        %v922 = vld [vmem:[%s799 + $0x13c] sm:$0xf]
        %v923 = vld [vmem:[%s799 + $0x140] sm:$0xf]
        %v924 = vld [vmem:[%s799 + $0x144] sm:$0xf]
        %v925 = vld [vmem:[%s799 + $0x148] sm:$0xf]
        %v926 = vld [vmem:[%s799 + $0x14c] sm:$0xf]
        %v927 = vld [vmem:[%s799 + $0x150] sm:$0xf]
        %v928 = vld [vmem:[%s799 + $0x154] sm:$0xf]
        %v929 = vld [vmem:[%s799 + $0x158] sm:$0xf]
        %v930 = vld [vmem:[%s799 + $0x15c] sm:$0xf]
        %v931 = vld [vmem:[%s799 + $0x160] sm:$0xf]
        %v932 = vld [vmem:[%s799 + $0x164] sm:$0xf]
        %v933 = vld [vmem:[%s799 + $0x168] sm:$0xf]
        %v934 = vld [vmem:[%s799 + $0x16c] sm:$0xf]
        %v935 = vld [vmem:[%s799 + $0x170] sm:$0xf]
        %v936 = vld [vmem:[%s799 + $0x174] sm:$0xf]
        %v937 = vld [vmem:[%s799 + $0x178] sm:$0xf]
        %v938 = vld [vmem:[%s799 + $0x17c] sm:$0xf]
        %v939 = vld [vmem:[%s799 + $0x180] sm:$0xf]
        %v940 = vld [vmem:[%s799 + $0x184] sm:$0xf]
        %v941 = vld [vmem:[%s799 + $0x188] sm:$0xf]
        %v942 = vld [vmem:[%s799 + $0x18c] sm:$0xf]
        %v943 = vld [vmem:[%s799 + $0x190] sm:$0xf]
        %v944 = vld [vmem:[%s799 + $0x194] sm:$0xf]
        %v945 = vld [vmem:[%s799 + $0x198] sm:$0xf]
        %v946 = vld [vmem:[%s799 + $0x19c] sm:$0xf]
        %v947 = vld [vmem:[%s799 + $0x1a0] sm:$0xf]
        %v948 = vld [vmem:[%s799 + $0x1a4] sm:$0xf]
        %v949 = vld [vmem:[%s799 + $0x1a8] sm:$0xf]
        %v950 = vld [vmem:[%s799 + $0x1ac] sm:$0xf]
        %v951 = vld [vmem:[%s799 + $0x1b0] sm:$0xf]
        %v952 = vld [vmem:[%s799 + $0x1b4] sm:$0xf]
        %v953 = vld [vmem:[%s799 + $0x1b8] sm:$0xf]
        %v954 = vld [vmem:[%s799 + $0x1bc] sm:$0xf]
        %v955 = vld [vmem:[%s799 + $0x1c0] sm:$0xf]
        %v956 = vld [vmem:[%s799 + $0x1c4] sm:$0xf]
        %v957 = vld [vmem:[%s799 + $0x1c8] sm:$0xf]
        %v958 = vld [vmem:[%s799 + $0x1cc] sm:$0xf]
        %v959 = vld [vmem:[%s799 + $0x1d0] sm:$0xf]
        %v960 = vld [vmem:[%s799 + $0x1d4] sm:$0xf]
        %v961 = vld [vmem:[%s799 + $0x1d8] sm:$0xf]
        %v962 = vld [vmem:[%s799 + $0x1dc] sm:$0xf]
        %v963 = vld [vmem:[%s799 + $0x1e0] sm:$0xf]
        %v964 = vld [vmem:[%s799 + $0x1e4] sm:$0xf]
        %v965 = vld [vmem:[%s799 + $0x1e8] sm:$0xf]
        %v966 = vld [vmem:[%s799 + $0x1ec] sm:$0xf]
        %v967 = vld [vmem:[%s799 + $0x1f0] sm:$0xf]
        %v968 = vld [vmem:[%s799 + $0x1f4] sm:$0xf]
        %v969 = vld [vmem:[%s799 + $0x1f8] sm:$0xf]
        %v970 = vld [vmem:[%s799 + $0x1fc] sm:$0xf]
        %v971 = vld [vmem:[%s799 + $0x200] sm:$0xf]
        %v972 = vld [vmem:[%s799 + $0x204] sm:$0xf]
        %v973 = vld [vmem:[%s799 + $0x208] sm:$0xf]
        %v974 = vld [vmem:[%s799 + $0x20c] sm:$0xf]
        %v975 = vld [vmem:[%s799 + $0x210] sm:$0xf]
        %v976 = vld [vmem:[%s799 + $0x214] sm:$0xf]
        %v977 = vld [vmem:[%s799 + $0x218] sm:$0xf]
        %v978 = vld [vmem:[%s799 + $0x21c] sm:$0xf]
        %v979 = vld [vmem:[%s799 + $0x220] sm:$0xf]
        %v980 = vld [vmem:[%s799 + $0x224] sm:$0xf]
        %v981 = vld [vmem:[%s799 + $0x228] sm:$0xf]
        %v982 = vld [vmem:[%s799 + $0x22c] sm:$0xf]
        %v983 = vld [vmem:[%s799 + $0x230] sm:$0xf]
        %v984 = vld [vmem:[%s799 + $0x234] sm:$0xf]
        %v985 = vld [vmem:[%s799 + $0x238] sm:$0xf]
        %v986 = vld [vmem:[%s799 + $0x23c] sm:$0xf]
        %v992 = vunpack.c.l.b16 %v838
        %v993 = vunpack.c.h.b16 %v838
        %v994 = vunpack.c.l.b16 %v839
        %v995 = vunpack.c.h.b16 %v839
        %v996 = vunpack.c.l.b16 %v840
        %v997 = vunpack.c.h.b16 %v840
        %v998 = vunpack.c.l.b16 %v841
        %v999 = vunpack.c.h.b16 %v841
        %v1000 = vunpack.c.l.b16 %v842
        %v1001 = vpack.c.b16 %v992, %v992
        %v1002 = vpack.c.b16 %v993, %v993
        %v1003 = vpack.c.b16 %v994, %v994
        %v1004 = vpack.c.b16 %v995, %v995
        %v1005 = vpack.c.b16 %v996, %v996
        %v1006 = vpack.c.b16 %v997, %v997
        %v1007 = vpack.c.b16 %v998, %v998
        %v1008 = vpack.c.b16 %v999, %v999
        %v1009 = vpack.c.b16 %v1000, %v1000
        %v1163 = vunpack.c.l.b16 %v843
        %v1164 = vunpack.c.l.b16 %v844
        %v1165 = vunpack.c.l.b16 %v845
        %v1166 = vunpack.c.l.b16 %v846
        %v1167 = vunpack.c.l.b16 %v847
        %v1168 = vunpack.c.l.b16 %v848
        %v1169 = vunpack.c.l.b16 %v849
        %v1170 = vunpack.c.l.b16 %v850
        %v1171 = vunpack.c.l.b16 %v851
        %v1172 = vunpack.c.l.b16 %v852
        %v1173 = vunpack.c.l.b16 %v853
        %v1174 = vunpack.c.l.b16 %v854
        %v1175 = vunpack.c.l.b16 %v855
        %v1176 = vunpack.c.l.b16 %v856
        %v1177 = vunpack.c.l.b16 %v857
        %v1178 = vunpack.c.l.b16 %v858
        %v1179 = vunpack.c.l.b16 %v859
        %v1180 = vunpack.c.l.b16 %v860
        %v1181 = vunpack.c.l.b16 %v861
        %v1182 = vunpack.c.l.b16 %v862
        %v1183 = vunpack.c.l.b16 %v863
        %v1184 = vunpack.c.l.b16 %v864
        %v1185 = vunpack.c.l.b16 %v865
        %v1186 = vunpack.c.l.b16 %v866
        %v1187 = vunpack.c.l.b16 %v867
        %v1188 = vunpack.c.l.b16 %v868
        %v1189 = vunpack.c.l.b16 %v869
        %v1190 = vunpack.c.l.b16 %v870
        %v1191 = vunpack.c.l.b16 %v871
        %v1192 = vunpack.c.l.b16 %v872
        %v1193 = vunpack.c.l.b16 %v873
        %v1194 = vunpack.c.l.b16 %v874
        %v1195 = vunpack.c.l.b16 %v875
        %v1196 = vunpack.c.l.b16 %v876
        %v1197 = vunpack.c.l.b16 %v877
        %v1198 = vunpack.c.l.b16 %v878
        %v1199 = vunpack.c.l.b16 %v879
        %v1200 = vunpack.c.l.b16 %v880
        %v1201 = vunpack.c.l.b16 %v881
        %v1202 = vunpack.c.l.b16 %v882
        %v1203 = vunpack.c.l.b16 %v883
        %v1204 = vunpack.c.l.b16 %v884
        %v1205 = vunpack.c.l.b16 %v885
        %v1206 = vunpack.c.l.b16 %v886
        %v1207 = vunpack.c.l.b16 %v887
        %v1208 = vunpack.c.l.b16 %v888
        %v1209 = vunpack.c.l.b16 %v889
        %v1210 = vunpack.c.l.b16 %v890
        %v1211 = vunpack.c.l.b16 %v891
        %v1212 = vunpack.c.l.b16 %v892
        %v1213 = vunpack.c.l.b16 %v893
        %v1214 = vunpack.c.l.b16 %v894
        %v1215 = vunpack.c.l.b16 %v895
        %v1216 = vunpack.c.l.b16 %v896
        %v1217 = vunpack.c.l.b16 %v897
        %v1218 = vunpack.c.l.b16 %v898
        %v1219 = vunpack.c.l.b16 %v899
        %v1220 = vunpack.c.l.b16 %v900
        %v1221 = vunpack.c.l.b16 %v901
        %v1222 = vunpack.c.l.b16 %v902
        %v1223 = vunpack.c.l.b16 %v903
        %v1224 = vunpack.c.l.b16 %v904
        %v1225 = vunpack.c.l.b16 %v905
        %v1226 = vunpack.c.l.b16 %v906
        %v1227 = vunpack.c.l.b16 %v907
        %v1228 = vunpack.c.l.b16 %v908
        %v1229 = vunpack.c.l.b16 %v909
        %v1230 = vunpack.c.l.b16 %v910
        %v1231 = vunpack.c.l.b16 %v911
        %v1232 = vunpack.c.l.b16 %v912
        %v1233 = vunpack.c.l.b16 %v913
        %v1234 = vunpack.c.l.b16 %v914
        %v1235 = vunpack.c.l.b16 %v915
        %v1236 = vunpack.c.l.b16 %v916
        %v1237 = vunpack.c.l.b16 %v917
        %v1238 = vunpack.c.l.b16 %v918
        %v1239 = vunpack.c.l.b16 %v919
        %v1240 = vunpack.c.l.b16 %v920
        %v1241 = vunpack.c.l.b16 %v921
        %v1242 = vunpack.c.l.b16 %v922
        %v1243 = vunpack.c.l.b16 %v923
        %v1244 = vunpack.c.l.b16 %v924
        %v1245 = vunpack.c.l.b16 %v925
        %v1246 = vunpack.c.l.b16 %v926
        %v1247 = vunpack.c.l.b16 %v927
        %v1248 = vunpack.c.l.b16 %v928
        %v1249 = vunpack.c.l.b16 %v929
        %v1250 = vunpack.c.l.b16 %v930
        %v1251 = vunpack.c.l.b16 %v931
        %v1252 = vunpack.c.l.b16 %v932
        %v1253 = vunpack.c.l.b16 %v933
        %v1254 = vunpack.c.l.b16 %v934
        %v1255 = vunpack.c.l.b16 %v935
        %v1256 = vunpack.c.l.b16 %v936
        %v1257 = vunpack.c.l.b16 %v937
        %v1258 = vunpack.c.l.b16 %v938
        %v1259 = vunpack.c.l.b16 %v939
        %v1260 = vunpack.c.l.b16 %v940
        %v1261 = vunpack.c.l.b16 %v941
        %v1262 = vunpack.c.l.b16 %v942
        %v1263 = vunpack.c.l.b16 %v943
        %v1264 = vunpack.c.l.b16 %v944
        %v1265 = vunpack.c.l.b16 %v945
        %v1266 = vunpack.c.l.b16 %v946
        %v1267 = vunpack.c.l.b16 %v947
        %v1268 = vunpack.c.l.b16 %v948
        %v1269 = vunpack.c.l.b16 %v949
        %v1270 = vunpack.c.l.b16 %v950
        %v1271 = vunpack.c.l.b16 %v951
        %v1272 = vunpack.c.l.b16 %v952
        %v1273 = vunpack.c.l.b16 %v953
        %v1274 = vunpack.c.l.b16 %v954
        %v1275 = vunpack.c.l.b16 %v955
        %v1276 = vunpack.c.l.b16 %v956
        %v1277 = vunpack.c.l.b16 %v957
        %v1278 = vunpack.c.l.b16 %v958
        %v1279 = vunpack.c.l.b16 %v959
        %v1280 = vunpack.c.l.b16 %v960
        %v1281 = vunpack.c.l.b16 %v961
        %v1282 = vunpack.c.l.b16 %v962
        %v1283 = vunpack.c.l.b16 %v963
        %v1284 = vunpack.c.l.b16 %v964
        %v1285 = vunpack.c.l.b16 %v965
        %v1286 = vunpack.c.l.b16 %v966
        %v1287 = vunpack.c.l.b16 %v967
        %v1288 = vunpack.c.l.b16 %v968
        %v1289 = vunpack.c.l.b16 %v969
        %v1290 = vunpack.c.l.b16 %v970
        %v1291 = vunpack.c.l.b16 %v971
        %v1292 = vunpack.c.l.b16 %v972
        %v1293 = vunpack.c.l.b16 %v973
        %v1294 = vunpack.c.l.b16 %v974
        %v1295 = vunpack.c.l.b16 %v975
        %v1296 = vunpack.c.l.b16 %v976
        %v1297 = vunpack.c.l.b16 %v977
        %v1298 = vunpack.c.l.b16 %v978
        %v1299 = vunpack.c.l.b16 %v979
        %v1300 = vunpack.c.l.b16 %v980
        %v1301 = vunpack.c.l.b16 %v981
        %v1302 = vunpack.c.l.b16 %v982
        %v1303 = vunpack.c.l.b16 %v983
        %v1304 = vunpack.c.l.b16 %v984
        %v1305 = vunpack.c.l.b16 %v985
        %v1306 = vunpack.c.l.b16 %v986
        %v1307 = vpack.c.b16 %v1164, %v1163
        %v1308 = vpack.c.b16 %v1166, %v1165
        %v1309 = vpack.c.b16 %v1168, %v1167
        %v1310 = vpack.c.b16 %v1170, %v1169
        %v1311 = vpack.c.b16 %v1172, %v1171
        %v1312 = vpack.c.b16 %v1174, %v1173
        %v1313 = vpack.c.b16 %v1176, %v1175
        %v1314 = vpack.c.b16 %v1178, %v1177
        %v1315 = vpack.c.b16 %v1180, %v1179
        %v1316 = vpack.c.b16 %v1182, %v1181
        %v1317 = vpack.c.b16 %v1184, %v1183
        %v1318 = vpack.c.b16 %v1186, %v1185
        %v1319 = vpack.c.b16 %v1188, %v1187
        %v1320 = vpack.c.b16 %v1190, %v1189
        %v1321 = vpack.c.b16 %v1192, %v1191
        %v1322 = vpack.c.b16 %v1194, %v1193
        %v1323 = vpack.c.b16 %v1196, %v1195
        %v1324 = vpack.c.b16 %v1198, %v1197
        %v1325 = vpack.c.b16 %v1200, %v1199
        %v1326 = vpack.c.b16 %v1202, %v1201
        %v1327 = vpack.c.b16 %v1204, %v1203
        %v1328 = vpack.c.b16 %v1206, %v1205
        %v1329 = vpack.c.b16 %v1208, %v1207
        %v1330 = vpack.c.b16 %v1210, %v1209
        %v1331 = vpack.c.b16 %v1212, %v1211
        %v1332 = vpack.c.b16 %v1214, %v1213
        %v1333 = vpack.c.b16 %v1216, %v1215
        %v1334 = vpack.c.b16 %v1218, %v1217
        %v1335 = vpack.c.b16 %v1220, %v1219
        %v1336 = vpack.c.b16 %v1222, %v1221
        %v1337 = vpack.c.b16 %v1224, %v1223
        %v1338 = vpack.c.b16 %v1226, %v1225
        %v1339 = vpack.c.b16 %v1228, %v1227
        %v1340 = vpack.c.b16 %v1230, %v1229
        %v1341 = vpack.c.b16 %v1232, %v1231
        %v1342 = vpack.c.b16 %v1234, %v1233
        %v1343 = vpack.c.b16 %v1236, %v1235
        %v1344 = vpack.c.b16 %v1238, %v1237
        %v1345 = vpack.c.b16 %v1240, %v1239
        %v1346 = vpack.c.b16 %v1242, %v1241
        %v1347 = vpack.c.b16 %v1244, %v1243
        %v1348 = vpack.c.b16 %v1246, %v1245
        %v1349 = vpack.c.b16 %v1248, %v1247
        %v1350 = vpack.c.b16 %v1250, %v1249
        %v1351 = vpack.c.b16 %v1252, %v1251
        %v1352 = vpack.c.b16 %v1254, %v1253
        %v1353 = vpack.c.b16 %v1256, %v1255
        %v1354 = vpack.c.b16 %v1258, %v1257
        %v1355 = vpack.c.b16 %v1260, %v1259
        %v1356 = vpack.c.b16 %v1262, %v1261
        %v1357 = vpack.c.b16 %v1264, %v1263
        %v1358 = vpack.c.b16 %v1266, %v1265
        %v1359 = vpack.c.b16 %v1268, %v1267
        %v1360 = vpack.c.b16 %v1270, %v1269
        %v1361 = vpack.c.b16 %v1272, %v1271
        %v1362 = vpack.c.b16 %v1274, %v1273
        %v1363 = vpack.c.b16 %v1276, %v1275
        %v1364 = vpack.c.b16 %v1278, %v1277
        %v1365 = vpack.c.b16 %v1280, %v1279
        %v1366 = vpack.c.b16 %v1282, %v1281
        %v1367 = vpack.c.b16 %v1284, %v1283
        %v1368 = vpack.c.b16 %v1286, %v1285
        %v1369 = vpack.c.b16 %v1288, %v1287
        %v1370 = vpack.c.b16 %v1290, %v1289
        %v1371 = vpack.c.b16 %v1292, %v1291
        %v1372 = vpack.c.b16 %v1294, %v1293
        %v1373 = vpack.c.b16 %v1296, %v1295
        %v1374 = vpack.c.b16 %v1298, %v1297
        %v1375 = vpack.c.b16 %v1300, %v1299
        %v1376 = vpack.c.b16 %v1302, %v1301
        %v1377 = vpack.c.b16 %v1304, %v1303
        %v1378 = vpack.c.b16 %v1306, %v1305
        %1451 = vmatprep.subr.bf16.mxu0 0
        %1452 = vmatpush1.bf16.msra.mxu0 %v1307
        %1453 = vmatprep.subr.bf16.mxu0 0
        %1454 = vmatpush1.bf16.msra.mxu0 %v1308
        %1455 = vmatprep.subr.bf16.mxu0 0
        %1456 = vmatpush1.bf16.msra.mxu0 %v1309
        %1457 = vmatprep.subr.bf16.mxu0 0
        %1458 = vmatpush1.bf16.msra.mxu0 %v1310
        %1459 = vmatprep.subr.bf16.mxu0 0
        %1460 = vmatpush1.bf16.msra.mxu0 %v1311
        %1461 = vmatprep.subr.bf16.mxu0 0
        %1462 = vmatpush1.bf16.msra.mxu0 %v1312
        %1463 = vmatprep.subr.bf16.mxu0 0
        %1464 = vmatpush1.bf16.msra.mxu0 %v1313
        %1465 = vmatprep.subr.bf16.mxu0 0
        %1466 = vmatpush1.bf16.msra.mxu0 %v1314
        %1467 = vmatprep.subr.bf16.mxu0 0
        %1468 = vmatpush1.bf16.msra.mxu0 %v1315
        %1469 = vmatprep.subr.bf16.mxu0 0
        %1470 = vmatpush1.bf16.msra.mxu0 %v1316
        %1471 = vmatprep.subr.bf16.mxu0 0
        %1472 = vmatpush1.bf16.msra.mxu0 %v1317
        %1473 = vmatprep.subr.bf16.mxu0 0
        %1474 = vmatpush1.bf16.msra.mxu0 %v1318
        %1475 = vmatprep.subr.bf16.mxu0 0
        %1476 = vmatpush1.bf16.msra.mxu0 %v1319
        %1477 = vmatprep.subr.bf16.mxu0 0
        %1478 = vmatpush1.bf16.msra.mxu0 %v1320
        %1479 = vmatprep.subr.bf16.mxu0 0
        %1480 = vmatpush1.bf16.msra.mxu0 %v1321
        %1481 = vmatprep.subr.bf16.mxu0 0
        %1482 = vmatpush1.bf16.msra.mxu0 %v1322
        %1483 = vmatprep.mubr.bf16.mxu0 %v1002
        %1484 = vmatmul.mubr.bf16.gmra.mrb[0].mxu0 %v1001
        %v1485 = vpop.f32.mrb[0].mxu0
        %v1486 = vadd.f32 0.0, %v1485
        %v1487 = vpop.f32.mrb[0].mxu0
        %v1488 = vpop.f32.mrb[0].mxu0
        %v1489 = vpop.f32.mrb[0].mxu0
        %1490 = vdwg.mxu0
        %1491 = vmatprep.subr.bf16.mxu0 0
        %1492 = vmatpush1.bf16.msra.mxu0 %v1323
        %1493 = vmatprep.subr.bf16.mxu0 0
        %1494 = vmatpush1.bf16.msra.mxu0 %v1324
        %1495 = vmatprep.subr.bf16.mxu0 0
        %1496 = vmatpush1.bf16.msra.mxu0 %v1325
        %1497 = vmatprep.subr.bf16.mxu0 0
        %1498 = vmatpush1.bf16.msra.mxu0 %v1326
        %1499 = vmatprep.subr.bf16.mxu0 0
        %1500 = vmatpush1.bf16.msra.mxu0 %v1327
        %1501 = vmatprep.subr.bf16.mxu0 0
        %1502 = vmatpush1.bf16.msra.mxu0 %v1328
        %1503 = vmatprep.subr.bf16.mxu0 0
        %1504 = vmatpush1.bf16.msra.mxu0 %v1329
        %1505 = vmatprep.subr.bf16.mxu0 0
        %1506 = vmatpush1.bf16.msra.mxu0 %v1330
        %1507 = vmatprep.subr.bf16.mxu0 0
        %1508 = vmatpush1.bf16.msra.mxu0 %v1331
        %1509 = vmatprep.subr.bf16.mxu0 0
        %1510 = vmatpush1.bf16.msra.mxu0 %v1332
        %1511 = vmatprep.subr.bf16.mxu0 0
        %1512 = vmatpush1.bf16.msra.mxu0 %v1333
        %1513 = vmatprep.subr.bf16.mxu0 0
        %1514 = vmatpush1.bf16.msra.mxu0 %v1334
        %1515 = vmatprep.subr.bf16.mxu0 0
        %1516 = vmatpush1.bf16.msra.mxu0 %v1335
        %1517 = vmatprep.subr.bf16.mxu0 0
        %1518 = vmatpush1.bf16.msra.mxu0 %v1336
        %1519 = vmatprep.subr.bf16.mxu0 0
        %1520 = vmatpush1.bf16.msra.mxu0 %v1337
        %1521 = vmatprep.subr.bf16.mxu0 0
        %1522 = vmatpush1.bf16.msra.mxu0 %v1338
        %1523 = vmatprep.mubr.bf16.mxu0 %v1004
        %1524 = vmatmul.mubr.bf16.gmra.mrb[0].mxu0 %v1003
        %v1525 = vpop.f32.mrb[0].mxu0
        %v1526 = vadd.f32 %v1486, %v1525
        %v1527 = vpop.f32.mrb[0].mxu0
        %v1528 = vpop.f32.mrb[0].mxu0
        %v1529 = vpop.f32.mrb[0].mxu0
        %1530 = vdwg.mxu0
        %1531 = vmatprep.subr.bf16.mxu0 0
        %1532 = vmatpush1.bf16.msra.mxu0 %v1339
        %1533 = vmatprep.subr.bf16.mxu0 0
        %1534 = vmatpush1.bf16.msra.mxu0 %v1340
        %1535 = vmatprep.subr.bf16.mxu0 0
        %1536 = vmatpush1.bf16.msra.mxu0 %v1341
        %1537 = vmatprep.subr.bf16.mxu0 0
        %1538 = vmatpush1.bf16.msra.mxu0 %v1342
        %1539 = vmatprep.subr.bf16.mxu0 0
        %1540 = vmatpush1.bf16.msra.mxu0 %v1343
        %1541 = vmatprep.subr.bf16.mxu0 0
        %1542 = vmatpush1.bf16.msra.mxu0 %v1344
        %1543 = vmatprep.subr.bf16.mxu0 0
        %1544 = vmatpush1.bf16.msra.mxu0 %v1345
        %1545 = vmatprep.subr.bf16.mxu0 0
        %1546 = vmatpush1.bf16.msra.mxu0 %v1346
        %1547 = vmatprep.subr.bf16.mxu0 0
        %1548 = vmatpush1.bf16.msra.mxu0 %v1347
        %1549 = vmatprep.subr.bf16.mxu0 0
        %1550 = vmatpush1.bf16.msra.mxu0 %v1348
        %1551 = vmatprep.subr.bf16.mxu0 0
        %1552 = vmatpush1.bf16.msra.mxu0 %v1349
        %1553 = vmatprep.subr.bf16.mxu0 0
        %1554 = vmatpush1.bf16.msra.mxu0 %v1350
        %1555 = vmatprep.subr.bf16.mxu0 0
        %1556 = vmatpush1.bf16.msra.mxu0 %v1351
        %1557 = vmatprep.subr.bf16.mxu0 0
        %1558 = vmatpush1.bf16.msra.mxu0 %v1352
        %1559 = vmatprep.subr.bf16.mxu0 0
        %1560 = vmatpush1.bf16.msra.mxu0 %v1353
        %1561 = vmatprep.subr.bf16.mxu0 0
        %1562 = vmatpush1.bf16.msra.mxu0 %v1354
        %1563 = vmatprep.mubr.bf16.mxu0 %v1006
        %1564 = vmatmul.mubr.bf16.gmra.mrb[0].mxu0 %v1005
        %v1565 = vpop.f32.mrb[0].mxu0
        %v1566 = vadd.f32 %v1526, %v1565
        %v1567 = vpop.f32.mrb[0].mxu0
        %v1568 = vpop.f32.mrb[0].mxu0
        %v1569 = vpop.f32.mrb[0].mxu0
        %1570 = vdwg.mxu0
        %1571 = vmatprep.subr.bf16.mxu0 0
        %1572 = vmatpush1.bf16.msra.mxu0 %v1355
        %1573 = vmatprep.subr.bf16.mxu0 0
        %1574 = vmatpush1.bf16.msra.mxu0 %v1356
        %1575 = vmatprep.subr.bf16.mxu0 0
        %1576 = vmatpush1.bf16.msra.mxu0 %v1357
        %1577 = vmatprep.subr.bf16.mxu0 0
        %1578 = vmatpush1.bf16.msra.mxu0 %v1358
        %1579 = vmatprep.subr.bf16.mxu0 0
        %1580 = vmatpush1.bf16.msra.mxu0 %v1359
        %1581 = vmatprep.subr.bf16.mxu0 0
        %1582 = vmatpush1.bf16.msra.mxu0 %v1360
        %1583 = vmatprep.subr.bf16.mxu0 0
        %1584 = vmatpush1.bf16.msra.mxu0 %v1361
        %1585 = vmatprep.subr.bf16.mxu0 0
        %1586 = vmatpush1.bf16.msra.mxu0 %v1362
        %1587 = vmatprep.subr.bf16.mxu0 0
        %1588 = vmatpush1.bf16.msra.mxu0 %v1363
        %1589 = vmatprep.subr.bf16.mxu0 0
        %1590 = vmatpush1.bf16.msra.mxu0 %v1364
        %1591 = vmatprep.subr.bf16.mxu0 0
        %1592 = vmatpush1.bf16.msra.mxu0 %v1365
        %1593 = vmatprep.subr.bf16.mxu0 0
        %1594 = vmatpush1.bf16.msra.mxu0 %v1366
        %1595 = vmatprep.subr.bf16.mxu0 0
        %1596 = vmatpush1.bf16.msra.mxu0 %v1367
        %1597 = vmatprep.subr.bf16.mxu0 0
        %1598 = vmatpush1.bf16.msra.mxu0 %v1368
        %1599 = vmatprep.subr.bf16.mxu0 0
        %1600 = vmatpush1.bf16.msra.mxu0 %v1369
        %1601 = vmatprep.subr.bf16.mxu0 0
        %1602 = vmatpush1.bf16.msra.mxu0 %v1370
        %1603 = vmatprep.mubr.bf16.mxu0 %v1008
        %1604 = vmatmul.mubr.bf16.gmra.mrb[0].mxu0 %v1007
        %v1605 = vpop.f32.mrb[0].mxu0
        %v1606 = vadd.f32 %v1566, %v1605
        %v1607 = vpop.f32.mrb[0].mxu0
        %v1608 = vpop.f32.mrb[0].mxu0
        %v1609 = vpop.f32.mrb[0].mxu0
        %1610 = vdwg.mxu0
        %1611 = vmatprep.subr.bf16.mxu0 0
        %1612 = vmatpush1.bf16.msra.mxu0 %v1371
        %1613 = vmatprep.subr.bf16.mxu0 0
        %1614 = vmatpush1.bf16.msra.mxu0 %v1372
        %1615 = vmatprep.subr.bf16.mxu0 0
        %1616 = vmatpush1.bf16.msra.mxu0 %v1373
        %1617 = vmatprep.subr.bf16.mxu0 0
        %1618 = vmatpush1.bf16.msra.mxu0 %v1374
        %1619 = vmatprep.subr.bf16.mxu0 0
        %1620 = vmatpush1.bf16.msra.mxu0 %v1375
        %1621 = vmatprep.subr.bf16.mxu0 0
        %1622 = vmatpush1.bf16.msra.mxu0 %v1376
        %1623 = vmatprep.subr.bf16.mxu0 0
        %1624 = vmatpush1.bf16.msra.mxu0 %v1377
        %1625 = vmatprep.subr.bf16.mxu0 0
        %1626 = vmatpush1.bf16.msra.mxu0 %v1378
        %1627 = vmatprep.subr.bf16.mxu0 0
        %1628 = vmatpush1.bf16.msra.mxu0 0
        %1629 = vmatprep.subr.bf16.mxu0 0
        %1630 = vmatpush1.bf16.msra.mxu0 0
        %1631 = vmatprep.subr.bf16.mxu0 0
        %1632 = vmatpush1.bf16.msra.mxu0 0
        %1633 = vmatprep.subr.bf16.mxu0 0
        %1634 = vmatpush1.bf16.msra.mxu0 0
        %1635 = vmatprep.subr.bf16.mxu0 0
        %1636 = vmatpush1.bf16.msra.mxu0 0
        %1637 = vmatprep.subr.bf16.mxu0 0
        %1638 = vmatpush1.bf16.msra.mxu0 0
        %1639 = vmatprep.subr.bf16.mxu0 0
        %1640 = vmatpush1.bf16.msra.mxu0 0
        %1641 = vmatprep.subr.bf16.mxu0 0
        %1642 = vmatpush1.bf16.msra.mxu0 0
        %1643 = vmatprep.mubr.bf16.mxu0 0
        %1644 = vmatmul.mubr.bf16.gmra.mrb[0].mxu0 %v1009
        %v1645 = vpop.f32.mrb[0].mxu0
        %v1646 = vadd.f32 %v1606, %v1645
        %v1647 = vpop.f32.mrb[0].mxu0
        %v1648 = vpop.f32.mrb[0].mxu0
        %v1649 = vpop.f32.mrb[0].mxu0
        %1650 = vdwg.mxu0
        %v1651 = vld [vmem:[%s829] sm:$0x1]
        %v1652 = vld [vmem:[%s832] sm:$0x1]
        %v1653 = vrot.slane %v1646, 4
        %v1654 = vadd.f32 %v1646, %v1653
        %v1655 = vrot.slane %v1654, 2
        %v1656 = vadd.f32 %v1654, %v1655
        %v1657 = vrot.slane %v1656, 1
        %v1658 = vadd.f32 %v1656, %v1657
        %v1659 = vrcp.pop 8.0
        %v1660 = vmul.f32 %v1658, %v1659
        %v1661 = vsub.f32 %v1646, %v1660
        %v1662 = vmul.f32 %v1661, %v1661
        %v1663 = vrot.slane %v1662, 4
        %v1664 = vadd.f32 %v1662, %v1663
        %v1665 = vrot.slane %v1664, 2
        %v1666 = vadd.f32 %v1664, %v1665
        %v1667 = vrot.slane %v1666, 1
        %v1668 = vadd.f32 %v1666, %v1667
        %v1669 = vmul.f32 %v1668, %v1659
        %v1670 = vadd.f32 %v1669, 1e-05
        %v1671 = vrsqrt.pop %v1670
        %v1672 = vmul.f32 %v1661, %v1671
        %v1674 = vlaneseq
        %v1675 = vshrl.u32 %v1674, 7
        %v1676 = vsub.s32 0, %v1675
        %v1677 = vrot.slane %v1651, %v1676
        %v1679 = vmul.f32 %v1672, %v1677
        %v1681 = vlaneseq
        %v1682 = vshrl.u32 %v1681, 7
        %v1683 = vsub.s32 0, %v1682
        %v1684 = vrot.slane %v1652, %v1683
        %v1686 = vadd.f32 %v1679, %v1684
        %vm1687 = vcmp.ge.f32.partialorder %v1686, 0.0
        %v1688 = vmul.f32 %v1686, 0.2
        %v1689 = vsel %vm1687, %v1686, %v1688
        %v1690 = vpack.c.bf16 %v1689, %v1689
        %1691 = vst [vmem:[%s836] sm:$0xf] %v1690
        %p1692 = scmp.lt.s32.totalorder %s15, 1
        %s1693 = scalar_select %p1692, %s15, 1
        %s1694 = smul.addr %s1693, 4
        %s1695 = scalar_lea.vmem %s4, %s1694
        // Predicated region
        $region78: #{discriminator_v2.8} parent=72 // pred_check
          %p1696 = pneg %p132
        $region79: #{discriminator_v2.8} parent=72 // pred_check_branch
          %1698 = sbr.rel (%p1696) target = $region81
        $region80: #{discriminator_v2.8} parent=72 // pred_region
          _
        $region81: #{discriminator_v2.8} parent=72 // pred_fallthru
          _
      $region73: #{discriminator_v2.8} parent=5 // pred_fallthru
        _
      %p1699 = scmp.le.s32.totalorder 2, %s10
      // Predicated region
      $region82: #{discriminator_v2.8} parent=5 // pred_check
        %p1700 = pneg %p1699
      $region83: #{discriminator_v2.8} parent=5 // pred_check_branch
        %1702 = sbr.rel (%p1700) target = $region85
      $region84: #{discriminator_v2.8} parent=5 // pred_region
        %s1703 = ssub.s32 %s10, 2
        // Predicated region
        $region86: #{discriminator_v2.8} parent=84 // pred_check
          %p1704 = pneg %p138
        $region87: #{discriminator_v2.8} parent=84 // pred_check_branch
          %1706 = sbr.rel (%p1704) target = $region89
        $region88: #{discriminator_v2.8} parent=84 // pred_region
          %p1707 = scmp.lt.s32.totalorder %s16, 1
          %s1708 = scalar_select %p1707, %s16, 1
          %s1709 = smul.addr %s1708, 4
          %s1710 = scalar_lea.vmem %s4, %s1709
        $region89: #{discriminator_v2.8} parent=84 // pred_fallthru
          _
      $region85: #{discriminator_v2.8} parent=5 // pred_fallthru
        _
    $region6: #{discriminator_v2.8} parent=1 // loop_footer
      %s14 = sadd.s32 1, %s10
    $region7: #{discriminator_v2.8} parent=1 // loop_footer_branch
      %9 = sbr.rel target = $region3
    $region8: #{discriminator_v2.8} parent=1 // loop_exit
      _

// kernel: discriminator_v2.7
$region0: #{discriminator_v2.7}
  #allocation0 [shape = 'u32[]', space=smem, size = 0x4, offset = 0x4, fixed_abs, tag = 'smem constant byte address 0x4 - core index']
  #allocation1 [shape = 'u32[144,128]{1,0:T(1,128)}', space=vmem, size = 0x12000, scoped, tag = 'internal scratch']
  %s0 = inlined_call_operand.vmem [shape: bf16[2,6,6,128], index: 0, kind: input, shape index: {}]
  %s1 = inlined_call_operand.vmem [shape: bf16[9,128,128], index: 1, kind: input, shape index: {}]
  %s2 = inlined_call_operand.vmem [shape: f32[1,128], index: 2, kind: input, shape index: {}]
  %s3 = inlined_call_operand.vmem [shape: f32[1,128], index: 3, kind: input, shape index: {}]
  %s4 = inlined_call_operand.vmem [shape: bf16[32,64], index: 4, kind: input, shape index: {}]
  %s5 = inlined_call_operand.vmem [shape: bf16[64,128], index: 5, kind: input, shape index: {}]
  %s6 = inlined_call_operand.vmem [shape: bf16[32,128], index: 6, kind: output, shape index: {}]
  %s7 = sld [smem:[#allocation0]]
  $region34: #{discriminator_v2.7} parent=0
    _
  %s9 = ssub.s32 1, %s7
  %s10 = scalar_select 0, %s9, %s7
  // Predicated region
  $region2: #{discriminator_v2.7} parent=0 // pred_check
    _
  $region3: #{discriminator_v2.7} parent=0 // pred_check_branch
    %12 = sbr.rel (0) target = $region5
  $region4: #{discriminator_v2.7} parent=0 // pred_region
    _
  $region5: #{discriminator_v2.7} parent=0 // pred_fallthru
    _
  // Predicated region
  $region6: #{discriminator_v2.7} parent=0 // pred_check
    _
  $region7: #{discriminator_v2.7} parent=0 // pred_check_branch
    %14 = sbr.rel (0) target = $region9
  $region8: #{discriminator_v2.7} parent=0 // pred_region
    _
  $region9: #{discriminator_v2.7} parent=0 // pred_fallthru
    _
  // Predicated region
  $region10: #{discriminator_v2.7} parent=0 // pred_check
    _
  $region11: #{discriminator_v2.7} parent=0 // pred_check_branch
    %16 = sbr.rel (0) target = $region13
  $region12: #{discriminator_v2.7} parent=0 // pred_region
    _
  $region13: #{discriminator_v2.7} parent=0 // pred_fallthru
    _
  // Predicated region
  $region14: #{discriminator_v2.7} parent=0 // pred_check
    _
  $region15: #{discriminator_v2.7} parent=0 // pred_check_branch
    %18 = sbr.rel (0) target = $region17
  $region16: #{discriminator_v2.7} parent=0 // pred_region
    _
  $region17: #{discriminator_v2.7} parent=0 // pred_fallthru
    _
  // Predicated region
  $region18: #{discriminator_v2.7} parent=0 // pred_check
    _
  $region19: #{discriminator_v2.7} parent=0 // pred_check_branch
    %20 = sbr.rel (0) target = $region21
  $region20: #{discriminator_v2.7} parent=0 // pred_region
    _
  $region21: #{discriminator_v2.7} parent=0 // pred_fallthru
    _
  // Predicated region
  $region22: #{discriminator_v2.7} parent=0 // pred_check
    _
  $region23: #{discriminator_v2.7} parent=0 // pred_check_branch
    %22 = sbr.rel (0) target = $region25
  $region24: #{discriminator_v2.7} parent=0 // pred_region
    _
  $region25: #{discriminator_v2.7} parent=0 // pred_fallthru
    _
  %v24 = vld [vmem:[%s0] sm:$0x3]
  %v25 = vld [vmem:[%s0 + $0x4] sm:$0x3]
  %v26 = vld [vmem:[%s0 + $0x8] sm:$0x3]
  %v27 = vld [vmem:[%s0 + $0xc] sm:$0x3]
  %v28 = vld [vmem:[%s0 + $0x18] sm:$0x3]
  %v29 = vld [vmem:[%s0 + $0x1c] sm:$0x3]
  %v30 = vld [vmem:[%s0 + $0x20] sm:$0x3]
  %v31 = vld [vmem:[%s0 + $0x24] sm:$0x3]
  %v32 = vld [vmem:[%s1] sm:$0xf]
  %v33 = vld [vmem:[%s1 + $0x4] sm:$0xf]
  %v34 = vld [vmem:[%s1 + $0x8] sm:$0xf]
  %v35 = vld [vmem:[%s1 + $0xc] sm:$0xf]
  %v36 = vld [vmem:[%s1 + $0x10] sm:$0xf]
  %v37 = vld [vmem:[%s1 + $0x14] sm:$0xf]
  %v38 = vld [vmem:[%s1 + $0x18] sm:$0xf]
  %v39 = vld [vmem:[%s1 + $0x1c] sm:$0xf]
  %v40 = vld [vmem:[%s1 + $0x20] sm:$0xf]
  %v41 = vld [vmem:[%s1 + $0x24] sm:$0xf]
  %v42 = vld [vmem:[%s1 + $0x28] sm:$0xf]
  %v43 = vld [vmem:[%s1 + $0x2c] sm:$0xf]
  %v44 = vld [vmem:[%s1 + $0x30] sm:$0xf]
  %v45 = vld [vmem:[%s1 + $0x34] sm:$0xf]
  %v46 = vld [vmem:[%s1 + $0x38] sm:$0xf]
  %v47 = vld [vmem:[%s1 + $0x3c] sm:$0xf]
  %v48 = vld [vmem:[%s0] sm:$0x7]
  %v49 = vld [vmem:[%s0 + $0x4] sm:$0x7]
  %v50 = vld [vmem:[%s0 + $0x8] sm:$0x7]
  %v51 = vld [vmem:[%s0 + $0xc] sm:$0x7]
  %v52 = vld [vmem:[%s0 + $0x18] sm:$0x7]
  %v53 = vld [vmem:[%s0 + $0x1c] sm:$0x7]
  %v54 = vld [vmem:[%s0 + $0x20] sm:$0x7]
  %v55 = vld [vmem:[%s0 + $0x24] sm:$0x7]
  %v65 = vunpack.c.l.s4 1983009808
  %v66 = vunpack.c.0.s8 %v65
  %v67 = vlaneseq
  %v68 = vshrl.u32 %v67, 7
  %v69 = vsub.s32 %v66, %v68
  %v70 = vrot.slane %v48, %v69
  %v71 = vcombine.high %v70, %v70
  %v73 = vunpack.c.l.s4 1983009808
  %v74 = vunpack.c.0.s8 %v73
  %v75 = vlaneseq
  %v76 = vshrl.u32 %v75, 7
  %v77 = vsub.s32 %v74, %v76
  %v78 = vrot.slane %v49, %v77
  %v79 = vcombine.high %v78, %v78
  %v81 = vunpack.c.l.s4 1983009808
  %v82 = vunpack.c.0.s8 %v81
  %v83 = vlaneseq
  %v84 = vshrl.u32 %v83, 7
  %v85 = vsub.s32 %v82, %v84
  %v86 = vrot.slane %v50, %v85
  %v87 = vcombine.high %v86, %v86
  %v89 = vunpack.c.l.s4 1983009808
  %v90 = vunpack.c.0.s8 %v89
  %v91 = vlaneseq
  %v92 = vshrl.u32 %v91, 7
  %v93 = vsub.s32 %v90, %v92
  %v94 = vrot.slane %v51, %v93
  %v95 = vcombine.high %v94, %v94
  %v97 = vunpack.c.l.s4 1983009808
  %v98 = vunpack.c.0.s8 %v97
  %v99 = vlaneseq
  %v100 = vshrl.u32 %v99, 7
  %v101 = vsub.s32 %v98, %v100
  %v102 = vrot.slane %v52, %v101
  %v103 = vcombine.high %v102, %v102
  %v105 = vunpack.c.l.s4 1983009808
  %v106 = vunpack.c.0.s8 %v105
  %v107 = vlaneseq
  %v108 = vshrl.u32 %v107, 7
  %v109 = vsub.s32 %v106, %v108
  %v110 = vrot.slane %v53, %v109
  %v111 = vcombine.high %v110, %v110
  %v113 = vunpack.c.l.s4 1983009808
  %v114 = vunpack.c.0.s8 %v113
  %v115 = vlaneseq
  %v116 = vshrl.u32 %v115, 7
  %v117 = vsub.s32 %v114, %v116
  %v118 = vrot.slane %v54, %v117
  %v119 = vcombine.high %v118, %v118
  %v121 = vunpack.c.l.s4 1983009808
  %v122 = vunpack.c.0.s8 %v121
  %v123 = vlaneseq
  %v124 = vshrl.u32 %v123, 7
  %v125 = vsub.s32 %v122, %v124
  %v126 = vrot.slane %v55, %v125
  %v127 = vcombine.high %v126, %v126
  %vm128 = vsmask.f32 1280
  %vm129 = vsmask.f32 3336
  %vm130 = vmor %vm128, %vm129
  %vm131 = vsmask.f32 5392
  %vm132 = vmor %vm130, %vm131
  %vm133 = vsmask.f32 7448
  %vm134 = vmor %vm132, %vm133
  %v136 = vshrl.u32 %v70, 16
  %v138 = vrot.slane %v136, 6
  %v139 = vshll.u32 %v70, 16
  %v141 = vrot.slane %v139, 7
  %v142 = vor.u32 %v138, %v141
  %v143 = vrot.slane %v142, 2
  %v145 = vshll.u32 %v71, 16
  %v147 = vrot.slane %v145, 7
  %v148 = vsel %vm134, %v143, %v147
  %v150 = vshrl.u32 %v78, 16
  %v152 = vrot.slane %v150, 6
  %v153 = vshll.u32 %v78, 16
  %v155 = vrot.slane %v153, 7
  %v156 = vor.u32 %v152, %v155
  %v157 = vrot.slane %v156, 2
  %v159 = vshll.u32 %v79, 16
  %v161 = vrot.slane %v159, 7
  %v162 = vsel %vm134, %v157, %v161
  %v164 = vshrl.u32 %v86, 16
  %v166 = vrot.slane %v164, 6
  %v167 = vshll.u32 %v86, 16
  %v169 = vrot.slane %v167, 7
  %v170 = vor.u32 %v166, %v169
  %v171 = vrot.slane %v170, 2
  %v173 = vshll.u32 %v87, 16
  %v175 = vrot.slane %v173, 7
  %v176 = vsel %vm134, %v171, %v175
  %v178 = vshrl.u32 %v94, 16
  %v180 = vrot.slane %v178, 6
  %v181 = vshll.u32 %v94, 16
  %v183 = vrot.slane %v181, 7
  %v184 = vor.u32 %v180, %v183
  %v185 = vrot.slane %v184, 2
  %v187 = vshll.u32 %v95, 16
  %v189 = vrot.slane %v187, 7
  %v190 = vsel %vm134, %v185, %v189
  %v192 = vshrl.u32 %v102, 16
  %v194 = vrot.slane %v192, 6
  %v195 = vshll.u32 %v102, 16
  %v197 = vrot.slane %v195, 7
  %v198 = vor.u32 %v194, %v197
  %v199 = vrot.slane %v198, 2
  %v201 = vshll.u32 %v103, 16
  %v203 = vrot.slane %v201, 7
  %v204 = vsel %vm134, %v199, %v203
  %v206 = vshrl.u32 %v110, 16
  %v208 = vrot.slane %v206, 6
  %v209 = vshll.u32 %v110, 16
  %v211 = vrot.slane %v209, 7
  %v212 = vor.u32 %v208, %v211
  %v213 = vrot.slane %v212, 2
  %v215 = vshll.u32 %v111, 16
  %v217 = vrot.slane %v215, 7
  %v218 = vsel %vm134, %v213, %v217
  %v220 = vshrl.u32 %v118, 16
  %v222 = vrot.slane %v220, 6
  %v223 = vshll.u32 %v118, 16
  %v225 = vrot.slane %v223, 7
  %v226 = vor.u32 %v222, %v225
  %v227 = vrot.slane %v226, 2
  %v229 = vshll.u32 %v119, 16
  %v231 = vrot.slane %v229, 7
  %v232 = vsel %vm134, %v227, %v231
  %v234 = vshrl.u32 %v126, 16
  %v236 = vrot.slane %v234, 6
  %v237 = vshll.u32 %v126, 16
  %v239 = vrot.slane %v237, 7
  %v240 = vor.u32 %v236, %v239
  %v241 = vrot.slane %v240, 2
  %v243 = vshll.u32 %v127, 16
  %v245 = vrot.slane %v243, 7
  %v246 = vsel %vm134, %v241, %v245
  %s247 = scalar_lea.vmem %s1, 64
  %v248 = vld [vmem:[%s247] sm:$0xf]
  %v249 = vld [vmem:[%s247 + $0x4] sm:$0xf]
  %v250 = vld [vmem:[%s247 + $0x8] sm:$0xf]
  %v251 = vld [vmem:[%s247 + $0xc] sm:$0xf]
  %v252 = vld [vmem:[%s247 + $0x10] sm:$0xf]
  %v253 = vld [vmem:[%s247 + $0x14] sm:$0xf]
  %v254 = vld [vmem:[%s247 + $0x18] sm:$0xf]
  %v255 = vld [vmem:[%s247 + $0x1c] sm:$0xf]
  %v256 = vld [vmem:[%s247 + $0x20] sm:$0xf]
  %v257 = vld [vmem:[%s247 + $0x24] sm:$0xf]
  %v258 = vld [vmem:[%s247 + $0x28] sm:$0xf]
  %v259 = vld [vmem:[%s247 + $0x2c] sm:$0xf]
  %v260 = vld [vmem:[%s247 + $0x30] sm:$0xf]
  %v261 = vld [vmem:[%s247 + $0x34] sm:$0xf]
  %v262 = vld [vmem:[%s247 + $0x38] sm:$0xf]
  %v263 = vld [vmem:[%s247 + $0x3c] sm:$0xf]
  %v264 = vcombine.low %v148, %v162
  %v265 = vcombine.low %v176, %v190
  %v267 = vunpack.c.l.s4 1983009808
  %v268 = vunpack.c.0.s8 %v267
  %v269 = vlaneseq
  %v270 = vshrl.u32 %v269, 7
  %v271 = vsub.s32 %v268, %v270
  %v272 = vrot.slane %v264, %v271
  %v274 = vunpack.c.l.s4 1983009808
  %v275 = vunpack.c.0.s8 %v274
  %v276 = vlaneseq
  %v277 = vshrl.u32 %v276, 7
  %v278 = vsub.s32 %v275, %v277
  %v279 = vrot.slane %v265, %v278
  %v280 = vcombine.low %v272, %v279
  %v281 = vcombine.low %v204, %v218
  %v282 = vcombine.low %v232, %v246
  %v284 = vunpack.c.l.s4 1983009808
  %v285 = vunpack.c.0.s8 %v284
  %v286 = vlaneseq
  %v287 = vshrl.u32 %v286, 7
  %v288 = vsub.s32 %v285, %v287
  %v289 = vrot.slane %v281, %v288
  %v291 = vunpack.c.l.s4 1983009808
  %v292 = vunpack.c.0.s8 %v291
  %v293 = vlaneseq
  %v294 = vshrl.u32 %v293, 7
  %v295 = vsub.s32 %v292, %v294
  %v296 = vrot.slane %v282, %v295
  %v297 = vcombine.low %v289, %v296
  %v316 = vunpack.c.l.b16 %v248
  %v317 = vunpack.c.l.b16 %v249
  %v318 = vunpack.c.l.b16 %v250
  %v319 = vunpack.c.l.b16 %v251
  %v320 = vunpack.c.l.b16 %v252
  %v321 = vunpack.c.l.b16 %v253
  %v322 = vunpack.c.l.b16 %v254
  %v323 = vunpack.c.l.b16 %v255
  %v324 = vunpack.c.l.b16 %v256
  %v325 = vunpack.c.l.b16 %v257
  %v326 = vunpack.c.l.b16 %v258
  %v327 = vunpack.c.l.b16 %v259
  %v328 = vunpack.c.l.b16 %v260
  %v329 = vunpack.c.l.b16 %v261
  %v330 = vunpack.c.l.b16 %v262
  %v331 = vunpack.c.l.b16 %v263
  %v332 = vpack.c.b16 %v317, %v316
  %v333 = vpack.c.b16 %v319, %v318
  %v334 = vpack.c.b16 %v321, %v320
  %v335 = vpack.c.b16 %v323, %v322
  %v336 = vpack.c.b16 %v325, %v324
  %v337 = vpack.c.b16 %v327, %v326
  %v338 = vpack.c.b16 %v329, %v328
  %v339 = vpack.c.b16 %v331, %v330
  %348 = vmatprep.subr.bf16.mxu0 0
  %349 = vmatpush1.bf16.msra.mxu0 %v332
  %350 = vmatprep.subr.bf16.mxu0 0
  %351 = vmatpush1.bf16.msra.mxu0 %v333
  %352 = vmatprep.subr.bf16.mxu0 0
  %353 = vmatpush1.bf16.msra.mxu0 %v334
  %354 = vmatprep.subr.bf16.mxu0 0
  %355 = vmatpush1.bf16.msra.mxu0 %v335
  %356 = vmatprep.subr.bf16.mxu0 0
  %357 = vmatpush1.bf16.msra.mxu0 %v336
  %358 = vmatprep.subr.bf16.mxu0 0
  %359 = vmatpush1.bf16.msra.mxu0 %v337
  %360 = vmatprep.subr.bf16.mxu0 0
  %361 = vmatpush1.bf16.msra.mxu0 %v338
  %362 = vmatprep.subr.bf16.mxu0 0
  %363 = vmatpush1.bf16.msra.mxu0 %v339
  %364 = vmatprep.subr.bf16.mxu0 0
  %365 = vmatpush1.bf16.msra.mxu0 0
  %366 = vmatprep.subr.bf16.mxu0 0
  %367 = vmatpush1.bf16.msra.mxu0 0
  %368 = vmatprep.subr.bf16.mxu0 0
  %369 = vmatpush1.bf16.msra.mxu0 0
  %370 = vmatprep.subr.bf16.mxu0 0
  %371 = vmatpush1.bf16.msra.mxu0 0
  %372 = vmatprep.subr.bf16.mxu0 0
  %373 = vmatpush1.bf16.msra.mxu0 0
  %374 = vmatprep.subr.bf16.mxu0 0
  %375 = vmatpush1.bf16.msra.mxu0 0
  %376 = vmatprep.subr.bf16.mxu0 0
  %377 = vmatpush1.bf16.msra.mxu0 0
  %378 = vmatprep.subr.bf16.mxu0 0
  %379 = vmatpush1.bf16.msra.mxu0 0
  %380 = vmatprep.mubr.bf16.mxu0 0
  %381 = vmatmul.mubr.bf16.gmra.mrb[0].mxu0 %v280
  %v382 = vpop.f32.mrb[0].mxu0
  %v383 = vadd.f32 0.0, %v382
  %v384 = vpop.f32.mrb[0].mxu0
  %v385 = vpop.f32.mrb[0].mxu0
  %v386 = vadd.f32 0.0, %v385
  %v387 = vpop.f32.mrb[0].mxu0
  %388 = vmatprep.mubr.bf16.mxu0 0
  %389 = vmatmul.mubr.bf16.gmra.mrb[0].mxu0 %v297
  %v390 = vpop.f32.mrb[0].mxu0
  %v391 = vadd.f32 0.0, %v390
  %v392 = vpop.f32.mrb[0].mxu0
  %v393 = vpop.f32.mrb[0].mxu0
  %v394 = vadd.f32 0.0, %v393
  %v395 = vpop.f32.mrb[0].mxu0
  %396 = vdwg.mxu0
  %v405 = vcombine.low %v24, %v25
  %v406 = vcombine.low %v26, %v27
  %v408 = vunpack.c.l.s4 1983009808
  %v409 = vunpack.c.0.s8 %v408
  %v410 = vlaneseq
  %v411 = vshrl.u32 %v410, 7
  %v412 = vsub.s32 %v409, %v411
  %v413 = vrot.slane %v405, %v412
  %v415 = vunpack.c.l.s4 1983009808
  %v416 = vunpack.c.0.s8 %v415
  %v417 = vlaneseq
  %v418 = vshrl.u32 %v417, 7
  %v419 = vsub.s32 %v416, %v418
  %v420 = vrot.slane %v406, %v419
  %v421 = vcombine.low %v413, %v420
  %v422 = vcombine.low %v28, %v29
  %v423 = vcombine.low %v30, %v31
  %v425 = vunpack.c.l.s4 1983009808
  %v426 = vunpack.c.0.s8 %v425
  %v427 = vlaneseq
  %v428 = vshrl.u32 %v427, 7
  %v429 = vsub.s32 %v426, %v428
  %v430 = vrot.slane %v422, %v429
  %v432 = vunpack.c.l.s4 1983009808
  %v433 = vunpack.c.0.s8 %v432
  %v434 = vlaneseq
  %v435 = vshrl.u32 %v434, 7
  %v436 = vsub.s32 %v433, %v435
  %v437 = vrot.slane %v423, %v436
  %v438 = vcombine.low %v430, %v437
  %v457 = vunpack.c.l.b16 %v32
  %v458 = vunpack.c.l.b16 %v33
  %v459 = vunpack.c.l.b16 %v34
  %v460 = vunpack.c.l.b16 %v35
  %v461 = vunpack.c.l.b16 %v36
  %v462 = vunpack.c.l.b16 %v37
  %v463 = vunpack.c.l.b16 %v38
  %v464 = vunpack.c.l.b16 %v39
  %v465 = vunpack.c.l.b16 %v40
  %v466 = vunpack.c.l.b16 %v41
  %v467 = vunpack.c.l.b16 %v42
  %v468 = vunpack.c.l.b16 %v43
  %v469 = vunpack.c.l.b16 %v44
  %v470 = vunpack.c.l.b16 %v45
  %v471 = vunpack.c.l.b16 %v46
  %v472 = vunpack.c.l.b16 %v47
  %v473 = vpack.c.b16 %v458, %v457
  %v474 = vpack.c.b16 %v460, %v459
  %v475 = vpack.c.b16 %v462, %v461
  %v476 = vpack.c.b16 %v464, %v463
  %v477 = vpack.c.b16 %v466, %v465
  %v478 = vpack.c.b16 %v468, %v467
  %v479 = vpack.c.b16 %v470, %v469
  %v480 = vpack.c.b16 %v472, %v471
  %489 = vmatprep.subr.bf16.mxu0 0
  %490 = vmatpush1.bf16.msra.mxu0 %v473
  %491 = vmatprep.subr.bf16.mxu0 0
  %492 = vmatpush1.bf16.msra.mxu0 %v474
  %493 = vmatprep.subr.bf16.mxu0 0
  %494 = vmatpush1.bf16.msra.mxu0 %v475
  %495 = vmatprep.subr.bf16.mxu0 0
  %496 = vmatpush1.bf16.msra.mxu0 %v476
  %497 = vmatprep.subr.bf16.mxu0 0
  %498 = vmatpush1.bf16.msra.mxu0 %v477
  %499 = vmatprep.subr.bf16.mxu0 0
  %500 = vmatpush1.bf16.msra.mxu0 %v478
  %501 = vmatprep.subr.bf16.mxu0 0
  %502 = vmatpush1.bf16.msra.mxu0 %v479
  %503 = vmatprep.subr.bf16.mxu0 0
  %504 = vmatpush1.bf16.msra.mxu0 %v480
  %505 = vmatprep.subr.bf16.mxu0 0
  %506 = vmatpush1.bf16.msra.mxu0 0
  %507 = vmatprep.subr.bf16.mxu0 0
  %508 = vmatpush1.bf16.msra.mxu0 0
  %509 = vmatprep.subr.bf16.mxu0 0
  %510 = vmatpush1.bf16.msra.mxu0 0
  %511 = vmatprep.subr.bf16.mxu0 0
  %512 = vmatpush1.bf16.msra.mxu0 0
  %513 = vmatprep.subr.bf16.mxu0 0
  %514 = vmatpush1.bf16.msra.mxu0 0
  %515 = vmatprep.subr.bf16.mxu0 0
  %516 = vmatpush1.bf16.msra.mxu0 0
  %517 = vmatprep.subr.bf16.mxu0 0
  %518 = vmatpush1.bf16.msra.mxu0 0
  %519 = vmatprep.subr.bf16.mxu0 0
  %520 = vmatpush1.bf16.msra.mxu0 0
  %521 = vmatprep.mubr.bf16.mxu0 0
  %522 = vmatmul.mubr.bf16.gmra.mrb[0].mxu0 %v421
  %v523 = vpop.f32.mrb[0].mxu0
  %v524 = vadd.f32 %v383, %v523
  %v525 = vpop.f32.mrb[0].mxu0
  %v526 = vpop.f32.mrb[0].mxu0
  %v527 = vadd.f32 %v386, %v526
  %v528 = vpop.f32.mrb[0].mxu0
  %529 = vmatprep.mubr.bf16.mxu0 0
  %530 = vmatmul.mubr.bf16.gmra.mrb[0].mxu0 %v438
  %v531 = vpop.f32.mrb[0].mxu0
  %v532 = vadd.f32 %v391, %v531
  %v533 = vpop.f32.mrb[0].mxu0
  %v534 = vpop.f32.mrb[0].mxu0
  %v535 = vadd.f32 %v394, %v534
  %v536 = vpop.f32.mrb[0].mxu0
  %537 = vdwg.mxu0
  %v538 = vld [vmem:[%s0] sm:$0x6]
  %v539 = vld [vmem:[%s0 + $0x4] sm:$0x6]
  %v540 = vld [vmem:[%s0 + $0x8] sm:$0x6]
  %v541 = vld [vmem:[%s0 + $0xc] sm:$0x6]
  %v542 = vld [vmem:[%s0 + $0x18] sm:$0x6]
  %v543 = vld [vmem:[%s0 + $0x1c] sm:$0x6]
  %v544 = vld [vmem:[%s0 + $0x20] sm:$0x6]
  %v545 = vld [vmem:[%s0 + $0x24] sm:$0x6]
  %v555 = vunpack.c.l.s4 1983009808
  %v556 = vunpack.c.0.s8 %v555
  %v557 = vlaneseq
  %v558 = vshrl.u32 %v557, 7
  %v559 = vsub.s32 %v556, %v558
  %v560 = vrot.slane %v538, %v559
  %v561 = vcombine.high %v560, %v560
  %v563 = vunpack.c.l.s4 1983009808
  %v564 = vunpack.c.0.s8 %v563
  %v565 = vlaneseq
  %v566 = vshrl.u32 %v565, 7
  %v567 = vsub.s32 %v564, %v566
  %v568 = vrot.slane %v539, %v567
  %v569 = vcombine.high %v568, %v568
  %v571 = vunpack.c.l.s4 1983009808
  %v572 = vunpack.c.0.s8 %v571
  %v573 = vlaneseq
  %v574 = vshrl.u32 %v573, 7
  %v575 = vsub.s32 %v572, %v574
  %v576 = vrot.slane %v540, %v575
  %v577 = vcombine.high %v576, %v576
  %v579 = vunpack.c.l.s4 1983009808
  %v580 = vunpack.c.0.s8 %v579
  %v581 = vlaneseq
  %v582 = vshrl.u32 %v581, 7
  %v583 = vsub.s32 %v580, %v582
  %v584 = vrot.slane %v541, %v583
  %v585 = vcombine.high %v584, %v584
  %v587 = vunpack.c.l.s4 1983009808
  %v588 = vunpack.c.0.s8 %v587
  %v589 = vlaneseq
  %v590 = vshrl.u32 %v589, 7
  %v591 = vsub.s32 %v588, %v590
  %v592 = vrot.slane %v542, %v591
  %v593 = vcombine.high %v592, %v592
  %v595 = vunpack.c.l.s4 1983009808
  %v596 = vunpack.c.0.s8 %v595
  %v597 = vlaneseq
  %v598 = vshrl.u32 %v597, 7
  %v599 = vsub.s32 %v596, %v598
  %v600 = vrot.slane %v543, %v599
  %v601 = vcombine.high %v600, %v600
  %v603 = vunpack.c.l.s4 1983009808
  %v604 = vunpack.c.0.s8 %v603
  %v605 = vlaneseq
  %v606 = vshrl.u32 %v605, 7
  %v607 = vsub.s32 %v604, %v606
  %v608 = vrot.slane %v544, %v607
  %v609 = vcombine.high %v608, %v608
  %v611 = vunpack.c.l.s4 1983009808
  %v612 = vunpack.c.0.s8 %v611
  %v613 = vlaneseq
  %v614 = vshrl.u32 %v613, 7
  %v615 = vsub.s32 %v612, %v614
  %v616 = vrot.slane %v545, %v615
  %v617 = vcombine.high %v616, %v616
  %vm618 = vcmask 1040384
  %vm619 = vcmask 1042434
  %vm620 = vmor %vm618, %vm619
  %vm621 = vcmask 1044484
  %vm622 = vmor %vm620, %vm621
  %vm623 = vcmask 1046534
  %vm624 = vmor %vm622, %vm623
  %v625 = vrot.slane %v560, 7
  %v626 = vrot.slane %v625, 2
  %v627 = vrot.slane %v561, 7
  %v628 = vsel %vm624, %v626, %v627
  %v629 = vrot.slane %v568, 7
  %v630 = vrot.slane %v629, 2
  %v631 = vrot.slane %v569, 7
  %v632 = vsel %vm624, %v630, %v631
  %v633 = vrot.slane %v576, 7
  %v634 = vrot.slane %v633, 2
  %v635 = vrot.slane %v577, 7
  %v636 = vsel %vm624, %v634, %v635
  %v637 = vrot.slane %v584, 7
  %v638 = vrot.slane %v637, 2
  %v639 = vrot.slane %v585, 7
  %v640 = vsel %vm624, %v638, %v639
  %v641 = vrot.slane %v592, 7
  %v642 = vrot.slane %v641, 2
  %v643 = vrot.slane %v593, 7
  %v644 = vsel %vm624, %v642, %v643
  %v645 = vrot.slane %v600, 7
  %v646 = vrot.slane %v645, 2
  %v647 = vrot.slane %v601, 7
  %v648 = vsel %vm624, %v646, %v647
  %v649 = vrot.slane %v608, 7
  %v650 = vrot.slane %v649, 2
  %v651 = vrot.slane %v609, 7
  %v652 = vsel %vm624, %v650, %v651
  %v653 = vrot.slane %v616, 7
  %v654 = vrot.slane %v653, 2
  %v655 = vrot.slane %v617, 7
  %v656 = vsel %vm624, %v654, %v655
  %s657 = scalar_lea.vmem %s1, 128
  %v658 = vld [vmem:[%s657] sm:$0xf]
  %v659 = vld [vmem:[%s657 + $0x4] sm:$0xf]
  %v660 = vld [vmem:[%s657 + $0x8] sm:$0xf]
  %v661 = vld [vmem:[%s657 + $0xc] sm:$0xf]
  %v662 = vld [vmem:[%s657 + $0x10] sm:$0xf]
  %v663 = vld [vmem:[%s657 + $0x14] sm:$0xf]
  %v664 = vld [vmem:[%s657 + $0x18] sm:$0xf]
  %v665 = vld [vmem:[%s657 + $0x1c] sm:$0xf]
  %v666 = vld [vmem:[%s657 + $0x20] sm:$0xf]
  %v667 = vld [vmem:[%s657 + $0x24] sm:$0xf]
  %v668 = vld [vmem:[%s657 + $0x28] sm:$0xf]
  %v669 = vld [vmem:[%s657 + $0x2c] sm:$0xf]
  %v670 = vld [vmem:[%s657 + $0x30] sm:$0xf]
  %v671 = vld [vmem:[%s657 + $0x34] sm:$0xf]
  %v672 = vld [vmem:[%s657 + $0x38] sm:$0xf]
  %v673 = vld [vmem:[%s657 + $0x3c] sm:$0xf]
  %v674 = vcombine.low %v628, %v632
  %v675 = vcombine.low %v636, %v640
  %v677 = vunpack.c.l.s4 1983009808
  %v678 = vunpack.c.0.s8 %v677
  %v679 = vlaneseq
  %v680 = vshrl.u32 %v679, 7
  %v681 = vsub.s32 %v678, %v680
  %v682 = vrot.slane %v674, %v681
  %v684 = vunpack.c.l.s4 1983009808
  %v685 = vunpack.c.0.s8 %v684
  %v686 = vlaneseq
  %v687 = vshrl.u32 %v686, 7
  %v688 = vsub.s32 %v685, %v687
  %v689 = vrot.slane %v675, %v688
  %v690 = vcombine.low %v682, %v689
  %v691 = vcombine.low %v644, %v648
  %v692 = vcombine.low %v652, %v656
  %v694 = vunpack.c.l.s4 1983009808
  %v695 = vunpack.c.0.s8 %v694
  %v696 = vlaneseq
  %v697 = vshrl.u32 %v696, 7
  %v698 = vsub.s32 %v695, %v697
  %v699 = vrot.slane %v691, %v698
  %v701 = vunpack.c.l.s4 1983009808
  %v702 = vunpack.c.0.s8 %v701
  %v703 = vlaneseq
  %v704 = vshrl.u32 %v703, 7
  %v705 = vsub.s32 %v702, %v704
  %v706 = vrot.slane %v692, %v705
  %v707 = vcombine.low %v699, %v706
  %v726 = vunpack.c.l.b16 %v658
  %v727 = vunpack.c.l.b16 %v659
  %v728 = vunpack.c.l.b16 %v660
  %v729 = vunpack.c.l.b16 %v661
  %v730 = vunpack.c.l.b16 %v662
  %v731 = vunpack.c.l.b16 %v663
  %v732 = vunpack.c.l.b16 %v664
  %v733 = vunpack.c.l.b16 %v665
  %v734 = vunpack.c.l.b16 %v666
  %v735 = vunpack.c.l.b16 %v667
  %v736 = vunpack.c.l.b16 %v668
  %v737 = vunpack.c.l.b16 %v669
  %v738 = vunpack.c.l.b16 %v670
  %v739 = vunpack.c.l.b16 %v671
  %v740 = vunpack.c.l.b16 %v672
  %v741 = vunpack.c.l.b16 %v673
  %v742 = vpack.c.b16 %v727, %v726
  %v743 = vpack.c.b16 %v729, %v728
  %v744 = vpack.c.b16 %v731, %v730
  %v745 = vpack.c.b16 %v733, %v732
  %v746 = vpack.c.b16 %v735, %v734
  %v747 = vpack.c.b16 %v737, %v736
  %v748 = vpack.c.b16 %v739, %v738
  %v749 = vpack.c.b16 %v741, %v740
  %758 = vmatprep.subr.bf16.mxu0 0
  %759 = vmatpush1.bf16.msra.mxu0 %v742
  %760 = vmatprep.subr.bf16.mxu0 0
  %761 = vmatpush1.bf16.msra.mxu0 %v743
  %762 = vmatprep.subr.bf16.mxu0 0
  %763 = vmatpush1.bf16.msra.mxu0 %v744
  %764 = vmatprep.subr.bf16.mxu0 0
  %765 = vmatpush1.bf16.msra.mxu0 %v745
  %766 = vmatprep.subr.bf16.mxu0 0
  %767 = vmatpush1.bf16.msra.mxu0 %v746
  %768 = vmatprep.subr.bf16.mxu0 0
  %769 = vmatpush1.bf16.msra.mxu0 %v747
  %770 = vmatprep.subr.bf16.mxu0 0
  %771 = vmatpush1.bf16.msra.mxu0 %v748
  %772 = vmatprep.subr.bf16.mxu0 0
  %773 = vmatpush1.bf16.msra.mxu0 %v749
  %774 = vmatprep.subr.bf16.mxu0 0
  %775 = vmatpush1.bf16.msra.mxu0 0
  %776 = vmatprep.subr.bf16.mxu0 0
  %777 = vmatpush1.bf16.msra.mxu0 0
  %778 = vmatprep.subr.bf16.mxu0 0
  %779 = vmatpush1.bf16.msra.mxu0 0
  %780 = vmatprep.subr.bf16.mxu0 0
  %781 = vmatpush1.bf16.msra.mxu0 0
  %782 = vmatprep.subr.bf16.mxu0 0
  %783 = vmatpush1.bf16.msra.mxu0 0
  %784 = vmatprep.subr.bf16.mxu0 0
  %785 = vmatpush1.bf16.msra.mxu0 0
  %786 = vmatprep.subr.bf16.mxu0 0
  %787 = vmatpush1.bf16.msra.mxu0 0
  %788 = vmatprep.subr.bf16.mxu0 0
  %789 = vmatpush1.bf16.msra.mxu0 0
  %790 = vmatprep.mubr.bf16.mxu0 0
  %791 = vmatmul.mubr.bf16.gmra.mrb[0].mxu0 %v690
  %v792 = vpop.f32.mrb[0].mxu0
  %v793 = vadd.f32 0.0, %v792
  %v794 = vpop.f32.mrb[0].mxu0
  %v795 = vpop.f32.mrb[0].mxu0
  %v796 = vadd.f32 0.0, %v795
  %v797 = vpop.f32.mrb[0].mxu0
  %798 = vmatprep.mubr.bf16.mxu0 0
  %799 = vmatmul.mubr.bf16.gmra.mrb[0].mxu0 %v707
  %v800 = vpop.f32.mrb[0].mxu0
  %v801 = vadd.f32 0.0, %v800
  %v802 = vpop.f32.mrb[0].mxu0
  %v803 = vpop.f32.mrb[0].mxu0
  %v804 = vadd.f32 0.0, %v803
  %v805 = vpop.f32.mrb[0].mxu0
  %806 = vdwg.mxu0
  %v807 = vadd.f32 %v524, %v793
  %v808 = vadd.f32 %v527, %v796
  %v809 = vadd.f32 %v532, %v801
  %v810 = vadd.f32 %v535, %v804
  %s811 = scalar_lea.vmem %s0, 4
  %v812 = vld [vmem:[%s811] sm:$0x3]
  %v813 = vld [vmem:[%s811 + $0x4] sm:$0x3]
  %v814 = vld [vmem:[%s811 + $0x8] sm:$0x3]
  %v815 = vld [vmem:[%s811 + $0xc] sm:$0x3]
  %v816 = vld [vmem:[%s811 + $0x18] sm:$0x3]
  %v817 = vld [vmem:[%s811 + $0x1c] sm:$0x3]
  %v818 = vld [vmem:[%s811 + $0x20] sm:$0x3]
  %v819 = vld [vmem:[%s811 + $0x24] sm:$0x3]
  %s820 = scalar_lea.vmem %s1, 192
  %v821 = vld [vmem:[%s820] sm:$0xf]
  %v822 = vld [vmem:[%s820 + $0x4] sm:$0xf]
  %v823 = vld [vmem:[%s820 + $0x8] sm:$0xf]
  %v824 = vld [vmem:[%s820 + $0xc] sm:$0xf]
  %v825 = vld [vmem:[%s820 + $0x10] sm:$0xf]
  %v826 = vld [vmem:[%s820 + $0x14] sm:$0xf]
  %v827 = vld [vmem:[%s820 + $0x18] sm:$0xf]
  %v828 = vld [vmem:[%s820 + $0x1c] sm:$0xf]
  %v829 = vld [vmem:[%s820 + $0x20] sm:$0xf]
  %v830 = vld [vmem:[%s820 + $0x24] sm:$0xf]
  %v831 = vld [vmem:[%s820 + $0x28] sm:$0xf]
  %v832 = vld [vmem:[%s820 + $0x2c] sm:$0xf]
  %v833 = vld [vmem:[%s820 + $0x30] sm:$0xf]
  %v834 = vld [vmem:[%s820 + $0x34] sm:$0xf]
  %v835 = vld [vmem:[%s820 + $0x38] sm:$0xf]
  %v836 = vld [vmem:[%s820 + $0x3c] sm:$0xf]
  %v845 = vcombine.low %v812, %v813
  %v846 = vcombine.low %v814, %v815
  %v848 = vunpack.c.l.s4 1983009808
  %v849 = vunpack.c.0.s8 %v848
  %v850 = vlaneseq
  %v851 = vshrl.u32 %v850, 7
  %v852 = vsub.s32 %v849, %v851
  %v853 = vrot.slane %v845, %v852
  %v855 = vunpack.c.l.s4 1983009808
  %v856 = vunpack.c.0.s8 %v855
  %v857 = vlaneseq
  %v858 = vshrl.u32 %v857, 7
  %v859 = vsub.s32 %v856, %v858
  %v860 = vrot.slane %v846, %v859
  %v861 = vcombine.low %v853, %v860
  %v862 = vcombine.low %v816, %v817
  %v863 = vcombine.low %v818, %v819
  %v865 = vunpack.c.l.s4 1983009808
  %v866 = vunpack.c.0.s8 %v865
  %v867 = vlaneseq
  %v868 = vshrl.u32 %v867, 7
  %v869 = vsub.s32 %v866, %v868
  %v870 = vrot.slane %v862, %v869
  %v872 = vunpack.c.l.s4 1983009808
  %v873 = vunpack.c.0.s8 %v872
  %v874 = vlaneseq
  %v875 = vshrl.u32 %v874, 7
  %v876 = vsub.s32 %v873, %v875
  %v877 = vrot.slane %v863, %v876
  %v878 = vcombine.low %v870, %v877
  %v897 = vunpack.c.l.b16 %v821
  %v898 = vunpack.c.l.b16 %v822
  %v899 = vunpack.c.l.b16 %v823
  %v900 = vunpack.c.l.b16 %v824
  %v901 = vunpack.c.l.b16 %v825
  %v902 = vunpack.c.l.b16 %v826
  %v903 = vunpack.c.l.b16 %v827
  %v904 = vunpack.c.l.b16 %v828
  %v905 = vunpack.c.l.b16 %v829
  %v906 = vunpack.c.l.b16 %v830
  %v907 = vunpack.c.l.b16 %v831
  %v908 = vunpack.c.l.b16 %v832
  %v909 = vunpack.c.l.b16 %v833
  %v910 = vunpack.c.l.b16 %v834
  %v911 = vunpack.c.l.b16 %v835
  %v912 = vunpack.c.l.b16 %v836
  %v913 = vpack.c.b16 %v898, %v897
  %v914 = vpack.c.b16 %v900, %v899
  %v915 = vpack.c.b16 %v902, %v901
  %v916 = vpack.c.b16 %v904, %v903
  %v917 = vpack.c.b16 %v906, %v905
  %v918 = vpack.c.b16 %v908, %v907
  %v919 = vpack.c.b16 %v910, %v909
  %v920 = vpack.c.b16 %v912, %v911
  %929 = vmatprep.subr.bf16.mxu0 0
  %930 = vmatpush1.bf16.msra.mxu0 %v913
  %931 = vmatprep.subr.bf16.mxu0 0
  %932 = vmatpush1.bf16.msra.mxu0 %v914
  %933 = vmatprep.subr.bf16.mxu0 0
  %934 = vmatpush1.bf16.msra.mxu0 %v915
  %935 = vmatprep.subr.bf16.mxu0 0
  %936 = vmatpush1.bf16.msra.mxu0 %v916
  %937 = vmatprep.subr.bf16.mxu0 0
  %938 = vmatpush1.bf16.msra.mxu0 %v917
  %939 = vmatprep.subr.bf16.mxu0 0
  %940 = vmatpush1.bf16.msra.mxu0 %v918
  %941 = vmatprep.subr.bf16.mxu0 0
  %942 = vmatpush1.bf16.msra.mxu0 %v919
  %943 = vmatprep.subr.bf16.mxu0 0
  %944 = vmatpush1.bf16.msra.mxu0 %v920
  %945 = vmatprep.subr.bf16.mxu0 0
  %946 = vmatpush1.bf16.msra.mxu0 0
  %947 = vmatprep.subr.bf16.mxu0 0
  %948 = vmatpush1.bf16.msra.mxu0 0
  %949 = vmatprep.subr.bf16.mxu0 0
  %950 = vmatpush1.bf16.msra.mxu0 0
  %951 = vmatprep.subr.bf16.mxu0 0
  %952 = vmatpush1.bf16.msra.mxu0 0
  %953 = vmatprep.subr.bf16.mxu0 0
  %954 = vmatpush1.bf16.msra.mxu0 0
  %955 = vmatprep.subr.bf16.mxu0 0
  %956 = vmatpush1.bf16.msra.mxu0 0
  %957 = vmatprep.subr.bf16.mxu0 0
  %958 = vmatpush1.bf16.msra.mxu0 0
  %959 = vmatprep.subr.bf16.mxu0 0
  %960 = vmatpush1.bf16.msra.mxu0 0
  %961 = vmatprep.mubr.bf16.mxu0 0
  %962 = vmatmul.mubr.bf16.gmra.mrb[0].mxu0 %v861
  %v963 = vpop.f32.mrb[0].mxu0
  %v964 = vadd.f32 0.0, %v963
  %v965 = vpop.f32.mrb[0].mxu0
  %v966 = vpop.f32.mrb[0].mxu0
  %v967 = vadd.f32 0.0, %v966
  %v968 = vpop.f32.mrb[0].mxu0
  %969 = vmatprep.mubr.bf16.mxu0 0
  %970 = vmatmul.mubr.bf16.gmra.mrb[0].mxu0 %v878
  %v971 = vpop.f32.mrb[0].mxu0
  %v972 = vadd.f32 0.0, %v971
  %v973 = vpop.f32.mrb[0].mxu0
  %v974 = vpop.f32.mrb[0].mxu0
  %v975 = vadd.f32 0.0, %v974
  %v976 = vpop.f32.mrb[0].mxu0
  %977 = vdwg.mxu0
  %v978 = vadd.f32 %v807, %v964
  %v979 = vadd.f32 %v808, %v967
  %v980 = vadd.f32 %v809, %v972
  %v981 = vadd.f32 %v810, %v975
  %v982 = vld [vmem:[%s811] sm:$0x7]
  %v983 = vld [vmem:[%s811 + $0x4] sm:$0x7]
  %v984 = vld [vmem:[%s811 + $0x8] sm:$0x7]
  %v985 = vld [vmem:[%s811 + $0xc] sm:$0x7]
  %v986 = vld [vmem:[%s811 + $0x18] sm:$0x7]
  %v987 = vld [vmem:[%s811 + $0x1c] sm:$0x7]
  %v988 = vld [vmem:[%s811 + $0x20] sm:$0x7]
  %v989 = vld [vmem:[%s811 + $0x24] sm:$0x7]
  %v999 = vunpack.c.l.s4 1983009808
  %v1000 = vunpack.c.0.s8 %v999
  %v1001 = vlaneseq
  %v1002 = vshrl.u32 %v1001, 7
  %v1003 = vsub.s32 %v1000, %v1002
  %v1004 = vrot.slane %v982, %v1003
  %v1005 = vcombine.high %v1004, %v1004
  %v1007 = vunpack.c.l.s4 1983009808
  %v1008 = vunpack.c.0.s8 %v1007
  %v1009 = vlaneseq
  %v1010 = vshrl.u32 %v1009, 7
  %v1011 = vsub.s32 %v1008, %v1010
  %v1012 = vrot.slane %v983, %v1011
  %v1013 = vcombine.high %v1012, %v1012
  %v1015 = vunpack.c.l.s4 1983009808
  %v1016 = vunpack.c.0.s8 %v1015
  %v1017 = vlaneseq
  %v1018 = vshrl.u32 %v1017, 7
  %v1019 = vsub.s32 %v1016, %v1018
  %v1020 = vrot.slane %v984, %v1019
  %v1021 = vcombine.high %v1020, %v1020
  %v1023 = vunpack.c.l.s4 1983009808
  %v1024 = vunpack.c.0.s8 %v1023
  %v1025 = vlaneseq
  %v1026 = vshrl.u32 %v1025, 7
  %v1027 = vsub.s32 %v1024, %v1026
  %v1028 = vrot.slane %v985, %v1027
  %v1029 = vcombine.high %v1028, %v1028
  %v1031 = vunpack.c.l.s4 1983009808
  %v1032 = vunpack.c.0.s8 %v1031
  %v1033 = vlaneseq
  %v1034 = vshrl.u32 %v1033, 7
  %v1035 = vsub.s32 %v1032, %v1034
  %v1036 = vrot.slane %v986, %v1035
  %v1037 = vcombine.high %v1036, %v1036
  %v1039 = vunpack.c.l.s4 1983009808
  %v1040 = vunpack.c.0.s8 %v1039
  %v1041 = vlaneseq
  %v1042 = vshrl.u32 %v1041, 7
  %v1043 = vsub.s32 %v1040, %v1042
  %v1044 = vrot.slane %v987, %v1043
  %v1045 = vcombine.high %v1044, %v1044
  %v1047 = vunpack.c.l.s4 1983009808
  %v1048 = vunpack.c.0.s8 %v1047
  %v1049 = vlaneseq
  %v1050 = vshrl.u32 %v1049, 7
  %v1051 = vsub.s32 %v1048, %v1050
  %v1052 = vrot.slane %v988, %v1051
  %v1053 = vcombine.high %v1052, %v1052
  %v1055 = vunpack.c.l.s4 1983009808
  %v1056 = vunpack.c.0.s8 %v1055
  %v1057 = vlaneseq
  %v1058 = vshrl.u32 %v1057, 7
  %v1059 = vsub.s32 %v1056, %v1058
  %v1060 = vrot.slane %v989, %v1059
  %v1061 = vcombine.high %v1060, %v1060
  %v1063 = vshrl.u32 %v1004, 16
  %v1065 = vrot.slane %v1063, 6
  %v1066 = vshll.u32 %v1004, 16
  %v1068 = vrot.slane %v1066, 7
  %v1069 = vor.u32 %v1065, %v1068
  %v1070 = vrot.slane %v1069, 2
  %v1072 = vshll.u32 %v1005, 16
  %v1074 = vrot.slane %v1072, 7
  %v1075 = vsel %vm134, %v1070, %v1074
  %v1077 = vshrl.u32 %v1012, 16
  %v1079 = vrot.slane %v1077, 6
  %v1080 = vshll.u32 %v1012, 16
  %v1082 = vrot.slane %v1080, 7
  %v1083 = vor.u32 %v1079, %v1082
  %v1084 = vrot.slane %v1083, 2
  %v1086 = vshll.u32 %v1013, 16
  %v1088 = vrot.slane %v1086, 7
  %v1089 = vsel %vm134, %v1084, %v1088
  %v1091 = vshrl.u32 %v1020, 16
  %v1093 = vrot.slane %v1091, 6
  %v1094 = vshll.u32 %v1020, 16
  %v1096 = vrot.slane %v1094, 7
  %v1097 = vor.u32 %v1093, %v1096
  %v1098 = vrot.slane %v1097, 2
  %v1100 = vshll.u32 %v1021, 16
  %v1102 = vrot.slane %v1100, 7
  %v1103 = vsel %vm134, %v1098, %v1102
  %v1105 = vshrl.u32 %v1028, 16
  %v1107 = vrot.slane %v1105, 6
  %v1108 = vshll.u32 %v1028, 16
  %v1110 = vrot.slane %v1108, 7
  %v1111 = vor.u32 %v1107, %v1110
  %v1112 = vrot.slane %v1111, 2
  %v1114 = vshll.u32 %v1029, 16
  %v1116 = vrot.slane %v1114, 7
  %v1117 = vsel %vm134, %v1112, %v1116
  %v1119 = vshrl.u32 %v1036, 16
  %v1121 = vrot.slane %v1119, 6
  %v1122 = vshll.u32 %v1036, 16
  %v1124 = vrot.slane %v1122, 7
  %v1125 = vor.u32 %v1121, %v1124
  %v1126 = vrot.slane %v1125, 2
  %v1128 = vshll.u32 %v1037, 16
  %v1130 = vrot.slane %v1128, 7
  %v1131 = vsel %vm134, %v1126, %v1130
  %v1133 = vshrl.u32 %v1044, 16
  %v1135 = vrot.slane %v1133, 6
  %v1136 = vshll.u32 %v1044, 16
  %v1138 = vrot.slane %v1136, 7
  %v1139 = vor.u32 %v1135, %v1138
  %v1140 = vrot.slane %v1139, 2
  %v1142 = vshll.u32 %v1045, 16
  %v1144 = vrot.slane %v1142, 7
  %v1145 = vsel %vm134, %v1140, %v1144
  %v1147 = vshrl.u32 %v1052, 16
  %v1149 = vrot.slane %v1147, 6
  %v1150 = vshll.u32 %v1052, 16
  %v1152 = vrot.slane %v1150, 7
  %v1153 = vor.u32 %v1149, %v1152
  %v1154 = vrot.slane %v1153, 2
  %v1156 = vshll.u32 %v1053, 16
  %v1158 = vrot.slane %v1156, 7
  %v1159 = vsel %vm134, %v1154, %v1158
  %v1161 = vshrl.u32 %v1060, 16
  %v1163 = vrot.slane %v1161, 6
  %v1164 = vshll.u32 %v1060, 16
  %v1166 = vrot.slane %v1164, 7
  %v1167 = vor.u32 %v1163, %v1166
  %v1168 = vrot.slane %v1167, 2
  %v1170 = vshll.u32 %v1061, 16
  %v1172 = vrot.slane %v1170, 7
  %v1173 = vsel %vm134, %v1168, %v1172
  %s1174 = scalar_lea.vmem %s1, 256
  %v1175 = vld [vmem:[%s1174] sm:$0xf]
  %v1176 = vld [vmem:[%s1174 + $0x4] sm:$0xf]
  %v1177 = vld [vmem:[%s1174 + $0x8] sm:$0xf]
  %v1178 = vld [vmem:[%s1174 + $0xc] sm:$0xf]
  %v1179 = vld [vmem:[%s1174 + $0x10] sm:$0xf]
  %v1180 = vld [vmem:[%s1174 + $0x14] sm:$0xf]
  %v1181 = vld [vmem:[%s1174 + $0x18] sm:$0xf]
  %v1182 = vld [vmem:[%s1174 + $0x1c] sm:$0xf]
  %v1183 = vld [vmem:[%s1174 + $0x20] sm:$0xf]
  %v1184 = vld [vmem:[%s1174 + $0x24] sm:$0xf]
  %v1185 = vld [vmem:[%s1174 + $0x28] sm:$0xf]
  %v1186 = vld [vmem:[%s1174 + $0x2c] sm:$0xf]
  %v1187 = vld [vmem:[%s1174 + $0x30] sm:$0xf]
  %v1188 = vld [vmem:[%s1174 + $0x34] sm:$0xf]
  %v1189 = vld [vmem:[%s1174 + $0x38] sm:$0xf]
  %v1190 = vld [vmem:[%s1174 + $0x3c] sm:$0xf]
  %v1191 = vcombine.low %v1075, %v1089
  %v1192 = vcombine.low %v1103, %v1117
  %v1194 = vunpack.c.l.s4 1983009808
  %v1195 = vunpack.c.0.s8 %v1194
  %v1196 = vlaneseq
  %v1197 = vshrl.u32 %v1196, 7
  %v1198 = vsub.s32 %v1195, %v1197
  %v1199 = vrot.slane %v1191, %v1198
  %v1201 = vunpack.c.l.s4 1983009808
  %v1202 = vunpack.c.0.s8 %v1201
  %v1203 = vlaneseq
  %v1204 = vshrl.u32 %v1203, 7
  %v1205 = vsub.s32 %v1202, %v1204
  %v1206 = vrot.slane %v1192, %v1205
  %v1207 = vcombine.low %v1199, %v1206
  %v1208 = vcombine.low %v1131, %v1145
  %v1209 = vcombine.low %v1159, %v1173
  %v1211 = vunpack.c.l.s4 1983009808
  %v1212 = vunpack.c.0.s8 %v1211
  %v1213 = vlaneseq
  %v1214 = vshrl.u32 %v1213, 7
  %v1215 = vsub.s32 %v1212, %v1214
  %v1216 = vrot.slane %v1208, %v1215
  %v1218 = vunpack.c.l.s4 1983009808
  %v1219 = vunpack.c.0.s8 %v1218
  %v1220 = vlaneseq
  %v1221 = vshrl.u32 %v1220, 7
  %v1222 = vsub.s32 %v1219, %v1221
  %v1223 = vrot.slane %v1209, %v1222
  %v1224 = vcombine.low %v1216, %v1223
  %v1243 = vunpack.c.l.b16 %v1175
  %v1244 = vunpack.c.l.b16 %v1176
  %v1245 = vunpack.c.l.b16 %v1177
  %v1246 = vunpack.c.l.b16 %v1178
  %v1247 = vunpack.c.l.b16 %v1179
  %v1248 = vunpack.c.l.b16 %v1180
  %v1249 = vunpack.c.l.b16 %v1181
  %v1250 = vunpack.c.l.b16 %v1182
  %v1251 = vunpack.c.l.b16 %v1183
  %v1252 = vunpack.c.l.b16 %v1184
  %v1253 = vunpack.c.l.b16 %v1185
  %v1254 = vunpack.c.l.b16 %v1186
  %v1255 = vunpack.c.l.b16 %v1187
  %v1256 = vunpack.c.l.b16 %v1188
  %v1257 = vunpack.c.l.b16 %v1189
  %v1258 = vunpack.c.l.b16 %v1190
  %v1259 = vpack.c.b16 %v1244, %v1243
  %v1260 = vpack.c.b16 %v1246, %v1245
  %v1261 = vpack.c.b16 %v1248, %v1247
  %v1262 = vpack.c.b16 %v1250, %v1249
  %v1263 = vpack.c.b16 %v1252, %v1251
  %v1264 = vpack.c.b16 %v1254, %v1253
  %v1265 = vpack.c.b16 %v1256, %v1255
  %v1266 = vpack.c.b16 %v1258, %v1257
  %1275 = vmatprep.subr.bf16.mxu0 0
  %1276 = vmatpush1.bf16.msra.mxu0 %v1259
  %1277 = vmatprep.subr.bf16.mxu0 0
  %1278 = vmatpush1.bf16.msra.mxu0 %v1260
  %1279 = vmatprep.subr.bf16.mxu0 0
  %1280 = vmatpush1.bf16.msra.mxu0 %v1261
  %1281 = vmatprep.subr.bf16.mxu0 0
  %1282 = vmatpush1.bf16.msra.mxu0 %v1262
  %1283 = vmatprep.subr.bf16.mxu0 0
  %1284 = vmatpush1.bf16.msra.mxu0 %v1263
  %1285 = vmatprep.subr.bf16.mxu0 0
  %1286 = vmatpush1.bf16.msra.mxu0 %v1264
  %1287 = vmatprep.subr.bf16.mxu0 0
  %1288 = vmatpush1.bf16.msra.mxu0 %v1265
  %1289 = vmatprep.subr.bf16.mxu0 0
  %1290 = vmatpush1.bf16.msra.mxu0 %v1266
  %1291 = vmatprep.subr.bf16.mxu0 0
  %1292 = vmatpush1.bf16.msra.mxu0 0
  %1293 = vmatprep.subr.bf16.mxu0 0
  %1294 = vmatpush1.bf16.msra.mxu0 0
  %1295 = vmatprep.subr.bf16.mxu0 0
  %1296 = vmatpush1.bf16.msra.mxu0 0
  %1297 = vmatprep.subr.bf16.mxu0 0
  %1298 = vmatpush1.bf16.msra.mxu0 0
  %1299 = vmatprep.subr.bf16.mxu0 0
  %1300 = vmatpush1.bf16.msra.mxu0 0
  %1301 = vmatprep.subr.bf16.mxu0 0
  %1302 = vmatpush1.bf16.msra.mxu0 0
  %1303 = vmatprep.subr.bf16.mxu0 0
  %1304 = vmatpush1.bf16.msra.mxu0 0
  %1305 = vmatprep.subr.bf16.mxu0 0
  %1306 = vmatpush1.bf16.msra.mxu0 0
  %1307 = vmatprep.mubr.bf16.mxu0 0
  %1308 = vmatmul.mubr.bf16.gmra.mrb[0].mxu0 %v1207
  %v1309 = vpop.f32.mrb[0].mxu0
  %v1310 = vadd.f32 0.0, %v1309
  %v1311 = vpop.f32.mrb[0].mxu0
  %v1312 = vpop.f32.mrb[0].mxu0
  %v1313 = vadd.f32 0.0, %v1312
  %v1314 = vpop.f32.mrb[0].mxu0
  %1315 = vmatprep.mubr.bf16.mxu0 0
  %1316 = vmatmul.mubr.bf16.gmra.mrb[0].mxu0 %v1224
  %v1317 = vpop.f32.mrb[0].mxu0
  %v1318 = vadd.f32 0.0, %v1317
  %v1319 = vpop.f32.mrb[0].mxu0
  %v1320 = vpop.f32.mrb[0].mxu0
  %v1321 = vadd.f32 0.0, %v1320
  %v1322 = vpop.f32.mrb[0].mxu0
  %1323 = vdwg.mxu0
  %v1324 = vadd.f32 %v978, %v1310
  %v1325 = vadd.f32 %v979, %v1313
  %v1326 = vadd.f32 %v980, %v1318
  %v1327 = vadd.f32 %v981, %v1321
  %v1328 = vld [vmem:[%s811] sm:$0x6]
  %v1329 = vld [vmem:[%s811 + $0x4] sm:$0x6]
  %v1330 = vld [vmem:[%s811 + $0x8] sm:$0x6]
  %v1331 = vld [vmem:[%s811 + $0xc] sm:$0x6]
  %v1332 = vld [vmem:[%s811 + $0x18] sm:$0x6]
  %v1333 = vld [vmem:[%s811 + $0x1c] sm:$0x6]
  %v1334 = vld [vmem:[%s811 + $0x20] sm:$0x6]
  %v1335 = vld [vmem:[%s811 + $0x24] sm:$0x6]
  %v1345 = vunpack.c.l.s4 1983009808
  %v1346 = vunpack.c.0.s8 %v1345
  %v1347 = vlaneseq
  %v1348 = vshrl.u32 %v1347, 7
  %v1349 = vsub.s32 %v1346, %v1348
  %v1350 = vrot.slane %v1328, %v1349
  %v1351 = vcombine.high %v1350, %v1350
  %v1353 = vunpack.c.l.s4 1983009808
  %v1354 = vunpack.c.0.s8 %v1353
  %v1355 = vlaneseq
  %v1356 = vshrl.u32 %v1355, 7
  %v1357 = vsub.s32 %v1354, %v1356
  %v1358 = vrot.slane %v1329, %v1357
  %v1359 = vcombine.high %v1358, %v1358
  %v1361 = vunpack.c.l.s4 1983009808
  %v1362 = vunpack.c.0.s8 %v1361
  %v1363 = vlaneseq
  %v1364 = vshrl.u32 %v1363, 7
  %v1365 = vsub.s32 %v1362, %v1364
  %v1366 = vrot.slane %v1330, %v1365
  %v1367 = vcombine.high %v1366, %v1366
  %v1369 = vunpack.c.l.s4 1983009808
  %v1370 = vunpack.c.0.s8 %v1369
  %v1371 = vlaneseq
  %v1372 = vshrl.u32 %v1371, 7
  %v1373 = vsub.s32 %v1370, %v1372
  %v1374 = vrot.slane %v1331, %v1373
  %v1375 = vcombine.high %v1374, %v1374
  %v1377 = vunpack.c.l.s4 1983009808
  %v1378 = vunpack.c.0.s8 %v1377
  %v1379 = vlaneseq
  %v1380 = vshrl.u32 %v1379, 7
  %v1381 = vsub.s32 %v1378, %v1380
  %v1382 = vrot.slane %v1332, %v1381
  %v1383 = vcombine.high %v1382, %v1382
  %v1385 = vunpack.c.l.s4 1983009808
  %v1386 = vunpack.c.0.s8 %v1385
  %v1387 = vlaneseq
  %v1388 = vshrl.u32 %v1387, 7
  %v1389 = vsub.s32 %v1386, %v1388
  %v1390 = vrot.slane %v1333, %v1389
  %v1391 = vcombine.high %v1390, %v1390
  %v1393 = vunpack.c.l.s4 1983009808
  %v1394 = vunpack.c.0.s8 %v1393
  %v1395 = vlaneseq
  %v1396 = vshrl.u32 %v1395, 7
  %v1397 = vsub.s32 %v1394, %v1396
  %v1398 = vrot.slane %v1334, %v1397
  %v1399 = vcombine.high %v1398, %v1398
  %v1401 = vunpack.c.l.s4 1983009808
  %v1402 = vunpack.c.0.s8 %v1401
  %v1403 = vlaneseq
  %v1404 = vshrl.u32 %v1403, 7
  %v1405 = vsub.s32 %v1402, %v1404
  %v1406 = vrot.slane %v1335, %v1405
  %v1407 = vcombine.high %v1406, %v1406
  %v1408 = vrot.slane %v1350, 7
  %v1409 = vrot.slane %v1408, 2
  %v1410 = vrot.slane %v1351, 7
  %v1411 = vsel %vm624, %v1409, %v1410
  %v1412 = vrot.slane %v1358, 7
  %v1413 = vrot.slane %v1412, 2
  %v1414 = vrot.slane %v1359, 7
  %v1415 = vsel %vm624, %v1413, %v1414
  %v1416 = vrot.slane %v1366, 7
  %v1417 = vrot.slane %v1416, 2
  %v1418 = vrot.slane %v1367, 7
  %v1419 = vsel %vm624, %v1417, %v1418
  %v1420 = vrot.slane %v1374, 7
  %v1421 = vrot.slane %v1420, 2
  %v1422 = vrot.slane %v1375, 7
  %v1423 = vsel %vm624, %v1421, %v1422
  %v1424 = vrot.slane %v1382, 7
  %v1425 = vrot.slane %v1424, 2
  %v1426 = vrot.slane %v1383, 7
  %v1427 = vsel %vm624, %v1425, %v1426
  %v1428 = vrot.slane %v1390, 7
  %v1429 = vrot.slane %v1428, 2
  %v1430 = vrot.slane %v1391, 7
  %v1431 = vsel %vm624, %v1429, %v1430
  %v1432 = vrot.slane %v1398, 7
  %v1433 = vrot.slane %v1432, 2
  %v1434 = vrot.slane %v1399, 7
  %v1435 = vsel %vm624, %v1433, %v1434
  %v1436 = vrot.slane %v1406, 7
  %v1437 = vrot.slane %v1436, 2
  %v1438 = vrot.slane %v1407, 7
  %v1439 = vsel %vm624, %v1437, %v1438
  %s1440 = scalar_lea.vmem %s1, 320
  %v1441 = vld [vmem:[%s1440] sm:$0xf]
  %v1442 = vld [vmem:[%s1440 + $0x4] sm:$0xf]
  %v1443 = vld [vmem:[%s1440 + $0x8] sm:$0xf]
  %v1444 = vld [vmem:[%s1440 + $0xc] sm:$0xf]
  %v1445 = vld [vmem:[%s1440 + $0x10] sm:$0xf]
  %v1446 = vld [vmem:[%s1440 + $0x14] sm:$0xf]
  %v1447 = vld [vmem:[%s1440 + $0x18] sm:$0xf]
  %v1448 = vld [vmem:[%s1440 + $0x1c] sm:$0xf]
  %v1449 = vld [vmem:[%s1440 + $0x20] sm:$0xf]
  %v1450 = vld [vmem:[%s1440 + $0x24] sm:$0xf]
  %v1451 = vld [vmem:[%s1440 + $0x28] sm:$0xf]
  %v1452 = vld [vmem:[%s1440 + $0x2c] sm:$0xf]
  %v1453 = vld [vmem:[%s1440 + $0x30] sm:$0xf]
  %v1454 = vld [vmem:[%s1440 + $0x34] sm:$0xf]
  %v1455 = vld [vmem:[%s1440 + $0x38] sm:$0xf]
  %v1456 = vld [vmem:[%s1440 + $0x3c] sm:$0xf]
  %v1457 = vcombine.low %v1411, %v1415
  %v1458 = vcombine.low %v1419, %v1423
  %v1460 = vunpack.c.l.s4 1983009808
  %v1461 = vunpack.c.0.s8 %v1460
  %v1462 = vlaneseq
  %v1463 = vshrl.u32 %v1462, 7
  %v1464 = vsub.s32 %v1461, %v1463
  %v1465 = vrot.slane %v1457, %v1464
  %v1467 = vunpack.c.l.s4 1983009808
  %v1468 = vunpack.c.0.s8 %v1467
  %v1469 = vlaneseq
  %v1470 = vshrl.u32 %v1469, 7
  %v1471 = vsub.s32 %v1468, %v1470
  %v1472 = vrot.slane %v1458, %v1471
  %v1473 = vcombine.low %v1465, %v1472
  %v1474 = vcombine.low %v1427, %v1431
  %v1475 = vcombine.low %v1435, %v1439
  %v1477 = vunpack.c.l.s4 1983009808
  %v1478 = vunpack.c.0.s8 %v1477
  %v1479 = vlaneseq
  %v1480 = vshrl.u32 %v1479, 7
  %v1481 = vsub.s32 %v1478, %v1480
  %v1482 = vrot.slane %v1474, %v1481
  %v1484 = vunpack.c.l.s4 1983009808
  %v1485 = vunpack.c.0.s8 %v1484
  %v1486 = vlaneseq
  %v1487 = vshrl.u32 %v1486, 7
  %v1488 = vsub.s32 %v1485, %v1487
  %v1489 = vrot.slane %v1475, %v1488
  %v1490 = vcombine.low %v1482, %v1489
  %v1509 = vunpack.c.l.b16 %v1441
  %v1510 = vunpack.c.l.b16 %v1442
  %v1511 = vunpack.c.l.b16 %v1443
  %v1512 = vunpack.c.l.b16 %v1444
  %v1513 = vunpack.c.l.b16 %v1445
  %v1514 = vunpack.c.l.b16 %v1446
  %v1515 = vunpack.c.l.b16 %v1447
  %v1516 = vunpack.c.l.b16 %v1448
  %v1517 = vunpack.c.l.b16 %v1449
  %v1518 = vunpack.c.l.b16 %v1450
  %v1519 = vunpack.c.l.b16 %v1451
  %v1520 = vunpack.c.l.b16 %v1452
  %v1521 = vunpack.c.l.b16 %v1453
  %v1522 = vunpack.c.l.b16 %v1454
  %v1523 = vunpack.c.l.b16 %v1455
  %v1524 = vunpack.c.l.b16 %v1456
  %v1525 = vpack.c.b16 %v1510, %v1509
  %v1526 = vpack.c.b16 %v1512, %v1511
  %v1527 = vpack.c.b16 %v1514, %v1513
  %v1528 = vpack.c.b16 %v1516, %v1515
  %v1529 = vpack.c.b16 %v1518, %v1517
  %v1530 = vpack.c.b16 %v1520, %v1519
  %v1531 = vpack.c.b16 %v1522, %v1521
  %v1532 = vpack.c.b16 %v1524, %v1523
  %1541 = vmatprep.subr.bf16.mxu0 0
  %1542 = vmatpush1.bf16.msra.mxu0 %v1525
  %1543 = vmatprep.subr.bf16.mxu0 0
  %1544 = vmatpush1.bf16.msra.mxu0 %v1526
  %1545 = vmatprep.subr.bf16.mxu0 0
  %1546 = vmatpush1.bf16.msra.mxu0 %v1527
  %1547 = vmatprep.subr.bf16.mxu0 0
  %1548 = vmatpush1.bf16.msra.mxu0 %v1528
  %1549 = vmatprep.subr.bf16.mxu0 0
  %1550 = vmatpush1.bf16.msra.mxu0 %v1529
  %1551 = vmatprep.subr.bf16.mxu0 0
  %1552 = vmatpush1.bf16.msra.mxu0 %v1530
  %1553 = vmatprep.subr.bf16.mxu0 0
  %1554 = vmatpush1.bf16.msra.mxu0 %v1531
  %1555 = vmatprep.subr.bf16.mxu0 0
  %1556 = vmatpush1.bf16.msra.mxu0 %v1532
  %1557 = vmatprep.subr.bf16.mxu0 0
  %1558 = vmatpush1.bf16.msra.mxu0 0
  %1559 = vmatprep.subr.bf16.mxu0 0
  %1560 = vmatpush1.bf16.msra.mxu0 0
  %1561 = vmatprep.subr.bf16.mxu0 0
  %1562 = vmatpush1.bf16.msra.mxu0 0
  %1563 = vmatprep.subr.bf16.mxu0 0
  %1564 = vmatpush1.bf16.msra.mxu0 0
  %1565 = vmatprep.subr.bf16.mxu0 0
  %1566 = vmatpush1.bf16.msra.mxu0 0
  %1567 = vmatprep.subr.bf16.mxu0 0
  %1568 = vmatpush1.bf16.msra.mxu0 0
  %1569 = vmatprep.subr.bf16.mxu0 0
  %1570 = vmatpush1.bf16.msra.mxu0 0
  %1571 = vmatprep.subr.bf16.mxu0 0
  %1572 = vmatpush1.bf16.msra.mxu0 0
  %1573 = vmatprep.mubr.bf16.mxu0 0
  %1574 = vmatmul.mubr.bf16.gmra.mrb[0].mxu0 %v1473
  %v1575 = vpop.f32.mrb[0].mxu0
  %v1576 = vadd.f32 0.0, %v1575
  %v1577 = vpop.f32.mrb[0].mxu0
  %v1578 = vpop.f32.mrb[0].mxu0
  %v1579 = vadd.f32 0.0, %v1578
  %v1580 = vpop.f32.mrb[0].mxu0
  %1581 = vmatprep.mubr.bf16.mxu0 0
  %1582 = vmatmul.mubr.bf16.gmra.mrb[0].mxu0 %v1490
  %v1583 = vpop.f32.mrb[0].mxu0
  %v1584 = vadd.f32 0.0, %v1583
  %v1585 = vpop.f32.mrb[0].mxu0
  %v1586 = vpop.f32.mrb[0].mxu0
  %v1587 = vadd.f32 0.0, %v1586
  %v1588 = vpop.f32.mrb[0].mxu0
  %1589 = vdwg.mxu0
  %v1590 = vadd.f32 %v1324, %v1576
  %v1591 = vadd.f32 %v1325, %v1579
  %v1592 = vadd.f32 %v1326, %v1584
  %v1593 = vadd.f32 %v1327, %v1587
  %s1594 = scalar_lea.vmem %s0, 8
  %v1595 = vld [vmem:[%s1594] sm:$0x3]
  %v1596 = vld [vmem:[%s1594 + $0x4] sm:$0x3]
  %v1597 = vld [vmem:[%s1594 + $0x8] sm:$0x3]
  %v1598 = vld [vmem:[%s1594 + $0xc] sm:$0x3]
  %v1599 = vld [vmem:[%s1594 + $0x18] sm:$0x3]
  %v1600 = vld [vmem:[%s1594 + $0x1c] sm:$0x3]
  %v1601 = vld [vmem:[%s1594 + $0x20] sm:$0x3]
  %v1602 = vld [vmem:[%s1594 + $0x24] sm:$0x3]
  %s1603 = scalar_lea.vmem %s1, 384
  %v1604 = vld [vmem:[%s1603] sm:$0xf]
  %v1605 = vld [vmem:[%s1603 + $0x4] sm:$0xf]
  %v1606 = vld [vmem:[%s1603 + $0x8] sm:$0xf]
  %v1607 = vld [vmem:[%s1603 + $0xc] sm:$0xf]
  %v1608 = vld [vmem:[%s1603 + $0x10] sm:$0xf]
  %v1609 = vld [vmem:[%s1603 + $0x14] sm:$0xf]
  %v1610 = vld [vmem:[%s1603 + $0x18] sm:$0xf]
  %v1611 = vld [vmem:[%s1603 + $0x1c] sm:$0xf]
  %v1612 = vld [vmem:[%s1603 + $0x20] sm:$0xf]
  %v1613 = vld [vmem:[%s1603 + $0x24] sm:$0xf]
  %v1614 = vld [vmem:[%s1603 + $0x28] sm:$0xf]
  %v1615 = vld [vmem:[%s1603 + $0x2c] sm:$0xf]
  %v1616 = vld [vmem:[%s1603 + $0x30] sm:$0xf]
  %v1617 = vld [vmem:[%s1603 + $0x34] sm:$0xf]
  %v1618 = vld [vmem:[%s1603 + $0x38] sm:$0xf]
  %v1619 = vld [vmem:[%s1603 + $0x3c] sm:$0xf]
  %v1628 = vcombine.low %v1595, %v1596
  %v1629 = vcombine.low %v1597, %v1598
  %v1631 = vunpack.c.l.s4 1983009808
  %v1632 = vunpack.c.0.s8 %v1631
  %v1633 = vlaneseq
  %v1634 = vshrl.u32 %v1633, 7
  %v1635 = vsub.s32 %v1632, %v1634
  %v1636 = vrot.slane %v1628, %v1635
  %v1638 = vunpack.c.l.s4 1983009808
  %v1639 = vunpack.c.0.s8 %v1638
  %v1640 = vlaneseq
  %v1641 = vshrl.u32 %v1640, 7
  %v1642 = vsub.s32 %v1639, %v1641
  %v1643 = vrot.slane %v1629, %v1642
  %v1644 = vcombine.low %v1636, %v1643
  %v1645 = vcombine.low %v1599, %v1600
  %v1646 = vcombine.low %v1601, %v1602
  %v1648 = vunpack.c.l.s4 1983009808
  %v1649 = vunpack.c.0.s8 %v1648
  %v1650 = vlaneseq
  %v1651 = vshrl.u32 %v1650, 7
  %v1652 = vsub.s32 %v1649, %v1651
  %v1653 = vrot.slane %v1645, %v1652
  %v1655 = vunpack.c.l.s4 1983009808
  %v1656 = vunpack.c.0.s8 %v1655
  %v1657 = vlaneseq
  %v1658 = vshrl.u32 %v1657, 7
  %v1659 = vsub.s32 %v1656, %v1658
  %v1660 = vrot.slane %v1646, %v1659
  %v1661 = vcombine.low %v1653, %v1660
  %v1680 = vunpack.c.l.b16 %v1604
  %v1681 = vunpack.c.l.b16 %v1605
  %v1682 = vunpack.c.l.b16 %v1606
  %v1683 = vunpack.c.l.b16 %v1607
  %v1684 = vunpack.c.l.b16 %v1608
  %v1685 = vunpack.c.l.b16 %v1609
  %v1686 = vunpack.c.l.b16 %v1610
  %v1687 = vunpack.c.l.b16 %v1611
  %v1688 = vunpack.c.l.b16 %v1612
  %v1689 = vunpack.c.l.b16 %v1613
  %v1690 = vunpack.c.l.b16 %v1614
  %v1691 = vunpack.c.l.b16 %v1615
  %v1692 = vunpack.c.l.b16 %v1616
  %v1693 = vunpack.c.l.b16 %v1617
  %v1694 = vunpack.c.l.b16 %v1618
  %v1695 = vunpack.c.l.b16 %v1619
  %v1696 = vpack.c.b16 %v1681, %v1680
  %v1697 = vpack.c.b16 %v1683, %v1682
  %v1698 = vpack.c.b16 %v1685, %v1684
  %v1699 = vpack.c.b16 %v1687, %v1686
  %v1700 = vpack.c.b16 %v1689, %v1688
  %v1701 = vpack.c.b16 %v1691, %v1690
  %v1702 = vpack.c.b16 %v1693, %v1692
  %v1703 = vpack.c.b16 %v1695, %v1694
  %1712 = vmatprep.subr.bf16.mxu0 0
  %1713 = vmatpush1.bf16.msra.mxu0 %v1696
  %1714 = vmatprep.subr.bf16.mxu0 0
  %1715 = vmatpush1.bf16.msra.mxu0 %v1697
  %1716 = vmatprep.subr.bf16.mxu0 0
  %1717 = vmatpush1.bf16.msra.mxu0 %v1698
  %1718 = vmatprep.subr.bf16.mxu0 0
  %1719 = vmatpush1.bf16.msra.mxu0 %v1699
  %1720 = vmatprep.subr.bf16.mxu0 0
  %1721 = vmatpush1.bf16.msra.mxu0 %v1700
  %1722 = vmatprep.subr.bf16.mxu0 0
  %1723 = vmatpush1.bf16.msra.mxu0 %v1701
  %1724 = vmatprep.subr.bf16.mxu0 0
  %1725 = vmatpush1.bf16.msra.mxu0 %v1702
  %1726 = vmatprep.subr.bf16.mxu0 0
  %1727 = vmatpush1.bf16.msra.mxu0 %v1703
  %1728 = vmatprep.subr.bf16.mxu0 0
  %1729 = vmatpush1.bf16.msra.mxu0 0
  %1730 = vmatprep.subr.bf16.mxu0 0
  %1731 = vmatpush1.bf16.msra.mxu0 0
  %1732 = vmatprep.subr.bf16.mxu0 0
  %1733 = vmatpush1.bf16.msra.mxu0 0
  %1734 = vmatprep.subr.bf16.mxu0 0
  %1735 = vmatpush1.bf16.msra.mxu0 0
  %1736 = vmatprep.subr.bf16.mxu0 0
  %1737 = vmatpush1.bf16.msra.mxu0 0
  %1738 = vmatprep.subr.bf16.mxu0 0
  %1739 = vmatpush1.bf16.msra.mxu0 0
  %1740 = vmatprep.subr.bf16.mxu0 0
  %1741 = vmatpush1.bf16.msra.mxu0 0
  %1742 = vmatprep.subr.bf16.mxu0 0
  %1743 = vmatpush1.bf16.msra.mxu0 0
  %1744 = vmatprep.mubr.bf16.mxu0 0
  %1745 = vmatmul.mubr.bf16.gmra.mrb[0].mxu0 %v1644
  %v1746 = vpop.f32.mrb[0].mxu0
  %v1747 = vadd.f32 0.0, %v1746
  %v1748 = vpop.f32.mrb[0].mxu0
  %v1749 = vpop.f32.mrb[0].mxu0
  %v1750 = vadd.f32 0.0, %v1749
  %v1751 = vpop.f32.mrb[0].mxu0
  %1752 = vmatprep.mubr.bf16.mxu0 0
  %1753 = vmatmul.mubr.bf16.gmra.mrb[0].mxu0 %v1661
  %v1754 = vpop.f32.mrb[0].mxu0
  %v1755 = vadd.f32 0.0, %v1754
  %v1756 = vpop.f32.mrb[0].mxu0
  %v1757 = vpop.f32.mrb[0].mxu0
  %v1758 = vadd.f32 0.0, %v1757
  %v1759 = vpop.f32.mrb[0].mxu0
  %1760 = vdwg.mxu0
  %v1761 = vadd.f32 %v1590, %v1747
  %v1762 = vadd.f32 %v1591, %v1750
  %v1763 = vadd.f32 %v1592, %v1755
  %v1764 = vadd.f32 %v1593, %v1758
  %v1765 = vld [vmem:[%s1594] sm:$0x7]
  %v1766 = vld [vmem:[%s1594 + $0x4] sm:$0x7]
  %v1767 = vld [vmem:[%s1594 + $0x8] sm:$0x7]
  %v1768 = vld [vmem:[%s1594 + $0xc] sm:$0x7]
  %v1769 = vld [vmem:[%s1594 + $0x18] sm:$0x7]
  %v1770 = vld [vmem:[%s1594 + $0x1c] sm:$0x7]
  %v1771 = vld [vmem:[%s1594 + $0x20] sm:$0x7]
  %v1772 = vld [vmem:[%s1594 + $0x24] sm:$0x7]
  %v1782 = vunpack.c.l.s4 1983009808
  %v1783 = vunpack.c.0.s8 %v1782
  %v1784 = vlaneseq
  %v1785 = vshrl.u32 %v1784, 7
  %v1786 = vsub.s32 %v1783, %v1785
  %v1787 = vrot.slane %v1765, %v1786
  %v1788 = vcombine.high %v1787, %v1787
  %v1790 = vunpack.c.l.s4 1983009808
  %v1791 = vunpack.c.0.s8 %v1790
  %v1792 = vlaneseq
  %v1793 = vshrl.u32 %v1792, 7
  %v1794 = vsub.s32 %v1791, %v1793
  %v1795 = vrot.slane %v1766, %v1794
  %v1796 = vcombine.high %v1795, %v1795
  %v1798 = vunpack.c.l.s4 1983009808
  %v1799 = vunpack.c.0.s8 %v1798
  %v1800 = vlaneseq
  %v1801 = vshrl.u32 %v1800, 7
  %v1802 = vsub.s32 %v1799, %v1801
  %v1803 = vrot.slane %v1767, %v1802
  %v1804 = vcombine.high %v1803, %v1803
  %v1806 = vunpack.c.l.s4 1983009808
  %v1807 = vunpack.c.0.s8 %v1806
  %v1808 = vlaneseq
  %v1809 = vshrl.u32 %v1808, 7
  %v1810 = vsub.s32 %v1807, %v1809
  %v1811 = vrot.slane %v1768, %v1810
  %v1812 = vcombine.high %v1811, %v1811
  %v1814 = vunpack.c.l.s4 1983009808
  %v1815 = vunpack.c.0.s8 %v1814
  %v1816 = vlaneseq
  %v1817 = vshrl.u32 %v1816, 7
  %v1818 = vsub.s32 %v1815, %v1817
  %v1819 = vrot.slane %v1769, %v1818
  %v1820 = vcombine.high %v1819, %v1819
  %v1822 = vunpack.c.l.s4 1983009808
  %v1823 = vunpack.c.0.s8 %v1822
  %v1824 = vlaneseq
  %v1825 = vshrl.u32 %v1824, 7
  %v1826 = vsub.s32 %v1823, %v1825
  %v1827 = vrot.slane %v1770, %v1826
  %v1828 = vcombine.high %v1827, %v1827
  %v1830 = vunpack.c.l.s4 1983009808
  %v1831 = vunpack.c.0.s8 %v1830
  %v1832 = vlaneseq
  %v1833 = vshrl.u32 %v1832, 7
  %v1834 = vsub.s32 %v1831, %v1833
  %v1835 = vrot.slane %v1771, %v1834
  %v1836 = vcombine.high %v1835, %v1835
  %v1838 = vunpack.c.l.s4 1983009808
  %v1839 = vunpack.c.0.s8 %v1838
  %v1840 = vlaneseq
  %v1841 = vshrl.u32 %v1840, 7
  %v1842 = vsub.s32 %v1839, %v1841
  %v1843 = vrot.slane %v1772, %v1842
  %v1844 = vcombine.high %v1843, %v1843
  %v1846 = vshrl.u32 %v1787, 16
  %v1848 = vrot.slane %v1846, 6
  %v1849 = vshll.u32 %v1787, 16
  %v1851 = vrot.slane %v1849, 7
  %v1852 = vor.u32 %v1848, %v1851
  %v1853 = vrot.slane %v1852, 2
  %v1855 = vshll.u32 %v1788, 16
  %v1857 = vrot.slane %v1855, 7
  %v1858 = vsel %vm134, %v1853, %v1857
  %v1860 = vshrl.u32 %v1795, 16
  %v1862 = vrot.slane %v1860, 6
  %v1863 = vshll.u32 %v1795, 16
  %v1865 = vrot.slane %v1863, 7
  %v1866 = vor.u32 %v1862, %v1865
  %v1867 = vrot.slane %v1866, 2
  %v1869 = vshll.u32 %v1796, 16
  %v1871 = vrot.slane %v1869, 7
  %v1872 = vsel %vm134, %v1867, %v1871
  %v1874 = vshrl.u32 %v1803, 16
  %v1876 = vrot.slane %v1874, 6
  %v1877 = vshll.u32 %v1803, 16
  %v1879 = vrot.slane %v1877, 7
  %v1880 = vor.u32 %v1876, %v1879
  %v1881 = vrot.slane %v1880, 2
  %v1883 = vshll.u32 %v1804, 16
  %v1885 = vrot.slane %v1883, 7
  %v1886 = vsel %vm134, %v1881, %v1885
  %v1888 = vshrl.u32 %v1811, 16
  %v1890 = vrot.slane %v1888, 6
  %v1891 = vshll.u32 %v1811, 16
  %v1893 = vrot.slane %v1891, 7
  %v1894 = vor.u32 %v1890, %v1893
  %v1895 = vrot.slane %v1894, 2
  %v1897 = vshll.u32 %v1812, 16
  %v1899 = vrot.slane %v1897, 7
  %v1900 = vsel %vm134, %v1895, %v1899
  %v1902 = vshrl.u32 %v1819, 16
  %v1904 = vrot.slane %v1902, 6
  %v1905 = vshll.u32 %v1819, 16
  %v1907 = vrot.slane %v1905, 7
  %v1908 = vor.u32 %v1904, %v1907
  %v1909 = vrot.slane %v1908, 2
  %v1911 = vshll.u32 %v1820, 16
  %v1913 = vrot.slane %v1911, 7
  %v1914 = vsel %vm134, %v1909, %v1913
  %v1916 = vshrl.u32 %v1827, 16
  %v1918 = vrot.slane %v1916, 6
  %v1919 = vshll.u32 %v1827, 16
  %v1921 = vrot.slane %v1919, 7
  %v1922 = vor.u32 %v1918, %v1921
  %v1923 = vrot.slane %v1922, 2
  %v1925 = vshll.u32 %v1828, 16
  %v1927 = vrot.slane %v1925, 7
  %v1928 = vsel %vm134, %v1923, %v1927
  %v1930 = vshrl.u32 %v1835, 16
  %v1932 = vrot.slane %v1930, 6
  %v1933 = vshll.u32 %v1835, 16
  %v1935 = vrot.slane %v1933, 7
  %v1936 = vor.u32 %v1932, %v1935
  %v1937 = vrot.slane %v1936, 2
  %v1939 = vshll.u32 %v1836, 16
  %v1941 = vrot.slane %v1939, 7
  %v1942 = vsel %vm134, %v1937, %v1941
  %v1944 = vshrl.u32 %v1843, 16
  %v1946 = vrot.slane %v1944, 6
  %v1947 = vshll.u32 %v1843, 16
  %v1949 = vrot.slane %v1947, 7
  %v1950 = vor.u32 %v1946, %v1949
  %v1951 = vrot.slane %v1950, 2
  %v1953 = vshll.u32 %v1844, 16
  %v1955 = vrot.slane %v1953, 7
  %v1956 = vsel %vm134, %v1951, %v1955
  %s1957 = scalar_lea.vmem %s1, 448
  %v1958 = vld [vmem:[%s1957] sm:$0xf]
  %v1959 = vld [vmem:[%s1957 + $0x4] sm:$0xf]
  %v1960 = vld [vmem:[%s1957 + $0x8] sm:$0xf]
  %v1961 = vld [vmem:[%s1957 + $0xc] sm:$0xf]
  %v1962 = vld [vmem:[%s1957 + $0x10] sm:$0xf]
  %v1963 = vld [vmem:[%s1957 + $0x14] sm:$0xf]
  %v1964 = vld [vmem:[%s1957 + $0x18] sm:$0xf]
  %v1965 = vld [vmem:[%s1957 + $0x1c] sm:$0xf]
  %v1966 = vld [vmem:[%s1957 + $0x20] sm:$0xf]
  %v1967 = vld [vmem:[%s1957 + $0x24] sm:$0xf]
  %v1968 = vld [vmem:[%s1957 + $0x28] sm:$0xf]
  %v1969 = vld [vmem:[%s1957 + $0x2c] sm:$0xf]
  %v1970 = vld [vmem:[%s1957 + $0x30] sm:$0xf]
  %v1971 = vld [vmem:[%s1957 + $0x34] sm:$0xf]
  %v1972 = vld [vmem:[%s1957 + $0x38] sm:$0xf]
  %v1973 = vld [vmem:[%s1957 + $0x3c] sm:$0xf]
  %v1974 = vcombine.low %v1858, %v1872
  %v1975 = vcombine.low %v1886, %v1900
  %v1977 = vunpack.c.l.s4 1983009808
  %v1978 = vunpack.c.0.s8 %v1977
  %v1979 = vlaneseq
  %v1980 = vshrl.u32 %v1979, 7
  %v1981 = vsub.s32 %v1978, %v1980
  %v1982 = vrot.slane %v1974, %v1981
  %v1984 = vunpack.c.l.s4 1983009808
  %v1985 = vunpack.c.0.s8 %v1984
  %v1986 = vlaneseq
  %v1987 = vshrl.u32 %v1986, 7
  %v1988 = vsub.s32 %v1985, %v1987
  %v1989 = vrot.slane %v1975, %v1988
  %v1990 = vcombine.low %v1982, %v1989
  %v1991 = vcombine.low %v1914, %v1928
  %v1992 = vcombine.low %v1942, %v1956
  %v1994 = vunpack.c.l.s4 1983009808
  %v1995 = vunpack.c.0.s8 %v1994
  %v1996 = vlaneseq
  %v1997 = vshrl.u32 %v1996, 7
  %v1998 = vsub.s32 %v1995, %v1997
  %v1999 = vrot.slane %v1991, %v1998
  %v2001 = vunpack.c.l.s4 1983009808
  %v2002 = vunpack.c.0.s8 %v2001
  %v2003 = vlaneseq
  %v2004 = vshrl.u32 %v2003, 7
  %v2005 = vsub.s32 %v2002, %v2004
  %v2006 = vrot.slane %v1992, %v2005
  %v2007 = vcombine.low %v1999, %v2006
  %v2026 = vunpack.c.l.b16 %v1958
  %v2027 = vunpack.c.l.b16 %v1959
  %v2028 = vunpack.c.l.b16 %v1960
  %v2029 = vunpack.c.l.b16 %v1961
  %v2030 = vunpack.c.l.b16 %v1962
  %v2031 = vunpack.c.l.b16 %v1963
  %v2032 = vunpack.c.l.b16 %v1964
  %v2033 = vunpack.c.l.b16 %v1965
  %v2034 = vunpack.c.l.b16 %v1966
  %v2035 = vunpack.c.l.b16 %v1967
  %v2036 = vunpack.c.l.b16 %v1968
  %v2037 = vunpack.c.l.b16 %v1969
  %v2038 = vunpack.c.l.b16 %v1970
  %v2039 = vunpack.c.l.b16 %v1971
  %v2040 = vunpack.c.l.b16 %v1972
  %v2041 = vunpack.c.l.b16 %v1973
  %v2042 = vpack.c.b16 %v2027, %v2026
  %v2043 = vpack.c.b16 %v2029, %v2028
  %v2044 = vpack.c.b16 %v2031, %v2030
  %v2045 = vpack.c.b16 %v2033, %v2032
  %v2046 = vpack.c.b16 %v2035, %v2034
  %v2047 = vpack.c.b16 %v2037, %v2036
  %v2048 = vpack.c.b16 %v2039, %v2038
  %v2049 = vpack.c.b16 %v2041, %v2040
  %2058 = vmatprep.subr.bf16.mxu0 0
  %2059 = vmatpush1.bf16.msra.mxu0 %v2042
  %2060 = vmatprep.subr.bf16.mxu0 0
  %2061 = vmatpush1.bf16.msra.mxu0 %v2043
  %2062 = vmatprep.subr.bf16.mxu0 0
  %2063 = vmatpush1.bf16.msra.mxu0 %v2044
  %2064 = vmatprep.subr.bf16.mxu0 0
  %2065 = vmatpush1.bf16.msra.mxu0 %v2045
  %2066 = vmatprep.subr.bf16.mxu0 0
  %2067 = vmatpush1.bf16.msra.mxu0 %v2046
  %2068 = vmatprep.subr.bf16.mxu0 0
  %2069 = vmatpush1.bf16.msra.mxu0 %v2047
  %2070 = vmatprep.subr.bf16.mxu0 0
  %2071 = vmatpush1.bf16.msra.mxu0 %v2048
  %2072 = vmatprep.subr.bf16.mxu0 0
  %2073 = vmatpush1.bf16.msra.mxu0 %v2049
  %2074 = vmatprep.subr.bf16.mxu0 0
  %2075 = vmatpush1.bf16.msra.mxu0 0
  %2076 = vmatprep.subr.bf16.mxu0 0
  %2077 = vmatpush1.bf16.msra.mxu0 0
  %2078 = vmatprep.subr.bf16.mxu0 0
  %2079 = vmatpush1.bf16.msra.mxu0 0
  %2080 = vmatprep.subr.bf16.mxu0 0
  %2081 = vmatpush1.bf16.msra.mxu0 0
  %2082 = vmatprep.subr.bf16.mxu0 0
  %2083 = vmatpush1.bf16.msra.mxu0 0
  %2084 = vmatprep.subr.bf16.mxu0 0
  %2085 = vmatpush1.bf16.msra.mxu0 0
  %2086 = vmatprep.subr.bf16.mxu0 0
  %2087 = vmatpush1.bf16.msra.mxu0 0
  %2088 = vmatprep.subr.bf16.mxu0 0
  %2089 = vmatpush1.bf16.msra.mxu0 0
  %2090 = vmatprep.mubr.bf16.mxu0 0
  %2091 = vmatmul.mubr.bf16.gmra.mrb[0].mxu0 %v1990
  %v2092 = vpop.f32.mrb[0].mxu0
  %v2093 = vadd.f32 0.0, %v2092
  %v2094 = vpop.f32.mrb[0].mxu0
  %v2095 = vpop.f32.mrb[0].mxu0
  %v2096 = vadd.f32 0.0, %v2095
  %v2097 = vpop.f32.mrb[0].mxu0
  %2098 = vmatprep.mubr.bf16.mxu0 0
  %2099 = vmatmul.mubr.bf16.gmra.mrb[0].mxu0 %v2007
  %v2100 = vpop.f32.mrb[0].mxu0
  %v2101 = vadd.f32 0.0, %v2100
  %v2102 = vpop.f32.mrb[0].mxu0
  %v2103 = vpop.f32.mrb[0].mxu0
  %v2104 = vadd.f32 0.0, %v2103
  %v2105 = vpop.f32.mrb[0].mxu0
  %2106 = vdwg.mxu0
  %v2107 = vadd.f32 %v1761, %v2093
  %v2108 = vadd.f32 %v1762, %v2096
  %v2109 = vadd.f32 %v1763, %v2101
  %v2110 = vadd.f32 %v1764, %v2104
  %v2111 = vld [vmem:[%s1594] sm:$0x6]
  %v2112 = vld [vmem:[%s1594 + $0x4] sm:$0x6]
  %v2113 = vld [vmem:[%s1594 + $0x8] sm:$0x6]
  %v2114 = vld [vmem:[%s1594 + $0xc] sm:$0x6]
  %v2115 = vld [vmem:[%s1594 + $0x18] sm:$0x6]
  %v2116 = vld [vmem:[%s1594 + $0x1c] sm:$0x6]
  %v2117 = vld [vmem:[%s1594 + $0x20] sm:$0x6]
  %v2118 = vld [vmem:[%s1594 + $0x24] sm:$0x6]
  %v2128 = vunpack.c.l.s4 1983009808
  %v2129 = vunpack.c.0.s8 %v2128
  %v2130 = vlaneseq
  %v2131 = vshrl.u32 %v2130, 7
  %v2132 = vsub.s32 %v2129, %v2131
  %v2133 = vrot.slane %v2111, %v2132
  %v2134 = vcombine.high %v2133, %v2133
  %v2136 = vunpack.c.l.s4 1983009808
  %v2137 = vunpack.c.0.s8 %v2136
  %v2138 = vlaneseq
  %v2139 = vshrl.u32 %v2138, 7
  %v2140 = vsub.s32 %v2137, %v2139
  %v2141 = vrot.slane %v2112, %v2140
  %v2142 = vcombine.high %v2141, %v2141
  %v2144 = vunpack.c.l.s4 1983009808
  %v2145 = vunpack.c.0.s8 %v2144
  %v2146 = vlaneseq
  %v2147 = vshrl.u32 %v2146, 7
  %v2148 = vsub.s32 %v2145, %v2147
  %v2149 = vrot.slane %v2113, %v2148
  %v2150 = vcombine.high %v2149, %v2149
  %v2152 = vunpack.c.l.s4 1983009808
  %v2153 = vunpack.c.0.s8 %v2152
  %v2154 = vlaneseq
  %v2155 = vshrl.u32 %v2154, 7
  %v2156 = vsub.s32 %v2153, %v2155
  %v2157 = vrot.slane %v2114, %v2156
  %v2158 = vcombine.high %v2157, %v2157
  %v2160 = vunpack.c.l.s4 1983009808
  %v2161 = vunpack.c.0.s8 %v2160
  %v2162 = vlaneseq
  %v2163 = vshrl.u32 %v2162, 7
  %v2164 = vsub.s32 %v2161, %v2163
  %v2165 = vrot.slane %v2115, %v2164
  %v2166 = vcombine.high %v2165, %v2165
  %v2168 = vunpack.c.l.s4 1983009808
  %v2169 = vunpack.c.0.s8 %v2168
  %v2170 = vlaneseq
  %v2171 = vshrl.u32 %v2170, 7
  %v2172 = vsub.s32 %v2169, %v2171
  %v2173 = vrot.slane %v2116, %v2172
  %v2174 = vcombine.high %v2173, %v2173
  %v2176 = vunpack.c.l.s4 1983009808
  %v2177 = vunpack.c.0.s8 %v2176
  %v2178 = vlaneseq
  %v2179 = vshrl.u32 %v2178, 7
  %v2180 = vsub.s32 %v2177, %v2179
  %v2181 = vrot.slane %v2117, %v2180
  %v2182 = vcombine.high %v2181, %v2181
  %v2184 = vunpack.c.l.s4 1983009808
  %v2185 = vunpack.c.0.s8 %v2184
  %v2186 = vlaneseq
  %v2187 = vshrl.u32 %v2186, 7
  %v2188 = vsub.s32 %v2185, %v2187
  %v2189 = vrot.slane %v2118, %v2188
  %v2190 = vcombine.high %v2189, %v2189
  %v2191 = vrot.slane %v2133, 7
  %v2192 = vrot.slane %v2191, 2
  %v2193 = vrot.slane %v2134, 7
  %v2194 = vsel %vm624, %v2192, %v2193
  %v2195 = vrot.slane %v2141, 7
  %v2196 = vrot.slane %v2195, 2
  %v2197 = vrot.slane %v2142, 7
  %v2198 = vsel %vm624, %v2196, %v2197
  %v2199 = vrot.slane %v2149, 7
  %v2200 = vrot.slane %v2199, 2
  %v2201 = vrot.slane %v2150, 7
  %v2202 = vsel %vm624, %v2200, %v2201
  %v2203 = vrot.slane %v2157, 7
  %v2204 = vrot.slane %v2203, 2
  %v2205 = vrot.slane %v2158, 7
  %v2206 = vsel %vm624, %v2204, %v2205
  %v2207 = vrot.slane %v2165, 7
  %v2208 = vrot.slane %v2207, 2
  %v2209 = vrot.slane %v2166, 7
  %v2210 = vsel %vm624, %v2208, %v2209
  %v2211 = vrot.slane %v2173, 7
  %v2212 = vrot.slane %v2211, 2
  %v2213 = vrot.slane %v2174, 7
  %v2214 = vsel %vm624, %v2212, %v2213
  %v2215 = vrot.slane %v2181, 7
  %v2216 = vrot.slane %v2215, 2
  %v2217 = vrot.slane %v2182, 7
  %v2218 = vsel %vm624, %v2216, %v2217
  %v2219 = vrot.slane %v2189, 7
  %v2220 = vrot.slane %v2219, 2
  %v2221 = vrot.slane %v2190, 7
  %v2222 = vsel %vm624, %v2220, %v2221
  %s2223 = scalar_lea.vmem %s1, 512
  %v2224 = vld [vmem:[%s2223] sm:$0xf]
  %v2225 = vld [vmem:[%s2223 + $0x4] sm:$0xf]
  %v2226 = vld [vmem:[%s2223 + $0x8] sm:$0xf]
  %v2227 = vld [vmem:[%s2223 + $0xc] sm:$0xf]
  %v2228 = vld [vmem:[%s2223 + $0x10] sm:$0xf]
  %v2229 = vld [vmem:[%s2223 + $0x14] sm:$0xf]
  %v2230 = vld [vmem:[%s2223 + $0x18] sm:$0xf]
  %v2231 = vld [vmem:[%s2223 + $0x1c] sm:$0xf]
  %v2232 = vld [vmem:[%s2223 + $0x20] sm:$0xf]
  %v2233 = vld [vmem:[%s2223 + $0x24] sm:$0xf]
  %v2234 = vld [vmem:[%s2223 + $0x28] sm:$0xf]
  %v2235 = vld [vmem:[%s2223 + $0x2c] sm:$0xf]
  %v2236 = vld [vmem:[%s2223 + $0x30] sm:$0xf]
  %v2237 = vld [vmem:[%s2223 + $0x34] sm:$0xf]
  %v2238 = vld [vmem:[%s2223 + $0x38] sm:$0xf]
  %v2239 = vld [vmem:[%s2223 + $0x3c] sm:$0xf]
  %v2240 = vcombine.low %v2194, %v2198
  %v2241 = vcombine.low %v2202, %v2206
  %v2243 = vunpack.c.l.s4 1983009808
  %v2244 = vunpack.c.0.s8 %v2243
  %v2245 = vlaneseq
  %v2246 = vshrl.u32 %v2245, 7
  %v2247 = vsub.s32 %v2244, %v2246
  %v2248 = vrot.slane %v2240, %v2247
  %v2250 = vunpack.c.l.s4 1983009808
  %v2251 = vunpack.c.0.s8 %v2250
  %v2252 = vlaneseq
  %v2253 = vshrl.u32 %v2252, 7
  %v2254 = vsub.s32 %v2251, %v2253
  %v2255 = vrot.slane %v2241, %v2254
  %v2256 = vcombine.low %v2248, %v2255
  %v2257 = vcombine.low %v2210, %v2214
  %v2258 = vcombine.low %v2218, %v2222
  %v2260 = vunpack.c.l.s4 1983009808
  %v2261 = vunpack.c.0.s8 %v2260
  %v2262 = vlaneseq
  %v2263 = vshrl.u32 %v2262, 7
  %v2264 = vsub.s32 %v2261, %v2263
  %v2265 = vrot.slane %v2257, %v2264
  %v2267 = vunpack.c.l.s4 1983009808
  %v2268 = vunpack.c.0.s8 %v2267
  %v2269 = vlaneseq
  %v2270 = vshrl.u32 %v2269, 7
  %v2271 = vsub.s32 %v2268, %v2270
  %v2272 = vrot.slane %v2258, %v2271
  %v2273 = vcombine.low %v2265, %v2272
  %v2292 = vunpack.c.l.b16 %v2224
  %v2293 = vunpack.c.l.b16 %v2225
  %v2294 = vunpack.c.l.b16 %v2226
  %v2295 = vunpack.c.l.b16 %v2227
  %v2296 = vunpack.c.l.b16 %v2228
  %v2297 = vunpack.c.l.b16 %v2229
  %v2298 = vunpack.c.l.b16 %v2230
  %v2299 = vunpack.c.l.b16 %v2231
  %v2300 = vunpack.c.l.b16 %v2232
  %v2301 = vunpack.c.l.b16 %v2233
  %v2302 = vunpack.c.l.b16 %v2234
  %v2303 = vunpack.c.l.b16 %v2235
  %v2304 = vunpack.c.l.b16 %v2236
  %v2305 = vunpack.c.l.b16 %v2237
  %v2306 = vunpack.c.l.b16 %v2238
  %v2307 = vunpack.c.l.b16 %v2239
  %v2308 = vpack.c.b16 %v2293, %v2292
  %v2309 = vpack.c.b16 %v2295, %v2294
  %v2310 = vpack.c.b16 %v2297, %v2296
  %v2311 = vpack.c.b16 %v2299, %v2298
  %v2312 = vpack.c.b16 %v2301, %v2300
  %v2313 = vpack.c.b16 %v2303, %v2302
  %v2314 = vpack.c.b16 %v2305, %v2304
  %v2315 = vpack.c.b16 %v2307, %v2306
  %2324 = vmatprep.subr.bf16.mxu0 0
  %2325 = vmatpush1.bf16.msra.mxu0 %v2308
  %2326 = vmatprep.subr.bf16.mxu0 0
  %2327 = vmatpush1.bf16.msra.mxu0 %v2309
  %2328 = vmatprep.subr.bf16.mxu0 0
  %2329 = vmatpush1.bf16.msra.mxu0 %v2310
  %2330 = vmatprep.subr.bf16.mxu0 0
  %2331 = vmatpush1.bf16.msra.mxu0 %v2311
  %2332 = vmatprep.subr.bf16.mxu0 0
  %2333 = vmatpush1.bf16.msra.mxu0 %v2312
  %2334 = vmatprep.subr.bf16.mxu0 0
  %2335 = vmatpush1.bf16.msra.mxu0 %v2313
  %2336 = vmatprep.subr.bf16.mxu0 0
  %2337 = vmatpush1.bf16.msra.mxu0 %v2314
  %2338 = vmatprep.subr.bf16.mxu0 0
  %2339 = vmatpush1.bf16.msra.mxu0 %v2315
  %2340 = vmatprep.subr.bf16.mxu0 0
  %2341 = vmatpush1.bf16.msra.mxu0 0
  %2342 = vmatprep.subr.bf16.mxu0 0
  %2343 = vmatpush1.bf16.msra.mxu0 0
  %2344 = vmatprep.subr.bf16.mxu0 0
  %2345 = vmatpush1.bf16.msra.mxu0 0
  %2346 = vmatprep.subr.bf16.mxu0 0
  %2347 = vmatpush1.bf16.msra.mxu0 0
  %2348 = vmatprep.subr.bf16.mxu0 0
  %2349 = vmatpush1.bf16.msra.mxu0 0
  %2350 = vmatprep.subr.bf16.mxu0 0
  %2351 = vmatpush1.bf16.msra.mxu0 0
  %2352 = vmatprep.subr.bf16.mxu0 0
  %2353 = vmatpush1.bf16.msra.mxu0 0
  %2354 = vmatprep.subr.bf16.mxu0 0
  %2355 = vmatpush1.bf16.msra.mxu0 0
  %2356 = vmatprep.mubr.bf16.mxu0 0
  %2357 = vmatmul.mubr.bf16.gmra.mrb[0].mxu0 %v2256
  %v2358 = vpop.f32.mrb[0].mxu0
  %v2359 = vadd.f32 0.0, %v2358
  %v2360 = vpop.f32.mrb[0].mxu0
  %v2361 = vpop.f32.mrb[0].mxu0
  %v2362 = vadd.f32 0.0, %v2361
  %v2363 = vpop.f32.mrb[0].mxu0
  %2364 = vmatprep.mubr.bf16.mxu0 0
  %2365 = vmatmul.mubr.bf16.gmra.mrb[0].mxu0 %v2273
  %v2366 = vpop.f32.mrb[0].mxu0
  %v2367 = vadd.f32 0.0, %v2366
  %v2368 = vpop.f32.mrb[0].mxu0
  %v2369 = vpop.f32.mrb[0].mxu0
  %v2370 = vadd.f32 0.0, %v2369
  %v2371 = vpop.f32.mrb[0].mxu0
  %2372 = vdwg.mxu0
  %v2373 = vadd.f32 %v2107, %v2359
  %v2374 = vadd.f32 %v2108, %v2362
  %v2375 = vadd.f32 %v2109, %v2367
  %v2376 = vadd.f32 %v2110, %v2370
  %v2377 = vld [vmem:[%s2] sm:$0x1]
  %v2378 = vld [vmem:[%s3] sm:$0x1]
  %v2379 = vadd.f32 %v2373, %v2374
  %v2380 = vadd.f32 %v2379, %v2375
  %v2381 = vadd.f32 %v2380, %v2376
  %v2382 = vrot.slane %v2381, 4
  %v2383 = vadd.f32 %v2381, %v2382
  %v2384 = vrot.slane %v2383, 2
  %v2385 = vadd.f32 %v2383, %v2384
  %v2386 = vrot.slane %v2385, 1
  %v2387 = vadd.f32 %v2385, %v2386
  %v2388 = vrcp.pop 32.0
  %v2389 = vmul.f32 %v2387, %v2388
  %v2390 = vsub.f32 %v2373, %v2389
  %v2391 = vsub.f32 %v2374, %v2389
  %v2392 = vsub.f32 %v2375, %v2389
  %v2393 = vsub.f32 %v2376, %v2389
  %v2394 = vmul.f32 %v2390, %v2390
  %v2395 = vmul.f32 %v2391, %v2391
  %v2396 = vmul.f32 %v2392, %v2392
  %v2397 = vmul.f32 %v2393, %v2393
  %v2398 = vadd.f32 %v2394, %v2395
  %v2399 = vadd.f32 %v2398, %v2396
  %v2400 = vadd.f32 %v2399, %v2397
  %v2401 = vrot.slane %v2400, 4
  %v2402 = vadd.f32 %v2400, %v2401
  %v2403 = vrot.slane %v2402, 2
  %v2404 = vadd.f32 %v2402, %v2403
  %v2405 = vrot.slane %v2404, 1
  %v2406 = vadd.f32 %v2404, %v2405
  %v2407 = vmul.f32 %v2406, %v2388
  %v2408 = vadd.f32 %v2407, 1e-05
  %v2409 = vrsqrt.pop %v2408
  %v2410 = vmul.f32 %v2390, %v2409
  %v2411 = vmul.f32 %v2391, %v2409
  %v2412 = vmul.f32 %v2392, %v2409
  %v2413 = vmul.f32 %v2393, %v2409
  %v2415 = vlaneseq
  %v2416 = vshrl.u32 %v2415, 7
  %v2417 = vsub.s32 0, %v2416
  %v2418 = vrot.slane %v2377, %v2417
  %v2420 = vmul.f32 %v2410, %v2418
  %v2421 = vmul.f32 %v2411, %v2418
  %v2422 = vmul.f32 %v2412, %v2418
  %v2423 = vmul.f32 %v2413, %v2418
  %v2425 = vlaneseq
  %v2426 = vshrl.u32 %v2425, 7
  %v2427 = vsub.s32 0, %v2426
  %v2428 = vrot.slane %v2378, %v2427
  %v2430 = vadd.f32 %v2420, %v2428
  %v2431 = vadd.f32 %v2421, %v2428
  %v2432 = vadd.f32 %v2422, %v2428
  %v2433 = vadd.f32 %v2423, %v2428
  %v2434 = vld [vmem:[%s4] sm:$0xf]
  %v2435 = vld [vmem:[%s4 + $0x4] sm:$0xf]
  %v2436 = vld [vmem:[%s4 + $0x8] sm:$0xf]
  %v2437 = vld [vmem:[%s4 + $0xc] sm:$0xf]
  %v2438 = vld [vmem:[%s5] sm:$0xf]
  %v2439 = vld [vmem:[%s5 + $0x4] sm:$0xf]
  %v2440 = vld [vmem:[%s5 + $0x8] sm:$0xf]
  %v2441 = vld [vmem:[%s5 + $0xc] sm:$0xf]
  %v2442 = vld [vmem:[%s5 + $0x10] sm:$0xf]
  %v2443 = vld [vmem:[%s5 + $0x14] sm:$0xf]
  %v2444 = vld [vmem:[%s5 + $0x18] sm:$0xf]
  %v2445 = vld [vmem:[%s5 + $0x1c] sm:$0xf]
  %v2450 = vunpack.c.l.b16 %v2434
  %v2451 = vunpack.c.l.b16 %v2435
  %v2452 = vunpack.c.l.b16 %v2436
  %v2453 = vunpack.c.l.b16 %v2437
  %v2454 = vpack.c.b16 %v2451, %v2450
  %v2455 = vpack.c.b16 %v2453, %v2452
  %v2464 = vunpack.c.l.b16 %v2438
  %v2465 = vunpack.c.l.b16 %v2439
  %v2466 = vunpack.c.l.b16 %v2440
  %v2467 = vunpack.c.l.b16 %v2441
  %v2468 = vunpack.c.l.b16 %v2442
  %v2469 = vunpack.c.l.b16 %v2443
  %v2470 = vunpack.c.l.b16 %v2444
  %v2471 = vunpack.c.l.b16 %v2445
  %v2472 = vpack.c.b16 %v2465, %v2464
  %v2473 = vpack.c.b16 %v2467, %v2466
  %v2474 = vpack.c.b16 %v2469, %v2468
  %v2475 = vpack.c.b16 %v2471, %v2470
  %vm2480 = vcmask 523264
  %v2482 = vsel %vm2480, %v2454, 0
  %v2485 = vsel %vm2480, %v2455, 0
  %2487 = vmatprep.subr.bf16.mxu0 0
  %2488 = vmatpush1.bf16.msra.mxu0 %v2472
  %2489 = vmatprep.subr.bf16.mxu0 0
  %2490 = vmatpush1.bf16.msra.mxu0 %v2473
  %2491 = vmatprep.subr.bf16.mxu0 0
  %2492 = vmatpush1.bf16.msra.mxu0 %v2474
  %2493 = vmatprep.subr.bf16.mxu0 0
  %2494 = vmatpush1.bf16.msra.mxu0 %v2475
  %2495 = vmatprep.subr.bf16.mxu0 0
  %2496 = vmatpush1.bf16.msra.mxu0 0
  %2497 = vmatprep.subr.bf16.mxu0 0
  %2498 = vmatpush1.bf16.msra.mxu0 0
  %2499 = vmatprep.subr.bf16.mxu0 0
  %2500 = vmatpush1.bf16.msra.mxu0 0
  %2501 = vmatprep.subr.bf16.mxu0 0
  %2502 = vmatpush1.bf16.msra.mxu0 0
  %2503 = vmatprep.subr.bf16.mxu0 0
  %2504 = vmatpush1.bf16.msra.mxu0 0
  %2505 = vmatprep.subr.bf16.mxu0 0
  %2506 = vmatpush1.bf16.msra.mxu0 0
  %2507 = vmatprep.subr.bf16.mxu0 0
  %2508 = vmatpush1.bf16.msra.mxu0 0
  %2509 = vmatprep.subr.bf16.mxu0 0
  %2510 = vmatpush1.bf16.msra.mxu0 0
  %2511 = vmatprep.subr.bf16.mxu0 0
  %2512 = vmatpush1.bf16.msra.mxu0 0
  %2513 = vmatprep.subr.bf16.mxu0 0
  %2514 = vmatpush1.bf16.msra.mxu0 0
  %2515 = vmatprep.subr.bf16.mxu0 0
  %2516 = vmatpush1.bf16.msra.mxu0 0
  %2517 = vmatprep.subr.bf16.mxu0 0
  %2518 = vmatpush1.bf16.msra.mxu0 0
  %2519 = vmatprep.mubr.bf16.mxu0 0
  %2520 = vmatmul.mubr.bf16.gmra.mrb[0].mxu0 %v2482
  %v2521 = vpop.f32.mrb[0].mxu0
  %v2522 = vadd.f32 0.0, %v2521
  %v2523 = vpop.f32.mrb[0].mxu0
  %v2524 = vpop.f32.mrb[0].mxu0
  %v2525 = vadd.f32 0.0, %v2524
  %v2526 = vpop.f32.mrb[0].mxu0
  %2527 = vmatprep.mubr.bf16.mxu0 0
  %2528 = vmatmul.mubr.bf16.gmra.mrb[0].mxu0 %v2485
  %v2529 = vpop.f32.mrb[0].mxu0
  %v2530 = vadd.f32 0.0, %v2529
  %v2531 = vpop.f32.mrb[0].mxu0
  %v2532 = vpop.f32.mrb[0].mxu0
  %v2533 = vadd.f32 0.0, %v2532
  %v2534 = vpop.f32.mrb[0].mxu0
  %2535 = vdwg.mxu0
  %v2536 = vadd.f32 %v2430, %v2522
  %v2537 = vadd.f32 %v2431, %v2525
  %v2538 = vadd.f32 %v2432, %v2530
  %v2539 = vadd.f32 %v2433, %v2533
  %vm2540 = vcmp.ge.f32.partialorder %v2536, 0.0
  %vm2541 = vcmp.ge.f32.partialorder %v2537, 0.0
  %vm2542 = vcmp.ge.f32.partialorder %v2538, 0.0
  %vm2543 = vcmp.ge.f32.partialorder %v2539, 0.0
  %v2544 = vmul.f32 %v2536, 0.2
  %v2545 = vmul.f32 %v2537, 0.2
  %v2546 = vmul.f32 %v2538, 0.2
  %v2547 = vmul.f32 %v2539, 0.2
  %v2548 = vsel %vm2540, %v2536, %v2544
  %v2549 = vsel %vm2541, %v2537, %v2545
  %v2550 = vsel %vm2542, %v2538, %v2546
  %v2551 = vsel %vm2543, %v2539, %v2547
  %v2552 = vpack.c.bf16 %v2549, %v2548
  %v2553 = vpack.c.bf16 %v2551, %v2550
  %v2556 = vunpack.c.l.b16 %v2552
  %v2557 = vunpack.c.h.b16 %v2552
  %v2558 = vunpack.c.l.b16 %v2553
  %v2559 = vunpack.c.h.b16 %v2553
  %v2560 = vpack.c.b16 %v2556, %v2556
  %v2561 = vpack.c.b16 %v2557, %v2557
  %v2562 = vpack.c.b16 %v2558, %v2558
  %v2563 = vpack.c.b16 %v2559, %v2559
  %2568 = vst [vmem:[%s6] sm:$0xf] %v2560
  %2569 = vst [vmem:[%s6 + $0x4] sm:$0xf] %v2561
  %2570 = vst [vmem:[%s6 + $0x8] sm:$0xf] %v2562
  %2571 = vst [vmem:[%s6 + $0xc] sm:$0xf] %v2563
  // Predicated region
  $region26: #{discriminator_v2.7} parent=0 // pred_check
    _
  $region27: #{discriminator_v2.7} parent=0 // pred_check_branch
    %2573 = sbr.rel (0) target = $region29
  $region28: #{discriminator_v2.7} parent=0 // pred_region
    _
  $region29: #{discriminator_v2.7} parent=0 // pred_fallthru
    _
  // Predicated region
  $region30: #{discriminator_v2.7} parent=0 // pred_check
    _
  $region31: #{discriminator_v2.7} parent=0 // pred_check_branch
    %2575 = sbr.rel (0) target = $region33
  $region32: #{discriminator_v2.7} parent=0 // pred_region
    _
  $region33: #{discriminator_v2.7} parent=0 // pred_fallthru
    _

// kernel: discriminator_v2.9
$region0: #{discriminator_v2.9}
  #allocation0 [shape = 'u32[]', space=smem, size = 0x4, offset = 0x4, fixed_abs, tag = 'smem constant byte address 0x4 - core index']
  #allocation1 [shape = 'u32[144,128]{1,0:T(1,128)}', space=vmem, size = 0x12000, scoped, tag = 'internal scratch']
  %s0 = inlined_call_operand.vmem [shape: bf16[2,4,4,256], index: 0, kind: input, shape index: {}]
  %s1 = inlined_call_operand.vmem [shape: bf16[9,256,256], index: 1, kind: input, shape index: {}]
  %s2 = inlined_call_operand.vmem [shape: f32[1,256], index: 2, kind: input, shape index: {}]
  %s3 = inlined_call_operand.vmem [shape: f32[1,256], index: 3, kind: input, shape index: {}]
  %s4 = inlined_call_operand.vmem [shape: bf16[8,128], index: 4, kind: input, shape index: {}]
  %s5 = inlined_call_operand.vmem [shape: bf16[128,256], index: 5, kind: input, shape index: {}]
  %s6 = inlined_call_operand.vmem [shape: bf16[8,256], index: 6, kind: output, shape index: {}]
  %s7 = sld [smem:[#allocation0]]
  $region139: #{discriminator_v2.9} parent=0
    _
  %s9 = ssub.s32 1, %s7
  %s10 = scalar_select 0, %s9, %s7
  $region1: #{discriminator_v2.9} parent=0
    #allocation2 [shape = 'u8[1179648]{0}', space=vmem, size = 0x120000, scoped, tag = 'input window, operand 1']
    #allocation3 [shape = 'u8[65536]{0}', space=vmem, size = 0x10000, scoped, tag = 'input window, operand 5']
    loop: start=0, step=1, limit=4
    $region2: #{discriminator_v2.9} parent=1 // loop_pre_header
      _
    $region3: #{discriminator_v2.9} parent=1 // loop_header
      %s12 = sphi 0, %s16
      %p13 = scmp.ge.s32.totalorder %s12, 4
      %s20 = sphi 0, %s20
      %s22 = sphi 0, %s20
      %s23 = sphi 0, %s22
      %s37 = sphi 0, %s23
      %s43 = sphi 0, %s45
      %s46 = sphi 0, %s43
      %s47 = sphi 0, %s46
      %s63 = sphi 0, %s47
      %s69 = sphi 0, %s71
      %s72 = sphi 0, %s69
      %s73 = sphi 0, %s72
      %s89 = sphi 0, %s73
      %s95 = sphi 0, %s97
      %s98 = sphi 0, %s95
      %s99 = sphi 0, %s98
      %s115 = sphi 0, %s99
      %s119 = sphi 0, %s119
      %s121 = sphi 0, %s119
      %s122 = sphi 0, %s121
      %s136 = sphi 0, %s122
      %s142 = sphi 0, %s144
      %s145 = sphi 0, %s142
      %s146 = sphi 0, %s145
      %s162 = sphi 0, %s146
      %s168 = sphi 0, %s170
      %s171 = sphi 0, %s168
      %s172 = sphi 0, %s171
      %s188 = sphi 0, %s172
    $region4: #{discriminator_v2.9} parent=1 // loop_header_branch
      %15 = sbr.rel (%p13) target = $region8
    $region5: #{discriminator_v2.9} parent=1 // loop_body
      %s17 = ssub.s32 %s12, 1
      %s18 = ssub.s32 %s12, 2
      %s19 = sadd.s32 %s12, 1
      %s21 = sadd.s32 %s20, 1
      %p24 = scmp.eq.s32.totalorder %s12, 1
      %p25 = scmp.ne.s32.totalorder %s20, %s22
      %p26 = scmp.eq.s32.totalorder %s12, 0
      %p27 = por %p25, %p26
      %p28 = scmp.ne.s32.totalorder %s20, %s22
      %p29 = scmp.eq.s32.totalorder %s17, 1
      %p30 = por %p28, %p29
      %p31 = scmp.ne.s32.totalorder %s22, %s23
      %p32 = scmp.eq.s32.totalorder %s17, 0
      %p33 = por %p31, %p32
      %p34 = scmp.ne.s32.totalorder %s22, %s23
      %p35 = scmp.eq.s32.totalorder %s18, 1
      %p36 = por %p34, %p35
      %p38 = scmp.ne.s32.totalorder %s23, %s37
      %p39 = scmp.eq.s32.totalorder %s18, 0
      %p40 = por %p38, %p39
      %s41 = ssub.s32 %s12, %s19
      %p42 = scmp.eq.s32.totalorder %s41, 0
      %s44 = sadd.s32 %s43, 1
      %s45 = scalar_select %p42, %s43, %s44
      %p48 = pneg %p42
      %p49 = scmp.eq.s32.totalorder %s12, 1
      %p50 = por %p48, %p49
      %p51 = scmp.ne.s32.totalorder %s43, %s46
      %p52 = scmp.eq.s32.totalorder %s12, 0
      %p53 = por %p51, %p52
      %p54 = scmp.ne.s32.totalorder %s43, %s46
      %p55 = scmp.eq.s32.totalorder %s17, 1
      %p56 = por %p54, %p55
      %p57 = scmp.ne.s32.totalorder %s46, %s47
      %p58 = scmp.eq.s32.totalorder %s17, 0
      %p59 = por %p57, %p58
      %p60 = scmp.ne.s32.totalorder %s46, %s47
      %p61 = scmp.eq.s32.totalorder %s18, 1
      %p62 = por %p60, %p61
      %p64 = scmp.ne.s32.totalorder %s47, %s63
      %p65 = scmp.eq.s32.totalorder %s18, 0
      %p66 = por %p64, %p65
      %s67 = ssub.s32 %s12, %s19
      %p68 = scmp.eq.s32.totalorder %s67, 0
      %s70 = sadd.s32 %s69, 1
      %s71 = scalar_select %p68, %s69, %s70
      %p74 = pneg %p68
      %p75 = scmp.eq.s32.totalorder %s12, 1
      %p76 = por %p74, %p75
      %p77 = scmp.ne.s32.totalorder %s69, %s72
      %p78 = scmp.eq.s32.totalorder %s12, 0
      %p79 = por %p77, %p78
      %p80 = scmp.ne.s32.totalorder %s69, %s72
      %p81 = scmp.eq.s32.totalorder %s17, 1
      %p82 = por %p80, %p81
      %p83 = scmp.ne.s32.totalorder %s72, %s73
      %p84 = scmp.eq.s32.totalorder %s17, 0
      %p85 = por %p83, %p84
      %p86 = scmp.ne.s32.totalorder %s72, %s73
      %p87 = scmp.eq.s32.totalorder %s18, 1
      %p88 = por %p86, %p87
      %p90 = scmp.ne.s32.totalorder %s73, %s89
      %p91 = scmp.eq.s32.totalorder %s18, 0
      %p92 = por %p90, %p91
      %s93 = ssub.s32 %s12, %s19
      %p94 = scmp.eq.s32.totalorder %s93, 0
      %s96 = sadd.s32 %s95, 1
      %s97 = scalar_select %p94, %s95, %s96
      %p100 = pneg %p94
      %p101 = scmp.eq.s32.totalorder %s12, 1
      %p102 = por %p100, %p101
      %p103 = scmp.ne.s32.totalorder %s95, %s98
      %p104 = scmp.eq.s32.totalorder %s12, 0
      %p105 = por %p103, %p104
      %p106 = scmp.ne.s32.totalorder %s95, %s98
      %p107 = scmp.eq.s32.totalorder %s17, 1
      %p108 = por %p106, %p107
      %p109 = scmp.ne.s32.totalorder %s98, %s99
      %p110 = scmp.eq.s32.totalorder %s17, 0
      %p111 = por %p109, %p110
      %p112 = scmp.ne.s32.totalorder %s98, %s99
      %p113 = scmp.eq.s32.totalorder %s18, 1
      %p114 = por %p112, %p113
      %p116 = scmp.ne.s32.totalorder %s99, %s115
      %p117 = scmp.eq.s32.totalorder %s18, 0
      %p118 = por %p116, %p117
      %s120 = sadd.s32 %s119, 1
      %p123 = scmp.eq.s32.totalorder %s12, 1
      %p124 = scmp.ne.s32.totalorder %s119, %s121
      %p125 = scmp.eq.s32.totalorder %s12, 0
      %p126 = por %p124, %p125
      %p127 = scmp.ne.s32.totalorder %s119, %s121
      %p128 = scmp.eq.s32.totalorder %s17, 1
      %p129 = por %p127, %p128
      %p130 = scmp.ne.s32.totalorder %s121, %s122
      %p131 = scmp.eq.s32.totalorder %s17, 0
      %p132 = por %p130, %p131
      %p133 = scmp.ne.s32.totalorder %s121, %s122
      %p134 = scmp.eq.s32.totalorder %s18, 1
      %p135 = por %p133, %p134
      %p137 = scmp.ne.s32.totalorder %s122, %s136
      %p138 = scmp.eq.s32.totalorder %s18, 0
      %p139 = por %p137, %p138
      %s140 = ssub.s32 %s12, %s19
      %p141 = scmp.eq.s32.totalorder %s140, 0
      %s143 = sadd.s32 %s142, 1
      %s144 = scalar_select %p141, %s142, %s143
      %p147 = pneg %p141
      %p148 = scmp.eq.s32.totalorder %s12, 1
      %p149 = por %p147, %p148
      %p150 = scmp.ne.s32.totalorder %s142, %s145
      %p151 = scmp.eq.s32.totalorder %s12, 0
      %p152 = por %p150, %p151
      %p153 = scmp.ne.s32.totalorder %s142, %s145
      %p154 = scmp.eq.s32.totalorder %s17, 1
      %p155 = por %p153, %p154
      %p156 = scmp.ne.s32.totalorder %s145, %s146
      %p157 = scmp.eq.s32.totalorder %s17, 0
      %p158 = por %p156, %p157
      %p159 = scmp.ne.s32.totalorder %s145, %s146
      %p160 = scmp.eq.s32.totalorder %s18, 1
      %p161 = por %p159, %p160
      %p163 = scmp.ne.s32.totalorder %s146, %s162
      %p164 = scmp.eq.s32.totalorder %s18, 0
      %p165 = por %p163, %p164
      %s166 = ssub.s32 %s12, %s19
      %p167 = scmp.eq.s32.totalorder %s166, 0
      %s169 = sadd.s32 %s168, 1
      %s170 = scalar_select %p167, %s168, %s169
      %p173 = pneg %p167
      %p174 = scmp.eq.s32.totalorder %s12, 1
      %p175 = por %p173, %p174
      %p176 = scmp.ne.s32.totalorder %s168, %s171
      %p177 = scmp.eq.s32.totalorder %s12, 0
      %p178 = por %p176, %p177
      %p179 = scmp.ne.s32.totalorder %s168, %s171
      %p180 = scmp.eq.s32.totalorder %s17, 1
      %p181 = por %p179, %p180
      %p182 = scmp.ne.s32.totalorder %s171, %s172
      %p183 = scmp.eq.s32.totalorder %s17, 0
      %p184 = por %p182, %p183
      %p185 = scmp.ne.s32.totalorder %s171, %s172
      %p186 = scmp.eq.s32.totalorder %s18, 1
      %p187 = por %p185, %p186
      %p189 = scmp.ne.s32.totalorder %s172, %s188
      %p190 = scmp.eq.s32.totalorder %s18, 0
      %p191 = por %p189, %p190
      %p192 = scmp.le.s32.totalorder 1, %s12
      %p193 = scmp.lt.s32.totalorder %s12, 3
      %p194 = pnand %p192, %p193
      %p195 = pneg %p194
      // Predicated region
      $region9: #{discriminator_v2.9} parent=5 // pred_check
        _
      $region10: #{discriminator_v2.9} parent=5 // pred_check_branch
        %197 = sbr.rel (%p194) target = $region12
      $region11: #{discriminator_v2.9} parent=5 // pred_region
        %s198 = ssub.s32 %s12, 1
        // Predicated region
        $region13: #{discriminator_v2.9} parent=11 // pred_check
          %p199 = pneg %p33
        $region14: #{discriminator_v2.9} parent=11 // pred_check_branch
          %201 = sbr.rel (%p199) target = $region16
        $region15: #{discriminator_v2.9} parent=11 // pred_region
          _
        $region16: #{discriminator_v2.9} parent=11 // pred_fallthru
          _
        // Predicated region
        $region17: #{discriminator_v2.9} parent=11 // pred_check
          %p202 = pneg %p132
        $region18: #{discriminator_v2.9} parent=11 // pred_check_branch
          %204 = sbr.rel (%p202) target = $region20
        $region19: #{discriminator_v2.9} parent=11 // pred_region
          _
        $region20: #{discriminator_v2.9} parent=11 // pred_fallthru
          _
      $region12: #{discriminator_v2.9} parent=5 // pred_fallthru
        _
      %p205 = scmp.lt.s32.totalorder %s12, 2
      // Predicated region
      $region21: #{discriminator_v2.9} parent=5 // pred_check
        %p206 = pneg %p205
      $region22: #{discriminator_v2.9} parent=5 // pred_check_branch
        %208 = sbr.rel (%p206) target = $region24
      $region23: #{discriminator_v2.9} parent=5 // pred_region
        // Predicated region
        $region25: #{discriminator_v2.9} parent=23 // pred_check
          %p209 = pneg %p53
        $region26: #{discriminator_v2.9} parent=23 // pred_check_branch
          %211 = sbr.rel (%p209) target = $region28
        $region27: #{discriminator_v2.9} parent=23 // pred_region
          %s212 = sand.u32 %s43, 1
          %s213 = sand.u32 %s43, 1
          %s214 = smul.addr %s213, 1152
          %s215 = scalar_lea.vmem [#allocation2], %s214
          %s216 = smul.addr %s12, 4
          %s217 = scalar_lea.vmem %s1, %s216
          // Predicated region
          $region29: #{discriminator_v2.9} parent=27 // pred_check
            _
          $region30: #{discriminator_v2.9} parent=27 // pred_check_branch
            %219 = sbr.rel (0) target = $region32
          $region31: #{discriminator_v2.9} parent=27 // pred_region
            // Predicated region
            $region33: #{discriminator_v2.9} parent=31 // pred_check
              _
            $region34: #{discriminator_v2.9} parent=31 // pred_check_branch
              %221 = sbr.rel target = $region36
            $region35: #{discriminator_v2.9} parent=31 // pred_region
              // Predicated region
              $region48: #{discriminator_v2.9} parent=35 // pred_check
                _
              $region49: #{discriminator_v2.9} parent=35 // pred_check_branch
                %810 = sbr.rel (0) target = $region51
              $region50: #{discriminator_v2.9} parent=35 // pred_region
                loop: start=0, step=1, limit=1
                $region52: #{discriminator_v2.9} parent=50 // loop_pre_header
                  _
                $region53: #{discriminator_v2.9} parent=50 // loop_header
                  %s812 = sphi 0, %s816
                  %p813 = scmp.ge.s32.totalorder %s812, 1
                  %s817 = sphi %s217, %s217
                  %s818 = sphi %s215, %s215
                $region54: #{discriminator_v2.9} parent=50 // loop_header_branch
                  %815 = sbr.rel (%p813) target = $region58
                $region55: #{discriminator_v2.9} parent=50 // loop_body
                  _
                $region56: #{discriminator_v2.9} parent=50 // loop_footer
                  %s816 = sadd.s32 1, %s812
                $region57: #{discriminator_v2.9} parent=50 // loop_footer_branch
                  %811 = sbr.rel target = $region53
                $region58: #{discriminator_v2.9} parent=50 // loop_exit
                  _
                loop: start=0, step=1, limit=1
                $region59: #{discriminator_v2.9} parent=50 // loop_pre_header
                  _
                $region60: #{discriminator_v2.9} parent=50 // loop_header
                  %s821 = sphi 0, %s825
                  %p822 = scmp.ge.s32.totalorder %s821, 1
                  %s826 = sphi %s217, %s217
                  %s827 = sphi %s215, %s215
                $region61: #{discriminator_v2.9} parent=50 // loop_header_branch
                  %824 = sbr.rel (%p822) target = $region65
                $region62: #{discriminator_v2.9} parent=50 // loop_body
                  %v828 = vld [vmem:[%s826] sm:$0xf]
                  %829 = vst [vmem:[%s827] sm:$0xf] %v828
                  %v830 = vld [vmem:[%s826 + $0x8] sm:$0xf]
                  %831 = vst [vmem:[%s827 + $0x4] sm:$0xf] %v830
                  %v832 = vld [vmem:[%s826 + $0x10] sm:$0xf]
                  %833 = vst [vmem:[%s827 + $0x8] sm:$0xf] %v832
                  %v834 = vld [vmem:[%s826 + $0x18] sm:$0xf]
                  %835 = vst [vmem:[%s827 + $0xc] sm:$0xf] %v834
                  %v836 = vld [vmem:[%s826 + $0x20] sm:$0xf]
                  %837 = vst [vmem:[%s827 + $0x10] sm:$0xf] %v836
                  %v838 = vld [vmem:[%s826 + $0x28] sm:$0xf]
                  %839 = vst [vmem:[%s827 + $0x14] sm:$0xf] %v838
                  %v840 = vld [vmem:[%s826 + $0x30] sm:$0xf]
                  %841 = vst [vmem:[%s827 + $0x18] sm:$0xf] %v840
                  %v842 = vld [vmem:[%s826 + $0x38] sm:$0xf]
                  %843 = vst [vmem:[%s827 + $0x1c] sm:$0xf] %v842
                  %v844 = vld [vmem:[%s826 + $0x40] sm:$0xf]
                  %845 = vst [vmem:[%s827 + $0x20] sm:$0xf] %v844
                  %v846 = vld [vmem:[%s826 + $0x48] sm:$0xf]
                  %847 = vst [vmem:[%s827 + $0x24] sm:$0xf] %v846
                  %v848 = vld [vmem:[%s826 + $0x50] sm:$0xf]
                  %849 = vst [vmem:[%s827 + $0x28] sm:$0xf] %v848
                  %v850 = vld [vmem:[%s826 + $0x58] sm:$0xf]
                  %851 = vst [vmem:[%s827 + $0x2c] sm:$0xf] %v850
                  %v852 = vld [vmem:[%s826 + $0x60] sm:$0xf]
                  %853 = vst [vmem:[%s827 + $0x30] sm:$0xf] %v852
                  %v854 = vld [vmem:[%s826 + $0x68] sm:$0xf]
                  %855 = vst [vmem:[%s827 + $0x34] sm:$0xf] %v854
                  %v856 = vld [vmem:[%s826 + $0x70] sm:$0xf]
                  %857 = vst [vmem:[%s827 + $0x38] sm:$0xf] %v856
                  %v858 = vld [vmem:[%s826 + $0x78] sm:$0xf]
                  %859 = vst [vmem:[%s827 + $0x3c] sm:$0xf] %v858
                  %v860 = vld [vmem:[%s826 + $0x80] sm:$0xf]
                  %861 = vst [vmem:[%s827 + $0x40] sm:$0xf] %v860
                  %v862 = vld [vmem:[%s826 + $0x88] sm:$0xf]
                  %863 = vst [vmem:[%s827 + $0x44] sm:$0xf] %v862
                  %v864 = vld [vmem:[%s826 + $0x90] sm:$0xf]
                  %865 = vst [vmem:[%s827 + $0x48] sm:$0xf] %v864
                  %v866 = vld [vmem:[%s826 + $0x98] sm:$0xf]
                  %867 = vst [vmem:[%s827 + $0x4c] sm:$0xf] %v866
                  %v868 = vld [vmem:[%s826 + $0xa0] sm:$0xf]
                  %869 = vst [vmem:[%s827 + $0x50] sm:$0xf] %v868
                  %v870 = vld [vmem:[%s826 + $0xa8] sm:$0xf]
                  %871 = vst [vmem:[%s827 + $0x54] sm:$0xf] %v870
                  %v872 = vld [vmem:[%s826 + $0xb0] sm:$0xf]
                  %873 = vst [vmem:[%s827 + $0x58] sm:$0xf] %v872
                  %v874 = vld [vmem:[%s826 + $0xb8] sm:$0xf]
                  %875 = vst [vmem:[%s827 + $0x5c] sm:$0xf] %v874
                  %v876 = vld [vmem:[%s826 + $0xc0] sm:$0xf]
                  %877 = vst [vmem:[%s827 + $0x60] sm:$0xf] %v876
                  %v878 = vld [vmem:[%s826 + $0xc8] sm:$0xf]
                  %879 = vst [vmem:[%s827 + $0x64] sm:$0xf] %v878
                  %v880 = vld [vmem:[%s826 + $0xd0] sm:$0xf]
                  %881 = vst [vmem:[%s827 + $0x68] sm:$0xf] %v880
                  %v882 = vld [vmem:[%s826 + $0xd8] sm:$0xf]
                  %883 = vst [vmem:[%s827 + $0x6c] sm:$0xf] %v882
                  %v884 = vld [vmem:[%s826 + $0xe0] sm:$0xf]
                  %885 = vst [vmem:[%s827 + $0x70] sm:$0xf] %v884
                  %v886 = vld [vmem:[%s826 + $0xe8] sm:$0xf]
                  %887 = vst [vmem:[%s827 + $0x74] sm:$0xf] %v886
                  %v888 = vld [vmem:[%s826 + $0xf0] sm:$0xf]
                  %889 = vst [vmem:[%s827 + $0x78] sm:$0xf] %v888
                  %v890 = vld [vmem:[%s826 + $0xf8] sm:$0xf]
                  %891 = vst [vmem:[%s827 + $0x7c] sm:$0xf] %v890
                  %v892 = vld [vmem:[%s826 + $0x100] sm:$0xf]
                  %893 = vst [vmem:[%s827 + $0x80] sm:$0xf] %v892
                  %v894 = vld [vmem:[%s826 + $0x108] sm:$0xf]
                  %895 = vst [vmem:[%s827 + $0x84] sm:$0xf] %v894
                  %v896 = vld [vmem:[%s826 + $0x110] sm:$0xf]
                  %897 = vst [vmem:[%s827 + $0x88] sm:$0xf] %v896
                  %v898 = vld [vmem:[%s826 + $0x118] sm:$0xf]
                  %899 = vst [vmem:[%s827 + $0x8c] sm:$0xf] %v898
                  %v900 = vld [vmem:[%s826 + $0x120] sm:$0xf]
                  %901 = vst [vmem:[%s827 + $0x90] sm:$0xf] %v900
                  %v902 = vld [vmem:[%s826 + $0x128] sm:$0xf]
                  %903 = vst [vmem:[%s827 + $0x94] sm:$0xf] %v902
                  %v904 = vld [vmem:[%s826 + $0x130] sm:$0xf]
                  %905 = vst [vmem:[%s827 + $0x98] sm:$0xf] %v904
                  %v906 = vld [vmem:[%s826 + $0x138] sm:$0xf]
                  %907 = vst [vmem:[%s827 + $0x9c] sm:$0xf] %v906
                  %v908 = vld [vmem:[%s826 + $0x140] sm:$0xf]
                  %909 = vst [vmem:[%s827 + $0xa0] sm:$0xf] %v908
                  %v910 = vld [vmem:[%s826 + $0x148] sm:$0xf]
                  %911 = vst [vmem:[%s827 + $0xa4] sm:$0xf] %v910
                  %v912 = vld [vmem:[%s826 + $0x150] sm:$0xf]
                  %913 = vst [vmem:[%s827 + $0xa8] sm:$0xf] %v912
                  %v914 = vld [vmem:[%s826 + $0x158] sm:$0xf]
                  %915 = vst [vmem:[%s827 + $0xac] sm:$0xf] %v914
                  %v916 = vld [vmem:[%s826 + $0x160] sm:$0xf]
                  %917 = vst [vmem:[%s827 + $0xb0] sm:$0xf] %v916
                  %v918 = vld [vmem:[%s826 + $0x168] sm:$0xf]
                  %919 = vst [vmem:[%s827 + $0xb4] sm:$0xf] %v918
                  %v920 = vld [vmem:[%s826 + $0x170] sm:$0xf]
                  %921 = vst [vmem:[%s827 + $0xb8] sm:$0xf] %v920
                  %v922 = vld [vmem:[%s826 + $0x178] sm:$0xf]
                  %923 = vst [vmem:[%s827 + $0xbc] sm:$0xf] %v922
                  %v924 = vld [vmem:[%s826 + $0x180] sm:$0xf]
                  %925 = vst [vmem:[%s827 + $0xc0] sm:$0xf] %v924
                  %v926 = vld [vmem:[%s826 + $0x188] sm:$0xf]
                  %927 = vst [vmem:[%s827 + $0xc4] sm:$0xf] %v926
                  %v928 = vld [vmem:[%s826 + $0x190] sm:$0xf]
                  %929 = vst [vmem:[%s827 + $0xc8] sm:$0xf] %v928
                  %v930 = vld [vmem:[%s826 + $0x198] sm:$0xf]
                  %931 = vst [vmem:[%s827 + $0xcc] sm:$0xf] %v930
                  %v932 = vld [vmem:[%s826 + $0x1a0] sm:$0xf]
                  %933 = vst [vmem:[%s827 + $0xd0] sm:$0xf] %v932
                  %v934 = vld [vmem:[%s826 + $0x1a8] sm:$0xf]
                  %935 = vst [vmem:[%s827 + $0xd4] sm:$0xf] %v934
                  %v936 = vld [vmem:[%s826 + $0x1b0] sm:$0xf]
                  %937 = vst [vmem:[%s827 + $0xd8] sm:$0xf] %v936
                  %v938 = vld [vmem:[%s826 + $0x1b8] sm:$0xf]
                  %939 = vst [vmem:[%s827 + $0xdc] sm:$0xf] %v938
                  %v940 = vld [vmem:[%s826 + $0x1c0] sm:$0xf]
                  %941 = vst [vmem:[%s827 + $0xe0] sm:$0xf] %v940
                  %v942 = vld [vmem:[%s826 + $0x1c8] sm:$0xf]
                  %943 = vst [vmem:[%s827 + $0xe4] sm:$0xf] %v942
                  %v944 = vld [vmem:[%s826 + $0x1d0] sm:$0xf]
                  %945 = vst [vmem:[%s827 + $0xe8] sm:$0xf] %v944
                  %v946 = vld [vmem:[%s826 + $0x1d8] sm:$0xf]
                  %947 = vst [vmem:[%s827 + $0xec] sm:$0xf] %v946
                  %v948 = vld [vmem:[%s826 + $0x1e0] sm:$0xf]
                  %949 = vst [vmem:[%s827 + $0xf0] sm:$0xf] %v948
                  %v950 = vld [vmem:[%s826 + $0x1e8] sm:$0xf]
                  %951 = vst [vmem:[%s827 + $0xf4] sm:$0xf] %v950
                  %v952 = vld [vmem:[%s826 + $0x1f0] sm:$0xf]
                  %953 = vst [vmem:[%s827 + $0xf8] sm:$0xf] %v952
                  %v954 = vld [vmem:[%s826 + $0x1f8] sm:$0xf]
                  %955 = vst [vmem:[%s827 + $0xfc] sm:$0xf] %v954
                  %v956 = vld [vmem:[%s826 + $0x200] sm:$0xf]
                  %957 = vst [vmem:[%s827 + $0x100] sm:$0xf] %v956
                  %v958 = vld [vmem:[%s826 + $0x208] sm:$0xf]
                  %959 = vst [vmem:[%s827 + $0x104] sm:$0xf] %v958
                  %v960 = vld [vmem:[%s826 + $0x210] sm:$0xf]
                  %961 = vst [vmem:[%s827 + $0x108] sm:$0xf] %v960
                  %v962 = vld [vmem:[%s826 + $0x218] sm:$0xf]
                  %963 = vst [vmem:[%s827 + $0x10c] sm:$0xf] %v962
                  %v964 = vld [vmem:[%s826 + $0x220] sm:$0xf]
                  %965 = vst [vmem:[%s827 + $0x110] sm:$0xf] %v964
                  %v966 = vld [vmem:[%s826 + $0x228] sm:$0xf]
                  %967 = vst [vmem:[%s827 + $0x114] sm:$0xf] %v966
                  %v968 = vld [vmem:[%s826 + $0x230] sm:$0xf]
                  %969 = vst [vmem:[%s827 + $0x118] sm:$0xf] %v968
                  %v970 = vld [vmem:[%s826 + $0x238] sm:$0xf]
                  %971 = vst [vmem:[%s827 + $0x11c] sm:$0xf] %v970
                  %v972 = vld [vmem:[%s826 + $0x240] sm:$0xf]
                  %973 = vst [vmem:[%s827 + $0x120] sm:$0xf] %v972
                  %v974 = vld [vmem:[%s826 + $0x248] sm:$0xf]
                  %975 = vst [vmem:[%s827 + $0x124] sm:$0xf] %v974
                  %v976 = vld [vmem:[%s826 + $0x250] sm:$0xf]
                  %977 = vst [vmem:[%s827 + $0x128] sm:$0xf] %v976
                  %v978 = vld [vmem:[%s826 + $0x258] sm:$0xf]
                  %979 = vst [vmem:[%s827 + $0x12c] sm:$0xf] %v978
                  %v980 = vld [vmem:[%s826 + $0x260] sm:$0xf]
                  %981 = vst [vmem:[%s827 + $0x130] sm:$0xf] %v980
                  %v982 = vld [vmem:[%s826 + $0x268] sm:$0xf]
                  %983 = vst [vmem:[%s827 + $0x134] sm:$0xf] %v982
                  %v984 = vld [vmem:[%s826 + $0x270] sm:$0xf]
                  %985 = vst [vmem:[%s827 + $0x138] sm:$0xf] %v984
                  %v986 = vld [vmem:[%s826 + $0x278] sm:$0xf]
                  %987 = vst [vmem:[%s827 + $0x13c] sm:$0xf] %v986
                  %v988 = vld [vmem:[%s826 + $0x280] sm:$0xf]
                  %989 = vst [vmem:[%s827 + $0x140] sm:$0xf] %v988
                  %v990 = vld [vmem:[%s826 + $0x288] sm:$0xf]
                  %991 = vst [vmem:[%s827 + $0x144] sm:$0xf] %v990
                  %v992 = vld [vmem:[%s826 + $0x290] sm:$0xf]
                  %993 = vst [vmem:[%s827 + $0x148] sm:$0xf] %v992
                  %v994 = vld [vmem:[%s826 + $0x298] sm:$0xf]
                  %995 = vst [vmem:[%s827 + $0x14c] sm:$0xf] %v994
                  %v996 = vld [vmem:[%s826 + $0x2a0] sm:$0xf]
                  %997 = vst [vmem:[%s827 + $0x150] sm:$0xf] %v996
                  %v998 = vld [vmem:[%s826 + $0x2a8] sm:$0xf]
                  %999 = vst [vmem:[%s827 + $0x154] sm:$0xf] %v998
                  %v1000 = vld [vmem:[%s826 + $0x2b0] sm:$0xf]
                  %1001 = vst [vmem:[%s827 + $0x158] sm:$0xf] %v1000
                  %v1002 = vld [vmem:[%s826 + $0x2b8] sm:$0xf]
                  %1003 = vst [vmem:[%s827 + $0x15c] sm:$0xf] %v1002
                  %v1004 = vld [vmem:[%s826 + $0x2c0] sm:$0xf]
                  %1005 = vst [vmem:[%s827 + $0x160] sm:$0xf] %v1004
                  %v1006 = vld [vmem:[%s826 + $0x2c8] sm:$0xf]
                  %1007 = vst [vmem:[%s827 + $0x164] sm:$0xf] %v1006
                  %v1008 = vld [vmem:[%s826 + $0x2d0] sm:$0xf]
                  %1009 = vst [vmem:[%s827 + $0x168] sm:$0xf] %v1008
                  %v1010 = vld [vmem:[%s826 + $0x2d8] sm:$0xf]
                  %1011 = vst [vmem:[%s827 + $0x16c] sm:$0xf] %v1010
                  %v1012 = vld [vmem:[%s826 + $0x2e0] sm:$0xf]
                  %1013 = vst [vmem:[%s827 + $0x170] sm:$0xf] %v1012
                  %v1014 = vld [vmem:[%s826 + $0x2e8] sm:$0xf]
                  %1015 = vst [vmem:[%s827 + $0x174] sm:$0xf] %v1014
                  %v1016 = vld [vmem:[%s826 + $0x2f0] sm:$0xf]
                  %1017 = vst [vmem:[%s827 + $0x178] sm:$0xf] %v1016
                  %v1018 = vld [vmem:[%s826 + $0x2f8] sm:$0xf]
                  %1019 = vst [vmem:[%s827 + $0x17c] sm:$0xf] %v1018
                  %v1020 = vld [vmem:[%s826 + $0x300] sm:$0xf]
                  %1021 = vst [vmem:[%s827 + $0x180] sm:$0xf] %v1020
                  %v1022 = vld [vmem:[%s826 + $0x308] sm:$0xf]
                  %1023 = vst [vmem:[%s827 + $0x184] sm:$0xf] %v1022
                  %v1024 = vld [vmem:[%s826 + $0x310] sm:$0xf]
                  %1025 = vst [vmem:[%s827 + $0x188] sm:$0xf] %v1024
                  %v1026 = vld [vmem:[%s826 + $0x318] sm:$0xf]
                  %1027 = vst [vmem:[%s827 + $0x18c] sm:$0xf] %v1026
                  %v1028 = vld [vmem:[%s826 + $0x320] sm:$0xf]
                  %1029 = vst [vmem:[%s827 + $0x190] sm:$0xf] %v1028
                  %v1030 = vld [vmem:[%s826 + $0x328] sm:$0xf]
                  %1031 = vst [vmem:[%s827 + $0x194] sm:$0xf] %v1030
                  %v1032 = vld [vmem:[%s826 + $0x330] sm:$0xf]
                  %1033 = vst [vmem:[%s827 + $0x198] sm:$0xf] %v1032
                  %v1034 = vld [vmem:[%s826 + $0x338] sm:$0xf]
                  %1035 = vst [vmem:[%s827 + $0x19c] sm:$0xf] %v1034
                  %v1036 = vld [vmem:[%s826 + $0x340] sm:$0xf]
                  %1037 = vst [vmem:[%s827 + $0x1a0] sm:$0xf] %v1036
                  %v1038 = vld [vmem:[%s826 + $0x348] sm:$0xf]
                  %1039 = vst [vmem:[%s827 + $0x1a4] sm:$0xf] %v1038
                  %v1040 = vld [vmem:[%s826 + $0x350] sm:$0xf]
                  %1041 = vst [vmem:[%s827 + $0x1a8] sm:$0xf] %v1040
                  %v1042 = vld [vmem:[%s826 + $0x358] sm:$0xf]
                  %1043 = vst [vmem:[%s827 + $0x1ac] sm:$0xf] %v1042
                  %v1044 = vld [vmem:[%s826 + $0x360] sm:$0xf]
                  %1045 = vst [vmem:[%s827 + $0x1b0] sm:$0xf] %v1044
                  %v1046 = vld [vmem:[%s826 + $0x368] sm:$0xf]
                  %1047 = vst [vmem:[%s827 + $0x1b4] sm:$0xf] %v1046
                  %v1048 = vld [vmem:[%s826 + $0x370] sm:$0xf]
                  %1049 = vst [vmem:[%s827 + $0x1b8] sm:$0xf] %v1048
                  %v1050 = vld [vmem:[%s826 + $0x378] sm:$0xf]
                  %1051 = vst [vmem:[%s827 + $0x1bc] sm:$0xf] %v1050
                  %v1052 = vld [vmem:[%s826 + $0x380] sm:$0xf]
                  %1053 = vst [vmem:[%s827 + $0x1c0] sm:$0xf] %v1052
                  %v1054 = vld [vmem:[%s826 + $0x388] sm:$0xf]
                  %1055 = vst [vmem:[%s827 + $0x1c4] sm:$0xf] %v1054
                  %v1056 = vld [vmem:[%s826 + $0x390] sm:$0xf]
                  %1057 = vst [vmem:[%s827 + $0x1c8] sm:$0xf] %v1056
                  %v1058 = vld [vmem:[%s826 + $0x398] sm:$0xf]
                  %1059 = vst [vmem:[%s827 + $0x1cc] sm:$0xf] %v1058
                  %v1060 = vld [vmem:[%s826 + $0x3a0] sm:$0xf]
                  %1061 = vst [vmem:[%s827 + $0x1d0] sm:$0xf] %v1060
                  %v1062 = vld [vmem:[%s826 + $0x3a8] sm:$0xf]
                  %1063 = vst [vmem:[%s827 + $0x1d4] sm:$0xf] %v1062
                  %v1064 = vld [vmem:[%s826 + $0x3b0] sm:$0xf]
                  %1065 = vst [vmem:[%s827 + $0x1d8] sm:$0xf] %v1064
                  %v1066 = vld [vmem:[%s826 + $0x3b8] sm:$0xf]
                  %1067 = vst [vmem:[%s827 + $0x1dc] sm:$0xf] %v1066
                  %v1068 = vld [vmem:[%s826 + $0x3c0] sm:$0xf]
                  %1069 = vst [vmem:[%s827 + $0x1e0] sm:$0xf] %v1068
                  %v1070 = vld [vmem:[%s826 + $0x3c8] sm:$0xf]
                  %1071 = vst [vmem:[%s827 + $0x1e4] sm:$0xf] %v1070
                  %v1072 = vld [vmem:[%s826 + $0x3d0] sm:$0xf]
                  %1073 = vst [vmem:[%s827 + $0x1e8] sm:$0xf] %v1072
                  %v1074 = vld [vmem:[%s826 + $0x3d8] sm:$0xf]
                  %1075 = vst [vmem:[%s827 + $0x1ec] sm:$0xf] %v1074
                  %v1076 = vld [vmem:[%s826 + $0x3e0] sm:$0xf]
                  %1077 = vst [vmem:[%s827 + $0x1f0] sm:$0xf] %v1076
                  %v1078 = vld [vmem:[%s826 + $0x3e8] sm:$0xf]
                  %1079 = vst [vmem:[%s827 + $0x1f4] sm:$0xf] %v1078
                  %v1080 = vld [vmem:[%s826 + $0x3f0] sm:$0xf]
                  %1081 = vst [vmem:[%s827 + $0x1f8] sm:$0xf] %v1080
                  %v1082 = vld [vmem:[%s826 + $0x3f8] sm:$0xf]
                  %1083 = vst [vmem:[%s827 + $0x1fc] sm:$0xf] %v1082
                  %v1084 = vld [vmem:[%s826 + $0x400] sm:$0xf]
                  %1085 = vst [vmem:[%s827 + $0x200] sm:$0xf] %v1084
                  %v1086 = vld [vmem:[%s826 + $0x408] sm:$0xf]
                  %1087 = vst [vmem:[%s827 + $0x204] sm:$0xf] %v1086
                  %v1088 = vld [vmem:[%s826 + $0x410] sm:$0xf]
                  %1089 = vst [vmem:[%s827 + $0x208] sm:$0xf] %v1088
                  %v1090 = vld [vmem:[%s826 + $0x418] sm:$0xf]
                  %1091 = vst [vmem:[%s827 + $0x20c] sm:$0xf] %v1090
                  %v1092 = vld [vmem:[%s826 + $0x420] sm:$0xf]
                  %1093 = vst [vmem:[%s827 + $0x210] sm:$0xf] %v1092
                  %v1094 = vld [vmem:[%s826 + $0x428] sm:$0xf]
                  %1095 = vst [vmem:[%s827 + $0x214] sm:$0xf] %v1094
                  %v1096 = vld [vmem:[%s826 + $0x430] sm:$0xf]
                  %1097 = vst [vmem:[%s827 + $0x218] sm:$0xf] %v1096
                  %v1098 = vld [vmem:[%s826 + $0x438] sm:$0xf]
                  %1099 = vst [vmem:[%s827 + $0x21c] sm:$0xf] %v1098
                  %v1100 = vld [vmem:[%s826 + $0x440] sm:$0xf]
                  %1101 = vst [vmem:[%s827 + $0x220] sm:$0xf] %v1100
                  %v1102 = vld [vmem:[%s826 + $0x448] sm:$0xf]
                  %1103 = vst [vmem:[%s827 + $0x224] sm:$0xf] %v1102
                  %v1104 = vld [vmem:[%s826 + $0x450] sm:$0xf]
                  %1105 = vst [vmem:[%s827 + $0x228] sm:$0xf] %v1104
                  %v1106 = vld [vmem:[%s826 + $0x458] sm:$0xf]
                  %1107 = vst [vmem:[%s827 + $0x22c] sm:$0xf] %v1106
                  %v1108 = vld [vmem:[%s826 + $0x460] sm:$0xf]
                  %1109 = vst [vmem:[%s827 + $0x230] sm:$0xf] %v1108
                  %v1110 = vld [vmem:[%s826 + $0x468] sm:$0xf]
                  %1111 = vst [vmem:[%s827 + $0x234] sm:$0xf] %v1110
                  %v1112 = vld [vmem:[%s826 + $0x470] sm:$0xf]
                  %1113 = vst [vmem:[%s827 + $0x238] sm:$0xf] %v1112
                  %v1114 = vld [vmem:[%s826 + $0x478] sm:$0xf]
                  %1115 = vst [vmem:[%s827 + $0x23c] sm:$0xf] %v1114
                  %v1116 = vld [vmem:[%s826 + $0x480] sm:$0xf]
                  %1117 = vst [vmem:[%s827 + $0x240] sm:$0xf] %v1116
                  %v1118 = vld [vmem:[%s826 + $0x488] sm:$0xf]
                  %1119 = vst [vmem:[%s827 + $0x244] sm:$0xf] %v1118
                  %v1120 = vld [vmem:[%s826 + $0x490] sm:$0xf]
                  %1121 = vst [vmem:[%s827 + $0x248] sm:$0xf] %v1120
                  %v1122 = vld [vmem:[%s826 + $0x498] sm:$0xf]
                  %1123 = vst [vmem:[%s827 + $0x24c] sm:$0xf] %v1122
                  %v1124 = vld [vmem:[%s826 + $0x4a0] sm:$0xf]
                  %1125 = vst [vmem:[%s827 + $0x250] sm:$0xf] %v1124
                  %v1126 = vld [vmem:[%s826 + $0x4a8] sm:$0xf]
                  %1127 = vst [vmem:[%s827 + $0x254] sm:$0xf] %v1126
                  %v1128 = vld [vmem:[%s826 + $0x4b0] sm:$0xf]
                  %1129 = vst [vmem:[%s827 + $0x258] sm:$0xf] %v1128
                  %v1130 = vld [vmem:[%s826 + $0x4b8] sm:$0xf]
                  %1131 = vst [vmem:[%s827 + $0x25c] sm:$0xf] %v1130
                  %v1132 = vld [vmem:[%s826 + $0x4c0] sm:$0xf]
                  %1133 = vst [vmem:[%s827 + $0x260] sm:$0xf] %v1132
                  %v1134 = vld [vmem:[%s826 + $0x4c8] sm:$0xf]
                  %1135 = vst [vmem:[%s827 + $0x264] sm:$0xf] %v1134
                  %v1136 = vld [vmem:[%s826 + $0x4d0] sm:$0xf]
                  %1137 = vst [vmem:[%s827 + $0x268] sm:$0xf] %v1136
                  %v1138 = vld [vmem:[%s826 + $0x4d8] sm:$0xf]
                  %1139 = vst [vmem:[%s827 + $0x26c] sm:$0xf] %v1138
                  %v1140 = vld [vmem:[%s826 + $0x4e0] sm:$0xf]
                  %1141 = vst [vmem:[%s827 + $0x270] sm:$0xf] %v1140
                  %v1142 = vld [vmem:[%s826 + $0x4e8] sm:$0xf]
                  %1143 = vst [vmem:[%s827 + $0x274] sm:$0xf] %v1142
                  %v1144 = vld [vmem:[%s826 + $0x4f0] sm:$0xf]
                  %1145 = vst [vmem:[%s827 + $0x278] sm:$0xf] %v1144
                  %v1146 = vld [vmem:[%s826 + $0x4f8] sm:$0xf]
                  %1147 = vst [vmem:[%s827 + $0x27c] sm:$0xf] %v1146
                  %v1148 = vld [vmem:[%s826 + $0x500] sm:$0xf]
                  %1149 = vst [vmem:[%s827 + $0x280] sm:$0xf] %v1148
                  %v1150 = vld [vmem:[%s826 + $0x508] sm:$0xf]
                  %1151 = vst [vmem:[%s827 + $0x284] sm:$0xf] %v1150
                  %v1152 = vld [vmem:[%s826 + $0x510] sm:$0xf]
                  %1153 = vst [vmem:[%s827 + $0x288] sm:$0xf] %v1152
                  %v1154 = vld [vmem:[%s826 + $0x518] sm:$0xf]
                  %1155 = vst [vmem:[%s827 + $0x28c] sm:$0xf] %v1154
                  %v1156 = vld [vmem:[%s826 + $0x520] sm:$0xf]
                  %1157 = vst [vmem:[%s827 + $0x290] sm:$0xf] %v1156
                  %v1158 = vld [vmem:[%s826 + $0x528] sm:$0xf]
                  %1159 = vst [vmem:[%s827 + $0x294] sm:$0xf] %v1158
                  %v1160 = vld [vmem:[%s826 + $0x530] sm:$0xf]
                  %1161 = vst [vmem:[%s827 + $0x298] sm:$0xf] %v1160
                  %v1162 = vld [vmem:[%s826 + $0x538] sm:$0xf]
                  %1163 = vst [vmem:[%s827 + $0x29c] sm:$0xf] %v1162
                  %v1164 = vld [vmem:[%s826 + $0x540] sm:$0xf]
                  %1165 = vst [vmem:[%s827 + $0x2a0] sm:$0xf] %v1164
                  %v1166 = vld [vmem:[%s826 + $0x548] sm:$0xf]
                  %1167 = vst [vmem:[%s827 + $0x2a4] sm:$0xf] %v1166
                  %v1168 = vld [vmem:[%s826 + $0x550] sm:$0xf]
                  %1169 = vst [vmem:[%s827 + $0x2a8] sm:$0xf] %v1168
                  %v1170 = vld [vmem:[%s826 + $0x558] sm:$0xf]
                  %1171 = vst [vmem:[%s827 + $0x2ac] sm:$0xf] %v1170
                  %v1172 = vld [vmem:[%s826 + $0x560] sm:$0xf]
                  %1173 = vst [vmem:[%s827 + $0x2b0] sm:$0xf] %v1172
                  %v1174 = vld [vmem:[%s826 + $0x568] sm:$0xf]
                  %1175 = vst [vmem:[%s827 + $0x2b4] sm:$0xf] %v1174
                  %v1176 = vld [vmem:[%s826 + $0x570] sm:$0xf]
                  %1177 = vst [vmem:[%s827 + $0x2b8] sm:$0xf] %v1176
                  %v1178 = vld [vmem:[%s826 + $0x578] sm:$0xf]
                  %1179 = vst [vmem:[%s827 + $0x2bc] sm:$0xf] %v1178
                  %v1180 = vld [vmem:[%s826 + $0x580] sm:$0xf]
                  %1181 = vst [vmem:[%s827 + $0x2c0] sm:$0xf] %v1180
                  %v1182 = vld [vmem:[%s826 + $0x588] sm:$0xf]
                  %1183 = vst [vmem:[%s827 + $0x2c4] sm:$0xf] %v1182
                  %v1184 = vld [vmem:[%s826 + $0x590] sm:$0xf]
                  %1185 = vst [vmem:[%s827 + $0x2c8] sm:$0xf] %v1184
                  %v1186 = vld [vmem:[%s826 + $0x598] sm:$0xf]
                  %1187 = vst [vmem:[%s827 + $0x2cc] sm:$0xf] %v1186
                  %v1188 = vld [vmem:[%s826 + $0x5a0] sm:$0xf]
                  %1189 = vst [vmem:[%s827 + $0x2d0] sm:$0xf] %v1188
                  %v1190 = vld [vmem:[%s826 + $0x5a8] sm:$0xf]
                  %1191 = vst [vmem:[%s827 + $0x2d4] sm:$0xf] %v1190
                  %v1192 = vld [vmem:[%s826 + $0x5b0] sm:$0xf]
                  %1193 = vst [vmem:[%s827 + $0x2d8] sm:$0xf] %v1192
                  %v1194 = vld [vmem:[%s826 + $0x5b8] sm:$0xf]
                  %1195 = vst [vmem:[%s827 + $0x2dc] sm:$0xf] %v1194
                  %v1196 = vld [vmem:[%s826 + $0x5c0] sm:$0xf]
                  %1197 = vst [vmem:[%s827 + $0x2e0] sm:$0xf] %v1196
                  %v1198 = vld [vmem:[%s826 + $0x5c8] sm:$0xf]
                  %1199 = vst [vmem:[%s827 + $0x2e4] sm:$0xf] %v1198
                  %v1200 = vld [vmem:[%s826 + $0x5d0] sm:$0xf]
                  %1201 = vst [vmem:[%s827 + $0x2e8] sm:$0xf] %v1200
                  %v1202 = vld [vmem:[%s826 + $0x5d8] sm:$0xf]
                  %1203 = vst [vmem:[%s827 + $0x2ec] sm:$0xf] %v1202
                  %v1204 = vld [vmem:[%s826 + $0x5e0] sm:$0xf]
                  %1205 = vst [vmem:[%s827 + $0x2f0] sm:$0xf] %v1204
                  %v1206 = vld [vmem:[%s826 + $0x5e8] sm:$0xf]
                  %1207 = vst [vmem:[%s827 + $0x2f4] sm:$0xf] %v1206
                  %v1208 = vld [vmem:[%s826 + $0x5f0] sm:$0xf]
                  %1209 = vst [vmem:[%s827 + $0x2f8] sm:$0xf] %v1208
                  %v1210 = vld [vmem:[%s826 + $0x5f8] sm:$0xf]
                  %1211 = vst [vmem:[%s827 + $0x2fc] sm:$0xf] %v1210
                  %v1212 = vld [vmem:[%s826 + $0x600] sm:$0xf]
                  %1213 = vst [vmem:[%s827 + $0x300] sm:$0xf] %v1212
                  %v1214 = vld [vmem:[%s826 + $0x608] sm:$0xf]
                  %1215 = vst [vmem:[%s827 + $0x304] sm:$0xf] %v1214
                  %v1216 = vld [vmem:[%s826 + $0x610] sm:$0xf]
                  %1217 = vst [vmem:[%s827 + $0x308] sm:$0xf] %v1216
                  %v1218 = vld [vmem:[%s826 + $0x618] sm:$0xf]
                  %1219 = vst [vmem:[%s827 + $0x30c] sm:$0xf] %v1218
                  %v1220 = vld [vmem:[%s826 + $0x620] sm:$0xf]
                  %1221 = vst [vmem:[%s827 + $0x310] sm:$0xf] %v1220
                  %v1222 = vld [vmem:[%s826 + $0x628] sm:$0xf]
                  %1223 = vst [vmem:[%s827 + $0x314] sm:$0xf] %v1222
                  %v1224 = vld [vmem:[%s826 + $0x630] sm:$0xf]
                  %1225 = vst [vmem:[%s827 + $0x318] sm:$0xf] %v1224
                  %v1226 = vld [vmem:[%s826 + $0x638] sm:$0xf]
                  %1227 = vst [vmem:[%s827 + $0x31c] sm:$0xf] %v1226
                  %v1228 = vld [vmem:[%s826 + $0x640] sm:$0xf]
                  %1229 = vst [vmem:[%s827 + $0x320] sm:$0xf] %v1228
                  %v1230 = vld [vmem:[%s826 + $0x648] sm:$0xf]
                  %1231 = vst [vmem:[%s827 + $0x324] sm:$0xf] %v1230
                  %v1232 = vld [vmem:[%s826 + $0x650] sm:$0xf]
                  %1233 = vst [vmem:[%s827 + $0x328] sm:$0xf] %v1232
                  %v1234 = vld [vmem:[%s826 + $0x658] sm:$0xf]
                  %1235 = vst [vmem:[%s827 + $0x32c] sm:$0xf] %v1234
                  %v1236 = vld [vmem:[%s826 + $0x660] sm:$0xf]
                  %1237 = vst [vmem:[%s827 + $0x330] sm:$0xf] %v1236
                  %v1238 = vld [vmem:[%s826 + $0x668] sm:$0xf]
                  %1239 = vst [vmem:[%s827 + $0x334] sm:$0xf] %v1238
                  %v1240 = vld [vmem:[%s826 + $0x670] sm:$0xf]
                  %1241 = vst [vmem:[%s827 + $0x338] sm:$0xf] %v1240
                  %v1242 = vld [vmem:[%s826 + $0x678] sm:$0xf]
                  %1243 = vst [vmem:[%s827 + $0x33c] sm:$0xf] %v1242
                  %v1244 = vld [vmem:[%s826 + $0x680] sm:$0xf]
                  %1245 = vst [vmem:[%s827 + $0x340] sm:$0xf] %v1244
                  %v1246 = vld [vmem:[%s826 + $0x688] sm:$0xf]
                  %1247 = vst [vmem:[%s827 + $0x344] sm:$0xf] %v1246
                  %v1248 = vld [vmem:[%s826 + $0x690] sm:$0xf]
                  %1249 = vst [vmem:[%s827 + $0x348] sm:$0xf] %v1248
                  %v1250 = vld [vmem:[%s826 + $0x698] sm:$0xf]
                  %1251 = vst [vmem:[%s827 + $0x34c] sm:$0xf] %v1250
                  %v1252 = vld [vmem:[%s826 + $0x6a0] sm:$0xf]
                  %1253 = vst [vmem:[%s827 + $0x350] sm:$0xf] %v1252
                  %v1254 = vld [vmem:[%s826 + $0x6a8] sm:$0xf]
                  %1255 = vst [vmem:[%s827 + $0x354] sm:$0xf] %v1254
                  %v1256 = vld [vmem:[%s826 + $0x6b0] sm:$0xf]
                  %1257 = vst [vmem:[%s827 + $0x358] sm:$0xf] %v1256
                  %v1258 = vld [vmem:[%s826 + $0x6b8] sm:$0xf]
                  %1259 = vst [vmem:[%s827 + $0x35c] sm:$0xf] %v1258
                  %v1260 = vld [vmem:[%s826 + $0x6c0] sm:$0xf]
                  %1261 = vst [vmem:[%s827 + $0x360] sm:$0xf] %v1260
                  %v1262 = vld [vmem:[%s826 + $0x6c8] sm:$0xf]
                  %1263 = vst [vmem:[%s827 + $0x364] sm:$0xf] %v1262
                  %v1264 = vld [vmem:[%s826 + $0x6d0] sm:$0xf]
                  %1265 = vst [vmem:[%s827 + $0x368] sm:$0xf] %v1264
                  %v1266 = vld [vmem:[%s826 + $0x6d8] sm:$0xf]
                  %1267 = vst [vmem:[%s827 + $0x36c] sm:$0xf] %v1266
                  %v1268 = vld [vmem:[%s826 + $0x6e0] sm:$0xf]
                  %1269 = vst [vmem:[%s827 + $0x370] sm:$0xf] %v1268
                  %v1270 = vld [vmem:[%s826 + $0x6e8] sm:$0xf]
                  %1271 = vst [vmem:[%s827 + $0x374] sm:$0xf] %v1270
                  %v1272 = vld [vmem:[%s826 + $0x6f0] sm:$0xf]
                  %1273 = vst [vmem:[%s827 + $0x378] sm:$0xf] %v1272
                  %v1274 = vld [vmem:[%s826 + $0x6f8] sm:$0xf]
                  %1275 = vst [vmem:[%s827 + $0x37c] sm:$0xf] %v1274
                  %v1276 = vld [vmem:[%s826 + $0x700] sm:$0xf]
                  %1277 = vst [vmem:[%s827 + $0x380] sm:$0xf] %v1276
                  %v1278 = vld [vmem:[%s826 + $0x708] sm:$0xf]
                  %1279 = vst [vmem:[%s827 + $0x384] sm:$0xf] %v1278
                  %v1280 = vld [vmem:[%s826 + $0x710] sm:$0xf]
                  %1281 = vst [vmem:[%s827 + $0x388] sm:$0xf] %v1280
                  %v1282 = vld [vmem:[%s826 + $0x718] sm:$0xf]
                  %1283 = vst [vmem:[%s827 + $0x38c] sm:$0xf] %v1282
                  %v1284 = vld [vmem:[%s826 + $0x720] sm:$0xf]
                  %1285 = vst [vmem:[%s827 + $0x390] sm:$0xf] %v1284
                  %v1286 = vld [vmem:[%s826 + $0x728] sm:$0xf]
                  %1287 = vst [vmem:[%s827 + $0x394] sm:$0xf] %v1286
                  %v1288 = vld [vmem:[%s826 + $0x730] sm:$0xf]
                  %1289 = vst [vmem:[%s827 + $0x398] sm:$0xf] %v1288
                  %v1290 = vld [vmem:[%s826 + $0x738] sm:$0xf]
                  %1291 = vst [vmem:[%s827 + $0x39c] sm:$0xf] %v1290
                  %v1292 = vld [vmem:[%s826 + $0x740] sm:$0xf]
                  %1293 = vst [vmem:[%s827 + $0x3a0] sm:$0xf] %v1292
                  %v1294 = vld [vmem:[%s826 + $0x748] sm:$0xf]
                  %1295 = vst [vmem:[%s827 + $0x3a4] sm:$0xf] %v1294
                  %v1296 = vld [vmem:[%s826 + $0x750] sm:$0xf]
                  %1297 = vst [vmem:[%s827 + $0x3a8] sm:$0xf] %v1296
                  %v1298 = vld [vmem:[%s826 + $0x758] sm:$0xf]
                  %1299 = vst [vmem:[%s827 + $0x3ac] sm:$0xf] %v1298
                  %v1300 = vld [vmem:[%s826 + $0x760] sm:$0xf]
                  %1301 = vst [vmem:[%s827 + $0x3b0] sm:$0xf] %v1300
                  %v1302 = vld [vmem:[%s826 + $0x768] sm:$0xf]
                  %1303 = vst [vmem:[%s827 + $0x3b4] sm:$0xf] %v1302
                  %v1304 = vld [vmem:[%s826 + $0x770] sm:$0xf]
                  %1305 = vst [vmem:[%s827 + $0x3b8] sm:$0xf] %v1304
                  %v1306 = vld [vmem:[%s826 + $0x778] sm:$0xf]
                  %1307 = vst [vmem:[%s827 + $0x3bc] sm:$0xf] %v1306
                  %v1308 = vld [vmem:[%s826 + $0x780] sm:$0xf]
                  %1309 = vst [vmem:[%s827 + $0x3c0] sm:$0xf] %v1308
                  %v1310 = vld [vmem:[%s826 + $0x788] sm:$0xf]
                  %1311 = vst [vmem:[%s827 + $0x3c4] sm:$0xf] %v1310
                  %v1312 = vld [vmem:[%s826 + $0x790] sm:$0xf]
                  %1313 = vst [vmem:[%s827 + $0x3c8] sm:$0xf] %v1312
                  %v1314 = vld [vmem:[%s826 + $0x798] sm:$0xf]
                  %1315 = vst [vmem:[%s827 + $0x3cc] sm:$0xf] %v1314
                  %v1316 = vld [vmem:[%s826 + $0x7a0] sm:$0xf]
                  %1317 = vst [vmem:[%s827 + $0x3d0] sm:$0xf] %v1316
                  %v1318 = vld [vmem:[%s826 + $0x7a8] sm:$0xf]
                  %1319 = vst [vmem:[%s827 + $0x3d4] sm:$0xf] %v1318
                  %v1320 = vld [vmem:[%s826 + $0x7b0] sm:$0xf]
                  %1321 = vst [vmem:[%s827 + $0x3d8] sm:$0xf] %v1320
                  %v1322 = vld [vmem:[%s826 + $0x7b8] sm:$0xf]
                  %1323 = vst [vmem:[%s827 + $0x3dc] sm:$0xf] %v1322
                  %v1324 = vld [vmem:[%s826 + $0x7c0] sm:$0xf]
                  %1325 = vst [vmem:[%s827 + $0x3e0] sm:$0xf] %v1324
                  %v1326 = vld [vmem:[%s826 + $0x7c8] sm:$0xf]
                  %1327 = vst [vmem:[%s827 + $0x3e4] sm:$0xf] %v1326
                  %v1328 = vld [vmem:[%s826 + $0x7d0] sm:$0xf]
                  %1329 = vst [vmem:[%s827 + $0x3e8] sm:$0xf] %v1328
                  %v1330 = vld [vmem:[%s826 + $0x7d8] sm:$0xf]
                  %1331 = vst [vmem:[%s827 + $0x3ec] sm:$0xf] %v1330
                  %v1332 = vld [vmem:[%s826 + $0x7e0] sm:$0xf]
                  %1333 = vst [vmem:[%s827 + $0x3f0] sm:$0xf] %v1332
                  %v1334 = vld [vmem:[%s826 + $0x7e8] sm:$0xf]
                  %1335 = vst [vmem:[%s827 + $0x3f4] sm:$0xf] %v1334
                  %v1336 = vld [vmem:[%s826 + $0x7f0] sm:$0xf]
                  %1337 = vst [vmem:[%s827 + $0x3f8] sm:$0xf] %v1336
                  %v1338 = vld [vmem:[%s826 + $0x7f8] sm:$0xf]
                  %1339 = vst [vmem:[%s827 + $0x3fc] sm:$0xf] %v1338
                  %v1340 = vld [vmem:[%s826 + $0x800] sm:$0xf]
                  %1341 = vst [vmem:[%s827 + $0x400] sm:$0xf] %v1340
                  %v1342 = vld [vmem:[%s826 + $0x808] sm:$0xf]
                  %1343 = vst [vmem:[%s827 + $0x404] sm:$0xf] %v1342
                  %v1344 = vld [vmem:[%s826 + $0x810] sm:$0xf]
                  %1345 = vst [vmem:[%s827 + $0x408] sm:$0xf] %v1344
                  %v1346 = vld [vmem:[%s826 + $0x818] sm:$0xf]
                  %1347 = vst [vmem:[%s827 + $0x40c] sm:$0xf] %v1346
                  %v1348 = vld [vmem:[%s826 + $0x820] sm:$0xf]
                  %1349 = vst [vmem:[%s827 + $0x410] sm:$0xf] %v1348
                  %v1350 = vld [vmem:[%s826 + $0x828] sm:$0xf]
                  %1351 = vst [vmem:[%s827 + $0x414] sm:$0xf] %v1350
                  %v1352 = vld [vmem:[%s826 + $0x830] sm:$0xf]
                  %1353 = vst [vmem:[%s827 + $0x418] sm:$0xf] %v1352
                  %v1354 = vld [vmem:[%s826 + $0x838] sm:$0xf]
                  %1355 = vst [vmem:[%s827 + $0x41c] sm:$0xf] %v1354
                  %v1356 = vld [vmem:[%s826 + $0x840] sm:$0xf]
                  %1357 = vst [vmem:[%s827 + $0x420] sm:$0xf] %v1356
                  %v1358 = vld [vmem:[%s826 + $0x848] sm:$0xf]
                  %1359 = vst [vmem:[%s827 + $0x424] sm:$0xf] %v1358
                  %v1360 = vld [vmem:[%s826 + $0x850] sm:$0xf]
                  %1361 = vst [vmem:[%s827 + $0x428] sm:$0xf] %v1360
                  %v1362 = vld [vmem:[%s826 + $0x858] sm:$0xf]
                  %1363 = vst [vmem:[%s827 + $0x42c] sm:$0xf] %v1362
                  %v1364 = vld [vmem:[%s826 + $0x860] sm:$0xf]
                  %1365 = vst [vmem:[%s827 + $0x430] sm:$0xf] %v1364
                  %v1366 = vld [vmem:[%s826 + $0x868] sm:$0xf]
                  %1367 = vst [vmem:[%s827 + $0x434] sm:$0xf] %v1366
                  %v1368 = vld [vmem:[%s826 + $0x870] sm:$0xf]
                  %1369 = vst [vmem:[%s827 + $0x438] sm:$0xf] %v1368
                  %v1370 = vld [vmem:[%s826 + $0x878] sm:$0xf]
                  %1371 = vst [vmem:[%s827 + $0x43c] sm:$0xf] %v1370
                  %v1372 = vld [vmem:[%s826 + $0x880] sm:$0xf]
                  %1373 = vst [vmem:[%s827 + $0x440] sm:$0xf] %v1372
                  %v1374 = vld [vmem:[%s826 + $0x888] sm:$0xf]
                  %1375 = vst [vmem:[%s827 + $0x444] sm:$0xf] %v1374
                  %v1376 = vld [vmem:[%s826 + $0x890] sm:$0xf]
                  %1377 = vst [vmem:[%s827 + $0x448] sm:$0xf] %v1376
                  %v1378 = vld [vmem:[%s826 + $0x898] sm:$0xf]
                  %1379 = vst [vmem:[%s827 + $0x44c] sm:$0xf] %v1378
                  %v1380 = vld [vmem:[%s826 + $0x8a0] sm:$0xf]
                  %1381 = vst [vmem:[%s827 + $0x450] sm:$0xf] %v1380
                  %v1382 = vld [vmem:[%s826 + $0x8a8] sm:$0xf]
                  %1383 = vst [vmem:[%s827 + $0x454] sm:$0xf] %v1382
                  %v1384 = vld [vmem:[%s826 + $0x8b0] sm:$0xf]
                  %1385 = vst [vmem:[%s827 + $0x458] sm:$0xf] %v1384
                  %v1386 = vld [vmem:[%s826 + $0x8b8] sm:$0xf]
                  %1387 = vst [vmem:[%s827 + $0x45c] sm:$0xf] %v1386
                  %v1388 = vld [vmem:[%s826 + $0x8c0] sm:$0xf]
                  %1389 = vst [vmem:[%s827 + $0x460] sm:$0xf] %v1388
                  %v1390 = vld [vmem:[%s826 + $0x8c8] sm:$0xf]
                  %1391 = vst [vmem:[%s827 + $0x464] sm:$0xf] %v1390
                  %v1392 = vld [vmem:[%s826 + $0x8d0] sm:$0xf]
                  %1393 = vst [vmem:[%s827 + $0x468] sm:$0xf] %v1392
                  %v1394 = vld [vmem:[%s826 + $0x8d8] sm:$0xf]
                  %1395 = vst [vmem:[%s827 + $0x46c] sm:$0xf] %v1394
                  %v1396 = vld [vmem:[%s826 + $0x8e0] sm:$0xf]
                  %1397 = vst [vmem:[%s827 + $0x470] sm:$0xf] %v1396
                  %v1398 = vld [vmem:[%s826 + $0x8e8] sm:$0xf]
                  %1399 = vst [vmem:[%s827 + $0x474] sm:$0xf] %v1398
                  %v1400 = vld [vmem:[%s826 + $0x8f0] sm:$0xf]
                  %1401 = vst [vmem:[%s827 + $0x478] sm:$0xf] %v1400
                  %v1402 = vld [vmem:[%s826 + $0x8f8] sm:$0xf]
                  %1403 = vst [vmem:[%s827 + $0x47c] sm:$0xf] %v1402
                $region63: #{discriminator_v2.9} parent=50 // loop_footer
                  %s825 = sadd.s32 1, %s821
                $region64: #{discriminator_v2.9} parent=50 // loop_footer_branch
                  %820 = sbr.rel target = $region60
                $region65: #{discriminator_v2.9} parent=50 // loop_exit
                  _
              $region51: #{discriminator_v2.9} parent=35 // pred_fallthru
                _
            $region36: #{discriminator_v2.9} parent=31 // pred_fallthru
              _
            // Predicated region
            $region37: #{discriminator_v2.9} parent=31 // pred_check
              _
            $region38: #{discriminator_v2.9} parent=31 // pred_check_branch
              %223 = sbr.rel (0) target = $region40
            $region39: #{discriminator_v2.9} parent=31 // pred_region
              loop: start=0, step=1, limit=1
              $region41: #{discriminator_v2.9} parent=39 // loop_pre_header
                _
              $region42: #{discriminator_v2.9} parent=39 // loop_header
                %s226 = sphi 0, %s230
                %p227 = scmp.ge.s32.totalorder %s226, 1
                %s231 = sphi %s217, %s217
                %s232 = sphi %s215, %s215
              $region43: #{discriminator_v2.9} parent=39 // loop_header_branch
                %229 = sbr.rel (%p227) target = $region47
              $region44: #{discriminator_v2.9} parent=39 // loop_body
                %v233 = vld [vmem:[%s231] sm:$0xf]
                %234 = vst [vmem:[%s232] sm:$0xf] %v233
                %v235 = vld [vmem:[%s231 + $0x8] sm:$0xf]
                %236 = vst [vmem:[%s232 + $0x4] sm:$0xf] %v235
                %v237 = vld [vmem:[%s231 + $0x10] sm:$0xf]
                %238 = vst [vmem:[%s232 + $0x8] sm:$0xf] %v237
                %v239 = vld [vmem:[%s231 + $0x18] sm:$0xf]
                %240 = vst [vmem:[%s232 + $0xc] sm:$0xf] %v239
                %v241 = vld [vmem:[%s231 + $0x20] sm:$0xf]
                %242 = vst [vmem:[%s232 + $0x10] sm:$0xf] %v241
                %v243 = vld [vmem:[%s231 + $0x28] sm:$0xf]
                %244 = vst [vmem:[%s232 + $0x14] sm:$0xf] %v243
                %v245 = vld [vmem:[%s231 + $0x30] sm:$0xf]
                %246 = vst [vmem:[%s232 + $0x18] sm:$0xf] %v245
                %v247 = vld [vmem:[%s231 + $0x38] sm:$0xf]
                %248 = vst [vmem:[%s232 + $0x1c] sm:$0xf] %v247
                %v249 = vld [vmem:[%s231 + $0x40] sm:$0xf]
                %250 = vst [vmem:[%s232 + $0x20] sm:$0xf] %v249
                %v251 = vld [vmem:[%s231 + $0x48] sm:$0xf]
                %252 = vst [vmem:[%s232 + $0x24] sm:$0xf] %v251
                %v253 = vld [vmem:[%s231 + $0x50] sm:$0xf]
                %254 = vst [vmem:[%s232 + $0x28] sm:$0xf] %v253
                %v255 = vld [vmem:[%s231 + $0x58] sm:$0xf]
                %256 = vst [vmem:[%s232 + $0x2c] sm:$0xf] %v255
                %v257 = vld [vmem:[%s231 + $0x60] sm:$0xf]
                %258 = vst [vmem:[%s232 + $0x30] sm:$0xf] %v257
                %v259 = vld [vmem:[%s231 + $0x68] sm:$0xf]
                %260 = vst [vmem:[%s232 + $0x34] sm:$0xf] %v259
                %v261 = vld [vmem:[%s231 + $0x70] sm:$0xf]
                %262 = vst [vmem:[%s232 + $0x38] sm:$0xf] %v261
                %v263 = vld [vmem:[%s231 + $0x78] sm:$0xf]
                %264 = vst [vmem:[%s232 + $0x3c] sm:$0xf] %v263
                %v265 = vld [vmem:[%s231 + $0x80] sm:$0xf]
                %266 = vst [vmem:[%s232 + $0x40] sm:$0xf] %v265
                %v267 = vld [vmem:[%s231 + $0x88] sm:$0xf]
                %268 = vst [vmem:[%s232 + $0x44] sm:$0xf] %v267
                %v269 = vld [vmem:[%s231 + $0x90] sm:$0xf]
                %270 = vst [vmem:[%s232 + $0x48] sm:$0xf] %v269
                %v271 = vld [vmem:[%s231 + $0x98] sm:$0xf]
                %272 = vst [vmem:[%s232 + $0x4c] sm:$0xf] %v271
                %v273 = vld [vmem:[%s231 + $0xa0] sm:$0xf]
                %274 = vst [vmem:[%s232 + $0x50] sm:$0xf] %v273
                %v275 = vld [vmem:[%s231 + $0xa8] sm:$0xf]
                %276 = vst [vmem:[%s232 + $0x54] sm:$0xf] %v275
                %v277 = vld [vmem:[%s231 + $0xb0] sm:$0xf]
                %278 = vst [vmem:[%s232 + $0x58] sm:$0xf] %v277
                %v279 = vld [vmem:[%s231 + $0xb8] sm:$0xf]
                %280 = vst [vmem:[%s232 + $0x5c] sm:$0xf] %v279
                %v281 = vld [vmem:[%s231 + $0xc0] sm:$0xf]
                %282 = vst [vmem:[%s232 + $0x60] sm:$0xf] %v281
                %v283 = vld [vmem:[%s231 + $0xc8] sm:$0xf]
                %284 = vst [vmem:[%s232 + $0x64] sm:$0xf] %v283
                %v285 = vld [vmem:[%s231 + $0xd0] sm:$0xf]
                %286 = vst [vmem:[%s232 + $0x68] sm:$0xf] %v285
                %v287 = vld [vmem:[%s231 + $0xd8] sm:$0xf]
                %288 = vst [vmem:[%s232 + $0x6c] sm:$0xf] %v287
                %v289 = vld [vmem:[%s231 + $0xe0] sm:$0xf]
                %290 = vst [vmem:[%s232 + $0x70] sm:$0xf] %v289
                %v291 = vld [vmem:[%s231 + $0xe8] sm:$0xf]
                %292 = vst [vmem:[%s232 + $0x74] sm:$0xf] %v291
                %v293 = vld [vmem:[%s231 + $0xf0] sm:$0xf]
                %294 = vst [vmem:[%s232 + $0x78] sm:$0xf] %v293
                %v295 = vld [vmem:[%s231 + $0xf8] sm:$0xf]
                %296 = vst [vmem:[%s232 + $0x7c] sm:$0xf] %v295
                %v297 = vld [vmem:[%s231 + $0x100] sm:$0xf]
                %298 = vst [vmem:[%s232 + $0x80] sm:$0xf] %v297
                %v299 = vld [vmem:[%s231 + $0x108] sm:$0xf]
                %300 = vst [vmem:[%s232 + $0x84] sm:$0xf] %v299
                %v301 = vld [vmem:[%s231 + $0x110] sm:$0xf]
                %302 = vst [vmem:[%s232 + $0x88] sm:$0xf] %v301
                %v303 = vld [vmem:[%s231 + $0x118] sm:$0xf]
                %304 = vst [vmem:[%s232 + $0x8c] sm:$0xf] %v303
                %v305 = vld [vmem:[%s231 + $0x120] sm:$0xf]
                %306 = vst [vmem:[%s232 + $0x90] sm:$0xf] %v305
                %v307 = vld [vmem:[%s231 + $0x128] sm:$0xf]
                %308 = vst [vmem:[%s232 + $0x94] sm:$0xf] %v307
                %v309 = vld [vmem:[%s231 + $0x130] sm:$0xf]
                %310 = vst [vmem:[%s232 + $0x98] sm:$0xf] %v309
                %v311 = vld [vmem:[%s231 + $0x138] sm:$0xf]
                %312 = vst [vmem:[%s232 + $0x9c] sm:$0xf] %v311
                %v313 = vld [vmem:[%s231 + $0x140] sm:$0xf]
                %314 = vst [vmem:[%s232 + $0xa0] sm:$0xf] %v313
                %v315 = vld [vmem:[%s231 + $0x148] sm:$0xf]
                %316 = vst [vmem:[%s232 + $0xa4] sm:$0xf] %v315
                %v317 = vld [vmem:[%s231 + $0x150] sm:$0xf]
                %318 = vst [vmem:[%s232 + $0xa8] sm:$0xf] %v317
                %v319 = vld [vmem:[%s231 + $0x158] sm:$0xf]
                %320 = vst [vmem:[%s232 + $0xac] sm:$0xf] %v319
                %v321 = vld [vmem:[%s231 + $0x160] sm:$0xf]
                %322 = vst [vmem:[%s232 + $0xb0] sm:$0xf] %v321
                %v323 = vld [vmem:[%s231 + $0x168] sm:$0xf]
                %324 = vst [vmem:[%s232 + $0xb4] sm:$0xf] %v323
                %v325 = vld [vmem:[%s231 + $0x170] sm:$0xf]
                %326 = vst [vmem:[%s232 + $0xb8] sm:$0xf] %v325
                %v327 = vld [vmem:[%s231 + $0x178] sm:$0xf]
                %328 = vst [vmem:[%s232 + $0xbc] sm:$0xf] %v327
                %v329 = vld [vmem:[%s231 + $0x180] sm:$0xf]
                %330 = vst [vmem:[%s232 + $0xc0] sm:$0xf] %v329
                %v331 = vld [vmem:[%s231 + $0x188] sm:$0xf]
                %332 = vst [vmem:[%s232 + $0xc4] sm:$0xf] %v331
                %v333 = vld [vmem:[%s231 + $0x190] sm:$0xf]
                %334 = vst [vmem:[%s232 + $0xc8] sm:$0xf] %v333
                %v335 = vld [vmem:[%s231 + $0x198] sm:$0xf]
                %336 = vst [vmem:[%s232 + $0xcc] sm:$0xf] %v335
                %v337 = vld [vmem:[%s231 + $0x1a0] sm:$0xf]
                %338 = vst [vmem:[%s232 + $0xd0] sm:$0xf] %v337
                %v339 = vld [vmem:[%s231 + $0x1a8] sm:$0xf]
                %340 = vst [vmem:[%s232 + $0xd4] sm:$0xf] %v339
                %v341 = vld [vmem:[%s231 + $0x1b0] sm:$0xf]
                %342 = vst [vmem:[%s232 + $0xd8] sm:$0xf] %v341
                %v343 = vld [vmem:[%s231 + $0x1b8] sm:$0xf]
                %344 = vst [vmem:[%s232 + $0xdc] sm:$0xf] %v343
                %v345 = vld [vmem:[%s231 + $0x1c0] sm:$0xf]
                %346 = vst [vmem:[%s232 + $0xe0] sm:$0xf] %v345
                %v347 = vld [vmem:[%s231 + $0x1c8] sm:$0xf]
                %348 = vst [vmem:[%s232 + $0xe4] sm:$0xf] %v347
                %v349 = vld [vmem:[%s231 + $0x1d0] sm:$0xf]
                %350 = vst [vmem:[%s232 + $0xe8] sm:$0xf] %v349
                %v351 = vld [vmem:[%s231 + $0x1d8] sm:$0xf]
                %352 = vst [vmem:[%s232 + $0xec] sm:$0xf] %v351
                %v353 = vld [vmem:[%s231 + $0x1e0] sm:$0xf]
                %354 = vst [vmem:[%s232 + $0xf0] sm:$0xf] %v353
                %v355 = vld [vmem:[%s231 + $0x1e8] sm:$0xf]
                %356 = vst [vmem:[%s232 + $0xf4] sm:$0xf] %v355
                %v357 = vld [vmem:[%s231 + $0x1f0] sm:$0xf]
                %358 = vst [vmem:[%s232 + $0xf8] sm:$0xf] %v357
                %v359 = vld [vmem:[%s231 + $0x1f8] sm:$0xf]
                %360 = vst [vmem:[%s232 + $0xfc] sm:$0xf] %v359
                %v361 = vld [vmem:[%s231 + $0x200] sm:$0xf]
                %362 = vst [vmem:[%s232 + $0x100] sm:$0xf] %v361
                %v363 = vld [vmem:[%s231 + $0x208] sm:$0xf]
                %364 = vst [vmem:[%s232 + $0x104] sm:$0xf] %v363
                %v365 = vld [vmem:[%s231 + $0x210] sm:$0xf]
                %366 = vst [vmem:[%s232 + $0x108] sm:$0xf] %v365
                %v367 = vld [vmem:[%s231 + $0x218] sm:$0xf]
                %368 = vst [vmem:[%s232 + $0x10c] sm:$0xf] %v367
                %v369 = vld [vmem:[%s231 + $0x220] sm:$0xf]
                %370 = vst [vmem:[%s232 + $0x110] sm:$0xf] %v369
                %v371 = vld [vmem:[%s231 + $0x228] sm:$0xf]
                %372 = vst [vmem:[%s232 + $0x114] sm:$0xf] %v371
                %v373 = vld [vmem:[%s231 + $0x230] sm:$0xf]
                %374 = vst [vmem:[%s232 + $0x118] sm:$0xf] %v373
                %v375 = vld [vmem:[%s231 + $0x238] sm:$0xf]
                %376 = vst [vmem:[%s232 + $0x11c] sm:$0xf] %v375
                %v377 = vld [vmem:[%s231 + $0x240] sm:$0xf]
                %378 = vst [vmem:[%s232 + $0x120] sm:$0xf] %v377
                %v379 = vld [vmem:[%s231 + $0x248] sm:$0xf]
                %380 = vst [vmem:[%s232 + $0x124] sm:$0xf] %v379
                %v381 = vld [vmem:[%s231 + $0x250] sm:$0xf]
                %382 = vst [vmem:[%s232 + $0x128] sm:$0xf] %v381
                %v383 = vld [vmem:[%s231 + $0x258] sm:$0xf]
                %384 = vst [vmem:[%s232 + $0x12c] sm:$0xf] %v383
                %v385 = vld [vmem:[%s231 + $0x260] sm:$0xf]
                %386 = vst [vmem:[%s232 + $0x130] sm:$0xf] %v385
                %v387 = vld [vmem:[%s231 + $0x268] sm:$0xf]
                %388 = vst [vmem:[%s232 + $0x134] sm:$0xf] %v387
                %v389 = vld [vmem:[%s231 + $0x270] sm:$0xf]
                %390 = vst [vmem:[%s232 + $0x138] sm:$0xf] %v389
                %v391 = vld [vmem:[%s231 + $0x278] sm:$0xf]
                %392 = vst [vmem:[%s232 + $0x13c] sm:$0xf] %v391
                %v393 = vld [vmem:[%s231 + $0x280] sm:$0xf]
                %394 = vst [vmem:[%s232 + $0x140] sm:$0xf] %v393
                %v395 = vld [vmem:[%s231 + $0x288] sm:$0xf]
                %396 = vst [vmem:[%s232 + $0x144] sm:$0xf] %v395
                %v397 = vld [vmem:[%s231 + $0x290] sm:$0xf]
                %398 = vst [vmem:[%s232 + $0x148] sm:$0xf] %v397
                %v399 = vld [vmem:[%s231 + $0x298] sm:$0xf]
                %400 = vst [vmem:[%s232 + $0x14c] sm:$0xf] %v399
                %v401 = vld [vmem:[%s231 + $0x2a0] sm:$0xf]
                %402 = vst [vmem:[%s232 + $0x150] sm:$0xf] %v401
                %v403 = vld [vmem:[%s231 + $0x2a8] sm:$0xf]
                %404 = vst [vmem:[%s232 + $0x154] sm:$0xf] %v403
                %v405 = vld [vmem:[%s231 + $0x2b0] sm:$0xf]
                %406 = vst [vmem:[%s232 + $0x158] sm:$0xf] %v405
                %v407 = vld [vmem:[%s231 + $0x2b8] sm:$0xf]
                %408 = vst [vmem:[%s232 + $0x15c] sm:$0xf] %v407
                %v409 = vld [vmem:[%s231 + $0x2c0] sm:$0xf]
                %410 = vst [vmem:[%s232 + $0x160] sm:$0xf] %v409
                %v411 = vld [vmem:[%s231 + $0x2c8] sm:$0xf]
                %412 = vst [vmem:[%s232 + $0x164] sm:$0xf] %v411
                %v413 = vld [vmem:[%s231 + $0x2d0] sm:$0xf]
                %414 = vst [vmem:[%s232 + $0x168] sm:$0xf] %v413
                %v415 = vld [vmem:[%s231 + $0x2d8] sm:$0xf]
                %416 = vst [vmem:[%s232 + $0x16c] sm:$0xf] %v415
                %v417 = vld [vmem:[%s231 + $0x2e0] sm:$0xf]
                %418 = vst [vmem:[%s232 + $0x170] sm:$0xf] %v417
                %v419 = vld [vmem:[%s231 + $0x2e8] sm:$0xf]
                %420 = vst [vmem:[%s232 + $0x174] sm:$0xf] %v419
                %v421 = vld [vmem:[%s231 + $0x2f0] sm:$0xf]
                %422 = vst [vmem:[%s232 + $0x178] sm:$0xf] %v421
                %v423 = vld [vmem:[%s231 + $0x2f8] sm:$0xf]
                %424 = vst [vmem:[%s232 + $0x17c] sm:$0xf] %v423
                %v425 = vld [vmem:[%s231 + $0x300] sm:$0xf]
                %426 = vst [vmem:[%s232 + $0x180] sm:$0xf] %v425
                %v427 = vld [vmem:[%s231 + $0x308] sm:$0xf]
                %428 = vst [vmem:[%s232 + $0x184] sm:$0xf] %v427
                %v429 = vld [vmem:[%s231 + $0x310] sm:$0xf]
                %430 = vst [vmem:[%s232 + $0x188] sm:$0xf] %v429
                %v431 = vld [vmem:[%s231 + $0x318] sm:$0xf]
                %432 = vst [vmem:[%s232 + $0x18c] sm:$0xf] %v431
                %v433 = vld [vmem:[%s231 + $0x320] sm:$0xf]
                %434 = vst [vmem:[%s232 + $0x190] sm:$0xf] %v433
                %v435 = vld [vmem:[%s231 + $0x328] sm:$0xf]
                %436 = vst [vmem:[%s232 + $0x194] sm:$0xf] %v435
                %v437 = vld [vmem:[%s231 + $0x330] sm:$0xf]
                %438 = vst [vmem:[%s232 + $0x198] sm:$0xf] %v437
                %v439 = vld [vmem:[%s231 + $0x338] sm:$0xf]
                %440 = vst [vmem:[%s232 + $0x19c] sm:$0xf] %v439
                %v441 = vld [vmem:[%s231 + $0x340] sm:$0xf]
                %442 = vst [vmem:[%s232 + $0x1a0] sm:$0xf] %v441
                %v443 = vld [vmem:[%s231 + $0x348] sm:$0xf]
                %444 = vst [vmem:[%s232 + $0x1a4] sm:$0xf] %v443
                %v445 = vld [vmem:[%s231 + $0x350] sm:$0xf]
                %446 = vst [vmem:[%s232 + $0x1a8] sm:$0xf] %v445
                %v447 = vld [vmem:[%s231 + $0x358] sm:$0xf]
                %448 = vst [vmem:[%s232 + $0x1ac] sm:$0xf] %v447
                %v449 = vld [vmem:[%s231 + $0x360] sm:$0xf]
                %450 = vst [vmem:[%s232 + $0x1b0] sm:$0xf] %v449
                %v451 = vld [vmem:[%s231 + $0x368] sm:$0xf]
                %452 = vst [vmem:[%s232 + $0x1b4] sm:$0xf] %v451
                %v453 = vld [vmem:[%s231 + $0x370] sm:$0xf]
                %454 = vst [vmem:[%s232 + $0x1b8] sm:$0xf] %v453
                %v455 = vld [vmem:[%s231 + $0x378] sm:$0xf]
                %456 = vst [vmem:[%s232 + $0x1bc] sm:$0xf] %v455
                %v457 = vld [vmem:[%s231 + $0x380] sm:$0xf]
                %458 = vst [vmem:[%s232 + $0x1c0] sm:$0xf] %v457
                %v459 = vld [vmem:[%s231 + $0x388] sm:$0xf]
                %460 = vst [vmem:[%s232 + $0x1c4] sm:$0xf] %v459
                %v461 = vld [vmem:[%s231 + $0x390] sm:$0xf]
                %462 = vst [vmem:[%s232 + $0x1c8] sm:$0xf] %v461
                %v463 = vld [vmem:[%s231 + $0x398] sm:$0xf]
                %464 = vst [vmem:[%s232 + $0x1cc] sm:$0xf] %v463
                %v465 = vld [vmem:[%s231 + $0x3a0] sm:$0xf]
                %466 = vst [vmem:[%s232 + $0x1d0] sm:$0xf] %v465
                %v467 = vld [vmem:[%s231 + $0x3a8] sm:$0xf]
                %468 = vst [vmem:[%s232 + $0x1d4] sm:$0xf] %v467
                %v469 = vld [vmem:[%s231 + $0x3b0] sm:$0xf]
                %470 = vst [vmem:[%s232 + $0x1d8] sm:$0xf] %v469
                %v471 = vld [vmem:[%s231 + $0x3b8] sm:$0xf]
                %472 = vst [vmem:[%s232 + $0x1dc] sm:$0xf] %v471
                %v473 = vld [vmem:[%s231 + $0x3c0] sm:$0xf]
                %474 = vst [vmem:[%s232 + $0x1e0] sm:$0xf] %v473
                %v475 = vld [vmem:[%s231 + $0x3c8] sm:$0xf]
                %476 = vst [vmem:[%s232 + $0x1e4] sm:$0xf] %v475
                %v477 = vld [vmem:[%s231 + $0x3d0] sm:$0xf]
                %478 = vst [vmem:[%s232 + $0x1e8] sm:$0xf] %v477
                %v479 = vld [vmem:[%s231 + $0x3d8] sm:$0xf]
                %480 = vst [vmem:[%s232 + $0x1ec] sm:$0xf] %v479
                %v481 = vld [vmem:[%s231 + $0x3e0] sm:$0xf]
                %482 = vst [vmem:[%s232 + $0x1f0] sm:$0xf] %v481
                %v483 = vld [vmem:[%s231 + $0x3e8] sm:$0xf]
                %484 = vst [vmem:[%s232 + $0x1f4] sm:$0xf] %v483
                %v485 = vld [vmem:[%s231 + $0x3f0] sm:$0xf]
                %486 = vst [vmem:[%s232 + $0x1f8] sm:$0xf] %v485
                %v487 = vld [vmem:[%s231 + $0x3f8] sm:$0xf]
                %488 = vst [vmem:[%s232 + $0x1fc] sm:$0xf] %v487
                %v489 = vld [vmem:[%s231 + $0x400] sm:$0xf]
                %490 = vst [vmem:[%s232 + $0x200] sm:$0xf] %v489
                %v491 = vld [vmem:[%s231 + $0x408] sm:$0xf]
                %492 = vst [vmem:[%s232 + $0x204] sm:$0xf] %v491
                %v493 = vld [vmem:[%s231 + $0x410] sm:$0xf]
                %494 = vst [vmem:[%s232 + $0x208] sm:$0xf] %v493
                %v495 = vld [vmem:[%s231 + $0x418] sm:$0xf]
                %496 = vst [vmem:[%s232 + $0x20c] sm:$0xf] %v495
                %v497 = vld [vmem:[%s231 + $0x420] sm:$0xf]
                %498 = vst [vmem:[%s232 + $0x210] sm:$0xf] %v497
                %v499 = vld [vmem:[%s231 + $0x428] sm:$0xf]
                %500 = vst [vmem:[%s232 + $0x214] sm:$0xf] %v499
                %v501 = vld [vmem:[%s231 + $0x430] sm:$0xf]
                %502 = vst [vmem:[%s232 + $0x218] sm:$0xf] %v501
                %v503 = vld [vmem:[%s231 + $0x438] sm:$0xf]
                %504 = vst [vmem:[%s232 + $0x21c] sm:$0xf] %v503
                %v505 = vld [vmem:[%s231 + $0x440] sm:$0xf]
                %506 = vst [vmem:[%s232 + $0x220] sm:$0xf] %v505
                %v507 = vld [vmem:[%s231 + $0x448] sm:$0xf]
                %508 = vst [vmem:[%s232 + $0x224] sm:$0xf] %v507
                %v509 = vld [vmem:[%s231 + $0x450] sm:$0xf]
                %510 = vst [vmem:[%s232 + $0x228] sm:$0xf] %v509
                %v511 = vld [vmem:[%s231 + $0x458] sm:$0xf]
                %512 = vst [vmem:[%s232 + $0x22c] sm:$0xf] %v511
                %v513 = vld [vmem:[%s231 + $0x460] sm:$0xf]
                %514 = vst [vmem:[%s232 + $0x230] sm:$0xf] %v513
                %v515 = vld [vmem:[%s231 + $0x468] sm:$0xf]
                %516 = vst [vmem:[%s232 + $0x234] sm:$0xf] %v515
                %v517 = vld [vmem:[%s231 + $0x470] sm:$0xf]
                %518 = vst [vmem:[%s232 + $0x238] sm:$0xf] %v517
                %v519 = vld [vmem:[%s231 + $0x478] sm:$0xf]
                %520 = vst [vmem:[%s232 + $0x23c] sm:$0xf] %v519
                %v521 = vld [vmem:[%s231 + $0x480] sm:$0xf]
                %522 = vst [vmem:[%s232 + $0x240] sm:$0xf] %v521
                %v523 = vld [vmem:[%s231 + $0x488] sm:$0xf]
                %524 = vst [vmem:[%s232 + $0x244] sm:$0xf] %v523
                %v525 = vld [vmem:[%s231 + $0x490] sm:$0xf]
                %526 = vst [vmem:[%s232 + $0x248] sm:$0xf] %v525
                %v527 = vld [vmem:[%s231 + $0x498] sm:$0xf]
                %528 = vst [vmem:[%s232 + $0x24c] sm:$0xf] %v527
                %v529 = vld [vmem:[%s231 + $0x4a0] sm:$0xf]
                %530 = vst [vmem:[%s232 + $0x250] sm:$0xf] %v529
                %v531 = vld [vmem:[%s231 + $0x4a8] sm:$0xf]
                %532 = vst [vmem:[%s232 + $0x254] sm:$0xf] %v531
                %v533 = vld [vmem:[%s231 + $0x4b0] sm:$0xf]
                %534 = vst [vmem:[%s232 + $0x258] sm:$0xf] %v533
                %v535 = vld [vmem:[%s231 + $0x4b8] sm:$0xf]
                %536 = vst [vmem:[%s232 + $0x25c] sm:$0xf] %v535
                %v537 = vld [vmem:[%s231 + $0x4c0] sm:$0xf]
                %538 = vst [vmem:[%s232 + $0x260] sm:$0xf] %v537
                %v539 = vld [vmem:[%s231 + $0x4c8] sm:$0xf]
                %540 = vst [vmem:[%s232 + $0x264] sm:$0xf] %v539
                %v541 = vld [vmem:[%s231 + $0x4d0] sm:$0xf]
                %542 = vst [vmem:[%s232 + $0x268] sm:$0xf] %v541
                %v543 = vld [vmem:[%s231 + $0x4d8] sm:$0xf]
                %544 = vst [vmem:[%s232 + $0x26c] sm:$0xf] %v543
                %v545 = vld [vmem:[%s231 + $0x4e0] sm:$0xf]
                %546 = vst [vmem:[%s232 + $0x270] sm:$0xf] %v545
                %v547 = vld [vmem:[%s231 + $0x4e8] sm:$0xf]
                %548 = vst [vmem:[%s232 + $0x274] sm:$0xf] %v547
                %v549 = vld [vmem:[%s231 + $0x4f0] sm:$0xf]
                %550 = vst [vmem:[%s232 + $0x278] sm:$0xf] %v549
                %v551 = vld [vmem:[%s231 + $0x4f8] sm:$0xf]
                %552 = vst [vmem:[%s232 + $0x27c] sm:$0xf] %v551
                %v553 = vld [vmem:[%s231 + $0x500] sm:$0xf]
                %554 = vst [vmem:[%s232 + $0x280] sm:$0xf] %v553
                %v555 = vld [vmem:[%s231 + $0x508] sm:$0xf]
                %556 = vst [vmem:[%s232 + $0x284] sm:$0xf] %v555
                %v557 = vld [vmem:[%s231 + $0x510] sm:$0xf]
                %558 = vst [vmem:[%s232 + $0x288] sm:$0xf] %v557
                %v559 = vld [vmem:[%s231 + $0x518] sm:$0xf]
                %560 = vst [vmem:[%s232 + $0x28c] sm:$0xf] %v559
                %v561 = vld [vmem:[%s231 + $0x520] sm:$0xf]
                %562 = vst [vmem:[%s232 + $0x290] sm:$0xf] %v561
                %v563 = vld [vmem:[%s231 + $0x528] sm:$0xf]
                %564 = vst [vmem:[%s232 + $0x294] sm:$0xf] %v563
                %v565 = vld [vmem:[%s231 + $0x530] sm:$0xf]
                %566 = vst [vmem:[%s232 + $0x298] sm:$0xf] %v565
                %v567 = vld [vmem:[%s231 + $0x538] sm:$0xf]
                %568 = vst [vmem:[%s232 + $0x29c] sm:$0xf] %v567
                %v569 = vld [vmem:[%s231 + $0x540] sm:$0xf]
                %570 = vst [vmem:[%s232 + $0x2a0] sm:$0xf] %v569
                %v571 = vld [vmem:[%s231 + $0x548] sm:$0xf]
                %572 = vst [vmem:[%s232 + $0x2a4] sm:$0xf] %v571
                %v573 = vld [vmem:[%s231 + $0x550] sm:$0xf]
                %574 = vst [vmem:[%s232 + $0x2a8] sm:$0xf] %v573
                %v575 = vld [vmem:[%s231 + $0x558] sm:$0xf]
                %576 = vst [vmem:[%s232 + $0x2ac] sm:$0xf] %v575
                %v577 = vld [vmem:[%s231 + $0x560] sm:$0xf]
                %578 = vst [vmem:[%s232 + $0x2b0] sm:$0xf] %v577
                %v579 = vld [vmem:[%s231 + $0x568] sm:$0xf]
                %580 = vst [vmem:[%s232 + $0x2b4] sm:$0xf] %v579
                %v581 = vld [vmem:[%s231 + $0x570] sm:$0xf]
                %582 = vst [vmem:[%s232 + $0x2b8] sm:$0xf] %v581
                %v583 = vld [vmem:[%s231 + $0x578] sm:$0xf]
                %584 = vst [vmem:[%s232 + $0x2bc] sm:$0xf] %v583
                %v585 = vld [vmem:[%s231 + $0x580] sm:$0xf]
                %586 = vst [vmem:[%s232 + $0x2c0] sm:$0xf] %v585
                %v587 = vld [vmem:[%s231 + $0x588] sm:$0xf]
                %588 = vst [vmem:[%s232 + $0x2c4] sm:$0xf] %v587
                %v589 = vld [vmem:[%s231 + $0x590] sm:$0xf]
                %590 = vst [vmem:[%s232 + $0x2c8] sm:$0xf] %v589
                %v591 = vld [vmem:[%s231 + $0x598] sm:$0xf]
                %592 = vst [vmem:[%s232 + $0x2cc] sm:$0xf] %v591
                %v593 = vld [vmem:[%s231 + $0x5a0] sm:$0xf]
                %594 = vst [vmem:[%s232 + $0x2d0] sm:$0xf] %v593
                %v595 = vld [vmem:[%s231 + $0x5a8] sm:$0xf]
                %596 = vst [vmem:[%s232 + $0x2d4] sm:$0xf] %v595
                %v597 = vld [vmem:[%s231 + $0x5b0] sm:$0xf]
                %598 = vst [vmem:[%s232 + $0x2d8] sm:$0xf] %v597
                %v599 = vld [vmem:[%s231 + $0x5b8] sm:$0xf]
                %600 = vst [vmem:[%s232 + $0x2dc] sm:$0xf] %v599
                %v601 = vld [vmem:[%s231 + $0x5c0] sm:$0xf]
                %602 = vst [vmem:[%s232 + $0x2e0] sm:$0xf] %v601
                %v603 = vld [vmem:[%s231 + $0x5c8] sm:$0xf]
                %604 = vst [vmem:[%s232 + $0x2e4] sm:$0xf] %v603
                %v605 = vld [vmem:[%s231 + $0x5d0] sm:$0xf]
                %606 = vst [vmem:[%s232 + $0x2e8] sm:$0xf] %v605
                %v607 = vld [vmem:[%s231 + $0x5d8] sm:$0xf]
                %608 = vst [vmem:[%s232 + $0x2ec] sm:$0xf] %v607
                %v609 = vld [vmem:[%s231 + $0x5e0] sm:$0xf]
                %610 = vst [vmem:[%s232 + $0x2f0] sm:$0xf] %v609
                %v611 = vld [vmem:[%s231 + $0x5e8] sm:$0xf]
                %612 = vst [vmem:[%s232 + $0x2f4] sm:$0xf] %v611
                %v613 = vld [vmem:[%s231 + $0x5f0] sm:$0xf]
                %614 = vst [vmem:[%s232 + $0x2f8] sm:$0xf] %v613
                %v615 = vld [vmem:[%s231 + $0x5f8] sm:$0xf]
                %616 = vst [vmem:[%s232 + $0x2fc] sm:$0xf] %v615
                %v617 = vld [vmem:[%s231 + $0x600] sm:$0xf]
                %618 = vst [vmem:[%s232 + $0x300] sm:$0xf] %v617
                %v619 = vld [vmem:[%s231 + $0x608] sm:$0xf]
                %620 = vst [vmem:[%s232 + $0x304] sm:$0xf] %v619
                %v621 = vld [vmem:[%s231 + $0x610] sm:$0xf]
                %622 = vst [vmem:[%s232 + $0x308] sm:$0xf] %v621
                %v623 = vld [vmem:[%s231 + $0x618] sm:$0xf]
                %624 = vst [vmem:[%s232 + $0x30c] sm:$0xf] %v623
                %v625 = vld [vmem:[%s231 + $0x620] sm:$0xf]
                %626 = vst [vmem:[%s232 + $0x310] sm:$0xf] %v625
                %v627 = vld [vmem:[%s231 + $0x628] sm:$0xf]
                %628 = vst [vmem:[%s232 + $0x314] sm:$0xf] %v627
                %v629 = vld [vmem:[%s231 + $0x630] sm:$0xf]
                %630 = vst [vmem:[%s232 + $0x318] sm:$0xf] %v629
                %v631 = vld [vmem:[%s231 + $0x638] sm:$0xf]
                %632 = vst [vmem:[%s232 + $0x31c] sm:$0xf] %v631
                %v633 = vld [vmem:[%s231 + $0x640] sm:$0xf]
                %634 = vst [vmem:[%s232 + $0x320] sm:$0xf] %v633
                %v635 = vld [vmem:[%s231 + $0x648] sm:$0xf]
                %636 = vst [vmem:[%s232 + $0x324] sm:$0xf] %v635
                %v637 = vld [vmem:[%s231 + $0x650] sm:$0xf]
                %638 = vst [vmem:[%s232 + $0x328] sm:$0xf] %v637
                %v639 = vld [vmem:[%s231 + $0x658] sm:$0xf]
                %640 = vst [vmem:[%s232 + $0x32c] sm:$0xf] %v639
                %v641 = vld [vmem:[%s231 + $0x660] sm:$0xf]
                %642 = vst [vmem:[%s232 + $0x330] sm:$0xf] %v641
                %v643 = vld [vmem:[%s231 + $0x668] sm:$0xf]
                %644 = vst [vmem:[%s232 + $0x334] sm:$0xf] %v643
                %v645 = vld [vmem:[%s231 + $0x670] sm:$0xf]
                %646 = vst [vmem:[%s232 + $0x338] sm:$0xf] %v645
                %v647 = vld [vmem:[%s231 + $0x678] sm:$0xf]
                %648 = vst [vmem:[%s232 + $0x33c] sm:$0xf] %v647
                %v649 = vld [vmem:[%s231 + $0x680] sm:$0xf]
                %650 = vst [vmem:[%s232 + $0x340] sm:$0xf] %v649
                %v651 = vld [vmem:[%s231 + $0x688] sm:$0xf]
                %652 = vst [vmem:[%s232 + $0x344] sm:$0xf] %v651
                %v653 = vld [vmem:[%s231 + $0x690] sm:$0xf]
                %654 = vst [vmem:[%s232 + $0x348] sm:$0xf] %v653
                %v655 = vld [vmem:[%s231 + $0x698] sm:$0xf]
                %656 = vst [vmem:[%s232 + $0x34c] sm:$0xf] %v655
                %v657 = vld [vmem:[%s231 + $0x6a0] sm:$0xf]
                %658 = vst [vmem:[%s232 + $0x350] sm:$0xf] %v657
                %v659 = vld [vmem:[%s231 + $0x6a8] sm:$0xf]
                %660 = vst [vmem:[%s232 + $0x354] sm:$0xf] %v659
                %v661 = vld [vmem:[%s231 + $0x6b0] sm:$0xf]
                %662 = vst [vmem:[%s232 + $0x358] sm:$0xf] %v661
                %v663 = vld [vmem:[%s231 + $0x6b8] sm:$0xf]
                %664 = vst [vmem:[%s232 + $0x35c] sm:$0xf] %v663
                %v665 = vld [vmem:[%s231 + $0x6c0] sm:$0xf]
                %666 = vst [vmem:[%s232 + $0x360] sm:$0xf] %v665
                %v667 = vld [vmem:[%s231 + $0x6c8] sm:$0xf]
                %668 = vst [vmem:[%s232 + $0x364] sm:$0xf] %v667
                %v669 = vld [vmem:[%s231 + $0x6d0] sm:$0xf]
                %670 = vst [vmem:[%s232 + $0x368] sm:$0xf] %v669
                %v671 = vld [vmem:[%s231 + $0x6d8] sm:$0xf]
                %672 = vst [vmem:[%s232 + $0x36c] sm:$0xf] %v671
                %v673 = vld [vmem:[%s231 + $0x6e0] sm:$0xf]
                %674 = vst [vmem:[%s232 + $0x370] sm:$0xf] %v673
                %v675 = vld [vmem:[%s231 + $0x6e8] sm:$0xf]
                %676 = vst [vmem:[%s232 + $0x374] sm:$0xf] %v675
                %v677 = vld [vmem:[%s231 + $0x6f0] sm:$0xf]
                %678 = vst [vmem:[%s232 + $0x378] sm:$0xf] %v677
                %v679 = vld [vmem:[%s231 + $0x6f8] sm:$0xf]
                %680 = vst [vmem:[%s232 + $0x37c] sm:$0xf] %v679
                %v681 = vld [vmem:[%s231 + $0x700] sm:$0xf]
                %682 = vst [vmem:[%s232 + $0x380] sm:$0xf] %v681
                %v683 = vld [vmem:[%s231 + $0x708] sm:$0xf]
                %684 = vst [vmem:[%s232 + $0x384] sm:$0xf] %v683
                %v685 = vld [vmem:[%s231 + $0x710] sm:$0xf]
                %686 = vst [vmem:[%s232 + $0x388] sm:$0xf] %v685
                %v687 = vld [vmem:[%s231 + $0x718] sm:$0xf]
                %688 = vst [vmem:[%s232 + $0x38c] sm:$0xf] %v687
                %v689 = vld [vmem:[%s231 + $0x720] sm:$0xf]
                %690 = vst [vmem:[%s232 + $0x390] sm:$0xf] %v689
                %v691 = vld [vmem:[%s231 + $0x728] sm:$0xf]
                %692 = vst [vmem:[%s232 + $0x394] sm:$0xf] %v691
                %v693 = vld [vmem:[%s231 + $0x730] sm:$0xf]
                %694 = vst [vmem:[%s232 + $0x398] sm:$0xf] %v693
                %v695 = vld [vmem:[%s231 + $0x738] sm:$0xf]
                %696 = vst [vmem:[%s232 + $0x39c] sm:$0xf] %v695
                %v697 = vld [vmem:[%s231 + $0x740] sm:$0xf]
                %698 = vst [vmem:[%s232 + $0x3a0] sm:$0xf] %v697
                %v699 = vld [vmem:[%s231 + $0x748] sm:$0xf]
                %700 = vst [vmem:[%s232 + $0x3a4] sm:$0xf] %v699
                %v701 = vld [vmem:[%s231 + $0x750] sm:$0xf]
                %702 = vst [vmem:[%s232 + $0x3a8] sm:$0xf] %v701
                %v703 = vld [vmem:[%s231 + $0x758] sm:$0xf]
                %704 = vst [vmem:[%s232 + $0x3ac] sm:$0xf] %v703
                %v705 = vld [vmem:[%s231 + $0x760] sm:$0xf]
                %706 = vst [vmem:[%s232 + $0x3b0] sm:$0xf] %v705
                %v707 = vld [vmem:[%s231 + $0x768] sm:$0xf]
                %708 = vst [vmem:[%s232 + $0x3b4] sm:$0xf] %v707
                %v709 = vld [vmem:[%s231 + $0x770] sm:$0xf]
                %710 = vst [vmem:[%s232 + $0x3b8] sm:$0xf] %v709
                %v711 = vld [vmem:[%s231 + $0x778] sm:$0xf]
                %712 = vst [vmem:[%s232 + $0x3bc] sm:$0xf] %v711
                %v713 = vld [vmem:[%s231 + $0x780] sm:$0xf]
                %714 = vst [vmem:[%s232 + $0x3c0] sm:$0xf] %v713
                %v715 = vld [vmem:[%s231 + $0x788] sm:$0xf]
                %716 = vst [vmem:[%s232 + $0x3c4] sm:$0xf] %v715
                %v717 = vld [vmem:[%s231 + $0x790] sm:$0xf]
                %718 = vst [vmem:[%s232 + $0x3c8] sm:$0xf] %v717
                %v719 = vld [vmem:[%s231 + $0x798] sm:$0xf]
                %720 = vst [vmem:[%s232 + $0x3cc] sm:$0xf] %v719
                %v721 = vld [vmem:[%s231 + $0x7a0] sm:$0xf]
                %722 = vst [vmem:[%s232 + $0x3d0] sm:$0xf] %v721
                %v723 = vld [vmem:[%s231 + $0x7a8] sm:$0xf]
                %724 = vst [vmem:[%s232 + $0x3d4] sm:$0xf] %v723
                %v725 = vld [vmem:[%s231 + $0x7b0] sm:$0xf]
                %726 = vst [vmem:[%s232 + $0x3d8] sm:$0xf] %v725
                %v727 = vld [vmem:[%s231 + $0x7b8] sm:$0xf]
                %728 = vst [vmem:[%s232 + $0x3dc] sm:$0xf] %v727
                %v729 = vld [vmem:[%s231 + $0x7c0] sm:$0xf]
                %730 = vst [vmem:[%s232 + $0x3e0] sm:$0xf] %v729
                %v731 = vld [vmem:[%s231 + $0x7c8] sm:$0xf]
                %732 = vst [vmem:[%s232 + $0x3e4] sm:$0xf] %v731
                %v733 = vld [vmem:[%s231 + $0x7d0] sm:$0xf]
                %734 = vst [vmem:[%s232 + $0x3e8] sm:$0xf] %v733
                %v735 = vld [vmem:[%s231 + $0x7d8] sm:$0xf]
                %736 = vst [vmem:[%s232 + $0x3ec] sm:$0xf] %v735
                %v737 = vld [vmem:[%s231 + $0x7e0] sm:$0xf]
                %738 = vst [vmem:[%s232 + $0x3f0] sm:$0xf] %v737
                %v739 = vld [vmem:[%s231 + $0x7e8] sm:$0xf]
                %740 = vst [vmem:[%s232 + $0x3f4] sm:$0xf] %v739
                %v741 = vld [vmem:[%s231 + $0x7f0] sm:$0xf]
                %742 = vst [vmem:[%s232 + $0x3f8] sm:$0xf] %v741
                %v743 = vld [vmem:[%s231 + $0x7f8] sm:$0xf]
                %744 = vst [vmem:[%s232 + $0x3fc] sm:$0xf] %v743
                %v745 = vld [vmem:[%s231 + $0x800] sm:$0xf]
                %746 = vst [vmem:[%s232 + $0x400] sm:$0xf] %v745
                %v747 = vld [vmem:[%s231 + $0x808] sm:$0xf]
                %748 = vst [vmem:[%s232 + $0x404] sm:$0xf] %v747
                %v749 = vld [vmem:[%s231 + $0x810] sm:$0xf]
                %750 = vst [vmem:[%s232 + $0x408] sm:$0xf] %v749
                %v751 = vld [vmem:[%s231 + $0x818] sm:$0xf]
                %752 = vst [vmem:[%s232 + $0x40c] sm:$0xf] %v751
                %v753 = vld [vmem:[%s231 + $0x820] sm:$0xf]
                %754 = vst [vmem:[%s232 + $0x410] sm:$0xf] %v753
                %v755 = vld [vmem:[%s231 + $0x828] sm:$0xf]
                %756 = vst [vmem:[%s232 + $0x414] sm:$0xf] %v755
                %v757 = vld [vmem:[%s231 + $0x830] sm:$0xf]
                %758 = vst [vmem:[%s232 + $0x418] sm:$0xf] %v757
                %v759 = vld [vmem:[%s231 + $0x838] sm:$0xf]
                %760 = vst [vmem:[%s232 + $0x41c] sm:$0xf] %v759
                %v761 = vld [vmem:[%s231 + $0x840] sm:$0xf]
                %762 = vst [vmem:[%s232 + $0x420] sm:$0xf] %v761
                %v763 = vld [vmem:[%s231 + $0x848] sm:$0xf]
                %764 = vst [vmem:[%s232 + $0x424] sm:$0xf] %v763
                %v765 = vld [vmem:[%s231 + $0x850] sm:$0xf]
                %766 = vst [vmem:[%s232 + $0x428] sm:$0xf] %v765
                %v767 = vld [vmem:[%s231 + $0x858] sm:$0xf]
                %768 = vst [vmem:[%s232 + $0x42c] sm:$0xf] %v767
                %v769 = vld [vmem:[%s231 + $0x860] sm:$0xf]
                %770 = vst [vmem:[%s232 + $0x430] sm:$0xf] %v769
                %v771 = vld [vmem:[%s231 + $0x868] sm:$0xf]
                %772 = vst [vmem:[%s232 + $0x434] sm:$0xf] %v771
                %v773 = vld [vmem:[%s231 + $0x870] sm:$0xf]
                %774 = vst [vmem:[%s232 + $0x438] sm:$0xf] %v773
                %v775 = vld [vmem:[%s231 + $0x878] sm:$0xf]
                %776 = vst [vmem:[%s232 + $0x43c] sm:$0xf] %v775
                %v777 = vld [vmem:[%s231 + $0x880] sm:$0xf]
                %778 = vst [vmem:[%s232 + $0x440] sm:$0xf] %v777
                %v779 = vld [vmem:[%s231 + $0x888] sm:$0xf]
                %780 = vst [vmem:[%s232 + $0x444] sm:$0xf] %v779
                %v781 = vld [vmem:[%s231 + $0x890] sm:$0xf]
                %782 = vst [vmem:[%s232 + $0x448] sm:$0xf] %v781
                %v783 = vld [vmem:[%s231 + $0x898] sm:$0xf]
                %784 = vst [vmem:[%s232 + $0x44c] sm:$0xf] %v783
                %v785 = vld [vmem:[%s231 + $0x8a0] sm:$0xf]
                %786 = vst [vmem:[%s232 + $0x450] sm:$0xf] %v785
                %v787 = vld [vmem:[%s231 + $0x8a8] sm:$0xf]
                %788 = vst [vmem:[%s232 + $0x454] sm:$0xf] %v787
                %v789 = vld [vmem:[%s231 + $0x8b0] sm:$0xf]
                %790 = vst [vmem:[%s232 + $0x458] sm:$0xf] %v789
                %v791 = vld [vmem:[%s231 + $0x8b8] sm:$0xf]
                %792 = vst [vmem:[%s232 + $0x45c] sm:$0xf] %v791
                %v793 = vld [vmem:[%s231 + $0x8c0] sm:$0xf]
                %794 = vst [vmem:[%s232 + $0x460] sm:$0xf] %v793
                %v795 = vld [vmem:[%s231 + $0x8c8] sm:$0xf]
                %796 = vst [vmem:[%s232 + $0x464] sm:$0xf] %v795
                %v797 = vld [vmem:[%s231 + $0x8d0] sm:$0xf]
                %798 = vst [vmem:[%s232 + $0x468] sm:$0xf] %v797
                %v799 = vld [vmem:[%s231 + $0x8d8] sm:$0xf]
                %800 = vst [vmem:[%s232 + $0x46c] sm:$0xf] %v799
                %v801 = vld [vmem:[%s231 + $0x8e0] sm:$0xf]
                %802 = vst [vmem:[%s232 + $0x470] sm:$0xf] %v801
                %v803 = vld [vmem:[%s231 + $0x8e8] sm:$0xf]
                %804 = vst [vmem:[%s232 + $0x474] sm:$0xf] %v803
                %v805 = vld [vmem:[%s231 + $0x8f0] sm:$0xf]
                %806 = vst [vmem:[%s232 + $0x478] sm:$0xf] %v805
                %v807 = vld [vmem:[%s231 + $0x8f8] sm:$0xf]
                %808 = vst [vmem:[%s232 + $0x47c] sm:$0xf] %v807
              $region45: #{discriminator_v2.9} parent=39 // loop_footer
                %s230 = sadd.s32 1, %s226
              $region46: #{discriminator_v2.9} parent=39 // loop_footer_branch
                %225 = sbr.rel target = $region42
              $region47: #{discriminator_v2.9} parent=39 // loop_exit
                _
            $region40: #{discriminator_v2.9} parent=31 // pred_fallthru
              _
          $region32: #{discriminator_v2.9} parent=27 // pred_fallthru
            _
          %1404 = vnop
        $region28: #{discriminator_v2.9} parent=23 // pred_fallthru
          _
        // Predicated region
        $region66: #{discriminator_v2.9} parent=23 // pred_check
          %p1405 = pneg %p79
        $region67: #{discriminator_v2.9} parent=23 // pred_check_branch
          %1407 = sbr.rel (%p1405) target = $region69
        $region68: #{discriminator_v2.9} parent=23 // pred_region
          %p1408 = scmp.lt.s32.totalorder %s12, 1
          %s1409 = scalar_select %p1408, %s12, 1
          %s1410 = scalar_lea.vmem %s2, %s1409
        $region69: #{discriminator_v2.9} parent=23 // pred_fallthru
          _
        // Predicated region
        $region70: #{discriminator_v2.9} parent=23 // pred_check
          %p1411 = pneg %p105
        $region71: #{discriminator_v2.9} parent=23 // pred_check_branch
          %1413 = sbr.rel (%p1411) target = $region73
        $region72: #{discriminator_v2.9} parent=23 // pred_region
          %p1414 = scmp.lt.s32.totalorder %s12, 1
          %s1415 = scalar_select %p1414, %s12, 1
          %s1416 = scalar_lea.vmem %s3, %s1415
        $region73: #{discriminator_v2.9} parent=23 // pred_fallthru
          _
        // Predicated region
        $region74: #{discriminator_v2.9} parent=23 // pred_check
          %p1417 = pneg %p152
        $region75: #{discriminator_v2.9} parent=23 // pred_check_branch
          %1419 = sbr.rel (%p1417) target = $region77
        $region76: #{discriminator_v2.9} parent=23 // pred_region
          %s1420 = sand.u32 %s142, 1
          %s1421 = sand.u32 %s142, 1
          %s1422 = smul.addr %s1421, 64
          %s1423 = scalar_lea.vmem [#allocation3], %s1422
          %s1424 = smul.addr %s12, 4
          %s1425 = scalar_lea.vmem %s5, %s1424
          // Predicated region
          $region78: #{discriminator_v2.9} parent=76 // pred_check
            _
          $region79: #{discriminator_v2.9} parent=76 // pred_check_branch
            %1427 = sbr.rel (0) target = $region81
          $region80: #{discriminator_v2.9} parent=76 // pred_region
            // Predicated region
            $region82: #{discriminator_v2.9} parent=80 // pred_check
              _
            $region83: #{discriminator_v2.9} parent=80 // pred_check_branch
              %1429 = sbr.rel target = $region85
            $region84: #{discriminator_v2.9} parent=80 // pred_region
              // Predicated region
              $region97: #{discriminator_v2.9} parent=84 // pred_check
                _
              $region98: #{discriminator_v2.9} parent=84 // pred_check_branch
                %1474 = sbr.rel (0) target = $region100
              $region99: #{discriminator_v2.9} parent=84 // pred_region
                loop: start=0, step=1, limit=1
                $region101: #{discriminator_v2.9} parent=99 // loop_pre_header
                  _
                $region102: #{discriminator_v2.9} parent=99 // loop_header
                  %s1476 = sphi 0, %s1480
                  %p1477 = scmp.ge.s32.totalorder %s1476, 1
                  %s1481 = sphi %s1425, %s1425
                  %s1482 = sphi %s1423, %s1423
                $region103: #{discriminator_v2.9} parent=99 // loop_header_branch
                  %1479 = sbr.rel (%p1477) target = $region107
                $region104: #{discriminator_v2.9} parent=99 // loop_body
                  _
                $region105: #{discriminator_v2.9} parent=99 // loop_footer
                  %s1480 = sadd.s32 1, %s1476
                $region106: #{discriminator_v2.9} parent=99 // loop_footer_branch
                  %1475 = sbr.rel target = $region102
                $region107: #{discriminator_v2.9} parent=99 // loop_exit
                  _
                loop: start=0, step=1, limit=1
                $region108: #{discriminator_v2.9} parent=99 // loop_pre_header
                  _
                $region109: #{discriminator_v2.9} parent=99 // loop_header
                  %s1485 = sphi 0, %s1489
                  %p1486 = scmp.ge.s32.totalorder %s1485, 1
                  %s1490 = sphi %s1425, %s1425
                  %s1491 = sphi %s1423, %s1423
                $region110: #{discriminator_v2.9} parent=99 // loop_header_branch
                  %1488 = sbr.rel (%p1486) target = $region114
                $region111: #{discriminator_v2.9} parent=99 // loop_body
                  %v1492 = vld [vmem:[%s1490] sm:$0xf]
                  %1493 = vst [vmem:[%s1491] sm:$0xf] %v1492
                  %v1494 = vld [vmem:[%s1490 + $0x8] sm:$0xf]
                  %1495 = vst [vmem:[%s1491 + $0x4] sm:$0xf] %v1494
                  %v1496 = vld [vmem:[%s1490 + $0x10] sm:$0xf]
                  %1497 = vst [vmem:[%s1491 + $0x8] sm:$0xf] %v1496
                  %v1498 = vld [vmem:[%s1490 + $0x18] sm:$0xf]
                  %1499 = vst [vmem:[%s1491 + $0xc] sm:$0xf] %v1498
                  %v1500 = vld [vmem:[%s1490 + $0x20] sm:$0xf]
                  %1501 = vst [vmem:[%s1491 + $0x10] sm:$0xf] %v1500
                  %v1502 = vld [vmem:[%s1490 + $0x28] sm:$0xf]
                  %1503 = vst [vmem:[%s1491 + $0x14] sm:$0xf] %v1502
                  %v1504 = vld [vmem:[%s1490 + $0x30] sm:$0xf]
                  %1505 = vst [vmem:[%s1491 + $0x18] sm:$0xf] %v1504
                  %v1506 = vld [vmem:[%s1490 + $0x38] sm:$0xf]
                  %1507 = vst [vmem:[%s1491 + $0x1c] sm:$0xf] %v1506
                  %v1508 = vld [vmem:[%s1490 + $0x40] sm:$0xf]
                  %1509 = vst [vmem:[%s1491 + $0x20] sm:$0xf] %v1508
                  %v1510 = vld [vmem:[%s1490 + $0x48] sm:$0xf]
                  %1511 = vst [vmem:[%s1491 + $0x24] sm:$0xf] %v1510
                  %v1512 = vld [vmem:[%s1490 + $0x50] sm:$0xf]
                  %1513 = vst [vmem:[%s1491 + $0x28] sm:$0xf] %v1512
                  %v1514 = vld [vmem:[%s1490 + $0x58] sm:$0xf]
                  %1515 = vst [vmem:[%s1491 + $0x2c] sm:$0xf] %v1514
                  %v1516 = vld [vmem:[%s1490 + $0x60] sm:$0xf]
                  %1517 = vst [vmem:[%s1491 + $0x30] sm:$0xf] %v1516
                  %v1518 = vld [vmem:[%s1490 + $0x68] sm:$0xf]
                  %1519 = vst [vmem:[%s1491 + $0x34] sm:$0xf] %v1518
                  %v1520 = vld [vmem:[%s1490 + $0x70] sm:$0xf]
                  %1521 = vst [vmem:[%s1491 + $0x38] sm:$0xf] %v1520
                  %v1522 = vld [vmem:[%s1490 + $0x78] sm:$0xf]
                  %1523 = vst [vmem:[%s1491 + $0x3c] sm:$0xf] %v1522
                $region112: #{discriminator_v2.9} parent=99 // loop_footer
                  %s1489 = sadd.s32 1, %s1485
                $region113: #{discriminator_v2.9} parent=99 // loop_footer_branch
                  %1484 = sbr.rel target = $region109
                $region114: #{discriminator_v2.9} parent=99 // loop_exit
                  _
              $region100: #{discriminator_v2.9} parent=84 // pred_fallthru
                _
            $region85: #{discriminator_v2.9} parent=80 // pred_fallthru
              _
            // Predicated region
            $region86: #{discriminator_v2.9} parent=80 // pred_check
              _
            $region87: #{discriminator_v2.9} parent=80 // pred_check_branch
              %1431 = sbr.rel (0) target = $region89
            $region88: #{discriminator_v2.9} parent=80 // pred_region
              loop: start=0, step=1, limit=1
              $region90: #{discriminator_v2.9} parent=88 // loop_pre_header
                _
              $region91: #{discriminator_v2.9} parent=88 // loop_header
                %s1434 = sphi 0, %s1438
                %p1435 = scmp.ge.s32.totalorder %s1434, 1
                %s1439 = sphi %s1425, %s1425
                %s1440 = sphi %s1423, %s1423
              $region92: #{discriminator_v2.9} parent=88 // loop_header_branch
                %1437 = sbr.rel (%p1435) target = $region96
              $region93: #{discriminator_v2.9} parent=88 // loop_body
                %v1441 = vld [vmem:[%s1439] sm:$0xf]
                %1442 = vst [vmem:[%s1440] sm:$0xf] %v1441
                %v1443 = vld [vmem:[%s1439 + $0x8] sm:$0xf]
                %1444 = vst [vmem:[%s1440 + $0x4] sm:$0xf] %v1443
                %v1445 = vld [vmem:[%s1439 + $0x10] sm:$0xf]
                %1446 = vst [vmem:[%s1440 + $0x8] sm:$0xf] %v1445
                %v1447 = vld [vmem:[%s1439 + $0x18] sm:$0xf]
                %1448 = vst [vmem:[%s1440 + $0xc] sm:$0xf] %v1447
                %v1449 = vld [vmem:[%s1439 + $0x20] sm:$0xf]
                %1450 = vst [vmem:[%s1440 + $0x10] sm:$0xf] %v1449
                %v1451 = vld [vmem:[%s1439 + $0x28] sm:$0xf]
                %1452 = vst [vmem:[%s1440 + $0x14] sm:$0xf] %v1451
                %v1453 = vld [vmem:[%s1439 + $0x30] sm:$0xf]
                %1454 = vst [vmem:[%s1440 + $0x18] sm:$0xf] %v1453
                %v1455 = vld [vmem:[%s1439 + $0x38] sm:$0xf]
                %1456 = vst [vmem:[%s1440 + $0x1c] sm:$0xf] %v1455
                %v1457 = vld [vmem:[%s1439 + $0x40] sm:$0xf]
                %1458 = vst [vmem:[%s1440 + $0x20] sm:$0xf] %v1457
                %v1459 = vld [vmem:[%s1439 + $0x48] sm:$0xf]
                %1460 = vst [vmem:[%s1440 + $0x24] sm:$0xf] %v1459
                %v1461 = vld [vmem:[%s1439 + $0x50] sm:$0xf]
                %1462 = vst [vmem:[%s1440 + $0x28] sm:$0xf] %v1461
                %v1463 = vld [vmem:[%s1439 + $0x58] sm:$0xf]
                %1464 = vst [vmem:[%s1440 + $0x2c] sm:$0xf] %v1463
                %v1465 = vld [vmem:[%s1439 + $0x60] sm:$0xf]
                %1466 = vst [vmem:[%s1440 + $0x30] sm:$0xf] %v1465
                %v1467 = vld [vmem:[%s1439 + $0x68] sm:$0xf]
                %1468 = vst [vmem:[%s1440 + $0x34] sm:$0xf] %v1467
                %v1469 = vld [vmem:[%s1439 + $0x70] sm:$0xf]
                %1470 = vst [vmem:[%s1440 + $0x38] sm:$0xf] %v1469
                %v1471 = vld [vmem:[%s1439 + $0x78] sm:$0xf]
                %1472 = vst [vmem:[%s1440 + $0x3c] sm:$0xf] %v1471
              $region94: #{discriminator_v2.9} parent=88 // loop_footer
                %s1438 = sadd.s32 1, %s1434
              $region95: #{discriminator_v2.9} parent=88 // loop_footer_branch
                %1433 = sbr.rel target = $region91
              $region96: #{discriminator_v2.9} parent=88 // loop_exit
                _
            $region89: #{discriminator_v2.9} parent=80 // pred_fallthru
              _
          $region81: #{discriminator_v2.9} parent=76 // pred_fallthru
            _
          %1524 = vnop
        $region77: #{discriminator_v2.9} parent=23 // pred_fallthru
          _
      $region24: #{discriminator_v2.9} parent=5 // pred_fallthru
        _
      %p1525 = scmp.le.s32.totalorder 1, %s12
      %p1526 = scmp.lt.s32.totalorder %s12, 3
      %p1527 = pnand %p1525, %p1526
      %p1528 = pneg %p1527
      // Predicated region
      $region115: #{discriminator_v2.9} parent=5 // pred_check
        _
      $region116: #{discriminator_v2.9} parent=5 // pred_check_branch
        %1530 = sbr.rel (%p1527) target = $region118
      $region117: #{discriminator_v2.9} parent=5 // pred_region
        %s1531 = ssub.s32 %s12, 1
        %s1532 = sand.u32 %s46, 1
        %s1533 = sand.u32 %s46, 1
        %s1534 = smul.addr %s1533, 1152
        %s1535 = scalar_lea.vmem [#allocation2], %s1534
        // Predicated region
        $region119: #{discriminator_v2.9} parent=117 // pred_check
          %p1536 = pneg %p59
        $region120: #{discriminator_v2.9} parent=117 // pred_check_branch
          %1538 = sbr.rel (%p1536) target = $region122
        $region121: #{discriminator_v2.9} parent=117 // pred_region
          _
        $region122: #{discriminator_v2.9} parent=117 // pred_fallthru
          _
        %s1539 = sand.u32 %s145, 1
        %s1540 = sand.u32 %s145, 1
        %s1541 = smul.addr %s1540, 64
        %s1542 = scalar_lea.vmem [#allocation3], %s1541
        // Predicated region
        $region123: #{discriminator_v2.9} parent=117 // pred_check
          %p1543 = pneg %p158
        $region124: #{discriminator_v2.9} parent=117 // pred_check_branch
          %1545 = sbr.rel (%p1543) target = $region126
        $region125: #{discriminator_v2.9} parent=117 // pred_region
          _
        $region126: #{discriminator_v2.9} parent=117 // pred_fallthru
          _
        %p1546 = pneg %p33
        %p1547 = pneg %p30
        %s1548 = sand.u32 %s46, 1
        %s1549 = sand.u32 %s46, 1
        %s1550 = smul.addr %s1549, 1152
        %s1551 = scalar_lea.vmem [#allocation2], %s1550
        %p1552 = pneg %p59
        %p1553 = pneg %p56
        %p1554 = scmp.lt.s32.totalorder %s17, 1
        %s1555 = scalar_select %p1554, %s17, 1
        %s1556 = scalar_lea.vmem %s2, %s1555
        %p1557 = pneg %p85
        %p1558 = pneg %p82
        %p1559 = scmp.lt.s32.totalorder %s17, 1
        %s1560 = scalar_select %p1559, %s17, 1
        %s1561 = scalar_lea.vmem %s3, %s1560
        %p1562 = pneg %p111
        %p1563 = pneg %p108
        %p1564 = pneg %p132
        %p1565 = pneg %p129
        %s1566 = sand.u32 %s145, 1
        %s1567 = sand.u32 %s145, 1
        %s1568 = smul.addr %s1567, 64
        %s1569 = scalar_lea.vmem [#allocation3], %s1568
        %p1570 = pneg %p158
        %p1571 = pneg %p155
        %p1572 = pneg %p184
        %p1573 = pneg %p181
        %p1574 = scmp.lt.s32.totalorder %s17, 1
        %s1575 = scalar_select %p1574, %s17, 1
        %s1576 = smul.addr %s1575, 4
        %s1577 = scalar_lea.vmem %s6, %s1576
        %p1578 = scmp.lt.s32.totalorder %s17, 1
        %s1579 = scalar_select %p1578, %s17, 1
        %s1580 = scalar_lea.vmem %s2, %s1579
        %p1581 = scmp.lt.s32.totalorder %s17, 1
        %s1582 = scalar_select %p1581, %s17, 1
        %s1583 = scalar_lea.vmem %s3, %s1582
        %p1584 = scmp.lt.s32.totalorder %s17, 1
        %s1585 = scalar_select %p1584, %s17, 1
        %s1586 = smul.addr %s1585, 4
        %s1587 = scalar_lea.vmem %s6, %s1586
        %v1589 = vld [vmem:[%s0] sm:$0x5]
        %v1590 = vld [vmem:[%s0 + $0x4] sm:$0x5]
        %v1591 = vld [vmem:[%s0 + $0x10] sm:$0x5]
        %v1592 = vld [vmem:[%s0 + $0x14] sm:$0x5]
        %v1598 = vunpack.c.l.s4 1966171168
        %v1599 = vunpack.c.0.s8 %v1598
        %v1600 = vlaneseq
        %v1601 = vshrl.u32 %v1600, 7
        %v1602 = vsub.s32 %v1599, %v1601
        %v1603 = vrot.slane %v1589, %v1602
        %v1605 = vunpack.c.l.s4 1966171168
        %v1606 = vunpack.c.0.s8 %v1605
        %v1607 = vlaneseq
        %v1608 = vshrl.u32 %v1607, 7
        %v1609 = vsub.s32 %v1606, %v1608
        %v1610 = vrot.slane %v1590, %v1609
        %v1612 = vunpack.c.l.s4 1966171168
        %v1613 = vunpack.c.0.s8 %v1612
        %v1614 = vlaneseq
        %v1615 = vshrl.u32 %v1614, 7
        %v1616 = vsub.s32 %v1613, %v1615
        %v1617 = vrot.slane %v1591, %v1616
        %v1619 = vunpack.c.l.s4 1966171168
        %v1620 = vunpack.c.0.s8 %v1619
        %v1621 = vlaneseq
        %v1622 = vshrl.u32 %v1621, 7
        %v1623 = vsub.s32 %v1620, %v1622
        %v1624 = vrot.slane %v1592, %v1623
        %v1625 = vld [vmem:[%s1535] sm:$0xf]
        %v1626 = vld [vmem:[%s1535 + $0x4] sm:$0xf]
        %v1627 = vld [vmem:[%s1535 + $0x8] sm:$0xf]
        %v1628 = vld [vmem:[%s1535 + $0xc] sm:$0xf]
        %v1629 = vld [vmem:[%s1535 + $0x10] sm:$0xf]
        %v1630 = vld [vmem:[%s1535 + $0x14] sm:$0xf]
        %v1631 = vld [vmem:[%s1535 + $0x18] sm:$0xf]
        %v1632 = vld [vmem:[%s1535 + $0x1c] sm:$0xf]
        %v1633 = vld [vmem:[%s1535 + $0x20] sm:$0xf]
        %v1634 = vld [vmem:[%s1535 + $0x24] sm:$0xf]
        %v1635 = vld [vmem:[%s1535 + $0x28] sm:$0xf]
        %v1636 = vld [vmem:[%s1535 + $0x2c] sm:$0xf]
        %v1637 = vld [vmem:[%s1535 + $0x30] sm:$0xf]
        %v1638 = vld [vmem:[%s1535 + $0x34] sm:$0xf]
        %v1639 = vld [vmem:[%s1535 + $0x38] sm:$0xf]
        %v1640 = vld [vmem:[%s1535 + $0x3c] sm:$0xf]
        %v1641 = vld [vmem:[%s1535 + $0x40] sm:$0xf]
        %v1642 = vld [vmem:[%s1535 + $0x44] sm:$0xf]
        %v1643 = vld [vmem:[%s1535 + $0x48] sm:$0xf]
        %v1644 = vld [vmem:[%s1535 + $0x4c] sm:$0xf]
        %v1645 = vld [vmem:[%s1535 + $0x50] sm:$0xf]
        %v1646 = vld [vmem:[%s1535 + $0x54] sm:$0xf]
        %v1647 = vld [vmem:[%s1535 + $0x58] sm:$0xf]
        %v1648 = vld [vmem:[%s1535 + $0x5c] sm:$0xf]
        %v1649 = vld [vmem:[%s1535 + $0x60] sm:$0xf]
        %v1650 = vld [vmem:[%s1535 + $0x64] sm:$0xf]
        %v1651 = vld [vmem:[%s1535 + $0x68] sm:$0xf]
        %v1652 = vld [vmem:[%s1535 + $0x6c] sm:$0xf]
        %v1653 = vld [vmem:[%s1535 + $0x70] sm:$0xf]
        %v1654 = vld [vmem:[%s1535 + $0x74] sm:$0xf]
        %v1655 = vld [vmem:[%s1535 + $0x78] sm:$0xf]
        %v1656 = vld [vmem:[%s1535 + $0x7c] sm:$0xf]
        %v1657 = vld [vmem:[%s0] sm:$0xf]
        %v1658 = vld [vmem:[%s0 + $0x4] sm:$0xf]
        %v1659 = vld [vmem:[%s0 + $0x10] sm:$0xf]
        %v1660 = vld [vmem:[%s0 + $0x14] sm:$0xf]
        %v1666 = vunpack.c.l.s4 1966171168
        %v1667 = vunpack.c.0.s8 %v1666
        %v1668 = vlaneseq
        %v1669 = vshrl.u32 %v1668, 7
        %v1670 = vsub.s32 %v1667, %v1669
        %v1671 = vrot.slane %v1657, %v1670
        %v1672 = vcombine.high %v1671, %v1671
        %v1674 = vunpack.c.l.s4 1966171168
        %v1675 = vunpack.c.0.s8 %v1674
        %v1676 = vlaneseq
        %v1677 = vshrl.u32 %v1676, 7
        %v1678 = vsub.s32 %v1675, %v1677
        %v1679 = vrot.slane %v1658, %v1678
        %v1680 = vcombine.high %v1679, %v1679
        %v1682 = vunpack.c.l.s4 1966171168
        %v1683 = vunpack.c.0.s8 %v1682
        %v1684 = vlaneseq
        %v1685 = vshrl.u32 %v1684, 7
        %v1686 = vsub.s32 %v1683, %v1685
        %v1687 = vrot.slane %v1659, %v1686
        %v1688 = vcombine.high %v1687, %v1687
        %v1690 = vunpack.c.l.s4 1966171168
        %v1691 = vunpack.c.0.s8 %v1690
        %v1692 = vlaneseq
        %v1693 = vshrl.u32 %v1692, 7
        %v1694 = vsub.s32 %v1691, %v1693
        %v1695 = vrot.slane %v1660, %v1694
        %v1696 = vcombine.high %v1695, %v1695
        %vm1697 = vsmask.f32 256
        %vm1698 = vsmask.f32 1284
        %vm1699 = vmor %vm1697, %vm1698
        %vm1700 = vsmask.f32 2312
        %vm1701 = vmor %vm1699, %vm1700
        %vm1702 = vsmask.f32 3340
        %vm1703 = vmor %vm1701, %vm1702
        %vm1704 = vsmask.f32 4368
        %vm1705 = vmor %vm1703, %vm1704
        %vm1706 = vsmask.f32 5396
        %vm1707 = vmor %vm1705, %vm1706
        %vm1708 = vsmask.f32 6424
        %vm1709 = vmor %vm1707, %vm1708
        %vm1710 = vsmask.f32 7452
        %vm1711 = vmor %vm1709, %vm1710
        %v1713 = vshrl.u32 %v1671, 16
        %v1715 = vrot.slane %v1713, 7
        %v1716 = vrot.slane %v1715, 1
        %v1718 = vshll.u32 %v1672, 16
        %v1720 = vsel %vm1711, %v1716, %v1718
        %v1722 = vshrl.u32 %v1679, 16
        %v1724 = vrot.slane %v1722, 7
        %v1725 = vrot.slane %v1724, 1
        %v1727 = vshll.u32 %v1680, 16
        %v1729 = vsel %vm1711, %v1725, %v1727
        %v1731 = vshrl.u32 %v1687, 16
        %v1733 = vrot.slane %v1731, 7
        %v1734 = vrot.slane %v1733, 1
        %v1736 = vshll.u32 %v1688, 16
        %v1738 = vsel %vm1711, %v1734, %v1736
        %v1740 = vshrl.u32 %v1695, 16
        %v1742 = vrot.slane %v1740, 7
        %v1743 = vrot.slane %v1742, 1
        %v1745 = vshll.u32 %v1696, 16
        %v1747 = vsel %vm1711, %v1743, %v1745
        %s1748 = scalar_lea.vmem %s1535, 128 [#allocation2]
        %v1749 = vld [vmem:[%s1748] sm:$0xf]
        %v1750 = vld [vmem:[%s1748 + $0x4] sm:$0xf]
        %v1751 = vld [vmem:[%s1748 + $0x8] sm:$0xf]
        %v1752 = vld [vmem:[%s1748 + $0xc] sm:$0xf]
        %v1753 = vld [vmem:[%s1748 + $0x10] sm:$0xf]
        %v1754 = vld [vmem:[%s1748 + $0x14] sm:$0xf]
        %v1755 = vld [vmem:[%s1748 + $0x18] sm:$0xf]
        %v1756 = vld [vmem:[%s1748 + $0x1c] sm:$0xf]
        %v1757 = vld [vmem:[%s1748 + $0x20] sm:$0xf]
        %v1758 = vld [vmem:[%s1748 + $0x24] sm:$0xf]
        %v1759 = vld [vmem:[%s1748 + $0x28] sm:$0xf]
        %v1760 = vld [vmem:[%s1748 + $0x2c] sm:$0xf]
        %v1761 = vld [vmem:[%s1748 + $0x30] sm:$0xf]
        %v1762 = vld [vmem:[%s1748 + $0x34] sm:$0xf]
        %v1763 = vld [vmem:[%s1748 + $0x38] sm:$0xf]
        %v1764 = vld [vmem:[%s1748 + $0x3c] sm:$0xf]
        %v1765 = vld [vmem:[%s1748 + $0x40] sm:$0xf]
        %v1766 = vld [vmem:[%s1748 + $0x44] sm:$0xf]
        %v1767 = vld [vmem:[%s1748 + $0x48] sm:$0xf]
        %v1768 = vld [vmem:[%s1748 + $0x4c] sm:$0xf]
        %v1769 = vld [vmem:[%s1748 + $0x50] sm:$0xf]
        %v1770 = vld [vmem:[%s1748 + $0x54] sm:$0xf]
        %v1771 = vld [vmem:[%s1748 + $0x58] sm:$0xf]
        %v1772 = vld [vmem:[%s1748 + $0x5c] sm:$0xf]
        %v1773 = vld [vmem:[%s1748 + $0x60] sm:$0xf]
        %v1774 = vld [vmem:[%s1748 + $0x64] sm:$0xf]
        %v1775 = vld [vmem:[%s1748 + $0x68] sm:$0xf]
        %v1776 = vld [vmem:[%s1748 + $0x6c] sm:$0xf]
        %v1777 = vld [vmem:[%s1748 + $0x70] sm:$0xf]
        %v1778 = vld [vmem:[%s1748 + $0x74] sm:$0xf]
        %v1779 = vld [vmem:[%s1748 + $0x78] sm:$0xf]
        %v1780 = vld [vmem:[%s1748 + $0x7c] sm:$0xf]
        %v1781 = vcombine.low %v1720, %v1729
        %v1782 = vcombine.low %v1738, %v1747
        %v1784 = vunpack.c.l.s4 1966171168
        %v1785 = vunpack.c.0.s8 %v1784
        %v1786 = vlaneseq
        %v1787 = vshrl.u32 %v1786, 7
        %v1788 = vsub.s32 %v1785, %v1787
        %v1789 = vrot.slane %v1781, %v1788
        %v1791 = vunpack.c.l.s4 1966171168
        %v1792 = vunpack.c.0.s8 %v1791
        %v1793 = vlaneseq
        %v1794 = vshrl.u32 %v1793, 7
        %v1795 = vsub.s32 %v1792, %v1794
        %v1796 = vrot.slane %v1782, %v1795
        %v1797 = vcombine.low %v1789, %v1796
        %v1798 = vcombine.high %v1789, %v1796
        %v1800 = vunpack.c.l.s4 1966171168
        %v1801 = vunpack.c.0.s8 %v1800
        %v1802 = vlaneseq
        %v1803 = vshrl.u32 %v1802, 7
        %v1804 = vsub.s32 %v1801, %v1803
        %v1805 = vrot.slane %v1797, %v1804
        %v1807 = vunpack.c.l.s4 1966171168
        %v1808 = vunpack.c.0.s8 %v1807
        %v1809 = vlaneseq
        %v1810 = vshrl.u32 %v1809, 7
        %v1811 = vsub.s32 %v1808, %v1810
        %v1812 = vrot.slane %v1798, %v1811
        %v1847 = vunpack.c.l.b16 %v1749
        %v1848 = vunpack.c.l.b16 %v1750
        %v1849 = vunpack.c.l.b16 %v1751
        %v1850 = vunpack.c.l.b16 %v1752
        %v1851 = vunpack.c.l.b16 %v1753
        %v1852 = vunpack.c.l.b16 %v1754
        %v1853 = vunpack.c.l.b16 %v1755
        %v1854 = vunpack.c.l.b16 %v1756
        %v1855 = vunpack.c.l.b16 %v1757
        %v1856 = vunpack.c.l.b16 %v1758
        %v1857 = vunpack.c.l.b16 %v1759
        %v1858 = vunpack.c.l.b16 %v1760
        %v1859 = vunpack.c.l.b16 %v1761
        %v1860 = vunpack.c.l.b16 %v1762
        %v1861 = vunpack.c.l.b16 %v1763
        %v1862 = vunpack.c.l.b16 %v1764
        %v1863 = vunpack.c.l.b16 %v1765
        %v1864 = vunpack.c.l.b16 %v1766
        %v1865 = vunpack.c.l.b16 %v1767
        %v1866 = vunpack.c.l.b16 %v1768
        %v1867 = vunpack.c.l.b16 %v1769
        %v1868 = vunpack.c.l.b16 %v1770
        %v1869 = vunpack.c.l.b16 %v1771
        %v1870 = vunpack.c.l.b16 %v1772
        %v1871 = vunpack.c.l.b16 %v1773
        %v1872 = vunpack.c.l.b16 %v1774
        %v1873 = vunpack.c.l.b16 %v1775
        %v1874 = vunpack.c.l.b16 %v1776
        %v1875 = vunpack.c.l.b16 %v1777
        %v1876 = vunpack.c.l.b16 %v1778
        %v1877 = vunpack.c.l.b16 %v1779
        %v1878 = vunpack.c.l.b16 %v1780
        %v1879 = vpack.c.b16 %v1848, %v1847
        %v1880 = vpack.c.b16 %v1850, %v1849
        %v1881 = vpack.c.b16 %v1852, %v1851
        %v1882 = vpack.c.b16 %v1854, %v1853
        %v1883 = vpack.c.b16 %v1856, %v1855
        %v1884 = vpack.c.b16 %v1858, %v1857
        %v1885 = vpack.c.b16 %v1860, %v1859
        %v1886 = vpack.c.b16 %v1862, %v1861
        %v1887 = vpack.c.b16 %v1864, %v1863
        %v1888 = vpack.c.b16 %v1866, %v1865
        %v1889 = vpack.c.b16 %v1868, %v1867
        %v1890 = vpack.c.b16 %v1870, %v1869
        %v1891 = vpack.c.b16 %v1872, %v1871
        %v1892 = vpack.c.b16 %v1874, %v1873
        %v1893 = vpack.c.b16 %v1876, %v1875
        %v1894 = vpack.c.b16 %v1878, %v1877
        %1911 = vmatprep.subr.bf16.mxu0 0
        %1912 = vmatpush1.bf16.msra.mxu0 %v1879
        %1913 = vmatprep.subr.bf16.mxu0 0
        %1914 = vmatpush1.bf16.msra.mxu0 %v1880
        %1915 = vmatprep.subr.bf16.mxu0 0
        %1916 = vmatpush1.bf16.msra.mxu0 %v1881
        %1917 = vmatprep.subr.bf16.mxu0 0
        %1918 = vmatpush1.bf16.msra.mxu0 %v1882
        %1919 = vmatprep.subr.bf16.mxu0 0
        %1920 = vmatpush1.bf16.msra.mxu0 %v1883
        %1921 = vmatprep.subr.bf16.mxu0 0
        %1922 = vmatpush1.bf16.msra.mxu0 %v1884
        %1923 = vmatprep.subr.bf16.mxu0 0
        %1924 = vmatpush1.bf16.msra.mxu0 %v1885
        %1925 = vmatprep.subr.bf16.mxu0 0
        %1926 = vmatpush1.bf16.msra.mxu0 %v1886
        %1927 = vmatprep.subr.bf16.mxu0 0
        %1928 = vmatpush1.bf16.msra.mxu0 %v1887
        %1929 = vmatprep.subr.bf16.mxu0 0
        %1930 = vmatpush1.bf16.msra.mxu0 %v1888
        %1931 = vmatprep.subr.bf16.mxu0 0
        %1932 = vmatpush1.bf16.msra.mxu0 %v1889
        %1933 = vmatprep.subr.bf16.mxu0 0
        %1934 = vmatpush1.bf16.msra.mxu0 %v1890
        %1935 = vmatprep.subr.bf16.mxu0 0
        %1936 = vmatpush1.bf16.msra.mxu0 %v1891
        %1937 = vmatprep.subr.bf16.mxu0 0
        %1938 = vmatpush1.bf16.msra.mxu0 %v1892
        %1939 = vmatprep.subr.bf16.mxu0 0
        %1940 = vmatpush1.bf16.msra.mxu0 %v1893
        %1941 = vmatprep.subr.bf16.mxu0 0
        %1942 = vmatpush1.bf16.msra.mxu0 %v1894
        %1943 = vmatprep.mubr.bf16.mxu0 %v1812
        %1944 = vmatmul.mubr.bf16.gmra.mrb[0].mxu0 %v1805
        %v1945 = vpop.f32.mrb[0].mxu0
        %v1946 = vadd.f32 0.0, %v1945
        %v1947 = vpop.f32.mrb[0].mxu0
        %v1948 = vpop.f32.mrb[0].mxu0
        %v1949 = vpop.f32.mrb[0].mxu0
        %1950 = vdwg.mxu0
        %v1951 = vcombine.low %v1603, %v1610
        %v1952 = vcombine.low %v1617, %v1624
        %v1954 = vunpack.c.l.s4 1966171168
        %v1955 = vunpack.c.0.s8 %v1954
        %v1956 = vlaneseq
        %v1957 = vshrl.u32 %v1956, 7
        %v1958 = vsub.s32 %v1955, %v1957
        %v1959 = vrot.slane %v1951, %v1958
        %v1961 = vunpack.c.l.s4 1966171168
        %v1962 = vunpack.c.0.s8 %v1961
        %v1963 = vlaneseq
        %v1964 = vshrl.u32 %v1963, 7
        %v1965 = vsub.s32 %v1962, %v1964
        %v1966 = vrot.slane %v1952, %v1965
        %v1967 = vcombine.low %v1959, %v1966
        %v1968 = vcombine.high %v1959, %v1966
        %v1970 = vunpack.c.l.s4 1966171168
        %v1971 = vunpack.c.0.s8 %v1970
        %v1972 = vlaneseq
        %v1973 = vshrl.u32 %v1972, 7
        %v1974 = vsub.s32 %v1971, %v1973
        %v1975 = vrot.slane %v1967, %v1974
        %v1977 = vunpack.c.l.s4 1966171168
        %v1978 = vunpack.c.0.s8 %v1977
        %v1979 = vlaneseq
        %v1980 = vshrl.u32 %v1979, 7
        %v1981 = vsub.s32 %v1978, %v1980
        %v1982 = vrot.slane %v1968, %v1981
        %v2017 = vunpack.c.l.b16 %v1625
        %v2018 = vunpack.c.l.b16 %v1626
        %v2019 = vunpack.c.l.b16 %v1627
        %v2020 = vunpack.c.l.b16 %v1628
        %v2021 = vunpack.c.l.b16 %v1629
        %v2022 = vunpack.c.l.b16 %v1630
        %v2023 = vunpack.c.l.b16 %v1631
        %v2024 = vunpack.c.l.b16 %v1632
        %v2025 = vunpack.c.l.b16 %v1633
        %v2026 = vunpack.c.l.b16 %v1634
        %v2027 = vunpack.c.l.b16 %v1635
        %v2028 = vunpack.c.l.b16 %v1636
        %v2029 = vunpack.c.l.b16 %v1637
        %v2030 = vunpack.c.l.b16 %v1638
        %v2031 = vunpack.c.l.b16 %v1639
        %v2032 = vunpack.c.l.b16 %v1640
        %v2033 = vunpack.c.l.b16 %v1641
        %v2034 = vunpack.c.l.b16 %v1642
        %v2035 = vunpack.c.l.b16 %v1643
        %v2036 = vunpack.c.l.b16 %v1644
        %v2037 = vunpack.c.l.b16 %v1645
        %v2038 = vunpack.c.l.b16 %v1646
        %v2039 = vunpack.c.l.b16 %v1647
        %v2040 = vunpack.c.l.b16 %v1648
        %v2041 = vunpack.c.l.b16 %v1649
        %v2042 = vunpack.c.l.b16 %v1650
        %v2043 = vunpack.c.l.b16 %v1651
        %v2044 = vunpack.c.l.b16 %v1652
        %v2045 = vunpack.c.l.b16 %v1653
        %v2046 = vunpack.c.l.b16 %v1654
        %v2047 = vunpack.c.l.b16 %v1655
        %v2048 = vunpack.c.l.b16 %v1656
        %v2049 = vpack.c.b16 %v2018, %v2017
        %v2050 = vpack.c.b16 %v2020, %v2019
        %v2051 = vpack.c.b16 %v2022, %v2021
        %v2052 = vpack.c.b16 %v2024, %v2023
        %v2053 = vpack.c.b16 %v2026, %v2025
        %v2054 = vpack.c.b16 %v2028, %v2027
        %v2055 = vpack.c.b16 %v2030, %v2029
        %v2056 = vpack.c.b16 %v2032, %v2031
        %v2057 = vpack.c.b16 %v2034, %v2033
        %v2058 = vpack.c.b16 %v2036, %v2035
        %v2059 = vpack.c.b16 %v2038, %v2037
        %v2060 = vpack.c.b16 %v2040, %v2039
        %v2061 = vpack.c.b16 %v2042, %v2041
        %v2062 = vpack.c.b16 %v2044, %v2043
        %v2063 = vpack.c.b16 %v2046, %v2045
        %v2064 = vpack.c.b16 %v2048, %v2047
        %2081 = vmatprep.subr.bf16.mxu0 0
        %2082 = vmatpush1.bf16.msra.mxu0 %v2049
        %2083 = vmatprep.subr.bf16.mxu0 0
        %2084 = vmatpush1.bf16.msra.mxu0 %v2050
        %2085 = vmatprep.subr.bf16.mxu0 0
        %2086 = vmatpush1.bf16.msra.mxu0 %v2051
        %2087 = vmatprep.subr.bf16.mxu0 0
        %2088 = vmatpush1.bf16.msra.mxu0 %v2052
        %2089 = vmatprep.subr.bf16.mxu0 0
        %2090 = vmatpush1.bf16.msra.mxu0 %v2053
        %2091 = vmatprep.subr.bf16.mxu0 0
        %2092 = vmatpush1.bf16.msra.mxu0 %v2054
        %2093 = vmatprep.subr.bf16.mxu0 0
        %2094 = vmatpush1.bf16.msra.mxu0 %v2055
        %2095 = vmatprep.subr.bf16.mxu0 0
        %2096 = vmatpush1.bf16.msra.mxu0 %v2056
        %2097 = vmatprep.subr.bf16.mxu0 0
        %2098 = vmatpush1.bf16.msra.mxu0 %v2057
        %2099 = vmatprep.subr.bf16.mxu0 0
        %2100 = vmatpush1.bf16.msra.mxu0 %v2058
        %2101 = vmatprep.subr.bf16.mxu0 0
        %2102 = vmatpush1.bf16.msra.mxu0 %v2059
        %2103 = vmatprep.subr.bf16.mxu0 0
        %2104 = vmatpush1.bf16.msra.mxu0 %v2060
        %2105 = vmatprep.subr.bf16.mxu0 0
        %2106 = vmatpush1.bf16.msra.mxu0 %v2061
        %2107 = vmatprep.subr.bf16.mxu0 0
        %2108 = vmatpush1.bf16.msra.mxu0 %v2062
        %2109 = vmatprep.subr.bf16.mxu0 0
        %2110 = vmatpush1.bf16.msra.mxu0 %v2063
        %2111 = vmatprep.subr.bf16.mxu0 0
        %2112 = vmatpush1.bf16.msra.mxu0 %v2064
        %2113 = vmatprep.mubr.bf16.mxu0 %v1982
        %2114 = vmatmul.mubr.bf16.gmra.mrb[0].mxu0 %v1975
        %v2115 = vpop.f32.mrb[0].mxu0
        %v2116 = vadd.f32 %v1946, %v2115
        %v2117 = vpop.f32.mrb[0].mxu0
        %v2118 = vpop.f32.mrb[0].mxu0
        %v2119 = vpop.f32.mrb[0].mxu0
        %2120 = vdwg.mxu0
        %v2121 = vld [vmem:[%s0] sm:$0xa]
        %v2122 = vld [vmem:[%s0 + $0x4] sm:$0xa]
        %v2123 = vld [vmem:[%s0 + $0x10] sm:$0xa]
        %v2124 = vld [vmem:[%s0 + $0x14] sm:$0xa]
        %v2130 = vunpack.c.l.s4 1966171168
        %v2131 = vunpack.c.0.s8 %v2130
        %v2132 = vlaneseq
        %v2133 = vshrl.u32 %v2132, 7
        %v2134 = vsub.s32 %v2131, %v2133
        %v2135 = vrot.slane %v2121, %v2134
        %v2136 = vcombine.high %v2135, %v2135
        %v2138 = vunpack.c.l.s4 1966171168
        %v2139 = vunpack.c.0.s8 %v2138
        %v2140 = vlaneseq
        %v2141 = vshrl.u32 %v2140, 7
        %v2142 = vsub.s32 %v2139, %v2141
        %v2143 = vrot.slane %v2122, %v2142
        %v2144 = vcombine.high %v2143, %v2143
        %v2146 = vunpack.c.l.s4 1966171168
        %v2147 = vunpack.c.0.s8 %v2146
        %v2148 = vlaneseq
        %v2149 = vshrl.u32 %v2148, 7
        %v2150 = vsub.s32 %v2147, %v2149
        %v2151 = vrot.slane %v2123, %v2150
        %v2152 = vcombine.high %v2151, %v2151
        %v2154 = vunpack.c.l.s4 1966171168
        %v2155 = vunpack.c.0.s8 %v2154
        %v2156 = vlaneseq
        %v2157 = vshrl.u32 %v2156, 7
        %v2158 = vsub.s32 %v2155, %v2157
        %v2159 = vrot.slane %v2124, %v2158
        %v2160 = vcombine.high %v2159, %v2159
        %s2161 = scalar_lea.vmem %s1535, 256 [#allocation2]
        %v2162 = vld [vmem:[%s2161] sm:$0xf]
        %v2163 = vld [vmem:[%s2161 + $0x4] sm:$0xf]
        %v2164 = vld [vmem:[%s2161 + $0x8] sm:$0xf]
        %v2165 = vld [vmem:[%s2161 + $0xc] sm:$0xf]
        %v2166 = vld [vmem:[%s2161 + $0x10] sm:$0xf]
        %v2167 = vld [vmem:[%s2161 + $0x14] sm:$0xf]
        %v2168 = vld [vmem:[%s2161 + $0x18] sm:$0xf]
        %v2169 = vld [vmem:[%s2161 + $0x1c] sm:$0xf]
        %v2170 = vld [vmem:[%s2161 + $0x20] sm:$0xf]
        %v2171 = vld [vmem:[%s2161 + $0x24] sm:$0xf]
        %v2172 = vld [vmem:[%s2161 + $0x28] sm:$0xf]
        %v2173 = vld [vmem:[%s2161 + $0x2c] sm:$0xf]
        %v2174 = vld [vmem:[%s2161 + $0x30] sm:$0xf]
        %v2175 = vld [vmem:[%s2161 + $0x34] sm:$0xf]
        %v2176 = vld [vmem:[%s2161 + $0x38] sm:$0xf]
        %v2177 = vld [vmem:[%s2161 + $0x3c] sm:$0xf]
        %v2178 = vld [vmem:[%s2161 + $0x40] sm:$0xf]
        %v2179 = vld [vmem:[%s2161 + $0x44] sm:$0xf]
        %v2180 = vld [vmem:[%s2161 + $0x48] sm:$0xf]
        %v2181 = vld [vmem:[%s2161 + $0x4c] sm:$0xf]
        %v2182 = vld [vmem:[%s2161 + $0x50] sm:$0xf]
        %v2183 = vld [vmem:[%s2161 + $0x54] sm:$0xf]
        %v2184 = vld [vmem:[%s2161 + $0x58] sm:$0xf]
        %v2185 = vld [vmem:[%s2161 + $0x5c] sm:$0xf]
        %v2186 = vld [vmem:[%s2161 + $0x60] sm:$0xf]
        %v2187 = vld [vmem:[%s2161 + $0x64] sm:$0xf]
        %v2188 = vld [vmem:[%s2161 + $0x68] sm:$0xf]
        %v2189 = vld [vmem:[%s2161 + $0x6c] sm:$0xf]
        %v2190 = vld [vmem:[%s2161 + $0x70] sm:$0xf]
        %v2191 = vld [vmem:[%s2161 + $0x74] sm:$0xf]
        %v2192 = vld [vmem:[%s2161 + $0x78] sm:$0xf]
        %v2193 = vld [vmem:[%s2161 + $0x7c] sm:$0xf]
        %v2194 = vcombine.low %v2136, %v2144
        %v2195 = vcombine.low %v2152, %v2160
        %v2197 = vunpack.c.l.s4 1966171168
        %v2198 = vunpack.c.0.s8 %v2197
        %v2199 = vlaneseq
        %v2200 = vshrl.u32 %v2199, 7
        %v2201 = vsub.s32 %v2198, %v2200
        %v2202 = vrot.slane %v2194, %v2201
        %v2204 = vunpack.c.l.s4 1966171168
        %v2205 = vunpack.c.0.s8 %v2204
        %v2206 = vlaneseq
        %v2207 = vshrl.u32 %v2206, 7
        %v2208 = vsub.s32 %v2205, %v2207
        %v2209 = vrot.slane %v2195, %v2208
        %v2210 = vcombine.low %v2202, %v2209
        %v2211 = vcombine.high %v2202, %v2209
        %v2213 = vunpack.c.l.s4 1966171168
        %v2214 = vunpack.c.0.s8 %v2213
        %v2215 = vlaneseq
        %v2216 = vshrl.u32 %v2215, 7
        %v2217 = vsub.s32 %v2214, %v2216
        %v2218 = vrot.slane %v2210, %v2217
        %v2220 = vunpack.c.l.s4 1966171168
        %v2221 = vunpack.c.0.s8 %v2220
        %v2222 = vlaneseq
        %v2223 = vshrl.u32 %v2222, 7
        %v2224 = vsub.s32 %v2221, %v2223
        %v2225 = vrot.slane %v2211, %v2224
        %v2260 = vunpack.c.l.b16 %v2162
        %v2261 = vunpack.c.l.b16 %v2163
        %v2262 = vunpack.c.l.b16 %v2164
        %v2263 = vunpack.c.l.b16 %v2165
        %v2264 = vunpack.c.l.b16 %v2166
        %v2265 = vunpack.c.l.b16 %v2167
        %v2266 = vunpack.c.l.b16 %v2168
        %v2267 = vunpack.c.l.b16 %v2169
        %v2268 = vunpack.c.l.b16 %v2170
        %v2269 = vunpack.c.l.b16 %v2171
        %v2270 = vunpack.c.l.b16 %v2172
        %v2271 = vunpack.c.l.b16 %v2173
        %v2272 = vunpack.c.l.b16 %v2174
        %v2273 = vunpack.c.l.b16 %v2175
        %v2274 = vunpack.c.l.b16 %v2176
        %v2275 = vunpack.c.l.b16 %v2177
        %v2276 = vunpack.c.l.b16 %v2178
        %v2277 = vunpack.c.l.b16 %v2179
        %v2278 = vunpack.c.l.b16 %v2180
        %v2279 = vunpack.c.l.b16 %v2181
        %v2280 = vunpack.c.l.b16 %v2182
        %v2281 = vunpack.c.l.b16 %v2183
        %v2282 = vunpack.c.l.b16 %v2184
        %v2283 = vunpack.c.l.b16 %v2185
        %v2284 = vunpack.c.l.b16 %v2186
        %v2285 = vunpack.c.l.b16 %v2187
        %v2286 = vunpack.c.l.b16 %v2188
        %v2287 = vunpack.c.l.b16 %v2189
        %v2288 = vunpack.c.l.b16 %v2190
        %v2289 = vunpack.c.l.b16 %v2191
        %v2290 = vunpack.c.l.b16 %v2192
        %v2291 = vunpack.c.l.b16 %v2193
        %v2292 = vpack.c.b16 %v2261, %v2260
        %v2293 = vpack.c.b16 %v2263, %v2262
        %v2294 = vpack.c.b16 %v2265, %v2264
        %v2295 = vpack.c.b16 %v2267, %v2266
        %v2296 = vpack.c.b16 %v2269, %v2268
        %v2297 = vpack.c.b16 %v2271, %v2270
        %v2298 = vpack.c.b16 %v2273, %v2272
        %v2299 = vpack.c.b16 %v2275, %v2274
        %v2300 = vpack.c.b16 %v2277, %v2276
        %v2301 = vpack.c.b16 %v2279, %v2278
        %v2302 = vpack.c.b16 %v2281, %v2280
        %v2303 = vpack.c.b16 %v2283, %v2282
        %v2304 = vpack.c.b16 %v2285, %v2284
        %v2305 = vpack.c.b16 %v2287, %v2286
        %v2306 = vpack.c.b16 %v2289, %v2288
        %v2307 = vpack.c.b16 %v2291, %v2290
        %2324 = vmatprep.subr.bf16.mxu0 0
        %2325 = vmatpush1.bf16.msra.mxu0 %v2292
        %2326 = vmatprep.subr.bf16.mxu0 0
        %2327 = vmatpush1.bf16.msra.mxu0 %v2293
        %2328 = vmatprep.subr.bf16.mxu0 0
        %2329 = vmatpush1.bf16.msra.mxu0 %v2294
        %2330 = vmatprep.subr.bf16.mxu0 0
        %2331 = vmatpush1.bf16.msra.mxu0 %v2295
        %2332 = vmatprep.subr.bf16.mxu0 0
        %2333 = vmatpush1.bf16.msra.mxu0 %v2296
        %2334 = vmatprep.subr.bf16.mxu0 0
        %2335 = vmatpush1.bf16.msra.mxu0 %v2297
        %2336 = vmatprep.subr.bf16.mxu0 0
        %2337 = vmatpush1.bf16.msra.mxu0 %v2298
        %2338 = vmatprep.subr.bf16.mxu0 0
        %2339 = vmatpush1.bf16.msra.mxu0 %v2299
        %2340 = vmatprep.subr.bf16.mxu0 0
        %2341 = vmatpush1.bf16.msra.mxu0 %v2300
        %2342 = vmatprep.subr.bf16.mxu0 0
        %2343 = vmatpush1.bf16.msra.mxu0 %v2301
        %2344 = vmatprep.subr.bf16.mxu0 0
        %2345 = vmatpush1.bf16.msra.mxu0 %v2302
        %2346 = vmatprep.subr.bf16.mxu0 0
        %2347 = vmatpush1.bf16.msra.mxu0 %v2303
        %2348 = vmatprep.subr.bf16.mxu0 0
        %2349 = vmatpush1.bf16.msra.mxu0 %v2304
        %2350 = vmatprep.subr.bf16.mxu0 0
        %2351 = vmatpush1.bf16.msra.mxu0 %v2305
        %2352 = vmatprep.subr.bf16.mxu0 0
        %2353 = vmatpush1.bf16.msra.mxu0 %v2306
        %2354 = vmatprep.subr.bf16.mxu0 0
        %2355 = vmatpush1.bf16.msra.mxu0 %v2307
        %2356 = vmatprep.mubr.bf16.mxu0 %v2225
        %2357 = vmatmul.mubr.bf16.gmra.mrb[0].mxu0 %v2218
        %v2358 = vpop.f32.mrb[0].mxu0
        %v2359 = vadd.f32 0.0, %v2358
        %v2360 = vpop.f32.mrb[0].mxu0
        %v2361 = vpop.f32.mrb[0].mxu0
        %v2362 = vpop.f32.mrb[0].mxu0
        %2363 = vdwg.mxu0
        %v2364 = vadd.f32 %v2116, %v2359
        %s2365 = scalar_lea.vmem %s0, 4
        %v2366 = vld [vmem:[%s2365] sm:$0x5]
        %v2367 = vld [vmem:[%s2365 + $0x4] sm:$0x5]
        %v2368 = vld [vmem:[%s2365 + $0x10] sm:$0x5]
        %v2369 = vld [vmem:[%s2365 + $0x14] sm:$0x5]
        %v2375 = vunpack.c.l.s4 1966171168
        %v2376 = vunpack.c.0.s8 %v2375
        %v2377 = vlaneseq
        %v2378 = vshrl.u32 %v2377, 7
        %v2379 = vsub.s32 %v2376, %v2378
        %v2380 = vrot.slane %v2366, %v2379
        %v2382 = vunpack.c.l.s4 1966171168
        %v2383 = vunpack.c.0.s8 %v2382
        %v2384 = vlaneseq
        %v2385 = vshrl.u32 %v2384, 7
        %v2386 = vsub.s32 %v2383, %v2385
        %v2387 = vrot.slane %v2367, %v2386
        %v2389 = vunpack.c.l.s4 1966171168
        %v2390 = vunpack.c.0.s8 %v2389
        %v2391 = vlaneseq
        %v2392 = vshrl.u32 %v2391, 7
        %v2393 = vsub.s32 %v2390, %v2392
        %v2394 = vrot.slane %v2368, %v2393
        %v2396 = vunpack.c.l.s4 1966171168
        %v2397 = vunpack.c.0.s8 %v2396
        %v2398 = vlaneseq
        %v2399 = vshrl.u32 %v2398, 7
        %v2400 = vsub.s32 %v2397, %v2399
        %v2401 = vrot.slane %v2369, %v2400
        %s2402 = scalar_lea.vmem %s1535, 384 [#allocation2]
        %v2403 = vld [vmem:[%s2402] sm:$0xf]
        %v2404 = vld [vmem:[%s2402 + $0x4] sm:$0xf]
        %v2405 = vld [vmem:[%s2402 + $0x8] sm:$0xf]
        %v2406 = vld [vmem:[%s2402 + $0xc] sm:$0xf]
        %v2407 = vld [vmem:[%s2402 + $0x10] sm:$0xf]
        %v2408 = vld [vmem:[%s2402 + $0x14] sm:$0xf]
        %v2409 = vld [vmem:[%s2402 + $0x18] sm:$0xf]
        %v2410 = vld [vmem:[%s2402 + $0x1c] sm:$0xf]
        %v2411 = vld [vmem:[%s2402 + $0x20] sm:$0xf]
        %v2412 = vld [vmem:[%s2402 + $0x24] sm:$0xf]
        %v2413 = vld [vmem:[%s2402 + $0x28] sm:$0xf]
        %v2414 = vld [vmem:[%s2402 + $0x2c] sm:$0xf]
        %v2415 = vld [vmem:[%s2402 + $0x30] sm:$0xf]
        %v2416 = vld [vmem:[%s2402 + $0x34] sm:$0xf]
        %v2417 = vld [vmem:[%s2402 + $0x38] sm:$0xf]
        %v2418 = vld [vmem:[%s2402 + $0x3c] sm:$0xf]
        %v2419 = vld [vmem:[%s2402 + $0x40] sm:$0xf]
        %v2420 = vld [vmem:[%s2402 + $0x44] sm:$0xf]
        %v2421 = vld [vmem:[%s2402 + $0x48] sm:$0xf]
        %v2422 = vld [vmem:[%s2402 + $0x4c] sm:$0xf]
        %v2423 = vld [vmem:[%s2402 + $0x50] sm:$0xf]
        %v2424 = vld [vmem:[%s2402 + $0x54] sm:$0xf]
        %v2425 = vld [vmem:[%s2402 + $0x58] sm:$0xf]
        %v2426 = vld [vmem:[%s2402 + $0x5c] sm:$0xf]
        %v2427 = vld [vmem:[%s2402 + $0x60] sm:$0xf]
        %v2428 = vld [vmem:[%s2402 + $0x64] sm:$0xf]
        %v2429 = vld [vmem:[%s2402 + $0x68] sm:$0xf]
        %v2430 = vld [vmem:[%s2402 + $0x6c] sm:$0xf]
        %v2431 = vld [vmem:[%s2402 + $0x70] sm:$0xf]
        %v2432 = vld [vmem:[%s2402 + $0x74] sm:$0xf]
        %v2433 = vld [vmem:[%s2402 + $0x78] sm:$0xf]
        %v2434 = vld [vmem:[%s2402 + $0x7c] sm:$0xf]
        %v2435 = vcombine.low %v2380, %v2387
        %v2436 = vcombine.low %v2394, %v2401
        %v2438 = vunpack.c.l.s4 1966171168
        %v2439 = vunpack.c.0.s8 %v2438
        %v2440 = vlaneseq
        %v2441 = vshrl.u32 %v2440, 7
        %v2442 = vsub.s32 %v2439, %v2441
        %v2443 = vrot.slane %v2435, %v2442
        %v2445 = vunpack.c.l.s4 1966171168
        %v2446 = vunpack.c.0.s8 %v2445
        %v2447 = vlaneseq
        %v2448 = vshrl.u32 %v2447, 7
        %v2449 = vsub.s32 %v2446, %v2448
        %v2450 = vrot.slane %v2436, %v2449
        %v2451 = vcombine.low %v2443, %v2450
        %v2452 = vcombine.high %v2443, %v2450
        %v2454 = vunpack.c.l.s4 1966171168
        %v2455 = vunpack.c.0.s8 %v2454
        %v2456 = vlaneseq
        %v2457 = vshrl.u32 %v2456, 7
        %v2458 = vsub.s32 %v2455, %v2457
        %v2459 = vrot.slane %v2451, %v2458
        %v2461 = vunpack.c.l.s4 1966171168
        %v2462 = vunpack.c.0.s8 %v2461
        %v2463 = vlaneseq
        %v2464 = vshrl.u32 %v2463, 7
        %v2465 = vsub.s32 %v2462, %v2464
        %v2466 = vrot.slane %v2452, %v2465
        %v2501 = vunpack.c.l.b16 %v2403
        %v2502 = vunpack.c.l.b16 %v2404
        %v2503 = vunpack.c.l.b16 %v2405
        %v2504 = vunpack.c.l.b16 %v2406
        %v2505 = vunpack.c.l.b16 %v2407
        %v2506 = vunpack.c.l.b16 %v2408
        %v2507 = vunpack.c.l.b16 %v2409
        %v2508 = vunpack.c.l.b16 %v2410
        %v2509 = vunpack.c.l.b16 %v2411
        %v2510 = vunpack.c.l.b16 %v2412
        %v2511 = vunpack.c.l.b16 %v2413
        %v2512 = vunpack.c.l.b16 %v2414
        %v2513 = vunpack.c.l.b16 %v2415
        %v2514 = vunpack.c.l.b16 %v2416
        %v2515 = vunpack.c.l.b16 %v2417
        %v2516 = vunpack.c.l.b16 %v2418
        %v2517 = vunpack.c.l.b16 %v2419
        %v2518 = vunpack.c.l.b16 %v2420
        %v2519 = vunpack.c.l.b16 %v2421
        %v2520 = vunpack.c.l.b16 %v2422
        %v2521 = vunpack.c.l.b16 %v2423
        %v2522 = vunpack.c.l.b16 %v2424
        %v2523 = vunpack.c.l.b16 %v2425
        %v2524 = vunpack.c.l.b16 %v2426
        %v2525 = vunpack.c.l.b16 %v2427
        %v2526 = vunpack.c.l.b16 %v2428
        %v2527 = vunpack.c.l.b16 %v2429
        %v2528 = vunpack.c.l.b16 %v2430
        %v2529 = vunpack.c.l.b16 %v2431
        %v2530 = vunpack.c.l.b16 %v2432
        %v2531 = vunpack.c.l.b16 %v2433
        %v2532 = vunpack.c.l.b16 %v2434
        %v2533 = vpack.c.b16 %v2502, %v2501
        %v2534 = vpack.c.b16 %v2504, %v2503
        %v2535 = vpack.c.b16 %v2506, %v2505
        %v2536 = vpack.c.b16 %v2508, %v2507
        %v2537 = vpack.c.b16 %v2510, %v2509
        %v2538 = vpack.c.b16 %v2512, %v2511
        %v2539 = vpack.c.b16 %v2514, %v2513
        %v2540 = vpack.c.b16 %v2516, %v2515
        %v2541 = vpack.c.b16 %v2518, %v2517
        %v2542 = vpack.c.b16 %v2520, %v2519
        %v2543 = vpack.c.b16 %v2522, %v2521
        %v2544 = vpack.c.b16 %v2524, %v2523
        %v2545 = vpack.c.b16 %v2526, %v2525
        %v2546 = vpack.c.b16 %v2528, %v2527
        %v2547 = vpack.c.b16 %v2530, %v2529
        %v2548 = vpack.c.b16 %v2532, %v2531
        %2565 = vmatprep.subr.bf16.mxu0 0
        %2566 = vmatpush1.bf16.msra.mxu0 %v2533
        %2567 = vmatprep.subr.bf16.mxu0 0
        %2568 = vmatpush1.bf16.msra.mxu0 %v2534
        %2569 = vmatprep.subr.bf16.mxu0 0
        %2570 = vmatpush1.bf16.msra.mxu0 %v2535
        %2571 = vmatprep.subr.bf16.mxu0 0
        %2572 = vmatpush1.bf16.msra.mxu0 %v2536
        %2573 = vmatprep.subr.bf16.mxu0 0
        %2574 = vmatpush1.bf16.msra.mxu0 %v2537
        %2575 = vmatprep.subr.bf16.mxu0 0
        %2576 = vmatpush1.bf16.msra.mxu0 %v2538
        %2577 = vmatprep.subr.bf16.mxu0 0
        %2578 = vmatpush1.bf16.msra.mxu0 %v2539
        %2579 = vmatprep.subr.bf16.mxu0 0
        %2580 = vmatpush1.bf16.msra.mxu0 %v2540
        %2581 = vmatprep.subr.bf16.mxu0 0
        %2582 = vmatpush1.bf16.msra.mxu0 %v2541
        %2583 = vmatprep.subr.bf16.mxu0 0
        %2584 = vmatpush1.bf16.msra.mxu0 %v2542
        %2585 = vmatprep.subr.bf16.mxu0 0
        %2586 = vmatpush1.bf16.msra.mxu0 %v2543
        %2587 = vmatprep.subr.bf16.mxu0 0
        %2588 = vmatpush1.bf16.msra.mxu0 %v2544
        %2589 = vmatprep.subr.bf16.mxu0 0
        %2590 = vmatpush1.bf16.msra.mxu0 %v2545
        %2591 = vmatprep.subr.bf16.mxu0 0
        %2592 = vmatpush1.bf16.msra.mxu0 %v2546
        %2593 = vmatprep.subr.bf16.mxu0 0
        %2594 = vmatpush1.bf16.msra.mxu0 %v2547
        %2595 = vmatprep.subr.bf16.mxu0 0
        %2596 = vmatpush1.bf16.msra.mxu0 %v2548
        %2597 = vmatprep.mubr.bf16.mxu0 %v2466
        %2598 = vmatmul.mubr.bf16.gmra.mrb[0].mxu0 %v2459
        %v2599 = vpop.f32.mrb[0].mxu0
        %v2600 = vadd.f32 0.0, %v2599
        %v2601 = vpop.f32.mrb[0].mxu0
        %v2602 = vpop.f32.mrb[0].mxu0
        %v2603 = vpop.f32.mrb[0].mxu0
        %2604 = vdwg.mxu0
        %v2605 = vadd.f32 %v2364, %v2600
        %v2606 = vld [vmem:[%s2365] sm:$0xf]
        %v2607 = vld [vmem:[%s2365 + $0x4] sm:$0xf]
        %v2608 = vld [vmem:[%s2365 + $0x10] sm:$0xf]
        %v2609 = vld [vmem:[%s2365 + $0x14] sm:$0xf]
        %v2615 = vunpack.c.l.s4 1966171168
        %v2616 = vunpack.c.0.s8 %v2615
        %v2617 = vlaneseq
        %v2618 = vshrl.u32 %v2617, 7
        %v2619 = vsub.s32 %v2616, %v2618
        %v2620 = vrot.slane %v2606, %v2619
        %v2621 = vcombine.high %v2620, %v2620
        %v2623 = vunpack.c.l.s4 1966171168
        %v2624 = vunpack.c.0.s8 %v2623
        %v2625 = vlaneseq
        %v2626 = vshrl.u32 %v2625, 7
        %v2627 = vsub.s32 %v2624, %v2626
        %v2628 = vrot.slane %v2607, %v2627
        %v2629 = vcombine.high %v2628, %v2628
        %v2631 = vunpack.c.l.s4 1966171168
        %v2632 = vunpack.c.0.s8 %v2631
        %v2633 = vlaneseq
        %v2634 = vshrl.u32 %v2633, 7
        %v2635 = vsub.s32 %v2632, %v2634
        %v2636 = vrot.slane %v2608, %v2635
        %v2637 = vcombine.high %v2636, %v2636
        %v2639 = vunpack.c.l.s4 1966171168
        %v2640 = vunpack.c.0.s8 %v2639
        %v2641 = vlaneseq
        %v2642 = vshrl.u32 %v2641, 7
        %v2643 = vsub.s32 %v2640, %v2642
        %v2644 = vrot.slane %v2609, %v2643
        %v2645 = vcombine.high %v2644, %v2644
        %v2647 = vshrl.u32 %v2620, 16
        %v2649 = vrot.slane %v2647, 7
        %v2650 = vrot.slane %v2649, 1
        %v2652 = vshll.u32 %v2621, 16
        %v2654 = vsel %vm1711, %v2650, %v2652
        %v2656 = vshrl.u32 %v2628, 16
        %v2658 = vrot.slane %v2656, 7
        %v2659 = vrot.slane %v2658, 1
        %v2661 = vshll.u32 %v2629, 16
        %v2663 = vsel %vm1711, %v2659, %v2661
        %v2665 = vshrl.u32 %v2636, 16
        %v2667 = vrot.slane %v2665, 7
        %v2668 = vrot.slane %v2667, 1
        %v2670 = vshll.u32 %v2637, 16
        %v2672 = vsel %vm1711, %v2668, %v2670
        %v2674 = vshrl.u32 %v2644, 16
        %v2676 = vrot.slane %v2674, 7
        %v2677 = vrot.slane %v2676, 1
        %v2679 = vshll.u32 %v2645, 16
        %v2681 = vsel %vm1711, %v2677, %v2679
        %s2682 = scalar_lea.vmem %s1535, 512 [#allocation2]
        %v2683 = vld [vmem:[%s2682] sm:$0xf]
        %v2684 = vld [vmem:[%s2682 + $0x4] sm:$0xf]
        %v2685 = vld [vmem:[%s2682 + $0x8] sm:$0xf]
        %v2686 = vld [vmem:[%s2682 + $0xc] sm:$0xf]
        %v2687 = vld [vmem:[%s2682 + $0x10] sm:$0xf]
        %v2688 = vld [vmem:[%s2682 + $0x14] sm:$0xf]
        %v2689 = vld [vmem:[%s2682 + $0x18] sm:$0xf]
        %v2690 = vld [vmem:[%s2682 + $0x1c] sm:$0xf]
        %v2691 = vld [vmem:[%s2682 + $0x20] sm:$0xf]
        %v2692 = vld [vmem:[%s2682 + $0x24] sm:$0xf]
        %v2693 = vld [vmem:[%s2682 + $0x28] sm:$0xf]
        %v2694 = vld [vmem:[%s2682 + $0x2c] sm:$0xf]
        %v2695 = vld [vmem:[%s2682 + $0x30] sm:$0xf]
        %v2696 = vld [vmem:[%s2682 + $0x34] sm:$0xf]
        %v2697 = vld [vmem:[%s2682 + $0x38] sm:$0xf]
        %v2698 = vld [vmem:[%s2682 + $0x3c] sm:$0xf]
        %v2699 = vld [vmem:[%s2682 + $0x40] sm:$0xf]
        %v2700 = vld [vmem:[%s2682 + $0x44] sm:$0xf]
        %v2701 = vld [vmem:[%s2682 + $0x48] sm:$0xf]
        %v2702 = vld [vmem:[%s2682 + $0x4c] sm:$0xf]
        %v2703 = vld [vmem:[%s2682 + $0x50] sm:$0xf]
        %v2704 = vld [vmem:[%s2682 + $0x54] sm:$0xf]
        %v2705 = vld [vmem:[%s2682 + $0x58] sm:$0xf]
        %v2706 = vld [vmem:[%s2682 + $0x5c] sm:$0xf]
        %v2707 = vld [vmem:[%s2682 + $0x60] sm:$0xf]
        %v2708 = vld [vmem:[%s2682 + $0x64] sm:$0xf]
        %v2709 = vld [vmem:[%s2682 + $0x68] sm:$0xf]
        %v2710 = vld [vmem:[%s2682 + $0x6c] sm:$0xf]
        %v2711 = vld [vmem:[%s2682 + $0x70] sm:$0xf]
        %v2712 = vld [vmem:[%s2682 + $0x74] sm:$0xf]
        %v2713 = vld [vmem:[%s2682 + $0x78] sm:$0xf]
        %v2714 = vld [vmem:[%s2682 + $0x7c] sm:$0xf]
        %v2715 = vcombine.low %v2654, %v2663
        %v2716 = vcombine.low %v2672, %v2681
        %v2718 = vunpack.c.l.s4 1966171168
        %v2719 = vunpack.c.0.s8 %v2718
        %v2720 = vlaneseq
        %v2721 = vshrl.u32 %v2720, 7
        %v2722 = vsub.s32 %v2719, %v2721
        %v2723 = vrot.slane %v2715, %v2722
        %v2725 = vunpack.c.l.s4 1966171168
        %v2726 = vunpack.c.0.s8 %v2725
        %v2727 = vlaneseq
        %v2728 = vshrl.u32 %v2727, 7
        %v2729 = vsub.s32 %v2726, %v2728
        %v2730 = vrot.slane %v2716, %v2729
        %v2731 = vcombine.low %v2723, %v2730
        %v2732 = vcombine.high %v2723, %v2730
        %v2734 = vunpack.c.l.s4 1966171168
        %v2735 = vunpack.c.0.s8 %v2734
        %v2736 = vlaneseq
        %v2737 = vshrl.u32 %v2736, 7
        %v2738 = vsub.s32 %v2735, %v2737
        %v2739 = vrot.slane %v2731, %v2738
        %v2741 = vunpack.c.l.s4 1966171168
        %v2742 = vunpack.c.0.s8 %v2741
        %v2743 = vlaneseq
        %v2744 = vshrl.u32 %v2743, 7
        %v2745 = vsub.s32 %v2742, %v2744
        %v2746 = vrot.slane %v2732, %v2745
        %v2781 = vunpack.c.l.b16 %v2683
        %v2782 = vunpack.c.l.b16 %v2684
        %v2783 = vunpack.c.l.b16 %v2685
        %v2784 = vunpack.c.l.b16 %v2686
        %v2785 = vunpack.c.l.b16 %v2687
        %v2786 = vunpack.c.l.b16 %v2688
        %v2787 = vunpack.c.l.b16 %v2689
        %v2788 = vunpack.c.l.b16 %v2690
        %v2789 = vunpack.c.l.b16 %v2691
        %v2790 = vunpack.c.l.b16 %v2692
        %v2791 = vunpack.c.l.b16 %v2693
        %v2792 = vunpack.c.l.b16 %v2694
        %v2793 = vunpack.c.l.b16 %v2695
        %v2794 = vunpack.c.l.b16 %v2696
        %v2795 = vunpack.c.l.b16 %v2697
        %v2796 = vunpack.c.l.b16 %v2698
        %v2797 = vunpack.c.l.b16 %v2699
        %v2798 = vunpack.c.l.b16 %v2700
        %v2799 = vunpack.c.l.b16 %v2701
        %v2800 = vunpack.c.l.b16 %v2702
        %v2801 = vunpack.c.l.b16 %v2703
        %v2802 = vunpack.c.l.b16 %v2704
        %v2803 = vunpack.c.l.b16 %v2705
        %v2804 = vunpack.c.l.b16 %v2706
        %v2805 = vunpack.c.l.b16 %v2707
        %v2806 = vunpack.c.l.b16 %v2708
        %v2807 = vunpack.c.l.b16 %v2709
        %v2808 = vunpack.c.l.b16 %v2710
        %v2809 = vunpack.c.l.b16 %v2711
        %v2810 = vunpack.c.l.b16 %v2712
        %v2811 = vunpack.c.l.b16 %v2713
        %v2812 = vunpack.c.l.b16 %v2714
        %v2813 = vpack.c.b16 %v2782, %v2781
        %v2814 = vpack.c.b16 %v2784, %v2783
        %v2815 = vpack.c.b16 %v2786, %v2785
        %v2816 = vpack.c.b16 %v2788, %v2787
        %v2817 = vpack.c.b16 %v2790, %v2789
        %v2818 = vpack.c.b16 %v2792, %v2791
        %v2819 = vpack.c.b16 %v2794, %v2793
        %v2820 = vpack.c.b16 %v2796, %v2795
        %v2821 = vpack.c.b16 %v2798, %v2797
        %v2822 = vpack.c.b16 %v2800, %v2799
        %v2823 = vpack.c.b16 %v2802, %v2801
        %v2824 = vpack.c.b16 %v2804, %v2803
        %v2825 = vpack.c.b16 %v2806, %v2805
        %v2826 = vpack.c.b16 %v2808, %v2807
        %v2827 = vpack.c.b16 %v2810, %v2809
        %v2828 = vpack.c.b16 %v2812, %v2811
        %2845 = vmatprep.subr.bf16.mxu0 0
        %2846 = vmatpush1.bf16.msra.mxu0 %v2813
        %2847 = vmatprep.subr.bf16.mxu0 0
        %2848 = vmatpush1.bf16.msra.mxu0 %v2814
        %2849 = vmatprep.subr.bf16.mxu0 0
        %2850 = vmatpush1.bf16.msra.mxu0 %v2815
        %2851 = vmatprep.subr.bf16.mxu0 0
        %2852 = vmatpush1.bf16.msra.mxu0 %v2816
        %2853 = vmatprep.subr.bf16.mxu0 0
        %2854 = vmatpush1.bf16.msra.mxu0 %v2817
        %2855 = vmatprep.subr.bf16.mxu0 0
        %2856 = vmatpush1.bf16.msra.mxu0 %v2818
        %2857 = vmatprep.subr.bf16.mxu0 0
        %2858 = vmatpush1.bf16.msra.mxu0 %v2819
        %2859 = vmatprep.subr.bf16.mxu0 0
        %2860 = vmatpush1.bf16.msra.mxu0 %v2820
        %2861 = vmatprep.subr.bf16.mxu0 0
        %2862 = vmatpush1.bf16.msra.mxu0 %v2821
        %2863 = vmatprep.subr.bf16.mxu0 0
        %2864 = vmatpush1.bf16.msra.mxu0 %v2822
        %2865 = vmatprep.subr.bf16.mxu0 0
        %2866 = vmatpush1.bf16.msra.mxu0 %v2823
        %2867 = vmatprep.subr.bf16.mxu0 0
        %2868 = vmatpush1.bf16.msra.mxu0 %v2824
        %2869 = vmatprep.subr.bf16.mxu0 0
        %2870 = vmatpush1.bf16.msra.mxu0 %v2825
        %2871 = vmatprep.subr.bf16.mxu0 0
        %2872 = vmatpush1.bf16.msra.mxu0 %v2826
        %2873 = vmatprep.subr.bf16.mxu0 0
        %2874 = vmatpush1.bf16.msra.mxu0 %v2827
        %2875 = vmatprep.subr.bf16.mxu0 0
        %2876 = vmatpush1.bf16.msra.mxu0 %v2828
        %2877 = vmatprep.mubr.bf16.mxu0 %v2746
        %2878 = vmatmul.mubr.bf16.gmra.mrb[0].mxu0 %v2739
        %v2879 = vpop.f32.mrb[0].mxu0
        %v2880 = vadd.f32 0.0, %v2879
        %v2881 = vpop.f32.mrb[0].mxu0
        %v2882 = vpop.f32.mrb[0].mxu0
        %v2883 = vpop.f32.mrb[0].mxu0
        %2884 = vdwg.mxu0
        %v2885 = vadd.f32 %v2605, %v2880
        %v2886 = vld [vmem:[%s2365] sm:$0xa]
        %v2887 = vld [vmem:[%s2365 + $0x4] sm:$0xa]
        %v2888 = vld [vmem:[%s2365 + $0x10] sm:$0xa]
        %v2889 = vld [vmem:[%s2365 + $0x14] sm:$0xa]
        %v2895 = vunpack.c.l.s4 1966171168
        %v2896 = vunpack.c.0.s8 %v2895
        %v2897 = vlaneseq
        %v2898 = vshrl.u32 %v2897, 7
        %v2899 = vsub.s32 %v2896, %v2898
        %v2900 = vrot.slane %v2886, %v2899
        %v2901 = vcombine.high %v2900, %v2900
        %v2903 = vunpack.c.l.s4 1966171168
        %v2904 = vunpack.c.0.s8 %v2903
        %v2905 = vlaneseq
        %v2906 = vshrl.u32 %v2905, 7
        %v2907 = vsub.s32 %v2904, %v2906
        %v2908 = vrot.slane %v2887, %v2907
        %v2909 = vcombine.high %v2908, %v2908
        %v2911 = vunpack.c.l.s4 1966171168
        %v2912 = vunpack.c.0.s8 %v2911
        %v2913 = vlaneseq
        %v2914 = vshrl.u32 %v2913, 7
        %v2915 = vsub.s32 %v2912, %v2914
        %v2916 = vrot.slane %v2888, %v2915
        %v2917 = vcombine.high %v2916, %v2916
        %v2919 = vunpack.c.l.s4 1966171168
        %v2920 = vunpack.c.0.s8 %v2919
        %v2921 = vlaneseq
        %v2922 = vshrl.u32 %v2921, 7
        %v2923 = vsub.s32 %v2920, %v2922
        %v2924 = vrot.slane %v2889, %v2923
        %v2925 = vcombine.high %v2924, %v2924
        %s2926 = scalar_lea.vmem %s1535, 640 [#allocation2]
        %v2927 = vld [vmem:[%s2926] sm:$0xf]
        %v2928 = vld [vmem:[%s2926 + $0x4] sm:$0xf]
        %v2929 = vld [vmem:[%s2926 + $0x8] sm:$0xf]
        %v2930 = vld [vmem:[%s2926 + $0xc] sm:$0xf]
        %v2931 = vld [vmem:[%s2926 + $0x10] sm:$0xf]
        %v2932 = vld [vmem:[%s2926 + $0x14] sm:$0xf]
        %v2933 = vld [vmem:[%s2926 + $0x18] sm:$0xf]
        %v2934 = vld [vmem:[%s2926 + $0x1c] sm:$0xf]
        %v2935 = vld [vmem:[%s2926 + $0x20] sm:$0xf]
        %v2936 = vld [vmem:[%s2926 + $0x24] sm:$0xf]
        %v2937 = vld [vmem:[%s2926 + $0x28] sm:$0xf]
        %v2938 = vld [vmem:[%s2926 + $0x2c] sm:$0xf]
        %v2939 = vld [vmem:[%s2926 + $0x30] sm:$0xf]
        %v2940 = vld [vmem:[%s2926 + $0x34] sm:$0xf]
        %v2941 = vld [vmem:[%s2926 + $0x38] sm:$0xf]
        %v2942 = vld [vmem:[%s2926 + $0x3c] sm:$0xf]
        %v2943 = vld [vmem:[%s2926 + $0x40] sm:$0xf]
        %v2944 = vld [vmem:[%s2926 + $0x44] sm:$0xf]
        %v2945 = vld [vmem:[%s2926 + $0x48] sm:$0xf]
        %v2946 = vld [vmem:[%s2926 + $0x4c] sm:$0xf]
        %v2947 = vld [vmem:[%s2926 + $0x50] sm:$0xf]
        %v2948 = vld [vmem:[%s2926 + $0x54] sm:$0xf]
        %v2949 = vld [vmem:[%s2926 + $0x58] sm:$0xf]
        %v2950 = vld [vmem:[%s2926 + $0x5c] sm:$0xf]
        %v2951 = vld [vmem:[%s2926 + $0x60] sm:$0xf]
        %v2952 = vld [vmem:[%s2926 + $0x64] sm:$0xf]
        %v2953 = vld [vmem:[%s2926 + $0x68] sm:$0xf]
        %v2954 = vld [vmem:[%s2926 + $0x6c] sm:$0xf]
        %v2955 = vld [vmem:[%s2926 + $0x70] sm:$0xf]
        %v2956 = vld [vmem:[%s2926 + $0x74] sm:$0xf]
        %v2957 = vld [vmem:[%s2926 + $0x78] sm:$0xf]
        %v2958 = vld [vmem:[%s2926 + $0x7c] sm:$0xf]
        %v2959 = vcombine.low %v2901, %v2909
        %v2960 = vcombine.low %v2917, %v2925
        %v2962 = vunpack.c.l.s4 1966171168
        %v2963 = vunpack.c.0.s8 %v2962
        %v2964 = vlaneseq
        %v2965 = vshrl.u32 %v2964, 7
        %v2966 = vsub.s32 %v2963, %v2965
        %v2967 = vrot.slane %v2959, %v2966
        %v2969 = vunpack.c.l.s4 1966171168
        %v2970 = vunpack.c.0.s8 %v2969
        %v2971 = vlaneseq
        %v2972 = vshrl.u32 %v2971, 7
        %v2973 = vsub.s32 %v2970, %v2972
        %v2974 = vrot.slane %v2960, %v2973
        %v2975 = vcombine.low %v2967, %v2974
        %v2976 = vcombine.high %v2967, %v2974
        %v2978 = vunpack.c.l.s4 1966171168
        %v2979 = vunpack.c.0.s8 %v2978
        %v2980 = vlaneseq
        %v2981 = vshrl.u32 %v2980, 7
        %v2982 = vsub.s32 %v2979, %v2981
        %v2983 = vrot.slane %v2975, %v2982
        %v2985 = vunpack.c.l.s4 1966171168
        %v2986 = vunpack.c.0.s8 %v2985
        %v2987 = vlaneseq
        %v2988 = vshrl.u32 %v2987, 7
        %v2989 = vsub.s32 %v2986, %v2988
        %v2990 = vrot.slane %v2976, %v2989
        %v3025 = vunpack.c.l.b16 %v2927
        %v3026 = vunpack.c.l.b16 %v2928
        %v3027 = vunpack.c.l.b16 %v2929
        %v3028 = vunpack.c.l.b16 %v2930
        %v3029 = vunpack.c.l.b16 %v2931
        %v3030 = vunpack.c.l.b16 %v2932
        %v3031 = vunpack.c.l.b16 %v2933
        %v3032 = vunpack.c.l.b16 %v2934
        %v3033 = vunpack.c.l.b16 %v2935
        %v3034 = vunpack.c.l.b16 %v2936
        %v3035 = vunpack.c.l.b16 %v2937
        %v3036 = vunpack.c.l.b16 %v2938
        %v3037 = vunpack.c.l.b16 %v2939
        %v3038 = vunpack.c.l.b16 %v2940
        %v3039 = vunpack.c.l.b16 %v2941
        %v3040 = vunpack.c.l.b16 %v2942
        %v3041 = vunpack.c.l.b16 %v2943
        %v3042 = vunpack.c.l.b16 %v2944
        %v3043 = vunpack.c.l.b16 %v2945
        %v3044 = vunpack.c.l.b16 %v2946
        %v3045 = vunpack.c.l.b16 %v2947
        %v3046 = vunpack.c.l.b16 %v2948
        %v3047 = vunpack.c.l.b16 %v2949
        %v3048 = vunpack.c.l.b16 %v2950
        %v3049 = vunpack.c.l.b16 %v2951
        %v3050 = vunpack.c.l.b16 %v2952
        %v3051 = vunpack.c.l.b16 %v2953
        %v3052 = vunpack.c.l.b16 %v2954
        %v3053 = vunpack.c.l.b16 %v2955
        %v3054 = vunpack.c.l.b16 %v2956
        %v3055 = vunpack.c.l.b16 %v2957
        %v3056 = vunpack.c.l.b16 %v2958
        %v3057 = vpack.c.b16 %v3026, %v3025
        %v3058 = vpack.c.b16 %v3028, %v3027
        %v3059 = vpack.c.b16 %v3030, %v3029
        %v3060 = vpack.c.b16 %v3032, %v3031
        %v3061 = vpack.c.b16 %v3034, %v3033
        %v3062 = vpack.c.b16 %v3036, %v3035
        %v3063 = vpack.c.b16 %v3038, %v3037
        %v3064 = vpack.c.b16 %v3040, %v3039
        %v3065 = vpack.c.b16 %v3042, %v3041
        %v3066 = vpack.c.b16 %v3044, %v3043
        %v3067 = vpack.c.b16 %v3046, %v3045
        %v3068 = vpack.c.b16 %v3048, %v3047
        %v3069 = vpack.c.b16 %v3050, %v3049
        %v3070 = vpack.c.b16 %v3052, %v3051
        %v3071 = vpack.c.b16 %v3054, %v3053
        %v3072 = vpack.c.b16 %v3056, %v3055
        %3089 = vmatprep.subr.bf16.mxu0 0
        %3090 = vmatpush1.bf16.msra.mxu0 %v3057
        %3091 = vmatprep.subr.bf16.mxu0 0
        %3092 = vmatpush1.bf16.msra.mxu0 %v3058
        %3093 = vmatprep.subr.bf16.mxu0 0
        %3094 = vmatpush1.bf16.msra.mxu0 %v3059
        %3095 = vmatprep.subr.bf16.mxu0 0
        %3096 = vmatpush1.bf16.msra.mxu0 %v3060
        %3097 = vmatprep.subr.bf16.mxu0 0
        %3098 = vmatpush1.bf16.msra.mxu0 %v3061
        %3099 = vmatprep.subr.bf16.mxu0 0
        %3100 = vmatpush1.bf16.msra.mxu0 %v3062
        %3101 = vmatprep.subr.bf16.mxu0 0
        %3102 = vmatpush1.bf16.msra.mxu0 %v3063
        %3103 = vmatprep.subr.bf16.mxu0 0
        %3104 = vmatpush1.bf16.msra.mxu0 %v3064
        %3105 = vmatprep.subr.bf16.mxu0 0
        %3106 = vmatpush1.bf16.msra.mxu0 %v3065
        %3107 = vmatprep.subr.bf16.mxu0 0
        %3108 = vmatpush1.bf16.msra.mxu0 %v3066
        %3109 = vmatprep.subr.bf16.mxu0 0
        %3110 = vmatpush1.bf16.msra.mxu0 %v3067
        %3111 = vmatprep.subr.bf16.mxu0 0
        %3112 = vmatpush1.bf16.msra.mxu0 %v3068
        %3113 = vmatprep.subr.bf16.mxu0 0
        %3114 = vmatpush1.bf16.msra.mxu0 %v3069
        %3115 = vmatprep.subr.bf16.mxu0 0
        %3116 = vmatpush1.bf16.msra.mxu0 %v3070
        %3117 = vmatprep.subr.bf16.mxu0 0
        %3118 = vmatpush1.bf16.msra.mxu0 %v3071
        %3119 = vmatprep.subr.bf16.mxu0 0
        %3120 = vmatpush1.bf16.msra.mxu0 %v3072
        %3121 = vmatprep.mubr.bf16.mxu0 %v2990
        %3122 = vmatmul.mubr.bf16.gmra.mrb[0].mxu0 %v2983
        %v3123 = vpop.f32.mrb[0].mxu0
        %v3124 = vadd.f32 0.0, %v3123
        %v3125 = vpop.f32.mrb[0].mxu0
        %v3126 = vpop.f32.mrb[0].mxu0
        %v3127 = vpop.f32.mrb[0].mxu0
        %3128 = vdwg.mxu0
        %v3129 = vadd.f32 %v2885, %v3124
        %s3130 = scalar_lea.vmem %s0, 8
        %v3131 = vld [vmem:[%s3130] sm:$0x5]
        %v3132 = vld [vmem:[%s3130 + $0x4] sm:$0x5]
        %v3133 = vld [vmem:[%s3130 + $0x10] sm:$0x5]
        %v3134 = vld [vmem:[%s3130 + $0x14] sm:$0x5]
        %v3140 = vunpack.c.l.s4 1966171168
        %v3141 = vunpack.c.0.s8 %v3140
        %v3142 = vlaneseq
        %v3143 = vshrl.u32 %v3142, 7
        %v3144 = vsub.s32 %v3141, %v3143
        %v3145 = vrot.slane %v3131, %v3144
        %v3147 = vunpack.c.l.s4 1966171168
        %v3148 = vunpack.c.0.s8 %v3147
        %v3149 = vlaneseq
        %v3150 = vshrl.u32 %v3149, 7
        %v3151 = vsub.s32 %v3148, %v3150
        %v3152 = vrot.slane %v3132, %v3151
        %v3154 = vunpack.c.l.s4 1966171168
        %v3155 = vunpack.c.0.s8 %v3154
        %v3156 = vlaneseq
        %v3157 = vshrl.u32 %v3156, 7
        %v3158 = vsub.s32 %v3155, %v3157
        %v3159 = vrot.slane %v3133, %v3158
        %v3161 = vunpack.c.l.s4 1966171168
        %v3162 = vunpack.c.0.s8 %v3161
        %v3163 = vlaneseq
        %v3164 = vshrl.u32 %v3163, 7
        %v3165 = vsub.s32 %v3162, %v3164
        %v3166 = vrot.slane %v3134, %v3165
        %s3167 = scalar_lea.vmem %s1535, 768 [#allocation2]
        %v3168 = vld [vmem:[%s3167] sm:$0xf]
        %v3169 = vld [vmem:[%s3167 + $0x4] sm:$0xf]
        %v3170 = vld [vmem:[%s3167 + $0x8] sm:$0xf]
        %v3171 = vld [vmem:[%s3167 + $0xc] sm:$0xf]
        %v3172 = vld [vmem:[%s3167 + $0x10] sm:$0xf]
        %v3173 = vld [vmem:[%s3167 + $0x14] sm:$0xf]
        %v3174 = vld [vmem:[%s3167 + $0x18] sm:$0xf]
        %v3175 = vld [vmem:[%s3167 + $0x1c] sm:$0xf]
        %v3176 = vld [vmem:[%s3167 + $0x20] sm:$0xf]
        %v3177 = vld [vmem:[%s3167 + $0x24] sm:$0xf]
        %v3178 = vld [vmem:[%s3167 + $0x28] sm:$0xf]
        %v3179 = vld [vmem:[%s3167 + $0x2c] sm:$0xf]
        %v3180 = vld [vmem:[%s3167 + $0x30] sm:$0xf]
        %v3181 = vld [vmem:[%s3167 + $0x34] sm:$0xf]
        %v3182 = vld [vmem:[%s3167 + $0x38] sm:$0xf]
        %v3183 = vld [vmem:[%s3167 + $0x3c] sm:$0xf]
        %v3184 = vld [vmem:[%s3167 + $0x40] sm:$0xf]
        %v3185 = vld [vmem:[%s3167 + $0x44] sm:$0xf]
        %v3186 = vld [vmem:[%s3167 + $0x48] sm:$0xf]
        %v3187 = vld [vmem:[%s3167 + $0x4c] sm:$0xf]
        %v3188 = vld [vmem:[%s3167 + $0x50] sm:$0xf]
        %v3189 = vld [vmem:[%s3167 + $0x54] sm:$0xf]
        %v3190 = vld [vmem:[%s3167 + $0x58] sm:$0xf]
        %v3191 = vld [vmem:[%s3167 + $0x5c] sm:$0xf]
        %v3192 = vld [vmem:[%s3167 + $0x60] sm:$0xf]
        %v3193 = vld [vmem:[%s3167 + $0x64] sm:$0xf]
        %v3194 = vld [vmem:[%s3167 + $0x68] sm:$0xf]
        %v3195 = vld [vmem:[%s3167 + $0x6c] sm:$0xf]
        %v3196 = vld [vmem:[%s3167 + $0x70] sm:$0xf]
        %v3197 = vld [vmem:[%s3167 + $0x74] sm:$0xf]
        %v3198 = vld [vmem:[%s3167 + $0x78] sm:$0xf]
        %v3199 = vld [vmem:[%s3167 + $0x7c] sm:$0xf]
        %v3200 = vcombine.low %v3145, %v3152
        %v3201 = vcombine.low %v3159, %v3166
        %v3203 = vunpack.c.l.s4 1966171168
        %v3204 = vunpack.c.0.s8 %v3203
        %v3205 = vlaneseq
        %v3206 = vshrl.u32 %v3205, 7
        %v3207 = vsub.s32 %v3204, %v3206
        %v3208 = vrot.slane %v3200, %v3207
        %v3210 = vunpack.c.l.s4 1966171168
        %v3211 = vunpack.c.0.s8 %v3210
        %v3212 = vlaneseq
        %v3213 = vshrl.u32 %v3212, 7
        %v3214 = vsub.s32 %v3211, %v3213
        %v3215 = vrot.slane %v3201, %v3214
        %v3216 = vcombine.low %v3208, %v3215
        %v3217 = vcombine.high %v3208, %v3215
        %v3219 = vunpack.c.l.s4 1966171168
        %v3220 = vunpack.c.0.s8 %v3219
        %v3221 = vlaneseq
        %v3222 = vshrl.u32 %v3221, 7
        %v3223 = vsub.s32 %v3220, %v3222
        %v3224 = vrot.slane %v3216, %v3223
        %v3226 = vunpack.c.l.s4 1966171168
        %v3227 = vunpack.c.0.s8 %v3226
        %v3228 = vlaneseq
        %v3229 = vshrl.u32 %v3228, 7
        %v3230 = vsub.s32 %v3227, %v3229
        %v3231 = vrot.slane %v3217, %v3230
        %v3266 = vunpack.c.l.b16 %v3168
        %v3267 = vunpack.c.l.b16 %v3169
        %v3268 = vunpack.c.l.b16 %v3170
        %v3269 = vunpack.c.l.b16 %v3171
        %v3270 = vunpack.c.l.b16 %v3172
        %v3271 = vunpack.c.l.b16 %v3173
        %v3272 = vunpack.c.l.b16 %v3174
        %v3273 = vunpack.c.l.b16 %v3175
        %v3274 = vunpack.c.l.b16 %v3176
        %v3275 = vunpack.c.l.b16 %v3177
        %v3276 = vunpack.c.l.b16 %v3178
        %v3277 = vunpack.c.l.b16 %v3179
        %v3278 = vunpack.c.l.b16 %v3180
        %v3279 = vunpack.c.l.b16 %v3181
        %v3280 = vunpack.c.l.b16 %v3182
        %v3281 = vunpack.c.l.b16 %v3183
        %v3282 = vunpack.c.l.b16 %v3184
        %v3283 = vunpack.c.l.b16 %v3185
        %v3284 = vunpack.c.l.b16 %v3186
        %v3285 = vunpack.c.l.b16 %v3187
        %v3286 = vunpack.c.l.b16 %v3188
        %v3287 = vunpack.c.l.b16 %v3189
        %v3288 = vunpack.c.l.b16 %v3190
        %v3289 = vunpack.c.l.b16 %v3191
        %v3290 = vunpack.c.l.b16 %v3192
        %v3291 = vunpack.c.l.b16 %v3193
        %v3292 = vunpack.c.l.b16 %v3194
        %v3293 = vunpack.c.l.b16 %v3195
        %v3294 = vunpack.c.l.b16 %v3196
        %v3295 = vunpack.c.l.b16 %v3197
        %v3296 = vunpack.c.l.b16 %v3198
        %v3297 = vunpack.c.l.b16 %v3199
        %v3298 = vpack.c.b16 %v3267, %v3266
        %v3299 = vpack.c.b16 %v3269, %v3268
        %v3300 = vpack.c.b16 %v3271, %v3270
        %v3301 = vpack.c.b16 %v3273, %v3272
        %v3302 = vpack.c.b16 %v3275, %v3274
        %v3303 = vpack.c.b16 %v3277, %v3276
        %v3304 = vpack.c.b16 %v3279, %v3278
        %v3305 = vpack.c.b16 %v3281, %v3280
        %v3306 = vpack.c.b16 %v3283, %v3282
        %v3307 = vpack.c.b16 %v3285, %v3284
        %v3308 = vpack.c.b16 %v3287, %v3286
        %v3309 = vpack.c.b16 %v3289, %v3288
        %v3310 = vpack.c.b16 %v3291, %v3290
        %v3311 = vpack.c.b16 %v3293, %v3292
        %v3312 = vpack.c.b16 %v3295, %v3294
        %v3313 = vpack.c.b16 %v3297, %v3296
        %3330 = vmatprep.subr.bf16.mxu0 0
        %3331 = vmatpush1.bf16.msra.mxu0 %v3298
        %3332 = vmatprep.subr.bf16.mxu0 0
        %3333 = vmatpush1.bf16.msra.mxu0 %v3299
        %3334 = vmatprep.subr.bf16.mxu0 0
        %3335 = vmatpush1.bf16.msra.mxu0 %v3300
        %3336 = vmatprep.subr.bf16.mxu0 0
        %3337 = vmatpush1.bf16.msra.mxu0 %v3301
        %3338 = vmatprep.subr.bf16.mxu0 0
        %3339 = vmatpush1.bf16.msra.mxu0 %v3302
        %3340 = vmatprep.subr.bf16.mxu0 0
        %3341 = vmatpush1.bf16.msra.mxu0 %v3303
        %3342 = vmatprep.subr.bf16.mxu0 0
        %3343 = vmatpush1.bf16.msra.mxu0 %v3304
        %3344 = vmatprep.subr.bf16.mxu0 0
        %3345 = vmatpush1.bf16.msra.mxu0 %v3305
        %3346 = vmatprep.subr.bf16.mxu0 0
        %3347 = vmatpush1.bf16.msra.mxu0 %v3306
        %3348 = vmatprep.subr.bf16.mxu0 0
        %3349 = vmatpush1.bf16.msra.mxu0 %v3307
        %3350 = vmatprep.subr.bf16.mxu0 0
        %3351 = vmatpush1.bf16.msra.mxu0 %v3308
        %3352 = vmatprep.subr.bf16.mxu0 0
        %3353 = vmatpush1.bf16.msra.mxu0 %v3309
        %3354 = vmatprep.subr.bf16.mxu0 0
        %3355 = vmatpush1.bf16.msra.mxu0 %v3310
        %3356 = vmatprep.subr.bf16.mxu0 0
        %3357 = vmatpush1.bf16.msra.mxu0 %v3311
        %3358 = vmatprep.subr.bf16.mxu0 0
        %3359 = vmatpush1.bf16.msra.mxu0 %v3312
        %3360 = vmatprep.subr.bf16.mxu0 0
        %3361 = vmatpush1.bf16.msra.mxu0 %v3313
        %3362 = vmatprep.mubr.bf16.mxu0 %v3231
        %3363 = vmatmul.mubr.bf16.gmra.mrb[0].mxu0 %v3224
        %v3364 = vpop.f32.mrb[0].mxu0
        %v3365 = vadd.f32 0.0, %v3364
        %v3366 = vpop.f32.mrb[0].mxu0
        %v3367 = vpop.f32.mrb[0].mxu0
        %v3368 = vpop.f32.mrb[0].mxu0
        %3369 = vdwg.mxu0
        %v3370 = vadd.f32 %v3129, %v3365
        %v3371 = vld [vmem:[%s3130] sm:$0xf]
        %v3372 = vld [vmem:[%s3130 + $0x4] sm:$0xf]
        %v3373 = vld [vmem:[%s3130 + $0x10] sm:$0xf]
        %v3374 = vld [vmem:[%s3130 + $0x14] sm:$0xf]
        %v3380 = vunpack.c.l.s4 1966171168
        %v3381 = vunpack.c.0.s8 %v3380
        %v3382 = vlaneseq
        %v3383 = vshrl.u32 %v3382, 7
        %v3384 = vsub.s32 %v3381, %v3383
        %v3385 = vrot.slane %v3371, %v3384
        %v3386 = vcombine.high %v3385, %v3385
        %v3388 = vunpack.c.l.s4 1966171168
        %v3389 = vunpack.c.0.s8 %v3388
        %v3390 = vlaneseq
        %v3391 = vshrl.u32 %v3390, 7
        %v3392 = vsub.s32 %v3389, %v3391
        %v3393 = vrot.slane %v3372, %v3392
        %v3394 = vcombine.high %v3393, %v3393
        %v3396 = vunpack.c.l.s4 1966171168
        %v3397 = vunpack.c.0.s8 %v3396
        %v3398 = vlaneseq
        %v3399 = vshrl.u32 %v3398, 7
        %v3400 = vsub.s32 %v3397, %v3399
        %v3401 = vrot.slane %v3373, %v3400
        %v3402 = vcombine.high %v3401, %v3401
        %v3404 = vunpack.c.l.s4 1966171168
        %v3405 = vunpack.c.0.s8 %v3404
        %v3406 = vlaneseq
        %v3407 = vshrl.u32 %v3406, 7
        %v3408 = vsub.s32 %v3405, %v3407
        %v3409 = vrot.slane %v3374, %v3408
        %v3410 = vcombine.high %v3409, %v3409
        %v3412 = vshrl.u32 %v3385, 16
        %v3414 = vrot.slane %v3412, 7
        %v3415 = vrot.slane %v3414, 1
        %v3417 = vshll.u32 %v3386, 16
        %v3419 = vsel %vm1711, %v3415, %v3417
        %v3421 = vshrl.u32 %v3393, 16
        %v3423 = vrot.slane %v3421, 7
        %v3424 = vrot.slane %v3423, 1
        %v3426 = vshll.u32 %v3394, 16
        %v3428 = vsel %vm1711, %v3424, %v3426
        %v3430 = vshrl.u32 %v3401, 16
        %v3432 = vrot.slane %v3430, 7
        %v3433 = vrot.slane %v3432, 1
        %v3435 = vshll.u32 %v3402, 16
        %v3437 = vsel %vm1711, %v3433, %v3435
        %v3439 = vshrl.u32 %v3409, 16
        %v3441 = vrot.slane %v3439, 7
        %v3442 = vrot.slane %v3441, 1
        %v3444 = vshll.u32 %v3410, 16
        %v3446 = vsel %vm1711, %v3442, %v3444
        %s3447 = scalar_lea.vmem %s1535, 896 [#allocation2]
        %v3448 = vld [vmem:[%s3447] sm:$0xf]
        %v3449 = vld [vmem:[%s3447 + $0x4] sm:$0xf]
        %v3450 = vld [vmem:[%s3447 + $0x8] sm:$0xf]
        %v3451 = vld [vmem:[%s3447 + $0xc] sm:$0xf]
        %v3452 = vld [vmem:[%s3447 + $0x10] sm:$0xf]
        %v3453 = vld [vmem:[%s3447 + $0x14] sm:$0xf]
        %v3454 = vld [vmem:[%s3447 + $0x18] sm:$0xf]
        %v3455 = vld [vmem:[%s3447 + $0x1c] sm:$0xf]
        %v3456 = vld [vmem:[%s3447 + $0x20] sm:$0xf]
        %v3457 = vld [vmem:[%s3447 + $0x24] sm:$0xf]
        %v3458 = vld [vmem:[%s3447 + $0x28] sm:$0xf]
        %v3459 = vld [vmem:[%s3447 + $0x2c] sm:$0xf]
        %v3460 = vld [vmem:[%s3447 + $0x30] sm:$0xf]
        %v3461 = vld [vmem:[%s3447 + $0x34] sm:$0xf]
        %v3462 = vld [vmem:[%s3447 + $0x38] sm:$0xf]
        %v3463 = vld [vmem:[%s3447 + $0x3c] sm:$0xf]
        %v3464 = vld [vmem:[%s3447 + $0x40] sm:$0xf]
        %v3465 = vld [vmem:[%s3447 + $0x44] sm:$0xf]
        %v3466 = vld [vmem:[%s3447 + $0x48] sm:$0xf]
        %v3467 = vld [vmem:[%s3447 + $0x4c] sm:$0xf]
        %v3468 = vld [vmem:[%s3447 + $0x50] sm:$0xf]
        %v3469 = vld [vmem:[%s3447 + $0x54] sm:$0xf]
        %v3470 = vld [vmem:[%s3447 + $0x58] sm:$0xf]
        %v3471 = vld [vmem:[%s3447 + $0x5c] sm:$0xf]
        %v3472 = vld [vmem:[%s3447 + $0x60] sm:$0xf]
        %v3473 = vld [vmem:[%s3447 + $0x64] sm:$0xf]
        %v3474 = vld [vmem:[%s3447 + $0x68] sm:$0xf]
        %v3475 = vld [vmem:[%s3447 + $0x6c] sm:$0xf]
        %v3476 = vld [vmem:[%s3447 + $0x70] sm:$0xf]
        %v3477 = vld [vmem:[%s3447 + $0x74] sm:$0xf]
        %v3478 = vld [vmem:[%s3447 + $0x78] sm:$0xf]
        %v3479 = vld [vmem:[%s3447 + $0x7c] sm:$0xf]
        %v3480 = vcombine.low %v3419, %v3428
        %v3481 = vcombine.low %v3437, %v3446
        %v3483 = vunpack.c.l.s4 1966171168
        %v3484 = vunpack.c.0.s8 %v3483
        %v3485 = vlaneseq
        %v3486 = vshrl.u32 %v3485, 7
        %v3487 = vsub.s32 %v3484, %v3486
        %v3488 = vrot.slane %v3480, %v3487
        %v3490 = vunpack.c.l.s4 1966171168
        %v3491 = vunpack.c.0.s8 %v3490
        %v3492 = vlaneseq
        %v3493 = vshrl.u32 %v3492, 7
        %v3494 = vsub.s32 %v3491, %v3493
        %v3495 = vrot.slane %v3481, %v3494
        %v3496 = vcombine.low %v3488, %v3495
        %v3497 = vcombine.high %v3488, %v3495
        %v3499 = vunpack.c.l.s4 1966171168
        %v3500 = vunpack.c.0.s8 %v3499
        %v3501 = vlaneseq
        %v3502 = vshrl.u32 %v3501, 7
        %v3503 = vsub.s32 %v3500, %v3502
        %v3504 = vrot.slane %v3496, %v3503
        %v3506 = vunpack.c.l.s4 1966171168
        %v3507 = vunpack.c.0.s8 %v3506
        %v3508 = vlaneseq
        %v3509 = vshrl.u32 %v3508, 7
        %v3510 = vsub.s32 %v3507, %v3509
        %v3511 = vrot.slane %v3497, %v3510
        %v3546 = vunpack.c.l.b16 %v3448
        %v3547 = vunpack.c.l.b16 %v3449
        %v3548 = vunpack.c.l.b16 %v3450
        %v3549 = vunpack.c.l.b16 %v3451
        %v3550 = vunpack.c.l.b16 %v3452
        %v3551 = vunpack.c.l.b16 %v3453
        %v3552 = vunpack.c.l.b16 %v3454
        %v3553 = vunpack.c.l.b16 %v3455
        %v3554 = vunpack.c.l.b16 %v3456
        %v3555 = vunpack.c.l.b16 %v3457
        %v3556 = vunpack.c.l.b16 %v3458
        %v3557 = vunpack.c.l.b16 %v3459
        %v3558 = vunpack.c.l.b16 %v3460
        %v3559 = vunpack.c.l.b16 %v3461
        %v3560 = vunpack.c.l.b16 %v3462
        %v3561 = vunpack.c.l.b16 %v3463
        %v3562 = vunpack.c.l.b16 %v3464
        %v3563 = vunpack.c.l.b16 %v3465
        %v3564 = vunpack.c.l.b16 %v3466
        %v3565 = vunpack.c.l.b16 %v3467
        %v3566 = vunpack.c.l.b16 %v3468
        %v3567 = vunpack.c.l.b16 %v3469
        %v3568 = vunpack.c.l.b16 %v3470
        %v3569 = vunpack.c.l.b16 %v3471
        %v3570 = vunpack.c.l.b16 %v3472
        %v3571 = vunpack.c.l.b16 %v3473
        %v3572 = vunpack.c.l.b16 %v3474
        %v3573 = vunpack.c.l.b16 %v3475
        %v3574 = vunpack.c.l.b16 %v3476
        %v3575 = vunpack.c.l.b16 %v3477
        %v3576 = vunpack.c.l.b16 %v3478
        %v3577 = vunpack.c.l.b16 %v3479
        %v3578 = vpack.c.b16 %v3547, %v3546
        %v3579 = vpack.c.b16 %v3549, %v3548
        %v3580 = vpack.c.b16 %v3551, %v3550
        %v3581 = vpack.c.b16 %v3553, %v3552
        %v3582 = vpack.c.b16 %v3555, %v3554
        %v3583 = vpack.c.b16 %v3557, %v3556
        %v3584 = vpack.c.b16 %v3559, %v3558
        %v3585 = vpack.c.b16 %v3561, %v3560
        %v3586 = vpack.c.b16 %v3563, %v3562
        %v3587 = vpack.c.b16 %v3565, %v3564
        %v3588 = vpack.c.b16 %v3567, %v3566
        %v3589 = vpack.c.b16 %v3569, %v3568
        %v3590 = vpack.c.b16 %v3571, %v3570
        %v3591 = vpack.c.b16 %v3573, %v3572
        %v3592 = vpack.c.b16 %v3575, %v3574
        %v3593 = vpack.c.b16 %v3577, %v3576
        %3610 = vmatprep.subr.bf16.mxu0 0
        %3611 = vmatpush1.bf16.msra.mxu0 %v3578
        %3612 = vmatprep.subr.bf16.mxu0 0
        %3613 = vmatpush1.bf16.msra.mxu0 %v3579
        %3614 = vmatprep.subr.bf16.mxu0 0
        %3615 = vmatpush1.bf16.msra.mxu0 %v3580
        %3616 = vmatprep.subr.bf16.mxu0 0
        %3617 = vmatpush1.bf16.msra.mxu0 %v3581
        %3618 = vmatprep.subr.bf16.mxu0 0
        %3619 = vmatpush1.bf16.msra.mxu0 %v3582
        %3620 = vmatprep.subr.bf16.mxu0 0
        %3621 = vmatpush1.bf16.msra.mxu0 %v3583
        %3622 = vmatprep.subr.bf16.mxu0 0
        %3623 = vmatpush1.bf16.msra.mxu0 %v3584
        %3624 = vmatprep.subr.bf16.mxu0 0
        %3625 = vmatpush1.bf16.msra.mxu0 %v3585
        %3626 = vmatprep.subr.bf16.mxu0 0
        %3627 = vmatpush1.bf16.msra.mxu0 %v3586
        %3628 = vmatprep.subr.bf16.mxu0 0
        %3629 = vmatpush1.bf16.msra.mxu0 %v3587
        %3630 = vmatprep.subr.bf16.mxu0 0
        %3631 = vmatpush1.bf16.msra.mxu0 %v3588
        %3632 = vmatprep.subr.bf16.mxu0 0
        %3633 = vmatpush1.bf16.msra.mxu0 %v3589
        %3634 = vmatprep.subr.bf16.mxu0 0
        %3635 = vmatpush1.bf16.msra.mxu0 %v3590
        %3636 = vmatprep.subr.bf16.mxu0 0
        %3637 = vmatpush1.bf16.msra.mxu0 %v3591
        %3638 = vmatprep.subr.bf16.mxu0 0
        %3639 = vmatpush1.bf16.msra.mxu0 %v3592
        %3640 = vmatprep.subr.bf16.mxu0 0
        %3641 = vmatpush1.bf16.msra.mxu0 %v3593
        %3642 = vmatprep.mubr.bf16.mxu0 %v3511
        %3643 = vmatmul.mubr.bf16.gmra.mrb[0].mxu0 %v3504
        %v3644 = vpop.f32.mrb[0].mxu0
        %v3645 = vadd.f32 0.0, %v3644
        %v3646 = vpop.f32.mrb[0].mxu0
        %v3647 = vpop.f32.mrb[0].mxu0
        %v3648 = vpop.f32.mrb[0].mxu0
        %3649 = vdwg.mxu0
        %v3650 = vadd.f32 %v3370, %v3645
        %v3651 = vld [vmem:[%s3130] sm:$0xa]
        %v3652 = vld [vmem:[%s3130 + $0x4] sm:$0xa]
        %v3653 = vld [vmem:[%s3130 + $0x10] sm:$0xa]
        %v3654 = vld [vmem:[%s3130 + $0x14] sm:$0xa]
        %v3660 = vunpack.c.l.s4 1966171168
        %v3661 = vunpack.c.0.s8 %v3660
        %v3662 = vlaneseq
        %v3663 = vshrl.u32 %v3662, 7
        %v3664 = vsub.s32 %v3661, %v3663
        %v3665 = vrot.slane %v3651, %v3664
        %v3666 = vcombine.high %v3665, %v3665
        %v3668 = vunpack.c.l.s4 1966171168
        %v3669 = vunpack.c.0.s8 %v3668
        %v3670 = vlaneseq
        %v3671 = vshrl.u32 %v3670, 7
        %v3672 = vsub.s32 %v3669, %v3671
        %v3673 = vrot.slane %v3652, %v3672
        %v3674 = vcombine.high %v3673, %v3673
        %v3676 = vunpack.c.l.s4 1966171168
        %v3677 = vunpack.c.0.s8 %v3676
        %v3678 = vlaneseq
        %v3679 = vshrl.u32 %v3678, 7
        %v3680 = vsub.s32 %v3677, %v3679
        %v3681 = vrot.slane %v3653, %v3680
        %v3682 = vcombine.high %v3681, %v3681
        %v3684 = vunpack.c.l.s4 1966171168
        %v3685 = vunpack.c.0.s8 %v3684
        %v3686 = vlaneseq
        %v3687 = vshrl.u32 %v3686, 7
        %v3688 = vsub.s32 %v3685, %v3687
        %v3689 = vrot.slane %v3654, %v3688
        %v3690 = vcombine.high %v3689, %v3689
        %s3691 = scalar_lea.vmem %s1535, 1024 [#allocation2]
        %v3692 = vld [vmem:[%s3691] sm:$0xf]
        %v3693 = vld [vmem:[%s3691 + $0x4] sm:$0xf]
        %v3694 = vld [vmem:[%s3691 + $0x8] sm:$0xf]
        %v3695 = vld [vmem:[%s3691 + $0xc] sm:$0xf]
        %v3696 = vld [vmem:[%s3691 + $0x10] sm:$0xf]
        %v3697 = vld [vmem:[%s3691 + $0x14] sm:$0xf]
        %v3698 = vld [vmem:[%s3691 + $0x18] sm:$0xf]
        %v3699 = vld [vmem:[%s3691 + $0x1c] sm:$0xf]
        %v3700 = vld [vmem:[%s3691 + $0x20] sm:$0xf]
        %v3701 = vld [vmem:[%s3691 + $0x24] sm:$0xf]
        %v3702 = vld [vmem:[%s3691 + $0x28] sm:$0xf]
        %v3703 = vld [vmem:[%s3691 + $0x2c] sm:$0xf]
        %v3704 = vld [vmem:[%s3691 + $0x30] sm:$0xf]
        %v3705 = vld [vmem:[%s3691 + $0x34] sm:$0xf]
        %v3706 = vld [vmem:[%s3691 + $0x38] sm:$0xf]
        %v3707 = vld [vmem:[%s3691 + $0x3c] sm:$0xf]
        %v3708 = vld [vmem:[%s3691 + $0x40] sm:$0xf]
        %v3709 = vld [vmem:[%s3691 + $0x44] sm:$0xf]
        %v3710 = vld [vmem:[%s3691 + $0x48] sm:$0xf]
        %v3711 = vld [vmem:[%s3691 + $0x4c] sm:$0xf]
        %v3712 = vld [vmem:[%s3691 + $0x50] sm:$0xf]
        %v3713 = vld [vmem:[%s3691 + $0x54] sm:$0xf]
        %v3714 = vld [vmem:[%s3691 + $0x58] sm:$0xf]
        %v3715 = vld [vmem:[%s3691 + $0x5c] sm:$0xf]
        %v3716 = vld [vmem:[%s3691 + $0x60] sm:$0xf]
        %v3717 = vld [vmem:[%s3691 + $0x64] sm:$0xf]
        %v3718 = vld [vmem:[%s3691 + $0x68] sm:$0xf]
        %v3719 = vld [vmem:[%s3691 + $0x6c] sm:$0xf]
        %v3720 = vld [vmem:[%s3691 + $0x70] sm:$0xf]
        %v3721 = vld [vmem:[%s3691 + $0x74] sm:$0xf]
        %v3722 = vld [vmem:[%s3691 + $0x78] sm:$0xf]
        %v3723 = vld [vmem:[%s3691 + $0x7c] sm:$0xf]
        %v3724 = vcombine.low %v3666, %v3674
        %v3725 = vcombine.low %v3682, %v3690
        %v3727 = vunpack.c.l.s4 1966171168
        %v3728 = vunpack.c.0.s8 %v3727
        %v3729 = vlaneseq
        %v3730 = vshrl.u32 %v3729, 7
        %v3731 = vsub.s32 %v3728, %v3730
        %v3732 = vrot.slane %v3724, %v3731
        %v3734 = vunpack.c.l.s4 1966171168
        %v3735 = vunpack.c.0.s8 %v3734
        %v3736 = vlaneseq
        %v3737 = vshrl.u32 %v3736, 7
        %v3738 = vsub.s32 %v3735, %v3737
        %v3739 = vrot.slane %v3725, %v3738
        %v3740 = vcombine.low %v3732, %v3739
        %v3741 = vcombine.high %v3732, %v3739
        %v3743 = vunpack.c.l.s4 1966171168
        %v3744 = vunpack.c.0.s8 %v3743
        %v3745 = vlaneseq
        %v3746 = vshrl.u32 %v3745, 7
        %v3747 = vsub.s32 %v3744, %v3746
        %v3748 = vrot.slane %v3740, %v3747
        %v3750 = vunpack.c.l.s4 1966171168
        %v3751 = vunpack.c.0.s8 %v3750
        %v3752 = vlaneseq
        %v3753 = vshrl.u32 %v3752, 7
        %v3754 = vsub.s32 %v3751, %v3753
        %v3755 = vrot.slane %v3741, %v3754
        %v3790 = vunpack.c.l.b16 %v3692
        %v3791 = vunpack.c.l.b16 %v3693
        %v3792 = vunpack.c.l.b16 %v3694
        %v3793 = vunpack.c.l.b16 %v3695
        %v3794 = vunpack.c.l.b16 %v3696
        %v3795 = vunpack.c.l.b16 %v3697
        %v3796 = vunpack.c.l.b16 %v3698
        %v3797 = vunpack.c.l.b16 %v3699
        %v3798 = vunpack.c.l.b16 %v3700
        %v3799 = vunpack.c.l.b16 %v3701
        %v3800 = vunpack.c.l.b16 %v3702
        %v3801 = vunpack.c.l.b16 %v3703
        %v3802 = vunpack.c.l.b16 %v3704
        %v3803 = vunpack.c.l.b16 %v3705
        %v3804 = vunpack.c.l.b16 %v3706
        %v3805 = vunpack.c.l.b16 %v3707
        %v3806 = vunpack.c.l.b16 %v3708
        %v3807 = vunpack.c.l.b16 %v3709
        %v3808 = vunpack.c.l.b16 %v3710
        %v3809 = vunpack.c.l.b16 %v3711
        %v3810 = vunpack.c.l.b16 %v3712
        %v3811 = vunpack.c.l.b16 %v3713
        %v3812 = vunpack.c.l.b16 %v3714
        %v3813 = vunpack.c.l.b16 %v3715
        %v3814 = vunpack.c.l.b16 %v3716
        %v3815 = vunpack.c.l.b16 %v3717
        %v3816 = vunpack.c.l.b16 %v3718
        %v3817 = vunpack.c.l.b16 %v3719
        %v3818 = vunpack.c.l.b16 %v3720
        %v3819 = vunpack.c.l.b16 %v3721
        %v3820 = vunpack.c.l.b16 %v3722
        %v3821 = vunpack.c.l.b16 %v3723
        %v3822 = vpack.c.b16 %v3791, %v3790
        %v3823 = vpack.c.b16 %v3793, %v3792
        %v3824 = vpack.c.b16 %v3795, %v3794
        %v3825 = vpack.c.b16 %v3797, %v3796
        %v3826 = vpack.c.b16 %v3799, %v3798
        %v3827 = vpack.c.b16 %v3801, %v3800
        %v3828 = vpack.c.b16 %v3803, %v3802
        %v3829 = vpack.c.b16 %v3805, %v3804
        %v3830 = vpack.c.b16 %v3807, %v3806
        %v3831 = vpack.c.b16 %v3809, %v3808
        %v3832 = vpack.c.b16 %v3811, %v3810
        %v3833 = vpack.c.b16 %v3813, %v3812
        %v3834 = vpack.c.b16 %v3815, %v3814
        %v3835 = vpack.c.b16 %v3817, %v3816
        %v3836 = vpack.c.b16 %v3819, %v3818
        %v3837 = vpack.c.b16 %v3821, %v3820
        %3854 = vmatprep.subr.bf16.mxu0 0
        %3855 = vmatpush1.bf16.msra.mxu0 %v3822
        %3856 = vmatprep.subr.bf16.mxu0 0
        %3857 = vmatpush1.bf16.msra.mxu0 %v3823
        %3858 = vmatprep.subr.bf16.mxu0 0
        %3859 = vmatpush1.bf16.msra.mxu0 %v3824
        %3860 = vmatprep.subr.bf16.mxu0 0
        %3861 = vmatpush1.bf16.msra.mxu0 %v3825
        %3862 = vmatprep.subr.bf16.mxu0 0
        %3863 = vmatpush1.bf16.msra.mxu0 %v3826
        %3864 = vmatprep.subr.bf16.mxu0 0
        %3865 = vmatpush1.bf16.msra.mxu0 %v3827
        %3866 = vmatprep.subr.bf16.mxu0 0
        %3867 = vmatpush1.bf16.msra.mxu0 %v3828
        %3868 = vmatprep.subr.bf16.mxu0 0
        %3869 = vmatpush1.bf16.msra.mxu0 %v3829
        %3870 = vmatprep.subr.bf16.mxu0 0
        %3871 = vmatpush1.bf16.msra.mxu0 %v3830
        %3872 = vmatprep.subr.bf16.mxu0 0
        %3873 = vmatpush1.bf16.msra.mxu0 %v3831
        %3874 = vmatprep.subr.bf16.mxu0 0
        %3875 = vmatpush1.bf16.msra.mxu0 %v3832
        %3876 = vmatprep.subr.bf16.mxu0 0
        %3877 = vmatpush1.bf16.msra.mxu0 %v3833
        %3878 = vmatprep.subr.bf16.mxu0 0
        %3879 = vmatpush1.bf16.msra.mxu0 %v3834
        %3880 = vmatprep.subr.bf16.mxu0 0
        %3881 = vmatpush1.bf16.msra.mxu0 %v3835
        %3882 = vmatprep.subr.bf16.mxu0 0
        %3883 = vmatpush1.bf16.msra.mxu0 %v3836
        %3884 = vmatprep.subr.bf16.mxu0 0
        %3885 = vmatpush1.bf16.msra.mxu0 %v3837
        %3886 = vmatprep.mubr.bf16.mxu0 %v3755
        %3887 = vmatmul.mubr.bf16.gmra.mrb[0].mxu0 %v3748
        %v3888 = vpop.f32.mrb[0].mxu0
        %v3889 = vadd.f32 0.0, %v3888
        %v3890 = vpop.f32.mrb[0].mxu0
        %v3891 = vpop.f32.mrb[0].mxu0
        %v3892 = vpop.f32.mrb[0].mxu0
        %3893 = vdwg.mxu0
        %v3894 = vadd.f32 %v3650, %v3889
        %v3895 = vld [vmem:[%s1580] sm:$0x1]
        %v3896 = vld [vmem:[%s1583] sm:$0x1]
        %v3897 = vrot.slane %v3894, 4
        %v3898 = vadd.f32 %v3894, %v3897
        %v3899 = vrot.slane %v3898, 2
        %v3900 = vadd.f32 %v3898, %v3899
        %v3901 = vrot.slane %v3900, 1
        %v3902 = vadd.f32 %v3900, %v3901
        %v3903 = vrcp.pop 8.0
        %v3904 = vmul.f32 %v3902, %v3903
        %v3905 = vsub.f32 %v3894, %v3904
        %v3906 = vmul.f32 %v3905, %v3905
        %v3907 = vrot.slane %v3906, 4
        %v3908 = vadd.f32 %v3906, %v3907
        %v3909 = vrot.slane %v3908, 2
        %v3910 = vadd.f32 %v3908, %v3909
        %v3911 = vrot.slane %v3910, 1
        %v3912 = vadd.f32 %v3910, %v3911
        %v3913 = vmul.f32 %v3912, %v3903
        %v3914 = vadd.f32 %v3913, 1e-05
        %v3915 = vrsqrt.pop %v3914
        %v3916 = vmul.f32 %v3905, %v3915
        %v3918 = vlaneseq
        %v3919 = vshrl.u32 %v3918, 7
        %v3920 = vsub.s32 0, %v3919
        %v3921 = vrot.slane %v3895, %v3920
        %v3923 = vmul.f32 %v3916, %v3921
        %v3925 = vlaneseq
        %v3926 = vshrl.u32 %v3925, 7
        %v3927 = vsub.s32 0, %v3926
        %v3928 = vrot.slane %v3896, %v3927
        %v3930 = vadd.f32 %v3923, %v3928
        %v3931 = vld [vmem:[%s4] sm:$0xf]
        %v3932 = vld [vmem:[%s1542] sm:$0xf]
        %v3933 = vld [vmem:[%s1542 + $0x4] sm:$0xf]
        %v3934 = vld [vmem:[%s1542 + $0x8] sm:$0xf]
        %v3935 = vld [vmem:[%s1542 + $0xc] sm:$0xf]
        %v3936 = vld [vmem:[%s1542 + $0x10] sm:$0xf]
        %v3937 = vld [vmem:[%s1542 + $0x14] sm:$0xf]
        %v3938 = vld [vmem:[%s1542 + $0x18] sm:$0xf]
        %v3939 = vld [vmem:[%s1542 + $0x1c] sm:$0xf]
        %v3940 = vld [vmem:[%s1542 + $0x20] sm:$0xf]
        %v3941 = vld [vmem:[%s1542 + $0x24] sm:$0xf]
        %v3942 = vld [vmem:[%s1542 + $0x28] sm:$0xf]
        %v3943 = vld [vmem:[%s1542 + $0x2c] sm:$0xf]
        %v3944 = vld [vmem:[%s1542 + $0x30] sm:$0xf]
        %v3945 = vld [vmem:[%s1542 + $0x34] sm:$0xf]
        %v3946 = vld [vmem:[%s1542 + $0x38] sm:$0xf]
        %v3947 = vld [vmem:[%s1542 + $0x3c] sm:$0xf]
        %v3964 = vunpack.c.l.b16 %v3932
        %v3965 = vunpack.c.l.b16 %v3933
        %v3966 = vunpack.c.l.b16 %v3934
        %v3967 = vunpack.c.l.b16 %v3935
        %v3968 = vunpack.c.l.b16 %v3936
        %v3969 = vunpack.c.l.b16 %v3937
        %v3970 = vunpack.c.l.b16 %v3938
        %v3971 = vunpack.c.l.b16 %v3939
        %v3972 = vunpack.c.l.b16 %v3940
        %v3973 = vunpack.c.l.b16 %v3941
        %v3974 = vunpack.c.l.b16 %v3942
        %v3975 = vunpack.c.l.b16 %v3943
        %v3976 = vunpack.c.l.b16 %v3944
        %v3977 = vunpack.c.l.b16 %v3945
        %v3978 = vunpack.c.l.b16 %v3946
        %v3979 = vunpack.c.l.b16 %v3947
        %v3980 = vpack.c.b16 %v3965, %v3964
        %v3981 = vpack.c.b16 %v3967, %v3966
        %v3982 = vpack.c.b16 %v3969, %v3968
        %v3983 = vpack.c.b16 %v3971, %v3970
        %v3984 = vpack.c.b16 %v3973, %v3972
        %v3985 = vpack.c.b16 %v3975, %v3974
        %v3986 = vpack.c.b16 %v3977, %v3976
        %v3987 = vpack.c.b16 %v3979, %v3978
        %3996 = vmatprep.subr.bf16.mxu0 0
        %3997 = vmatpush1.bf16.msra.mxu0 %v3980
        %3998 = vmatprep.subr.bf16.mxu0 0
        %3999 = vmatpush1.bf16.msra.mxu0 %v3981
        %4000 = vmatprep.subr.bf16.mxu0 0
        %4001 = vmatpush1.bf16.msra.mxu0 %v3982
        %4002 = vmatprep.subr.bf16.mxu0 0
        %4003 = vmatpush1.bf16.msra.mxu0 %v3983
        %4004 = vmatprep.subr.bf16.mxu0 0
        %4005 = vmatpush1.bf16.msra.mxu0 %v3984
        %4006 = vmatprep.subr.bf16.mxu0 0
        %4007 = vmatpush1.bf16.msra.mxu0 %v3985
        %4008 = vmatprep.subr.bf16.mxu0 0
        %4009 = vmatpush1.bf16.msra.mxu0 %v3986
        %4010 = vmatprep.subr.bf16.mxu0 0
        %4011 = vmatpush1.bf16.msra.mxu0 %v3987
        %4012 = vmatprep.subr.bf16.mxu0 0
        %4013 = vmatpush1.bf16.msra.mxu0 0
        %4014 = vmatprep.subr.bf16.mxu0 0
        %4015 = vmatpush1.bf16.msra.mxu0 0
        %4016 = vmatprep.subr.bf16.mxu0 0
        %4017 = vmatpush1.bf16.msra.mxu0 0
        %4018 = vmatprep.subr.bf16.mxu0 0
        %4019 = vmatpush1.bf16.msra.mxu0 0
        %4020 = vmatprep.subr.bf16.mxu0 0
        %4021 = vmatpush1.bf16.msra.mxu0 0
        %4022 = vmatprep.subr.bf16.mxu0 0
        %4023 = vmatpush1.bf16.msra.mxu0 0
        %4024 = vmatprep.subr.bf16.mxu0 0
        %4025 = vmatpush1.bf16.msra.mxu0 0
        %4026 = vmatprep.subr.bf16.mxu0 0
        %4027 = vmatpush1.bf16.msra.mxu0 0
        %4028 = vmatprep.mubr.bf16.mxu0 0
        %4029 = vmatmul.mubr.bf16.gmra.mrb[0].mxu0 %v3931
        %v4030 = vpop.f32.mrb[0].mxu0
        %v4031 = vadd.f32 0.0, %v4030
        %v4032 = vpop.f32.mrb[0].mxu0
        %v4033 = vpop.f32.mrb[0].mxu0
        %v4034 = vpop.f32.mrb[0].mxu0
        %4035 = vdwg.mxu0
        %v4036 = vadd.f32 %v3930, %v4031
        %vm4037 = vcmp.ge.f32.partialorder %v4036, 0.0
        %v4038 = vmul.f32 %v4036, 0.2
        %v4039 = vsel %vm4037, %v4036, %v4038
        %v4040 = vpack.c.bf16 %v4039, %v4039
        %4041 = vst [vmem:[%s1587] sm:$0xf] %v4040
        %p4042 = scmp.lt.s32.totalorder %s17, 1
        %s4043 = scalar_select %p4042, %s17, 1
        %s4044 = smul.addr %s4043, 4
        %s4045 = scalar_lea.vmem %s6, %s4044
        // Predicated region
        $region127: #{discriminator_v2.9} parent=117 // pred_check
          %p4046 = pneg %p181
        $region128: #{discriminator_v2.9} parent=117 // pred_check_branch
          %4048 = sbr.rel (%p4046) target = $region130
        $region129: #{discriminator_v2.9} parent=117 // pred_region
          _
        $region130: #{discriminator_v2.9} parent=117 // pred_fallthru
          _
      $region118: #{discriminator_v2.9} parent=5 // pred_fallthru
        _
      %p4049 = scmp.le.s32.totalorder 2, %s12
      // Predicated region
      $region131: #{discriminator_v2.9} parent=5 // pred_check
        %p4050 = pneg %p4049
      $region132: #{discriminator_v2.9} parent=5 // pred_check_branch
        %4052 = sbr.rel (%p4050) target = $region134
      $region133: #{discriminator_v2.9} parent=5 // pred_region
        %s4053 = ssub.s32 %s12, 2
        // Predicated region
        $region135: #{discriminator_v2.9} parent=133 // pred_check
          %p4054 = pneg %p187
        $region136: #{discriminator_v2.9} parent=133 // pred_check_branch
          %4056 = sbr.rel (%p4054) target = $region138
        $region137: #{discriminator_v2.9} parent=133 // pred_region
          %p4057 = scmp.lt.s32.totalorder %s18, 1
          %s4058 = scalar_select %p4057, %s18, 1
          %s4059 = smul.addr %s4058, 4
          %s4060 = scalar_lea.vmem %s6, %s4059
        $region138: #{discriminator_v2.9} parent=133 // pred_fallthru
          _
      $region134: #{discriminator_v2.9} parent=5 // pred_fallthru
        _
    $region6: #{discriminator_v2.9} parent=1 // loop_footer
      %s16 = sadd.s32 1, %s12
    $region7: #{discriminator_v2.9} parent=1 // loop_footer_branch
      %11 = sbr.rel target = $region3
    $region8: #{discriminator_v2.9} parent=1 // loop_exit
      _

</llo_original>
